<compile_context>
chip_gen: v5e
topology: v5e:2x2
jax: 0.10.0
libtpu: 0.0.40
codegen_flags: <defaults>
</compile_context>

<pallas_src>
import functools

import jax
import jax.numpy as jnp
from jax.experimental import pallas as pl
from jax.experimental.pallas import tpu as pltpu

_VMEM_LIMIT_BYTES = 48 * 1024 * 1024   # < 64 MiB -> headroom on v7x


def _round_up(x, m):
    return (x + m - 1) // m * m


def _choose_tiling(n, requested):
    """Tile size + zero-padded pillar count.

    Zero-padding (instead of a 'largest divisor' fallback) keeps tiles large
    for awkward N; padded rows are all zeros so they contribute nothing to
    the BN statistics and are sliced off the output.
    """
    tile = max(8, min(_round_up(requested, 8), _round_up(n, 8)))
    n_pad = _round_up(n, tile)
    # Keep >= 2 tiles when possible so the "parallel" axis can split across
    # v7x's two TensorCores.
    if n_pad // tile < 2 and n >= 16:
        tile = max(8, _round_up(-(-n // 2), 8))
        n_pad = _round_up(n, tile)
    return tile, n_pad


def _stats_kernel(x_ref, w_ref, sum_ref, sq_ref):
    """Pass 1: block-diagonal linear -> lane-dense y (Tn, P*Cout); emit
    per-tile partial channel sum / sum-of-squares (no y round-trip to HBM)."""
    y = jnp.dot(x_ref[...], w_ref[...], preferred_element_type=jnp.float32)
    sum_ref[...] = jnp.sum(y, axis=0, keepdims=True).reshape(sum_ref.shape)
    sq_ref[...] = jnp.sum(y * y, axis=0, keepdims=True).reshape(sq_ref.shape)


def _fwd_kernel(x_ref, w_ref, scale_ref, shift_ref, out_ref, *, seg, width):
    """Pass 2: block-diagonal linear lands directly in the interleaved
    [z_p | max] lane layout; folded-BN affine + relu, roll-tree max over
    points, single dense lane-wide store."""
    y = jnp.dot(x_ref[...], w_ref[...], preferred_element_type=jnp.float32)
    # scale/shift are zero on the max-half lanes, so z there is exactly 0.
    z = jnp.maximum(y * scale_ref[...] + shift_ref[...], 0.0)
    # Max over points: cyclic roll-max tree over seg-aligned lane segments
    # (z-half and max-half lanes never mix because shifts are multiples of seg).
    m = z
    s = seg
    while s < width:
        m = jnp.maximum(m, pltpu.roll(m, shift=s, axis=1))
        s *= 2
    # Shift the per-channel maxima from the z-half into the max-half of each
    # segment; the z-half of the shifted array is all zeros, so a single add
    # produces concat([z, max]) per point without any relayout or temporary.
    out_ref[...] = z + pltpu.roll(m, shift=seg // 2, axis=1)


def pfn_layer_forward(inputs, weight, gamma, beta, *, eps=1e-3, tile_n=512):
    """PFNLayer forward (use_norm=True, last_layer=False).

    inputs: (N, P, Cin) f32; weight: (Cout, Cin) as in nn.Linear(bias=False);
    gamma/beta: (Cout,) BatchNorm1d affine.  Returns (N, P, 2*Cout) f32.
    """
    n, p, cin = inputs.shape
    cout = weight.shape[0]
    seg = 2 * cout                  # per-point output segment: [z | max]
    width = p * seg                 # lane-dense output row width
    pcin = p * cin
    pcout = p * cout

    tile, n_pad = _choose_tiling(n, tile_n)
    num_tiles = n_pad // tile

    # Lane-dense, padding-free 2-D input layout.
    x2d = inputs.astype(jnp.float32).reshape(n, pcin)
    if n_pad != n:
        x2d = jnp.pad(x2d, ((0, n_pad - n), (0, 0)))

    w_t = weight.T.astype(jnp.float32)                            # (Cin, Cout)
    eye_p = jnp.eye(p, dtype=jnp.float32)
    # Block-diagonal weights: P per-point matmuls fused into one lane-dense
    # MXU call (contraction K = P*Cin instead of Cin).
    w_bd1 = jnp.kron(eye_p, w_t)                                  # (P*Cin, P*Cout)
    # Pass-2 weight has a zero "max half" per point so y lands directly in
    # the interleaved output layout.
    w_bd2 = jnp.kron(eye_p, jnp.pad(w_t, ((0, 0), (0, cout))))    # (P*Cin, P*2*Cout)

    compiler_params = pltpu.CompilerParams(
        dimension_semantics=("parallel",),
        vmem_limit_bytes=_VMEM_LIMIT_BYTES)

    # ---- pass 1: per-tile partial batch statistics -------------------------
    ch_sum, ch_sq = pl.pallas_call(
        _stats_kernel,
        out_shape=(
            jax.ShapeDtypeStruct((num_tiles, 1, pcout), jnp.float32),
            jax.ShapeDtypeStruct((num_tiles, 1, pcout), jnp.float32),
        ),
        grid_spec=pltpu.PrefetchScalarGridSpec(
            num_scalar_prefetch=0,
            grid=(num_tiles,),
            in_specs=[
                pl.BlockSpec((tile, pcin), lambda i: (i, 0)),
                pl.BlockSpec((pcin, pcout), lambda i: (0, 0)),
            ],
            out_specs=[
                pl.BlockSpec((1, 1, pcout), lambda i: (i, 0, 0)),
                pl.BlockSpec((1, 1, pcout), lambda i: (i, 0, 0)),
            ]),
        compiler_params=compiler_params,
    )(x2d, w_bd1)

    # ---- tiny XLA glue: reduce partials, fold BN into per-channel affine ---
    count = jnp.float32(n * p)           # true count (padded rows contribute 0)
    mean = ch_sum.reshape(-1, cout).sum(axis=0) / count
    ex2 = ch_sq.reshape(-1, cout).sum(axis=0) / count
    var = jnp.maximum(ex2 - mean * mean, 0.0)                     # biased, clamped
    inv_std = jax.lax.rsqrt(var + eps)
    scale = gamma.astype(jnp.float32) * inv_std
    shift = beta.astype(jnp.float32) - mean * scale
    zeros_c = jnp.zeros((cout,), jnp.float32)
    scale_il = jnp.tile(jnp.concatenate([scale, zeros_c]), p).reshape(1, width)
    shift_il = jnp.tile(jnp.concatenate([shift, zeros_c]), p).reshape(1, width)

    # ---- pass 2: recompute linear + affine + relu + max + interleave -------
    fwd = functools.partial(_fwd_kernel, seg=seg, width=width)
    out2d = pl.pallas_call(
        fwd,
        out_shape=jax.ShapeDtypeStruct((n_pad, width), jnp.float32),
        grid_spec=pltpu.PrefetchScalarGridSpec(
            num_scalar_prefetch=0,
            grid=(num_tiles,),
            in_specs=[
                pl.BlockSpec((tile, pcin), lambda i: (i, 0)),
                pl.BlockSpec((pcin, width), lambda i: (0, 0)),
                pl.BlockSpec((1, width), lambda i: (0, 0)),
                pl.BlockSpec((1, width), lambda i: (0, 0)),
            ],
            out_specs=pl.BlockSpec((tile, width), lambda i: (i, 0)),
        ),
        compiler_params=compiler_params,
    )(x2d, w_bd2, scale_il, shift_il)

    # Free, contiguous metadata reshape back to (N, P, 2*Cout).
    return out2d[:n].reshape(n, p, seg)


def _reference(inputs, weight, gamma, beta, eps=1e-3):
    x = jnp.einsum("npi,oi->npo", inputs, weight,
                   precision=jax.lax.Precision.HIGHEST)
    flat = x.reshape(-1, x.shape[-1])
    mean = flat.mean(axis=0)
    var = flat.var(axis=0)                                        # biased (train-mode BN)
    xn = (x - mean) * jax.lax.rsqrt(var + eps) * gamma + beta
    z = jnp.maximum(xn, 0.0)
    zmax = jnp.max(z, axis=1, keepdims=True)
    return jnp.concatenate([z, jnp.broadcast_to(zmax, z.shape)], axis=-1)


if __name__ == "__main__":
    # points=32, in_channels=10, out_channels=64 (-> 32 after //2 since
    # last_layer=False); 1024 pillars so the 512-pillar tiling gives 2 grid
    # steps per pass (exercises tiling + the v7x megacore split).
    N, P, C_IN, C_OUT_FULL = 1024, 32, 10, 64
    C_OUT = C_OUT_FULL // 2

    key = jax.random.PRNGKey(0)
    k_in, k_w, k_g, k_b = jax.random.split(key, 4)
    inputs = jax.random.normal(k_in, (N, P, C_IN), dtype=jnp.float32)
    weight = jax.random.normal(k_w, (C_OUT, C_IN), dtype=jnp.float32) * 0.1
    gamma = 1.0 + 0.1 * jax.random.normal(k_g, (C_OUT,), dtype=jnp.float32)
    beta = 0.1 * jax.random.normal(k_b, (C_OUT,), dtype=jnp.float32)

    out = pfn_layer_forward(inputs, weight, gamma, beta, tile_n=512)
    out = jax.block_until_ready(out)

    ref = _reference(inputs, weight, gamma, beta)
    assert out.shape == (N, P, 2 * C_OUT), out.shape
    max_err = float(jnp.max(jnp.abs(out - ref)))
    assert max_err < 2e-3, max_err
    print("KERNEL_OK")
</pallas_src>

<mosaic_0001>
module attributes {stable_mosaic.version = 11 : i64} {
  func.func @_stats_kernel(%arg0: i32, %arg1: memref<512x320xf32, #tpu.memory_space<vmem>>, %arg2: memref<320x1024xf32, #tpu.memory_space<vmem>>, %arg3: memref<1x1x1024xf32, #tpu.memory_space<vmem>>, %arg4: memref<1x1x1024xf32, #tpu.memory_space<vmem>>) attributes {dimension_semantics = [#tpu.dimension_semantics<parallel>], iteration_bounds = array<i64: 2>, scalar_prefetch = 0 : i64, scratch_operands = 0 : i64, tpu.core_type = #tpu.core_type<tc>, window_params = [{transform_indices = @transform_0, window_bounds = array<i64: 512, 320>}, {pipeline_mode = #tpu.pipeline_mode<synchronous>, transform_indices = @transform_1, window_bounds = array<i64: 320, 1024>}, {transform_indices = @transform_2, window_bounds = array<i64: 1, 1, 1024>}, {transform_indices = @transform_3, window_bounds = array<i64: 1, 1, 1024>}]} {
    %c0 = arith.constant 0 : index
    %c0_0 = arith.constant 0 : index
    %0 = vector.load %arg1[%c0, %c0_0] : memref<512x320xf32, #tpu.memory_space<vmem>>, vector<512x320xf32>
    %c0_1 = arith.constant 0 : index
    %c0_2 = arith.constant 0 : index
    %1 = vector.load %arg2[%c0_1, %c0_2] : memref<320x1024xf32, #tpu.memory_space<vmem>>, vector<320x1024xf32>
    %cst = arith.constant dense<0.000000e+00> : vector<512x1024xf32>
    %2 = tpu.matmul %0, %1, %cst {dimension_numbers = #tpu.dot_dimension_numbers<[1], [0], [0], [1], [0, 0, 1, 1], [], []>} : vector<512x320xf32>, vector<320x1024xf32>, vector<512x1024xf32> -> vector<512x1024xf32>
    %cst_3 = arith.constant dense<0.000000e+00> : vector<1024xf32>
    %3 = vector.multi_reduction <add>, %2, %cst_3 [0] : vector<512x1024xf32> to vector<1024xf32>
    %4 = vector.shape_cast %3 : vector<1024xf32> to vector<1x1024xf32>
    %5 = vector.shape_cast %4 : vector<1x1024xf32> to vector<1x1x1024xf32>
    %c0_4 = arith.constant 0 : index
    %c0_5 = arith.constant 0 : index
    %c0_6 = arith.constant 0 : index
    %6 = vector.load %arg3[%c0_4, %c0_5, %c0_6] : memref<1x1x1024xf32, #tpu.memory_space<vmem>>, vector<1x1x1024xf32>
    tpu.vector_store %arg3[%c0_4, %c0_5, %c0_6], %5 {strides = array<i32>} : memref<1x1x1024xf32, #tpu.memory_space<vmem>>, vector<1x1x1024xf32>,
    %7 = arith.mulf %2, %2 : vector<512x1024xf32>
    %cst_7 = arith.constant dense<0.000000e+00> : vector<1024xf32>
    %8 = vector.multi_reduction <add>, %7, %cst_7 [0] : vector<512x1024xf32> to vector<1024xf32>
    %9 = vector.shape_cast %8 : vector<1024xf32> to vector<1x1024xf32>
    %10 = vector.shape_cast %9 : vector<1x1024xf32> to vector<1x1x1024xf32>
    %c0_8 = arith.constant 0 : index
    %c0_9 = arith.constant 0 : index
    %c0_10 = arith.constant 0 : index
    %11 = vector.load %arg4[%c0_8, %c0_9, %c0_10] : memref<1x1x1024xf32, #tpu.memory_space<vmem>>, vector<1x1x1024xf32>
    tpu.vector_store %arg4[%c0_8, %c0_9, %c0_10], %10 {strides = array<i32>} : memref<1x1x1024xf32, #tpu.memory_space<vmem>>, vector<1x1x1024xf32>,
    return
  }
  func.func @transform_0(%arg0: i32) -> (i32, i32) {
    %c0_i32 = arith.constant 0 : i32
    %c0_i32_0 = arith.constant 0 : i32
    return %arg0, %c0_i32 : i32, i32
  }
  func.func @transform_1(%arg0: i32) -> (i32, i32) {
    %c0_i32 = arith.constant 0 : i32
    %c0_i32_0 = arith.constant 0 : i32
    %c0_i32_1 = arith.constant 0 : i32
    return %c0_i32, %c0_i32_0 : i32, i32
  }
  func.func @transform_2(%arg0: i32) -> (i32, i32, i32) {
    %c0_i32 = arith.constant 0 : i32
    %c0_i32_0 = arith.constant 0 : i32
    %c0_i32_1 = arith.constant 0 : i32
    return %arg0, %c0_i32, %c0_i32_0 : i32, i32, i32
  }
  func.func @transform_3(%arg0: i32) -> (i32, i32, i32) {
    %c0_i32 = arith.constant 0 : i32
    %c0_i32_0 = arith.constant 0 : i32
    %c0_i32_1 = arith.constant 0 : i32
    return %arg0, %c0_i32, %c0_i32_0 : i32, i32, i32
  }
}

</mosaic_0001>

<llo_original>
// kernel: tpu_custom_call.1
$region0: #{tpu_custom_call.1}
  #allocation0 [shape = 'u32[]', space=smem, size = 0x4, offset = 0x4, fixed_abs, tag = 'smem constant byte address 0x4 - core index']
  #allocation1 [shape = 'u32[72,128]{1,0:T(1,128)}', space=vmem, size = 0x9000, scoped, tag = 'internal scratch']
  %s0 = inlined_call_operand.vmem [shape: f32[1024,320], index: 0, kind: input, shape index: {}]
  %s1 = inlined_call_operand.vmem [shape: f32[320,1024], index: 1, kind: input, shape index: {}]
  %s2 = inlined_call_operand.hbm [shape: f32[2,1,1024], index: 2, kind: output, shape index: {0}]
  %s3 = inlined_call_operand.hbm [shape: f32[2,1,1024], index: 3, kind: output, shape index: {1}]
  %4 = xla_tuple %s2, %s3
  %s5 = sld [smem:[#allocation0]]
  $region49: #{tpu_custom_call.1} parent=0
    _
  %s7 = ssub.s32 1, %s5
  %s8 = scalar_select 0, %s7, %s5
  $region1: #{tpu_custom_call.1} parent=0
    #allocation2 [shape = 'u8[8192]{0}', space=vmem, size = 0x2000, scoped, tag = 'output window, operand 0']
    #allocation3 [shape = 's32[2]{0}', space=sflag, size = 0x8, scoped, tag = 'scoped memory for tpu_custom_call.1']
    #allocation4 [shape = 'u8[8192]{0}', space=vmem, size = 0x2000, scoped, tag = 'output window, operand 1']
    #allocation5 [shape = 's32[2]{0}', space=sflag, size = 0x8, scoped, tag = 'scoped memory for tpu_custom_call.1']
    %9 = vsyncpa [#allocation3], 0
    %s10 = scalar_lea.sflag [#allocation3], 1
    %11 = vsyncpa %s10, 0
    %12 = vsyncpa [#allocation5], 0
    %s13 = scalar_lea.sflag [#allocation5], 1
    %14 = vsyncpa %s13, 0
    loop: start=0, step=1, limit=4
    $region2: #{tpu_custom_call.1} parent=1 // loop_pre_header
      _
    $region3: #{tpu_custom_call.1} parent=1 // loop_header
      %s16 = sphi 0, %s20
      %p17 = scmp.ge.s32.totalorder %s16, 4
      %s26 = sphi 0, %s28
      %s29 = sphi 0, %s26
      %s30 = sphi 0, %s29
      %s46 = sphi 0, %s30
      %s50 = sphi 0, %s50
      %s52 = sphi 0, %s50
      %s53 = sphi 0, %s52
      %s67 = sphi 0, %s53
      %s73 = sphi 0, %s75
      %s76 = sphi 0, %s73
      %s77 = sphi 0, %s76
      %s93 = sphi 0, %s77
      %s99 = sphi 0, %s101
      %s102 = sphi 0, %s99
      %s103 = sphi 0, %s102
      %s119 = sphi 0, %s103
    $region4: #{tpu_custom_call.1} parent=1 // loop_header_branch
      %19 = sbr.rel (%p17) target = $region8
    $region5: #{tpu_custom_call.1} parent=1 // loop_body
      %s21 = ssub.s32 %s16, 1
      %s22 = ssub.s32 %s16, 2
      %s23 = sadd.s32 %s16, 1
      %s24 = ssub.s32 %s16, %s23
      %p25 = scmp.eq.s32.totalorder %s24, 0
      %s27 = sadd.s32 %s26, 1
      %s28 = scalar_select %p25, %s26, %s27
      %p31 = pneg %p25
      %p32 = scmp.eq.s32.totalorder %s16, 1
      %p33 = por %p31, %p32
      %p34 = scmp.ne.s32.totalorder %s26, %s29
      %p35 = scmp.eq.s32.totalorder %s16, 0
      %p36 = por %p34, %p35
      %p37 = scmp.ne.s32.totalorder %s26, %s29
      %p38 = scmp.eq.s32.totalorder %s21, 1
      %p39 = por %p37, %p38
      %p40 = scmp.ne.s32.totalorder %s29, %s30
      %p41 = scmp.eq.s32.totalorder %s21, 0
      %p42 = por %p40, %p41
      %p43 = scmp.ne.s32.totalorder %s29, %s30
      %p44 = scmp.eq.s32.totalorder %s22, 1
      %p45 = por %p43, %p44
      %p47 = scmp.ne.s32.totalorder %s30, %s46
      %p48 = scmp.eq.s32.totalorder %s22, 0
      %p49 = por %p47, %p48
      %s51 = sadd.s32 %s50, 1
      %p54 = scmp.eq.s32.totalorder %s16, 1
      %p55 = scmp.ne.s32.totalorder %s50, %s52
      %p56 = scmp.eq.s32.totalorder %s16, 0
      %p57 = por %p55, %p56
      %p58 = scmp.ne.s32.totalorder %s50, %s52
      %p59 = scmp.eq.s32.totalorder %s21, 1
      %p60 = por %p58, %p59
      %p61 = scmp.ne.s32.totalorder %s52, %s53
      %p62 = scmp.eq.s32.totalorder %s21, 0
      %p63 = por %p61, %p62
      %p64 = scmp.ne.s32.totalorder %s52, %s53
      %p65 = scmp.eq.s32.totalorder %s22, 1
      %p66 = por %p64, %p65
      %p68 = scmp.ne.s32.totalorder %s53, %s67
      %p69 = scmp.eq.s32.totalorder %s22, 0
      %p70 = por %p68, %p69
      %s71 = ssub.s32 %s16, %s23
      %p72 = scmp.eq.s32.totalorder %s71, 0
      %s74 = sadd.s32 %s73, 1
      %s75 = scalar_select %p72, %s73, %s74
      %p78 = pneg %p72
      %p79 = scmp.eq.s32.totalorder %s16, 1
      %p80 = por %p78, %p79
      %p81 = scmp.ne.s32.totalorder %s73, %s76
      %p82 = scmp.eq.s32.totalorder %s16, 0
      %p83 = por %p81, %p82
      %p84 = scmp.ne.s32.totalorder %s73, %s76
      %p85 = scmp.eq.s32.totalorder %s21, 1
      %p86 = por %p84, %p85
      %p87 = scmp.ne.s32.totalorder %s76, %s77
      %p88 = scmp.eq.s32.totalorder %s21, 0
      %p89 = por %p87, %p88
      %p90 = scmp.ne.s32.totalorder %s76, %s77
      %p91 = scmp.eq.s32.totalorder %s22, 1
      %p92 = por %p90, %p91
      %p94 = scmp.ne.s32.totalorder %s77, %s93
      %p95 = scmp.eq.s32.totalorder %s22, 0
      %p96 = por %p94, %p95
      %s97 = ssub.s32 %s16, %s23
      %p98 = scmp.eq.s32.totalorder %s97, 0
      %s100 = sadd.s32 %s99, 1
      %s101 = scalar_select %p98, %s99, %s100
      %p104 = pneg %p98
      %p105 = scmp.eq.s32.totalorder %s16, 1
      %p106 = por %p104, %p105
      %p107 = scmp.ne.s32.totalorder %s99, %s102
      %p108 = scmp.eq.s32.totalorder %s16, 0
      %p109 = por %p107, %p108
      %p110 = scmp.ne.s32.totalorder %s99, %s102
      %p111 = scmp.eq.s32.totalorder %s21, 1
      %p112 = por %p110, %p111
      %p113 = scmp.ne.s32.totalorder %s102, %s103
      %p114 = scmp.eq.s32.totalorder %s21, 0
      %p115 = por %p113, %p114
      %p116 = scmp.ne.s32.totalorder %s102, %s103
      %p117 = scmp.eq.s32.totalorder %s22, 1
      %p118 = por %p116, %p117
      %p120 = scmp.ne.s32.totalorder %s103, %s119
      %p121 = scmp.eq.s32.totalorder %s22, 0
      %p122 = por %p120, %p121
      %p123 = scmp.le.s32.totalorder 1, %s16
      %p124 = scmp.lt.s32.totalorder %s16, 3
      %p125 = pnand %p123, %p124
      %p126 = pneg %p125
      // Predicated region
      $region9: #{tpu_custom_call.1} parent=5 // pred_check
        _
      $region10: #{tpu_custom_call.1} parent=5 // pred_check_branch
        %128 = sbr.rel (%p125) target = $region12
      $region11: #{tpu_custom_call.1} parent=5 // pred_region
        %s129 = ssub.s32 %s16, 1
        // Predicated region
        $region13: #{tpu_custom_call.1} parent=11 // pred_check
          %p130 = pneg %p63
        $region14: #{tpu_custom_call.1} parent=11 // pred_check_branch
          %132 = sbr.rel (%p130) target = $region16
        $region15: #{tpu_custom_call.1} parent=11 // pred_region
          _
        $region16: #{tpu_custom_call.1} parent=11 // pred_fallthru
          _
      $region12: #{tpu_custom_call.1} parent=5 // pred_fallthru
        _
      %p133 = scmp.lt.s32.totalorder %s16, 2
      // Predicated region
      $region17: #{tpu_custom_call.1} parent=5 // pred_check
        %p134 = pneg %p133
      $region18: #{tpu_custom_call.1} parent=5 // pred_check_branch
        %136 = sbr.rel (%p134) target = $region20
      $region19: #{tpu_custom_call.1} parent=5 // pred_region
        // Predicated region
        $region21: #{tpu_custom_call.1} parent=19 // pred_check
          %p137 = pneg %p36
        $region22: #{tpu_custom_call.1} parent=19 // pred_check_branch
          %139 = sbr.rel (%p137) target = $region24
        $region23: #{tpu_custom_call.1} parent=19 // pred_region
          %s140 = smul.u32 64, %s16
          %p141 = scmp.lt.s32.totalorder %s140, 127
          %s142 = scalar_select %p141, %s140, 127
          %s143 = smul.addr %s142, 3
          %s144 = smul.addr %s143, 8
          %s145 = scalar_lea.vmem %s0, %s144
          %s146 = smul.u32 64, %s16
        $region24: #{tpu_custom_call.1} parent=19 // pred_fallthru
          _
      $region20: #{tpu_custom_call.1} parent=5 // pred_fallthru
        _
      %p147 = scmp.le.s32.totalorder 1, %s16
      %p148 = scmp.lt.s32.totalorder %s16, 3
      %p149 = pnand %p147, %p148
      %p150 = pneg %p149
      // Predicated region
      $region25: #{tpu_custom_call.1} parent=5 // pred_check
        _
      $region26: #{tpu_custom_call.1} parent=5 // pred_check_branch
        %152 = sbr.rel (%p149) target = $region28
      $region27: #{tpu_custom_call.1} parent=5 // pred_region
        %s153 = ssub.s32 %s16, 1
        %s154 = smul.u32 64, %s21
        %p155 = scmp.lt.s32.totalorder %s154, 127
        %s156 = scalar_select %p155, %s154, 127
        %s157 = smul.addr %s156, 3
        %s158 = smul.addr %s157, 8
        %s159 = scalar_lea.vmem %s0, %s158
        %p160 = pneg %p42
        %p161 = pneg %p39
        %p162 = pneg %p63
        %p163 = pneg %p60
        %p164 = pneg %p89
        %p165 = pneg %p86
        %s166 = sand.u32 %s76, 1
        %s167 = scalar_lea.sflag [#allocation3], %s166
        %s168 = sand.u32 %s76, 1
        %s169 = smul.addr %s168, 8
        %s170 = scalar_lea.vmem [#allocation2], %s169
        %p171 = pneg %p115
        %p172 = pneg %p112
        %s173 = sand.u32 %s102, 1
        %s174 = scalar_lea.sflag [#allocation5], %s173
        %s175 = sand.u32 %s102, 1
        %s176 = smul.addr %s175, 8
        %s177 = scalar_lea.vmem [#allocation4], %s176
        %s178 = smul.u32 64, %s21
        %p179 = scmp.lt.s32.totalorder %s178, 127
        %s180 = scalar_select %p179, %s178, 127
        %s181 = smul.addr %s180, 3
        %s182 = smul.addr %s181, 8
        %s183 = scalar_lea.vmem %s0, %s182
        %s184 = smul.u32 64, %s21
        %v185 = vld [vmem:[%s183] sm:$0xff]
        %v186 = vld [vmem:[%s183 + $0x8] sm:$0xff]
        %v187 = vld [vmem:[%s183 + $0x10] sm:$0xff]
        %v188 = vld [vmem:[%s183 + $0x18] sm:$0xff]
        %v189 = vld [vmem:[%s183 + $0x20] sm:$0xff]
        %v190 = vld [vmem:[%s183 + $0x28] sm:$0xff]
        %v191 = vld [vmem:[%s183 + $0x30] sm:$0xff]
        %v192 = vld [vmem:[%s183 + $0x38] sm:$0xff]
        %v193 = vld [vmem:[%s183 + $0x40] sm:$0xff]
        %v194 = vld [vmem:[%s183 + $0x48] sm:$0xff]
        %v195 = vld [vmem:[%s183 + $0x50] sm:$0xff]
        %v196 = vld [vmem:[%s183 + $0x58] sm:$0xff]
        %v197 = vld [vmem:[%s183 + $0x60] sm:$0xff]
        %v198 = vld [vmem:[%s183 + $0x68] sm:$0xff]
        %v199 = vld [vmem:[%s183 + $0x70] sm:$0xff]
        %v200 = vld [vmem:[%s183 + $0x78] sm:$0xff]
        %v201 = vld [vmem:[%s183 + $0x80] sm:$0xff]
        %v202 = vld [vmem:[%s183 + $0x88] sm:$0xff]
        %v203 = vld [vmem:[%s183 + $0x90] sm:$0xff]
        %v204 = vld [vmem:[%s183 + $0x98] sm:$0xff]
        %v205 = vld [vmem:[%s183 + $0xa0] sm:$0xff]
        %v206 = vld [vmem:[%s183 + $0xa8] sm:$0xff]
        %v207 = vld [vmem:[%s183 + $0xb0] sm:$0xff]
        %v208 = vld [vmem:[%s183 + $0xb8] sm:$0xff]
        %v209 = vld [vmem:[%s183 + $0xc0] sm:$0xff]
        %v210 = vld [vmem:[%s183 + $0xc8] sm:$0xff]
        %v211 = vld [vmem:[%s183 + $0xd0] sm:$0xff]
        %v212 = vld [vmem:[%s183 + $0xd8] sm:$0xff]
        %v213 = vld [vmem:[%s183 + $0xe0] sm:$0xff]
        %v214 = vld [vmem:[%s183 + $0xe8] sm:$0xff]
        %v215 = vld [vmem:[%s183 + $0xf0] sm:$0xff]
        %v216 = vld [vmem:[%s183 + $0xf8] sm:$0xff]
        %v217 = vld [vmem:[%s183 + $0x100] sm:$0xff]
        %v218 = vld [vmem:[%s183 + $0x108] sm:$0xff]
        %v219 = vld [vmem:[%s183 + $0x110] sm:$0xff]
        %v220 = vld [vmem:[%s183 + $0x118] sm:$0xff]
        %v221 = vld [vmem:[%s183 + $0x120] sm:$0xff]
        %v222 = vld [vmem:[%s183 + $0x128] sm:$0xff]
        %v223 = vld [vmem:[%s183 + $0x130] sm:$0xff]
        %v224 = vld [vmem:[%s183 + $0x138] sm:$0xff]
        %v225 = vld [vmem:[%s183 + $0x140] sm:$0xff]
        %v226 = vld [vmem:[%s183 + $0x148] sm:$0xff]
        %v227 = vld [vmem:[%s183 + $0x150] sm:$0xff]
        %v228 = vld [vmem:[%s183 + $0x158] sm:$0xff]
        %v229 = vld [vmem:[%s183 + $0x160] sm:$0xff]
        %v230 = vld [vmem:[%s183 + $0x168] sm:$0xff]
        %v231 = vld [vmem:[%s183 + $0x170] sm:$0xff]
        %v232 = vld [vmem:[%s183 + $0x178] sm:$0xff]
        %v233 = vld [vmem:[%s183 + $0x180] sm:$0xff]
        %v234 = vld [vmem:[%s183 + $0x188] sm:$0xff]
        %v235 = vld [vmem:[%s183 + $0x190] sm:$0xff]
        %v236 = vld [vmem:[%s183 + $0x198] sm:$0xff]
        %v237 = vld [vmem:[%s183 + $0x1a0] sm:$0xff]
        %v238 = vld [vmem:[%s183 + $0x1a8] sm:$0xff]
        %v239 = vld [vmem:[%s183 + $0x1b0] sm:$0xff]
        %v240 = vld [vmem:[%s183 + $0x1b8] sm:$0xff]
        %v241 = vld [vmem:[%s183 + $0x1c0] sm:$0xff]
        %v242 = vld [vmem:[%s183 + $0x1c8] sm:$0xff]
        %v243 = vld [vmem:[%s183 + $0x1d0] sm:$0xff]
        %v244 = vld [vmem:[%s183 + $0x1d8] sm:$0xff]
        %v245 = vld [vmem:[%s183 + $0x1e0] sm:$0xff]
        %v246 = vld [vmem:[%s183 + $0x1e8] sm:$0xff]
        %v247 = vld [vmem:[%s183 + $0x1f0] sm:$0xff]
        %v248 = vld [vmem:[%s183 + $0x1f8] sm:$0xff]
        %v249 = vld [vmem:[%s183 + $0x200] sm:$0xff]
        %v250 = vld [vmem:[%s183 + $0x208] sm:$0xff]
        %v251 = vld [vmem:[%s183 + $0x210] sm:$0xff]
        %v252 = vld [vmem:[%s183 + $0x218] sm:$0xff]
        %v253 = vld [vmem:[%s183 + $0x220] sm:$0xff]
        %v254 = vld [vmem:[%s183 + $0x228] sm:$0xff]
        %v255 = vld [vmem:[%s183 + $0x230] sm:$0xff]
        %v256 = vld [vmem:[%s183 + $0x238] sm:$0xff]
        %v257 = vld [vmem:[%s183 + $0x240] sm:$0xff]
        %v258 = vld [vmem:[%s183 + $0x248] sm:$0xff]
        %v259 = vld [vmem:[%s183 + $0x250] sm:$0xff]
        %v260 = vld [vmem:[%s183 + $0x258] sm:$0xff]
        %v261 = vld [vmem:[%s183 + $0x260] sm:$0xff]
        %v262 = vld [vmem:[%s183 + $0x268] sm:$0xff]
        %v263 = vld [vmem:[%s183 + $0x270] sm:$0xff]
        %v264 = vld [vmem:[%s183 + $0x278] sm:$0xff]
        %v265 = vld [vmem:[%s183 + $0x280] sm:$0xff]
        %v266 = vld [vmem:[%s183 + $0x288] sm:$0xff]
        %v267 = vld [vmem:[%s183 + $0x290] sm:$0xff]
        %v268 = vld [vmem:[%s183 + $0x298] sm:$0xff]
        %v269 = vld [vmem:[%s183 + $0x2a0] sm:$0xff]
        %v270 = vld [vmem:[%s183 + $0x2a8] sm:$0xff]
        %v271 = vld [vmem:[%s183 + $0x2b0] sm:$0xff]
        %v272 = vld [vmem:[%s183 + $0x2b8] sm:$0xff]
        %v273 = vld [vmem:[%s183 + $0x2c0] sm:$0xff]
        %v274 = vld [vmem:[%s183 + $0x2c8] sm:$0xff]
        %v275 = vld [vmem:[%s183 + $0x2d0] sm:$0xff]
        %v276 = vld [vmem:[%s183 + $0x2d8] sm:$0xff]
        %v277 = vld [vmem:[%s183 + $0x2e0] sm:$0xff]
        %v278 = vld [vmem:[%s183 + $0x2e8] sm:$0xff]
        %v279 = vld [vmem:[%s183 + $0x2f0] sm:$0xff]
        %v280 = vld [vmem:[%s183 + $0x2f8] sm:$0xff]
        %v281 = vld [vmem:[%s183 + $0x300] sm:$0xff]
        %v282 = vld [vmem:[%s183 + $0x308] sm:$0xff]
        %v283 = vld [vmem:[%s183 + $0x310] sm:$0xff]
        %v284 = vld [vmem:[%s183 + $0x318] sm:$0xff]
        %v285 = vld [vmem:[%s183 + $0x320] sm:$0xff]
        %v286 = vld [vmem:[%s183 + $0x328] sm:$0xff]
        %v287 = vld [vmem:[%s183 + $0x330] sm:$0xff]
        %v288 = vld [vmem:[%s183 + $0x338] sm:$0xff]
        %v289 = vld [vmem:[%s183 + $0x340] sm:$0xff]
        %v290 = vld [vmem:[%s183 + $0x348] sm:$0xff]
        %v291 = vld [vmem:[%s183 + $0x350] sm:$0xff]
        %v292 = vld [vmem:[%s183 + $0x358] sm:$0xff]
        %v293 = vld [vmem:[%s183 + $0x360] sm:$0xff]
        %v294 = vld [vmem:[%s183 + $0x368] sm:$0xff]
        %v295 = vld [vmem:[%s183 + $0x370] sm:$0xff]
        %v296 = vld [vmem:[%s183 + $0x378] sm:$0xff]
        %v297 = vld [vmem:[%s183 + $0x380] sm:$0xff]
        %v298 = vld [vmem:[%s183 + $0x388] sm:$0xff]
        %v299 = vld [vmem:[%s183 + $0x390] sm:$0xff]
        %v300 = vld [vmem:[%s183 + $0x398] sm:$0xff]
        %v301 = vld [vmem:[%s183 + $0x3a0] sm:$0xff]
        %v302 = vld [vmem:[%s183 + $0x3a8] sm:$0xff]
        %v303 = vld [vmem:[%s183 + $0x3b0] sm:$0xff]
        %v304 = vld [vmem:[%s183 + $0x3b8] sm:$0xff]
        %v305 = vld [vmem:[%s183 + $0x3c0] sm:$0xff]
        %v306 = vld [vmem:[%s183 + $0x3c8] sm:$0xff]
        %v307 = vld [vmem:[%s183 + $0x3d0] sm:$0xff]
        %v308 = vld [vmem:[%s183 + $0x3d8] sm:$0xff]
        %v309 = vld [vmem:[%s183 + $0x3e0] sm:$0xff]
        %v310 = vld [vmem:[%s183 + $0x3e8] sm:$0xff]
        %v311 = vld [vmem:[%s183 + $0x3f0] sm:$0xff]
        %v312 = vld [vmem:[%s183 + $0x3f8] sm:$0xff]
        %v313 = vld [vmem:[%s183 + $0x400] sm:$0xff]
        %v314 = vld [vmem:[%s183 + $0x408] sm:$0xff]
        %v315 = vld [vmem:[%s183 + $0x410] sm:$0xff]
        %v316 = vld [vmem:[%s183 + $0x418] sm:$0xff]
        %v317 = vld [vmem:[%s183 + $0x420] sm:$0xff]
        %v318 = vld [vmem:[%s183 + $0x428] sm:$0xff]
        %v319 = vld [vmem:[%s183 + $0x430] sm:$0xff]
        %v320 = vld [vmem:[%s183 + $0x438] sm:$0xff]
        %v321 = vld [vmem:[%s183 + $0x440] sm:$0xff]
        %v322 = vld [vmem:[%s183 + $0x448] sm:$0xff]
        %v323 = vld [vmem:[%s183 + $0x450] sm:$0xff]
        %v324 = vld [vmem:[%s183 + $0x458] sm:$0xff]
        %v325 = vld [vmem:[%s183 + $0x460] sm:$0xff]
        %v326 = vld [vmem:[%s183 + $0x468] sm:$0xff]
        %v327 = vld [vmem:[%s183 + $0x470] sm:$0xff]
        %v328 = vld [vmem:[%s183 + $0x478] sm:$0xff]
        %v329 = vld [vmem:[%s183 + $0x480] sm:$0xff]
        %v330 = vld [vmem:[%s183 + $0x488] sm:$0xff]
        %v331 = vld [vmem:[%s183 + $0x490] sm:$0xff]
        %v332 = vld [vmem:[%s183 + $0x498] sm:$0xff]
        %v333 = vld [vmem:[%s183 + $0x4a0] sm:$0xff]
        %v334 = vld [vmem:[%s183 + $0x4a8] sm:$0xff]
        %v335 = vld [vmem:[%s183 + $0x4b0] sm:$0xff]
        %v336 = vld [vmem:[%s183 + $0x4b8] sm:$0xff]
        %v337 = vld [vmem:[%s183 + $0x4c0] sm:$0xff]
        %v338 = vld [vmem:[%s183 + $0x4c8] sm:$0xff]
        %v339 = vld [vmem:[%s183 + $0x4d0] sm:$0xff]
        %v340 = vld [vmem:[%s183 + $0x4d8] sm:$0xff]
        %v341 = vld [vmem:[%s183 + $0x4e0] sm:$0xff]
        %v342 = vld [vmem:[%s183 + $0x4e8] sm:$0xff]
        %v343 = vld [vmem:[%s183 + $0x4f0] sm:$0xff]
        %v344 = vld [vmem:[%s183 + $0x4f8] sm:$0xff]
        %v345 = vld [vmem:[%s183 + $0x500] sm:$0xff]
        %v346 = vld [vmem:[%s183 + $0x508] sm:$0xff]
        %v347 = vld [vmem:[%s183 + $0x510] sm:$0xff]
        %v348 = vld [vmem:[%s183 + $0x518] sm:$0xff]
        %v349 = vld [vmem:[%s183 + $0x520] sm:$0xff]
        %v350 = vld [vmem:[%s183 + $0x528] sm:$0xff]
        %v351 = vld [vmem:[%s183 + $0x530] sm:$0xff]
        %v352 = vld [vmem:[%s183 + $0x538] sm:$0xff]
        %v353 = vld [vmem:[%s183 + $0x540] sm:$0xff]
        %v354 = vld [vmem:[%s183 + $0x548] sm:$0xff]
        %v355 = vld [vmem:[%s183 + $0x550] sm:$0xff]
        %v356 = vld [vmem:[%s183 + $0x558] sm:$0xff]
        %v357 = vld [vmem:[%s183 + $0x560] sm:$0xff]
        %v358 = vld [vmem:[%s183 + $0x568] sm:$0xff]
        %v359 = vld [vmem:[%s183 + $0x570] sm:$0xff]
        %v360 = vld [vmem:[%s183 + $0x578] sm:$0xff]
        %v361 = vld [vmem:[%s183 + $0x580] sm:$0xff]
        %v362 = vld [vmem:[%s183 + $0x588] sm:$0xff]
        %v363 = vld [vmem:[%s183 + $0x590] sm:$0xff]
        %v364 = vld [vmem:[%s183 + $0x598] sm:$0xff]
        %v365 = vld [vmem:[%s183 + $0x5a0] sm:$0xff]
        %v366 = vld [vmem:[%s183 + $0x5a8] sm:$0xff]
        %v367 = vld [vmem:[%s183 + $0x5b0] sm:$0xff]
        %v368 = vld [vmem:[%s183 + $0x5b8] sm:$0xff]
        %v369 = vld [vmem:[%s183 + $0x5c0] sm:$0xff]
        %v370 = vld [vmem:[%s183 + $0x5c8] sm:$0xff]
        %v371 = vld [vmem:[%s183 + $0x5d0] sm:$0xff]
        %v372 = vld [vmem:[%s183 + $0x5d8] sm:$0xff]
        %v373 = vld [vmem:[%s183 + $0x5e0] sm:$0xff]
        %v374 = vld [vmem:[%s183 + $0x5e8] sm:$0xff]
        %v375 = vld [vmem:[%s183 + $0x5f0] sm:$0xff]
        %v376 = vld [vmem:[%s183 + $0x5f8] sm:$0xff]
        %v377 = vld [vmem:[%s1] sm:$0xff]
        %v378 = vld [vmem:[%s1 + $0x8] sm:$0xff]
        %v379 = vld [vmem:[%s1 + $0x10] sm:$0xff]
        %v380 = vld [vmem:[%s1 + $0x18] sm:$0xff]
        %v381 = vld [vmem:[%s1 + $0x20] sm:$0xff]
        %v382 = vld [vmem:[%s1 + $0x28] sm:$0xff]
        %v383 = vld [vmem:[%s1 + $0x30] sm:$0xff]
        %v384 = vld [vmem:[%s1 + $0x38] sm:$0xff]
        %v385 = vld [vmem:[%s1 + $0x40] sm:$0xff]
        %v386 = vld [vmem:[%s1 + $0x48] sm:$0xff]
        %v387 = vld [vmem:[%s1 + $0x50] sm:$0xff]
        %v388 = vld [vmem:[%s1 + $0x58] sm:$0xff]
        %v389 = vld [vmem:[%s1 + $0x60] sm:$0xff]
        %v390 = vld [vmem:[%s1 + $0x68] sm:$0xff]
        %v391 = vld [vmem:[%s1 + $0x70] sm:$0xff]
        %v392 = vld [vmem:[%s1 + $0x78] sm:$0xff]
        %v393 = vld [vmem:[%s1 + $0x80] sm:$0xff]
        %v394 = vld [vmem:[%s1 + $0x88] sm:$0xff]
        %v395 = vld [vmem:[%s1 + $0x90] sm:$0xff]
        %v396 = vld [vmem:[%s1 + $0x98] sm:$0xff]
        %v397 = vld [vmem:[%s1 + $0xa0] sm:$0xff]
        %v398 = vld [vmem:[%s1 + $0xa8] sm:$0xff]
        %v399 = vld [vmem:[%s1 + $0xb0] sm:$0xff]
        %v400 = vld [vmem:[%s1 + $0xb8] sm:$0xff]
        %v401 = vld [vmem:[%s1 + $0xc0] sm:$0xff]
        %v402 = vld [vmem:[%s1 + $0xc8] sm:$0xff]
        %v403 = vld [vmem:[%s1 + $0xd0] sm:$0xff]
        %v404 = vld [vmem:[%s1 + $0xd8] sm:$0xff]
        %v405 = vld [vmem:[%s1 + $0xe0] sm:$0xff]
        %v406 = vld [vmem:[%s1 + $0xe8] sm:$0xff]
        %v407 = vld [vmem:[%s1 + $0xf0] sm:$0xff]
        %v408 = vld [vmem:[%s1 + $0xf8] sm:$0xff]
        %v409 = vld [vmem:[%s1 + $0x100] sm:$0xff]
        %v410 = vld [vmem:[%s1 + $0x108] sm:$0xff]
        %v411 = vld [vmem:[%s1 + $0x110] sm:$0xff]
        %v412 = vld [vmem:[%s1 + $0x118] sm:$0xff]
        %v413 = vld [vmem:[%s1 + $0x120] sm:$0xff]
        %v414 = vld [vmem:[%s1 + $0x128] sm:$0xff]
        %v415 = vld [vmem:[%s1 + $0x130] sm:$0xff]
        %v416 = vld [vmem:[%s1 + $0x138] sm:$0xff]
        %v417 = vld [vmem:[%s1 + $0x140] sm:$0xff]
        %v418 = vld [vmem:[%s1 + $0x148] sm:$0xff]
        %v419 = vld [vmem:[%s1 + $0x150] sm:$0xff]
        %v420 = vld [vmem:[%s1 + $0x158] sm:$0xff]
        %v421 = vld [vmem:[%s1 + $0x160] sm:$0xff]
        %v422 = vld [vmem:[%s1 + $0x168] sm:$0xff]
        %v423 = vld [vmem:[%s1 + $0x170] sm:$0xff]
        %v424 = vld [vmem:[%s1 + $0x178] sm:$0xff]
        %v425 = vld [vmem:[%s1 + $0x180] sm:$0xff]
        %v426 = vld [vmem:[%s1 + $0x188] sm:$0xff]
        %v427 = vld [vmem:[%s1 + $0x190] sm:$0xff]
        %v428 = vld [vmem:[%s1 + $0x198] sm:$0xff]
        %v429 = vld [vmem:[%s1 + $0x1a0] sm:$0xff]
        %v430 = vld [vmem:[%s1 + $0x1a8] sm:$0xff]
        %v431 = vld [vmem:[%s1 + $0x1b0] sm:$0xff]
        %v432 = vld [vmem:[%s1 + $0x1b8] sm:$0xff]
        %v433 = vld [vmem:[%s1 + $0x1c0] sm:$0xff]
        %v434 = vld [vmem:[%s1 + $0x1c8] sm:$0xff]
        %v435 = vld [vmem:[%s1 + $0x1d0] sm:$0xff]
        %v436 = vld [vmem:[%s1 + $0x1d8] sm:$0xff]
        %v437 = vld [vmem:[%s1 + $0x1e0] sm:$0xff]
        %v438 = vld [vmem:[%s1 + $0x1e8] sm:$0xff]
        %v439 = vld [vmem:[%s1 + $0x1f0] sm:$0xff]
        %v440 = vld [vmem:[%s1 + $0x1f8] sm:$0xff]
        %v441 = vld [vmem:[%s1 + $0x200] sm:$0xff]
        %v442 = vld [vmem:[%s1 + $0x208] sm:$0xff]
        %v443 = vld [vmem:[%s1 + $0x210] sm:$0xff]
        %v444 = vld [vmem:[%s1 + $0x218] sm:$0xff]
        %v445 = vld [vmem:[%s1 + $0x220] sm:$0xff]
        %v446 = vld [vmem:[%s1 + $0x228] sm:$0xff]
        %v447 = vld [vmem:[%s1 + $0x230] sm:$0xff]
        %v448 = vld [vmem:[%s1 + $0x238] sm:$0xff]
        %v449 = vld [vmem:[%s1 + $0x240] sm:$0xff]
        %v450 = vld [vmem:[%s1 + $0x248] sm:$0xff]
        %v451 = vld [vmem:[%s1 + $0x250] sm:$0xff]
        %v452 = vld [vmem:[%s1 + $0x258] sm:$0xff]
        %v453 = vld [vmem:[%s1 + $0x260] sm:$0xff]
        %v454 = vld [vmem:[%s1 + $0x268] sm:$0xff]
        %v455 = vld [vmem:[%s1 + $0x270] sm:$0xff]
        %v456 = vld [vmem:[%s1 + $0x278] sm:$0xff]
        %v457 = vld [vmem:[%s1 + $0x280] sm:$0xff]
        %v458 = vld [vmem:[%s1 + $0x288] sm:$0xff]
        %v459 = vld [vmem:[%s1 + $0x290] sm:$0xff]
        %v460 = vld [vmem:[%s1 + $0x298] sm:$0xff]
        %v461 = vld [vmem:[%s1 + $0x2a0] sm:$0xff]
        %v462 = vld [vmem:[%s1 + $0x2a8] sm:$0xff]
        %v463 = vld [vmem:[%s1 + $0x2b0] sm:$0xff]
        %v464 = vld [vmem:[%s1 + $0x2b8] sm:$0xff]
        %v465 = vld [vmem:[%s1 + $0x2c0] sm:$0xff]
        %v466 = vld [vmem:[%s1 + $0x2c8] sm:$0xff]
        %v467 = vld [vmem:[%s1 + $0x2d0] sm:$0xff]
        %v468 = vld [vmem:[%s1 + $0x2d8] sm:$0xff]
        %v469 = vld [vmem:[%s1 + $0x2e0] sm:$0xff]
        %v470 = vld [vmem:[%s1 + $0x2e8] sm:$0xff]
        %v471 = vld [vmem:[%s1 + $0x2f0] sm:$0xff]
        %v472 = vld [vmem:[%s1 + $0x2f8] sm:$0xff]
        %v473 = vld [vmem:[%s1 + $0x300] sm:$0xff]
        %v474 = vld [vmem:[%s1 + $0x308] sm:$0xff]
        %v475 = vld [vmem:[%s1 + $0x310] sm:$0xff]
        %v476 = vld [vmem:[%s1 + $0x318] sm:$0xff]
        %v477 = vld [vmem:[%s1 + $0x320] sm:$0xff]
        %v478 = vld [vmem:[%s1 + $0x328] sm:$0xff]
        %v479 = vld [vmem:[%s1 + $0x330] sm:$0xff]
        %v480 = vld [vmem:[%s1 + $0x338] sm:$0xff]
        %v481 = vld [vmem:[%s1 + $0x340] sm:$0xff]
        %v482 = vld [vmem:[%s1 + $0x348] sm:$0xff]
        %v483 = vld [vmem:[%s1 + $0x350] sm:$0xff]
        %v484 = vld [vmem:[%s1 + $0x358] sm:$0xff]
        %v485 = vld [vmem:[%s1 + $0x360] sm:$0xff]
        %v486 = vld [vmem:[%s1 + $0x368] sm:$0xff]
        %v487 = vld [vmem:[%s1 + $0x370] sm:$0xff]
        %v488 = vld [vmem:[%s1 + $0x378] sm:$0xff]
        %v489 = vld [vmem:[%s1 + $0x380] sm:$0xff]
        %v490 = vld [vmem:[%s1 + $0x388] sm:$0xff]
        %v491 = vld [vmem:[%s1 + $0x390] sm:$0xff]
        %v492 = vld [vmem:[%s1 + $0x398] sm:$0xff]
        %v493 = vld [vmem:[%s1 + $0x3a0] sm:$0xff]
        %v494 = vld [vmem:[%s1 + $0x3a8] sm:$0xff]
        %v495 = vld [vmem:[%s1 + $0x3b0] sm:$0xff]
        %v496 = vld [vmem:[%s1 + $0x3b8] sm:$0xff]
        %v497 = vld [vmem:[%s1 + $0x3c0] sm:$0xff]
        %v498 = vld [vmem:[%s1 + $0x3c8] sm:$0xff]
        %v499 = vld [vmem:[%s1 + $0x3d0] sm:$0xff]
        %v500 = vld [vmem:[%s1 + $0x3d8] sm:$0xff]
        %v501 = vld [vmem:[%s1 + $0x3e0] sm:$0xff]
        %v502 = vld [vmem:[%s1 + $0x3e8] sm:$0xff]
        %v503 = vld [vmem:[%s1 + $0x3f0] sm:$0xff]
        %v504 = vld [vmem:[%s1 + $0x3f8] sm:$0xff]
        %v505 = vld [vmem:[%s1 + $0x400] sm:$0xff]
        %v506 = vld [vmem:[%s1 + $0x408] sm:$0xff]
        %v507 = vld [vmem:[%s1 + $0x410] sm:$0xff]
        %v508 = vld [vmem:[%s1 + $0x418] sm:$0xff]
        %v509 = vld [vmem:[%s1 + $0x420] sm:$0xff]
        %v510 = vld [vmem:[%s1 + $0x428] sm:$0xff]
        %v511 = vld [vmem:[%s1 + $0x430] sm:$0xff]
        %v512 = vld [vmem:[%s1 + $0x438] sm:$0xff]
        %v513 = vld [vmem:[%s1 + $0x440] sm:$0xff]
        %v514 = vld [vmem:[%s1 + $0x448] sm:$0xff]
        %v515 = vld [vmem:[%s1 + $0x450] sm:$0xff]
        %v516 = vld [vmem:[%s1 + $0x458] sm:$0xff]
        %v517 = vld [vmem:[%s1 + $0x460] sm:$0xff]
        %v518 = vld [vmem:[%s1 + $0x468] sm:$0xff]
        %v519 = vld [vmem:[%s1 + $0x470] sm:$0xff]
        %v520 = vld [vmem:[%s1 + $0x478] sm:$0xff]
        %v521 = vld [vmem:[%s1 + $0x480] sm:$0xff]
        %v522 = vld [vmem:[%s1 + $0x488] sm:$0xff]
        %v523 = vld [vmem:[%s1 + $0x490] sm:$0xff]
        %v524 = vld [vmem:[%s1 + $0x498] sm:$0xff]
        %v525 = vld [vmem:[%s1 + $0x4a0] sm:$0xff]
        %v526 = vld [vmem:[%s1 + $0x4a8] sm:$0xff]
        %v527 = vld [vmem:[%s1 + $0x4b0] sm:$0xff]
        %v528 = vld [vmem:[%s1 + $0x4b8] sm:$0xff]
        %v529 = vld [vmem:[%s1 + $0x4c0] sm:$0xff]
        %v530 = vld [vmem:[%s1 + $0x4c8] sm:$0xff]
        %v531 = vld [vmem:[%s1 + $0x4d0] sm:$0xff]
        %v532 = vld [vmem:[%s1 + $0x4d8] sm:$0xff]
        %v533 = vld [vmem:[%s1 + $0x4e0] sm:$0xff]
        %v534 = vld [vmem:[%s1 + $0x4e8] sm:$0xff]
        %v535 = vld [vmem:[%s1 + $0x4f0] sm:$0xff]
        %v536 = vld [vmem:[%s1 + $0x4f8] sm:$0xff]
        %v537 = vld [vmem:[%s1 + $0x500] sm:$0xff]
        %v538 = vld [vmem:[%s1 + $0x508] sm:$0xff]
        %v539 = vld [vmem:[%s1 + $0x510] sm:$0xff]
        %v540 = vld [vmem:[%s1 + $0x518] sm:$0xff]
        %v541 = vld [vmem:[%s1 + $0x520] sm:$0xff]
        %v542 = vld [vmem:[%s1 + $0x528] sm:$0xff]
        %v543 = vld [vmem:[%s1 + $0x530] sm:$0xff]
        %v544 = vld [vmem:[%s1 + $0x538] sm:$0xff]
        %v545 = vld [vmem:[%s1 + $0x540] sm:$0xff]
        %v546 = vld [vmem:[%s1 + $0x548] sm:$0xff]
        %v547 = vld [vmem:[%s1 + $0x550] sm:$0xff]
        %v548 = vld [vmem:[%s1 + $0x558] sm:$0xff]
        %v549 = vld [vmem:[%s1 + $0x560] sm:$0xff]
        %v550 = vld [vmem:[%s1 + $0x568] sm:$0xff]
        %v551 = vld [vmem:[%s1 + $0x570] sm:$0xff]
        %v552 = vld [vmem:[%s1 + $0x578] sm:$0xff]
        %v553 = vld [vmem:[%s1 + $0x580] sm:$0xff]
        %v554 = vld [vmem:[%s1 + $0x588] sm:$0xff]
        %v555 = vld [vmem:[%s1 + $0x590] sm:$0xff]
        %v556 = vld [vmem:[%s1 + $0x598] sm:$0xff]
        %v557 = vld [vmem:[%s1 + $0x5a0] sm:$0xff]
        %v558 = vld [vmem:[%s1 + $0x5a8] sm:$0xff]
        %v559 = vld [vmem:[%s1 + $0x5b0] sm:$0xff]
        %v560 = vld [vmem:[%s1 + $0x5b8] sm:$0xff]
        %v561 = vld [vmem:[%s1 + $0x5c0] sm:$0xff]
        %v562 = vld [vmem:[%s1 + $0x5c8] sm:$0xff]
        %v563 = vld [vmem:[%s1 + $0x5d0] sm:$0xff]
        %v564 = vld [vmem:[%s1 + $0x5d8] sm:$0xff]
        %v565 = vld [vmem:[%s1 + $0x5e0] sm:$0xff]
        %v566 = vld [vmem:[%s1 + $0x5e8] sm:$0xff]
        %v567 = vld [vmem:[%s1 + $0x5f0] sm:$0xff]
        %v568 = vld [vmem:[%s1 + $0x5f8] sm:$0xff]
        %v569 = vld [vmem:[%s1 + $0x600] sm:$0xff]
        %v570 = vld [vmem:[%s1 + $0x608] sm:$0xff]
        %v571 = vld [vmem:[%s1 + $0x610] sm:$0xff]
        %v572 = vld [vmem:[%s1 + $0x618] sm:$0xff]
        %v573 = vld [vmem:[%s1 + $0x620] sm:$0xff]
        %v574 = vld [vmem:[%s1 + $0x628] sm:$0xff]
        %v575 = vld [vmem:[%s1 + $0x630] sm:$0xff]
        %v576 = vld [vmem:[%s1 + $0x638] sm:$0xff]
        %v577 = vld [vmem:[%s1 + $0x640] sm:$0xff]
        %v578 = vld [vmem:[%s1 + $0x648] sm:$0xff]
        %v579 = vld [vmem:[%s1 + $0x650] sm:$0xff]
        %v580 = vld [vmem:[%s1 + $0x658] sm:$0xff]
        %v581 = vld [vmem:[%s1 + $0x660] sm:$0xff]
        %v582 = vld [vmem:[%s1 + $0x668] sm:$0xff]
        %v583 = vld [vmem:[%s1 + $0x670] sm:$0xff]
        %v584 = vld [vmem:[%s1 + $0x678] sm:$0xff]
        %v585 = vld [vmem:[%s1 + $0x680] sm:$0xff]
        %v586 = vld [vmem:[%s1 + $0x688] sm:$0xff]
        %v587 = vld [vmem:[%s1 + $0x690] sm:$0xff]
        %v588 = vld [vmem:[%s1 + $0x698] sm:$0xff]
        %v589 = vld [vmem:[%s1 + $0x6a0] sm:$0xff]
        %v590 = vld [vmem:[%s1 + $0x6a8] sm:$0xff]
        %v591 = vld [vmem:[%s1 + $0x6b0] sm:$0xff]
        %v592 = vld [vmem:[%s1 + $0x6b8] sm:$0xff]
        %v593 = vld [vmem:[%s1 + $0x6c0] sm:$0xff]
        %v594 = vld [vmem:[%s1 + $0x6c8] sm:$0xff]
        %v595 = vld [vmem:[%s1 + $0x6d0] sm:$0xff]
        %v596 = vld [vmem:[%s1 + $0x6d8] sm:$0xff]
        %v597 = vld [vmem:[%s1 + $0x6e0] sm:$0xff]
        %v598 = vld [vmem:[%s1 + $0x6e8] sm:$0xff]
        %v599 = vld [vmem:[%s1 + $0x6f0] sm:$0xff]
        %v600 = vld [vmem:[%s1 + $0x6f8] sm:$0xff]
        %v601 = vld [vmem:[%s1 + $0x700] sm:$0xff]
        %v602 = vld [vmem:[%s1 + $0x708] sm:$0xff]
        %v603 = vld [vmem:[%s1 + $0x710] sm:$0xff]
        %v604 = vld [vmem:[%s1 + $0x718] sm:$0xff]
        %v605 = vld [vmem:[%s1 + $0x720] sm:$0xff]
        %v606 = vld [vmem:[%s1 + $0x728] sm:$0xff]
        %v607 = vld [vmem:[%s1 + $0x730] sm:$0xff]
        %v608 = vld [vmem:[%s1 + $0x738] sm:$0xff]
        %v609 = vld [vmem:[%s1 + $0x740] sm:$0xff]
        %v610 = vld [vmem:[%s1 + $0x748] sm:$0xff]
        %v611 = vld [vmem:[%s1 + $0x750] sm:$0xff]
        %v612 = vld [vmem:[%s1 + $0x758] sm:$0xff]
        %v613 = vld [vmem:[%s1 + $0x760] sm:$0xff]
        %v614 = vld [vmem:[%s1 + $0x768] sm:$0xff]
        %v615 = vld [vmem:[%s1 + $0x770] sm:$0xff]
        %v616 = vld [vmem:[%s1 + $0x778] sm:$0xff]
        %v617 = vld [vmem:[%s1 + $0x780] sm:$0xff]
        %v618 = vld [vmem:[%s1 + $0x788] sm:$0xff]
        %v619 = vld [vmem:[%s1 + $0x790] sm:$0xff]
        %v620 = vld [vmem:[%s1 + $0x798] sm:$0xff]
        %v621 = vld [vmem:[%s1 + $0x7a0] sm:$0xff]
        %v622 = vld [vmem:[%s1 + $0x7a8] sm:$0xff]
        %v623 = vld [vmem:[%s1 + $0x7b0] sm:$0xff]
        %v624 = vld [vmem:[%s1 + $0x7b8] sm:$0xff]
        %v625 = vld [vmem:[%s1 + $0x7c0] sm:$0xff]
        %v626 = vld [vmem:[%s1 + $0x7c8] sm:$0xff]
        %v627 = vld [vmem:[%s1 + $0x7d0] sm:$0xff]
        %v628 = vld [vmem:[%s1 + $0x7d8] sm:$0xff]
        %v629 = vld [vmem:[%s1 + $0x7e0] sm:$0xff]
        %v630 = vld [vmem:[%s1 + $0x7e8] sm:$0xff]
        %v631 = vld [vmem:[%s1 + $0x7f0] sm:$0xff]
        %v632 = vld [vmem:[%s1 + $0x7f8] sm:$0xff]
        %v633 = vld [vmem:[%s1 + $0x800] sm:$0xff]
        %v634 = vld [vmem:[%s1 + $0x808] sm:$0xff]
        %v635 = vld [vmem:[%s1 + $0x810] sm:$0xff]
        %v636 = vld [vmem:[%s1 + $0x818] sm:$0xff]
        %v637 = vld [vmem:[%s1 + $0x820] sm:$0xff]
        %v638 = vld [vmem:[%s1 + $0x828] sm:$0xff]
        %v639 = vld [vmem:[%s1 + $0x830] sm:$0xff]
        %v640 = vld [vmem:[%s1 + $0x838] sm:$0xff]
        %v641 = vld [vmem:[%s1 + $0x840] sm:$0xff]
        %v642 = vld [vmem:[%s1 + $0x848] sm:$0xff]
        %v643 = vld [vmem:[%s1 + $0x850] sm:$0xff]
        %v644 = vld [vmem:[%s1 + $0x858] sm:$0xff]
        %v645 = vld [vmem:[%s1 + $0x860] sm:$0xff]
        %v646 = vld [vmem:[%s1 + $0x868] sm:$0xff]
        %v647 = vld [vmem:[%s1 + $0x870] sm:$0xff]
        %v648 = vld [vmem:[%s1 + $0x878] sm:$0xff]
        %v649 = vld [vmem:[%s1 + $0x880] sm:$0xff]
        %v650 = vld [vmem:[%s1 + $0x888] sm:$0xff]
        %v651 = vld [vmem:[%s1 + $0x890] sm:$0xff]
        %v652 = vld [vmem:[%s1 + $0x898] sm:$0xff]
        %v653 = vld [vmem:[%s1 + $0x8a0] sm:$0xff]
        %v654 = vld [vmem:[%s1 + $0x8a8] sm:$0xff]
        %v655 = vld [vmem:[%s1 + $0x8b0] sm:$0xff]
        %v656 = vld [vmem:[%s1 + $0x8b8] sm:$0xff]
        %v657 = vld [vmem:[%s1 + $0x8c0] sm:$0xff]
        %v658 = vld [vmem:[%s1 + $0x8c8] sm:$0xff]
        %v659 = vld [vmem:[%s1 + $0x8d0] sm:$0xff]
        %v660 = vld [vmem:[%s1 + $0x8d8] sm:$0xff]
        %v661 = vld [vmem:[%s1 + $0x8e0] sm:$0xff]
        %v662 = vld [vmem:[%s1 + $0x8e8] sm:$0xff]
        %v663 = vld [vmem:[%s1 + $0x8f0] sm:$0xff]
        %v664 = vld [vmem:[%s1 + $0x8f8] sm:$0xff]
        %v665 = vld [vmem:[%s1 + $0x900] sm:$0xff]
        %v666 = vld [vmem:[%s1 + $0x908] sm:$0xff]
        %v667 = vld [vmem:[%s1 + $0x910] sm:$0xff]
        %v668 = vld [vmem:[%s1 + $0x918] sm:$0xff]
        %v669 = vld [vmem:[%s1 + $0x920] sm:$0xff]
        %v670 = vld [vmem:[%s1 + $0x928] sm:$0xff]
        %v671 = vld [vmem:[%s1 + $0x930] sm:$0xff]
        %v672 = vld [vmem:[%s1 + $0x938] sm:$0xff]
        %v673 = vld [vmem:[%s1 + $0x940] sm:$0xff]
        %v674 = vld [vmem:[%s1 + $0x948] sm:$0xff]
        %v675 = vld [vmem:[%s1 + $0x950] sm:$0xff]
        %v676 = vld [vmem:[%s1 + $0x958] sm:$0xff]
        %v677 = vld [vmem:[%s1 + $0x960] sm:$0xff]
        %v678 = vld [vmem:[%s1 + $0x968] sm:$0xff]
        %v679 = vld [vmem:[%s1 + $0x970] sm:$0xff]
        %v680 = vld [vmem:[%s1 + $0x978] sm:$0xff]
        %v681 = vld [vmem:[%s1 + $0x980] sm:$0xff]
        %v682 = vld [vmem:[%s1 + $0x988] sm:$0xff]
        %v683 = vld [vmem:[%s1 + $0x990] sm:$0xff]
        %v684 = vld [vmem:[%s1 + $0x998] sm:$0xff]
        %v685 = vld [vmem:[%s1 + $0x9a0] sm:$0xff]
        %v686 = vld [vmem:[%s1 + $0x9a8] sm:$0xff]
        %v687 = vld [vmem:[%s1 + $0x9b0] sm:$0xff]
        %v688 = vld [vmem:[%s1 + $0x9b8] sm:$0xff]
        %v689 = vld [vmem:[%s1 + $0x9c0] sm:$0xff]
        %v690 = vld [vmem:[%s1 + $0x9c8] sm:$0xff]
        %v691 = vld [vmem:[%s1 + $0x9d0] sm:$0xff]
        %v692 = vld [vmem:[%s1 + $0x9d8] sm:$0xff]
        %v693 = vld [vmem:[%s1 + $0x9e0] sm:$0xff]
        %v694 = vld [vmem:[%s1 + $0x9e8] sm:$0xff]
        %v695 = vld [vmem:[%s1 + $0x9f0] sm:$0xff]
        %v696 = vld [vmem:[%s1 + $0x9f8] sm:$0xff]
        %vm697 = vcmask 523264
        %v699 = vsel %vm697, %v187, 0
        %v702 = vsel %vm697, %v190, 0
        %v705 = vsel %vm697, %v193, 0
        %v708 = vsel %vm697, %v196, 0
        %v711 = vsel %vm697, %v199, 0
        %v714 = vsel %vm697, %v202, 0
        %v717 = vsel %vm697, %v205, 0
        %v720 = vsel %vm697, %v208, 0
        %v723 = vsel %vm697, %v211, 0
        %v726 = vsel %vm697, %v214, 0
        %v729 = vsel %vm697, %v217, 0
        %v732 = vsel %vm697, %v220, 0
        %v735 = vsel %vm697, %v223, 0
        %v738 = vsel %vm697, %v226, 0
        %v741 = vsel %vm697, %v229, 0
        %v744 = vsel %vm697, %v232, 0
        %v747 = vsel %vm697, %v235, 0
        %v750 = vsel %vm697, %v238, 0
        %v753 = vsel %vm697, %v241, 0
        %v756 = vsel %vm697, %v244, 0
        %v759 = vsel %vm697, %v247, 0
        %v762 = vsel %vm697, %v250, 0
        %v765 = vsel %vm697, %v253, 0
        %v768 = vsel %vm697, %v256, 0
        %v771 = vsel %vm697, %v259, 0
        %v774 = vsel %vm697, %v262, 0
        %v777 = vsel %vm697, %v265, 0
        %v780 = vsel %vm697, %v268, 0
        %v783 = vsel %vm697, %v271, 0
        %v786 = vsel %vm697, %v274, 0
        %v789 = vsel %vm697, %v277, 0
        %v792 = vsel %vm697, %v280, 0
        %v795 = vsel %vm697, %v283, 0
        %v798 = vsel %vm697, %v286, 0
        %v801 = vsel %vm697, %v289, 0
        %v804 = vsel %vm697, %v292, 0
        %v807 = vsel %vm697, %v295, 0
        %v810 = vsel %vm697, %v298, 0
        %v813 = vsel %vm697, %v301, 0
        %v816 = vsel %vm697, %v304, 0
        %v819 = vsel %vm697, %v307, 0
        %v822 = vsel %vm697, %v310, 0
        %v825 = vsel %vm697, %v313, 0
        %v828 = vsel %vm697, %v316, 0
        %v831 = vsel %vm697, %v319, 0
        %v834 = vsel %vm697, %v322, 0
        %v837 = vsel %vm697, %v325, 0
        %v840 = vsel %vm697, %v328, 0
        %v843 = vsel %vm697, %v331, 0
        %v846 = vsel %vm697, %v334, 0
        %v849 = vsel %vm697, %v337, 0
        %v852 = vsel %vm697, %v340, 0
        %v855 = vsel %vm697, %v343, 0
        %v858 = vsel %vm697, %v346, 0
        %v861 = vsel %vm697, %v349, 0
        %v864 = vsel %vm697, %v352, 0
        %v867 = vsel %vm697, %v355, 0
        %v870 = vsel %vm697, %v358, 0
        %v873 = vsel %vm697, %v361, 0
        %v876 = vsel %vm697, %v364, 0
        %v879 = vsel %vm697, %v367, 0
        %v882 = vsel %vm697, %v370, 0
        %v885 = vsel %vm697, %v373, 0
        %v888 = vsel %vm697, %v376, 0
        %890 = vmatpush.msra.mxu0 %v497
        %891 = vmatpush.msra.mxu0 %v489
        %892 = vmatpush.msra.mxu0 %v481
        %893 = vmatpush.msra.mxu0 %v473
        %894 = vmatpush.msra.mxu0 %v465
        %895 = vmatpush.msra.mxu0 %v457
        %896 = vmatpush.msra.mxu0 %v449
        %897 = vmatpush.msra.mxu0 %v441
        %898 = vmatpush.msra.mxu0 %v433
        %899 = vmatpush.msra.mxu0 %v425
        %900 = vmatpush.msra.mxu0 %v417
        %901 = vmatpush.msra.mxu0 %v409
        %902 = vmatpush.msra.mxu0 %v401
        %903 = vmatpush.msra.mxu0 %v393
        %904 = vmatpush.msra.mxu0 %v385
        %905 = vmatpush.msra.mxu0 %v377
        %906 = vmatmul.f32.gmra.mxu0 %v185
        %v907 = vpop.f32.mrf.mxu0
        %v908 = vadd.f32 0.0, %v907
        %909 = vmatmul.f32.gmra.mxu0 %v188
        %v910 = vpop.f32.mrf.mxu0
        %v911 = vadd.f32 0.0, %v910
        %912 = vmatmul.f32.gmra.mxu0 %v191
        %v913 = vpop.f32.mrf.mxu0
        %v914 = vadd.f32 0.0, %v913
        %915 = vmatmul.f32.gmra.mxu0 %v194
        %v916 = vpop.f32.mrf.mxu0
        %v917 = vadd.f32 0.0, %v916
        %918 = vmatmul.f32.gmra.mxu0 %v197
        %v919 = vpop.f32.mrf.mxu0
        %v920 = vadd.f32 0.0, %v919
        %921 = vmatmul.f32.gmra.mxu0 %v200
        %v922 = vpop.f32.mrf.mxu0
        %v923 = vadd.f32 0.0, %v922
        %924 = vmatmul.f32.gmra.mxu0 %v203
        %v925 = vpop.f32.mrf.mxu0
        %v926 = vadd.f32 0.0, %v925
        %927 = vmatmul.f32.gmra.mxu0 %v206
        %v928 = vpop.f32.mrf.mxu0
        %v929 = vadd.f32 0.0, %v928
        %930 = vmatmul.f32.gmra.mxu0 %v209
        %v931 = vpop.f32.mrf.mxu0
        %v932 = vadd.f32 0.0, %v931
        %933 = vmatmul.f32.gmra.mxu0 %v212
        %v934 = vpop.f32.mrf.mxu0
        %v935 = vadd.f32 0.0, %v934
        %936 = vmatmul.f32.gmra.mxu0 %v215
        %v937 = vpop.f32.mrf.mxu0
        %v938 = vadd.f32 0.0, %v937
        %939 = vmatmul.f32.gmra.mxu0 %v218
        %v940 = vpop.f32.mrf.mxu0
        %v941 = vadd.f32 0.0, %v940
        %942 = vmatmul.f32.gmra.mxu0 %v221
        %v943 = vpop.f32.mrf.mxu0
        %v944 = vadd.f32 0.0, %v943
        %945 = vmatmul.f32.gmra.mxu0 %v224
        %v946 = vpop.f32.mrf.mxu0
        %v947 = vadd.f32 0.0, %v946
        %948 = vmatmul.f32.gmra.mxu0 %v227
        %v949 = vpop.f32.mrf.mxu0
        %v950 = vadd.f32 0.0, %v949
        %951 = vmatmul.f32.gmra.mxu0 %v230
        %v952 = vpop.f32.mrf.mxu0
        %v953 = vadd.f32 0.0, %v952
        %954 = vmatmul.f32.gmra.mxu0 %v233
        %v955 = vpop.f32.mrf.mxu0
        %v956 = vadd.f32 0.0, %v955
        %957 = vmatmul.f32.gmra.mxu0 %v236
        %v958 = vpop.f32.mrf.mxu0
        %v959 = vadd.f32 0.0, %v958
        %960 = vmatmul.f32.gmra.mxu0 %v239
        %v961 = vpop.f32.mrf.mxu0
        %v962 = vadd.f32 0.0, %v961
        %963 = vmatmul.f32.gmra.mxu0 %v242
        %v964 = vpop.f32.mrf.mxu0
        %v965 = vadd.f32 0.0, %v964
        %966 = vmatmul.f32.gmra.mxu0 %v245
        %v967 = vpop.f32.mrf.mxu0
        %v968 = vadd.f32 0.0, %v967
        %969 = vmatmul.f32.gmra.mxu0 %v248
        %v970 = vpop.f32.mrf.mxu0
        %v971 = vadd.f32 0.0, %v970
        %972 = vmatmul.f32.gmra.mxu0 %v251
        %v973 = vpop.f32.mrf.mxu0
        %v974 = vadd.f32 0.0, %v973
        %975 = vmatmul.f32.gmra.mxu0 %v254
        %v976 = vpop.f32.mrf.mxu0
        %v977 = vadd.f32 0.0, %v976
        %978 = vmatmul.f32.gmra.mxu0 %v257
        %v979 = vpop.f32.mrf.mxu0
        %v980 = vadd.f32 0.0, %v979
        %981 = vmatmul.f32.gmra.mxu0 %v260
        %v982 = vpop.f32.mrf.mxu0
        %v983 = vadd.f32 0.0, %v982
        %984 = vmatmul.f32.gmra.mxu0 %v263
        %v985 = vpop.f32.mrf.mxu0
        %v986 = vadd.f32 0.0, %v985
        %987 = vmatmul.f32.gmra.mxu0 %v266
        %v988 = vpop.f32.mrf.mxu0
        %v989 = vadd.f32 0.0, %v988
        %990 = vmatmul.f32.gmra.mxu0 %v269
        %v991 = vpop.f32.mrf.mxu0
        %v992 = vadd.f32 0.0, %v991
        %993 = vmatmul.f32.gmra.mxu0 %v272
        %v994 = vpop.f32.mrf.mxu0
        %v995 = vadd.f32 0.0, %v994
        %996 = vmatmul.f32.gmra.mxu0 %v275
        %v997 = vpop.f32.mrf.mxu0
        %v998 = vadd.f32 0.0, %v997
        %999 = vmatmul.f32.gmra.mxu0 %v278
        %v1000 = vpop.f32.mrf.mxu0
        %v1001 = vadd.f32 0.0, %v1000
        %1002 = vmatmul.f32.gmra.mxu0 %v281
        %v1003 = vpop.f32.mrf.mxu0
        %v1004 = vadd.f32 0.0, %v1003
        %1005 = vmatmul.f32.gmra.mxu0 %v284
        %v1006 = vpop.f32.mrf.mxu0
        %v1007 = vadd.f32 0.0, %v1006
        %1008 = vmatmul.f32.gmra.mxu0 %v287
        %v1009 = vpop.f32.mrf.mxu0
        %v1010 = vadd.f32 0.0, %v1009
        %1011 = vmatmul.f32.gmra.mxu0 %v290
        %v1012 = vpop.f32.mrf.mxu0
        %v1013 = vadd.f32 0.0, %v1012
        %1014 = vmatmul.f32.gmra.mxu0 %v293
        %v1015 = vpop.f32.mrf.mxu0
        %v1016 = vadd.f32 0.0, %v1015
        %1017 = vmatmul.f32.gmra.mxu0 %v296
        %v1018 = vpop.f32.mrf.mxu0
        %v1019 = vadd.f32 0.0, %v1018
        %1020 = vmatmul.f32.gmra.mxu0 %v299
        %v1021 = vpop.f32.mrf.mxu0
        %v1022 = vadd.f32 0.0, %v1021
        %1023 = vmatmul.f32.gmra.mxu0 %v302
        %v1024 = vpop.f32.mrf.mxu0
        %v1025 = vadd.f32 0.0, %v1024
        %1026 = vmatmul.f32.gmra.mxu0 %v305
        %v1027 = vpop.f32.mrf.mxu0
        %v1028 = vadd.f32 0.0, %v1027
        %1029 = vmatmul.f32.gmra.mxu0 %v308
        %v1030 = vpop.f32.mrf.mxu0
        %v1031 = vadd.f32 0.0, %v1030
        %1032 = vmatmul.f32.gmra.mxu0 %v311
        %v1033 = vpop.f32.mrf.mxu0
        %v1034 = vadd.f32 0.0, %v1033
        %1035 = vmatmul.f32.gmra.mxu0 %v314
        %v1036 = vpop.f32.mrf.mxu0
        %v1037 = vadd.f32 0.0, %v1036
        %1038 = vmatmul.f32.gmra.mxu0 %v317
        %v1039 = vpop.f32.mrf.mxu0
        %v1040 = vadd.f32 0.0, %v1039
        %1041 = vmatmul.f32.gmra.mxu0 %v320
        %v1042 = vpop.f32.mrf.mxu0
        %v1043 = vadd.f32 0.0, %v1042
        %1044 = vmatmul.f32.gmra.mxu0 %v323
        %v1045 = vpop.f32.mrf.mxu0
        %v1046 = vadd.f32 0.0, %v1045
        %1047 = vmatmul.f32.gmra.mxu0 %v326
        %v1048 = vpop.f32.mrf.mxu0
        %v1049 = vadd.f32 0.0, %v1048
        %1050 = vmatmul.f32.gmra.mxu0 %v329
        %v1051 = vpop.f32.mrf.mxu0
        %v1052 = vadd.f32 0.0, %v1051
        %1053 = vmatmul.f32.gmra.mxu0 %v332
        %v1054 = vpop.f32.mrf.mxu0
        %v1055 = vadd.f32 0.0, %v1054
        %1056 = vmatmul.f32.gmra.mxu0 %v335
        %v1057 = vpop.f32.mrf.mxu0
        %v1058 = vadd.f32 0.0, %v1057
        %1059 = vmatmul.f32.gmra.mxu0 %v338
        %v1060 = vpop.f32.mrf.mxu0
        %v1061 = vadd.f32 0.0, %v1060
        %1062 = vmatmul.f32.gmra.mxu0 %v341
        %v1063 = vpop.f32.mrf.mxu0
        %v1064 = vadd.f32 0.0, %v1063
        %1065 = vmatmul.f32.gmra.mxu0 %v344
        %v1066 = vpop.f32.mrf.mxu0
        %v1067 = vadd.f32 0.0, %v1066
        %1068 = vmatmul.f32.gmra.mxu0 %v347
        %v1069 = vpop.f32.mrf.mxu0
        %v1070 = vadd.f32 0.0, %v1069
        %1071 = vmatmul.f32.gmra.mxu0 %v350
        %v1072 = vpop.f32.mrf.mxu0
        %v1073 = vadd.f32 0.0, %v1072
        %1074 = vmatmul.f32.gmra.mxu0 %v353
        %v1075 = vpop.f32.mrf.mxu0
        %v1076 = vadd.f32 0.0, %v1075
        %1077 = vmatmul.f32.gmra.mxu0 %v356
        %v1078 = vpop.f32.mrf.mxu0
        %v1079 = vadd.f32 0.0, %v1078
        %1080 = vmatmul.f32.gmra.mxu0 %v359
        %v1081 = vpop.f32.mrf.mxu0
        %v1082 = vadd.f32 0.0, %v1081
        %1083 = vmatmul.f32.gmra.mxu0 %v362
        %v1084 = vpop.f32.mrf.mxu0
        %v1085 = vadd.f32 0.0, %v1084
        %1086 = vmatmul.f32.gmra.mxu0 %v365
        %v1087 = vpop.f32.mrf.mxu0
        %v1088 = vadd.f32 0.0, %v1087
        %1089 = vmatmul.f32.gmra.mxu0 %v368
        %v1090 = vpop.f32.mrf.mxu0
        %v1091 = vadd.f32 0.0, %v1090
        %1092 = vmatmul.f32.gmra.mxu0 %v371
        %v1093 = vpop.f32.mrf.mxu0
        %v1094 = vadd.f32 0.0, %v1093
        %1095 = vmatmul.f32.gmra.mxu0 %v374
        %v1096 = vpop.f32.mrf.mxu0
        %v1097 = vadd.f32 0.0, %v1096
        %1098 = vdwg.mxu0
        %1099 = vmatpush.msra.mxu0 %v625
        %1100 = vmatpush.msra.mxu0 %v617
        %1101 = vmatpush.msra.mxu0 %v609
        %1102 = vmatpush.msra.mxu0 %v601
        %1103 = vmatpush.msra.mxu0 %v593
        %1104 = vmatpush.msra.mxu0 %v585
        %1105 = vmatpush.msra.mxu0 %v577
        %1106 = vmatpush.msra.mxu0 %v569
        %1107 = vmatpush.msra.mxu0 %v561
        %1108 = vmatpush.msra.mxu0 %v553
        %1109 = vmatpush.msra.mxu0 %v545
        %1110 = vmatpush.msra.mxu0 %v537
        %1111 = vmatpush.msra.mxu0 %v529
        %1112 = vmatpush.msra.mxu0 %v521
        %1113 = vmatpush.msra.mxu0 %v513
        %1114 = vmatpush.msra.mxu0 %v505
        %1115 = vmatmul.f32.gmra.mxu0 %v186
        %v1116 = vpop.f32.mrf.mxu0
        %v1117 = vadd.f32 %v908, %v1116
        %1118 = vmatmul.f32.gmra.mxu0 %v189
        %v1119 = vpop.f32.mrf.mxu0
        %v1120 = vadd.f32 %v911, %v1119
        %1121 = vmatmul.f32.gmra.mxu0 %v192
        %v1122 = vpop.f32.mrf.mxu0
        %v1123 = vadd.f32 %v914, %v1122
        %1124 = vmatmul.f32.gmra.mxu0 %v195
        %v1125 = vpop.f32.mrf.mxu0
        %v1126 = vadd.f32 %v917, %v1125
        %1127 = vmatmul.f32.gmra.mxu0 %v198
        %v1128 = vpop.f32.mrf.mxu0
        %v1129 = vadd.f32 %v920, %v1128
        %1130 = vmatmul.f32.gmra.mxu0 %v201
        %v1131 = vpop.f32.mrf.mxu0
        %v1132 = vadd.f32 %v923, %v1131
        %1133 = vmatmul.f32.gmra.mxu0 %v204
        %v1134 = vpop.f32.mrf.mxu0
        %v1135 = vadd.f32 %v926, %v1134
        %1136 = vmatmul.f32.gmra.mxu0 %v207
        %v1137 = vpop.f32.mrf.mxu0
        %v1138 = vadd.f32 %v929, %v1137
        %1139 = vmatmul.f32.gmra.mxu0 %v210
        %v1140 = vpop.f32.mrf.mxu0
        %v1141 = vadd.f32 %v932, %v1140
        %1142 = vmatmul.f32.gmra.mxu0 %v213
        %v1143 = vpop.f32.mrf.mxu0
        %v1144 = vadd.f32 %v935, %v1143
        %1145 = vmatmul.f32.gmra.mxu0 %v216
        %v1146 = vpop.f32.mrf.mxu0
        %v1147 = vadd.f32 %v938, %v1146
        %1148 = vmatmul.f32.gmra.mxu0 %v219
        %v1149 = vpop.f32.mrf.mxu0
        %v1150 = vadd.f32 %v941, %v1149
        %1151 = vmatmul.f32.gmra.mxu0 %v222
        %v1152 = vpop.f32.mrf.mxu0
        %v1153 = vadd.f32 %v944, %v1152
        %1154 = vmatmul.f32.gmra.mxu0 %v225
        %v1155 = vpop.f32.mrf.mxu0
        %v1156 = vadd.f32 %v947, %v1155
        %1157 = vmatmul.f32.gmra.mxu0 %v228
        %v1158 = vpop.f32.mrf.mxu0
        %v1159 = vadd.f32 %v950, %v1158
        %1160 = vmatmul.f32.gmra.mxu0 %v231
        %v1161 = vpop.f32.mrf.mxu0
        %v1162 = vadd.f32 %v953, %v1161
        %1163 = vmatmul.f32.gmra.mxu0 %v234
        %v1164 = vpop.f32.mrf.mxu0
        %v1165 = vadd.f32 %v956, %v1164
        %1166 = vmatmul.f32.gmra.mxu0 %v237
        %v1167 = vpop.f32.mrf.mxu0
        %v1168 = vadd.f32 %v959, %v1167
        %1169 = vmatmul.f32.gmra.mxu0 %v240
        %v1170 = vpop.f32.mrf.mxu0
        %v1171 = vadd.f32 %v962, %v1170
        %1172 = vmatmul.f32.gmra.mxu0 %v243
        %v1173 = vpop.f32.mrf.mxu0
        %v1174 = vadd.f32 %v965, %v1173
        %1175 = vmatmul.f32.gmra.mxu0 %v246
        %v1176 = vpop.f32.mrf.mxu0
        %v1177 = vadd.f32 %v968, %v1176
        %1178 = vmatmul.f32.gmra.mxu0 %v249
        %v1179 = vpop.f32.mrf.mxu0
        %v1180 = vadd.f32 %v971, %v1179
        %1181 = vmatmul.f32.gmra.mxu0 %v252
        %v1182 = vpop.f32.mrf.mxu0
        %v1183 = vadd.f32 %v974, %v1182
        %1184 = vmatmul.f32.gmra.mxu0 %v255
        %v1185 = vpop.f32.mrf.mxu0
        %v1186 = vadd.f32 %v977, %v1185
        %1187 = vmatmul.f32.gmra.mxu0 %v258
        %v1188 = vpop.f32.mrf.mxu0
        %v1189 = vadd.f32 %v980, %v1188
        %1190 = vmatmul.f32.gmra.mxu0 %v261
        %v1191 = vpop.f32.mrf.mxu0
        %v1192 = vadd.f32 %v983, %v1191
        %1193 = vmatmul.f32.gmra.mxu0 %v264
        %v1194 = vpop.f32.mrf.mxu0
        %v1195 = vadd.f32 %v986, %v1194
        %1196 = vmatmul.f32.gmra.mxu0 %v267
        %v1197 = vpop.f32.mrf.mxu0
        %v1198 = vadd.f32 %v989, %v1197
        %1199 = vmatmul.f32.gmra.mxu0 %v270
        %v1200 = vpop.f32.mrf.mxu0
        %v1201 = vadd.f32 %v992, %v1200
        %1202 = vmatmul.f32.gmra.mxu0 %v273
        %v1203 = vpop.f32.mrf.mxu0
        %v1204 = vadd.f32 %v995, %v1203
        %1205 = vmatmul.f32.gmra.mxu0 %v276
        %v1206 = vpop.f32.mrf.mxu0
        %v1207 = vadd.f32 %v998, %v1206
        %1208 = vmatmul.f32.gmra.mxu0 %v279
        %v1209 = vpop.f32.mrf.mxu0
        %v1210 = vadd.f32 %v1001, %v1209
        %1211 = vmatmul.f32.gmra.mxu0 %v282
        %v1212 = vpop.f32.mrf.mxu0
        %v1213 = vadd.f32 %v1004, %v1212
        %1214 = vmatmul.f32.gmra.mxu0 %v285
        %v1215 = vpop.f32.mrf.mxu0
        %v1216 = vadd.f32 %v1007, %v1215
        %1217 = vmatmul.f32.gmra.mxu0 %v288
        %v1218 = vpop.f32.mrf.mxu0
        %v1219 = vadd.f32 %v1010, %v1218
        %1220 = vmatmul.f32.gmra.mxu0 %v291
        %v1221 = vpop.f32.mrf.mxu0
        %v1222 = vadd.f32 %v1013, %v1221
        %1223 = vmatmul.f32.gmra.mxu0 %v294
        %v1224 = vpop.f32.mrf.mxu0
        %v1225 = vadd.f32 %v1016, %v1224
        %1226 = vmatmul.f32.gmra.mxu0 %v297
        %v1227 = vpop.f32.mrf.mxu0
        %v1228 = vadd.f32 %v1019, %v1227
        %1229 = vmatmul.f32.gmra.mxu0 %v300
        %v1230 = vpop.f32.mrf.mxu0
        %v1231 = vadd.f32 %v1022, %v1230
        %1232 = vmatmul.f32.gmra.mxu0 %v303
        %v1233 = vpop.f32.mrf.mxu0
        %v1234 = vadd.f32 %v1025, %v1233
        %1235 = vmatmul.f32.gmra.mxu0 %v306
        %v1236 = vpop.f32.mrf.mxu0
        %v1237 = vadd.f32 %v1028, %v1236
        %1238 = vmatmul.f32.gmra.mxu0 %v309
        %v1239 = vpop.f32.mrf.mxu0
        %v1240 = vadd.f32 %v1031, %v1239
        %1241 = vmatmul.f32.gmra.mxu0 %v312
        %v1242 = vpop.f32.mrf.mxu0
        %v1243 = vadd.f32 %v1034, %v1242
        %1244 = vmatmul.f32.gmra.mxu0 %v315
        %v1245 = vpop.f32.mrf.mxu0
        %v1246 = vadd.f32 %v1037, %v1245
        %1247 = vmatmul.f32.gmra.mxu0 %v318
        %v1248 = vpop.f32.mrf.mxu0
        %v1249 = vadd.f32 %v1040, %v1248
        %1250 = vmatmul.f32.gmra.mxu0 %v321
        %v1251 = vpop.f32.mrf.mxu0
        %v1252 = vadd.f32 %v1043, %v1251
        %1253 = vmatmul.f32.gmra.mxu0 %v324
        %v1254 = vpop.f32.mrf.mxu0
        %v1255 = vadd.f32 %v1046, %v1254
        %1256 = vmatmul.f32.gmra.mxu0 %v327
        %v1257 = vpop.f32.mrf.mxu0
        %v1258 = vadd.f32 %v1049, %v1257
        %1259 = vmatmul.f32.gmra.mxu0 %v330
        %v1260 = vpop.f32.mrf.mxu0
        %v1261 = vadd.f32 %v1052, %v1260
        %1262 = vmatmul.f32.gmra.mxu0 %v333
        %v1263 = vpop.f32.mrf.mxu0
        %v1264 = vadd.f32 %v1055, %v1263
        %1265 = vmatmul.f32.gmra.mxu0 %v336
        %v1266 = vpop.f32.mrf.mxu0
        %v1267 = vadd.f32 %v1058, %v1266
        %1268 = vmatmul.f32.gmra.mxu0 %v339
        %v1269 = vpop.f32.mrf.mxu0
        %v1270 = vadd.f32 %v1061, %v1269
        %1271 = vmatmul.f32.gmra.mxu0 %v342
        %v1272 = vpop.f32.mrf.mxu0
        %v1273 = vadd.f32 %v1064, %v1272
        %1274 = vmatmul.f32.gmra.mxu0 %v345
        %v1275 = vpop.f32.mrf.mxu0
        %v1276 = vadd.f32 %v1067, %v1275
        %1277 = vmatmul.f32.gmra.mxu0 %v348
        %v1278 = vpop.f32.mrf.mxu0
        %v1279 = vadd.f32 %v1070, %v1278
        %1280 = vmatmul.f32.gmra.mxu0 %v351
        %v1281 = vpop.f32.mrf.mxu0
        %v1282 = vadd.f32 %v1073, %v1281
        %1283 = vmatmul.f32.gmra.mxu0 %v354
        %v1284 = vpop.f32.mrf.mxu0
        %v1285 = vadd.f32 %v1076, %v1284
        %1286 = vmatmul.f32.gmra.mxu0 %v357
        %v1287 = vpop.f32.mrf.mxu0
        %v1288 = vadd.f32 %v1079, %v1287
        %1289 = vmatmul.f32.gmra.mxu0 %v360
        %v1290 = vpop.f32.mrf.mxu0
        %v1291 = vadd.f32 %v1082, %v1290
        %1292 = vmatmul.f32.gmra.mxu0 %v363
        %v1293 = vpop.f32.mrf.mxu0
        %v1294 = vadd.f32 %v1085, %v1293
        %1295 = vmatmul.f32.gmra.mxu0 %v366
        %v1296 = vpop.f32.mrf.mxu0
        %v1297 = vadd.f32 %v1088, %v1296
        %1298 = vmatmul.f32.gmra.mxu0 %v369
        %v1299 = vpop.f32.mrf.mxu0
        %v1300 = vadd.f32 %v1091, %v1299
        %1301 = vmatmul.f32.gmra.mxu0 %v372
        %v1302 = vpop.f32.mrf.mxu0
        %v1303 = vadd.f32 %v1094, %v1302
        %1304 = vmatmul.f32.gmra.mxu0 %v375
        %v1305 = vpop.f32.mrf.mxu0
        %v1306 = vadd.f32 %v1097, %v1305
        %1307 = vdwg.mxu0
        %1308 = vmatpush.msra.mxu0 0.0
        %1309 = vmatpush.msra.mxu0 0.0
        %1310 = vmatpush.msra.mxu0 0.0
        %1311 = vmatpush.msra.mxu0 0.0
        %1312 = vmatpush.msra.mxu0 0.0
        %1313 = vmatpush.msra.mxu0 0.0
        %1314 = vmatpush.msra.mxu0 0.0
        %1315 = vmatpush.msra.mxu0 0.0
        %1316 = vmatpush.msra.mxu0 %v689
        %1317 = vmatpush.msra.mxu0 %v681
        %1318 = vmatpush.msra.mxu0 %v673
        %1319 = vmatpush.msra.mxu0 %v665
        %1320 = vmatpush.msra.mxu0 %v657
        %1321 = vmatpush.msra.mxu0 %v649
        %1322 = vmatpush.msra.mxu0 %v641
        %1323 = vmatpush.msra.mxu0 %v633
        %1324 = vmatmul.f32.gmra.mxu0 %v699
        %v1325 = vpop.f32.mrf.mxu0
        %v1326 = vadd.f32 %v1117, %v1325
        %1327 = vmatmul.f32.gmra.mxu0 %v702
        %v1328 = vpop.f32.mrf.mxu0
        %v1329 = vadd.f32 %v1120, %v1328
        %1330 = vmatmul.f32.gmra.mxu0 %v705
        %v1331 = vpop.f32.mrf.mxu0
        %v1332 = vadd.f32 %v1123, %v1331
        %1333 = vmatmul.f32.gmra.mxu0 %v708
        %v1334 = vpop.f32.mrf.mxu0
        %v1335 = vadd.f32 %v1126, %v1334
        %1336 = vmatmul.f32.gmra.mxu0 %v711
        %v1337 = vpop.f32.mrf.mxu0
        %v1338 = vadd.f32 %v1129, %v1337
        %1339 = vmatmul.f32.gmra.mxu0 %v714
        %v1340 = vpop.f32.mrf.mxu0
        %v1341 = vadd.f32 %v1132, %v1340
        %1342 = vmatmul.f32.gmra.mxu0 %v717
        %v1343 = vpop.f32.mrf.mxu0
        %v1344 = vadd.f32 %v1135, %v1343
        %1345 = vmatmul.f32.gmra.mxu0 %v720
        %v1346 = vpop.f32.mrf.mxu0
        %v1347 = vadd.f32 %v1138, %v1346
        %1348 = vmatmul.f32.gmra.mxu0 %v723
        %v1349 = vpop.f32.mrf.mxu0
        %v1350 = vadd.f32 %v1141, %v1349
        %1351 = vmatmul.f32.gmra.mxu0 %v726
        %v1352 = vpop.f32.mrf.mxu0
        %v1353 = vadd.f32 %v1144, %v1352
        %1354 = vmatmul.f32.gmra.mxu0 %v729
        %v1355 = vpop.f32.mrf.mxu0
        %v1356 = vadd.f32 %v1147, %v1355
        %1357 = vmatmul.f32.gmra.mxu0 %v732
        %v1358 = vpop.f32.mrf.mxu0
        %v1359 = vadd.f32 %v1150, %v1358
        %1360 = vmatmul.f32.gmra.mxu0 %v735
        %v1361 = vpop.f32.mrf.mxu0
        %v1362 = vadd.f32 %v1153, %v1361
        %1363 = vmatmul.f32.gmra.mxu0 %v738
        %v1364 = vpop.f32.mrf.mxu0
        %v1365 = vadd.f32 %v1156, %v1364
        %1366 = vmatmul.f32.gmra.mxu0 %v741
        %v1367 = vpop.f32.mrf.mxu0
        %v1368 = vadd.f32 %v1159, %v1367
        %1369 = vmatmul.f32.gmra.mxu0 %v744
        %v1370 = vpop.f32.mrf.mxu0
        %v1371 = vadd.f32 %v1162, %v1370
        %1372 = vmatmul.f32.gmra.mxu0 %v747
        %v1373 = vpop.f32.mrf.mxu0
        %v1374 = vadd.f32 %v1165, %v1373
        %1375 = vmatmul.f32.gmra.mxu0 %v750
        %v1376 = vpop.f32.mrf.mxu0
        %v1377 = vadd.f32 %v1168, %v1376
        %1378 = vmatmul.f32.gmra.mxu0 %v753
        %v1379 = vpop.f32.mrf.mxu0
        %v1380 = vadd.f32 %v1171, %v1379
        %1381 = vmatmul.f32.gmra.mxu0 %v756
        %v1382 = vpop.f32.mrf.mxu0
        %v1383 = vadd.f32 %v1174, %v1382
        %1384 = vmatmul.f32.gmra.mxu0 %v759
        %v1385 = vpop.f32.mrf.mxu0
        %v1386 = vadd.f32 %v1177, %v1385
        %1387 = vmatmul.f32.gmra.mxu0 %v762
        %v1388 = vpop.f32.mrf.mxu0
        %v1389 = vadd.f32 %v1180, %v1388
        %1390 = vmatmul.f32.gmra.mxu0 %v765
        %v1391 = vpop.f32.mrf.mxu0
        %v1392 = vadd.f32 %v1183, %v1391
        %1393 = vmatmul.f32.gmra.mxu0 %v768
        %v1394 = vpop.f32.mrf.mxu0
        %v1395 = vadd.f32 %v1186, %v1394
        %1396 = vmatmul.f32.gmra.mxu0 %v771
        %v1397 = vpop.f32.mrf.mxu0
        %v1398 = vadd.f32 %v1189, %v1397
        %1399 = vmatmul.f32.gmra.mxu0 %v774
        %v1400 = vpop.f32.mrf.mxu0
        %v1401 = vadd.f32 %v1192, %v1400
        %1402 = vmatmul.f32.gmra.mxu0 %v777
        %v1403 = vpop.f32.mrf.mxu0
        %v1404 = vadd.f32 %v1195, %v1403
        %1405 = vmatmul.f32.gmra.mxu0 %v780
        %v1406 = vpop.f32.mrf.mxu0
        %v1407 = vadd.f32 %v1198, %v1406
        %1408 = vmatmul.f32.gmra.mxu0 %v783
        %v1409 = vpop.f32.mrf.mxu0
        %v1410 = vadd.f32 %v1201, %v1409
        %1411 = vmatmul.f32.gmra.mxu0 %v786
        %v1412 = vpop.f32.mrf.mxu0
        %v1413 = vadd.f32 %v1204, %v1412
        %1414 = vmatmul.f32.gmra.mxu0 %v789
        %v1415 = vpop.f32.mrf.mxu0
        %v1416 = vadd.f32 %v1207, %v1415
        %1417 = vmatmul.f32.gmra.mxu0 %v792
        %v1418 = vpop.f32.mrf.mxu0
        %v1419 = vadd.f32 %v1210, %v1418
        %1420 = vmatmul.f32.gmra.mxu0 %v795
        %v1421 = vpop.f32.mrf.mxu0
        %v1422 = vadd.f32 %v1213, %v1421
        %1423 = vmatmul.f32.gmra.mxu0 %v798
        %v1424 = vpop.f32.mrf.mxu0
        %v1425 = vadd.f32 %v1216, %v1424
        %1426 = vmatmul.f32.gmra.mxu0 %v801
        %v1427 = vpop.f32.mrf.mxu0
        %v1428 = vadd.f32 %v1219, %v1427
        %1429 = vmatmul.f32.gmra.mxu0 %v804
        %v1430 = vpop.f32.mrf.mxu0
        %v1431 = vadd.f32 %v1222, %v1430
        %1432 = vmatmul.f32.gmra.mxu0 %v807
        %v1433 = vpop.f32.mrf.mxu0
        %v1434 = vadd.f32 %v1225, %v1433
        %1435 = vmatmul.f32.gmra.mxu0 %v810
        %v1436 = vpop.f32.mrf.mxu0
        %v1437 = vadd.f32 %v1228, %v1436
        %1438 = vmatmul.f32.gmra.mxu0 %v813
        %v1439 = vpop.f32.mrf.mxu0
        %v1440 = vadd.f32 %v1231, %v1439
        %1441 = vmatmul.f32.gmra.mxu0 %v816
        %v1442 = vpop.f32.mrf.mxu0
        %v1443 = vadd.f32 %v1234, %v1442
        %1444 = vmatmul.f32.gmra.mxu0 %v819
        %v1445 = vpop.f32.mrf.mxu0
        %v1446 = vadd.f32 %v1237, %v1445
        %1447 = vmatmul.f32.gmra.mxu0 %v822
        %v1448 = vpop.f32.mrf.mxu0
        %v1449 = vadd.f32 %v1240, %v1448
        %1450 = vmatmul.f32.gmra.mxu0 %v825
        %v1451 = vpop.f32.mrf.mxu0
        %v1452 = vadd.f32 %v1243, %v1451
        %1453 = vmatmul.f32.gmra.mxu0 %v828
        %v1454 = vpop.f32.mrf.mxu0
        %v1455 = vadd.f32 %v1246, %v1454
        %1456 = vmatmul.f32.gmra.mxu0 %v831
        %v1457 = vpop.f32.mrf.mxu0
        %v1458 = vadd.f32 %v1249, %v1457
        %1459 = vmatmul.f32.gmra.mxu0 %v834
        %v1460 = vpop.f32.mrf.mxu0
        %v1461 = vadd.f32 %v1252, %v1460
        %1462 = vmatmul.f32.gmra.mxu0 %v837
        %v1463 = vpop.f32.mrf.mxu0
        %v1464 = vadd.f32 %v1255, %v1463
        %1465 = vmatmul.f32.gmra.mxu0 %v840
        %v1466 = vpop.f32.mrf.mxu0
        %v1467 = vadd.f32 %v1258, %v1466
        %1468 = vmatmul.f32.gmra.mxu0 %v843
        %v1469 = vpop.f32.mrf.mxu0
        %v1470 = vadd.f32 %v1261, %v1469
        %1471 = vmatmul.f32.gmra.mxu0 %v846
        %v1472 = vpop.f32.mrf.mxu0
        %v1473 = vadd.f32 %v1264, %v1472
        %1474 = vmatmul.f32.gmra.mxu0 %v849
        %v1475 = vpop.f32.mrf.mxu0
        %v1476 = vadd.f32 %v1267, %v1475
        %1477 = vmatmul.f32.gmra.mxu0 %v852
        %v1478 = vpop.f32.mrf.mxu0
        %v1479 = vadd.f32 %v1270, %v1478
        %1480 = vmatmul.f32.gmra.mxu0 %v855
        %v1481 = vpop.f32.mrf.mxu0
        %v1482 = vadd.f32 %v1273, %v1481
        %1483 = vmatmul.f32.gmra.mxu0 %v858
        %v1484 = vpop.f32.mrf.mxu0
        %v1485 = vadd.f32 %v1276, %v1484
        %1486 = vmatmul.f32.gmra.mxu0 %v861
        %v1487 = vpop.f32.mrf.mxu0
        %v1488 = vadd.f32 %v1279, %v1487
        %1489 = vmatmul.f32.gmra.mxu0 %v864
        %v1490 = vpop.f32.mrf.mxu0
        %v1491 = vadd.f32 %v1282, %v1490
        %1492 = vmatmul.f32.gmra.mxu0 %v867
        %v1493 = vpop.f32.mrf.mxu0
        %v1494 = vadd.f32 %v1285, %v1493
        %1495 = vmatmul.f32.gmra.mxu0 %v870
        %v1496 = vpop.f32.mrf.mxu0
        %v1497 = vadd.f32 %v1288, %v1496
        %1498 = vmatmul.f32.gmra.mxu0 %v873
        %v1499 = vpop.f32.mrf.mxu0
        %v1500 = vadd.f32 %v1291, %v1499
        %1501 = vmatmul.f32.gmra.mxu0 %v876
        %v1502 = vpop.f32.mrf.mxu0
        %v1503 = vadd.f32 %v1294, %v1502
        %1504 = vmatmul.f32.gmra.mxu0 %v879
        %v1505 = vpop.f32.mrf.mxu0
        %v1506 = vadd.f32 %v1297, %v1505
        %1507 = vmatmul.f32.gmra.mxu0 %v882
        %v1508 = vpop.f32.mrf.mxu0
        %v1509 = vadd.f32 %v1300, %v1508
        %1510 = vmatmul.f32.gmra.mxu0 %v885
        %v1511 = vpop.f32.mrf.mxu0
        %v1512 = vadd.f32 %v1303, %v1511
        %1513 = vmatmul.f32.gmra.mxu0 %v888
        %v1514 = vpop.f32.mrf.mxu0
        %v1515 = vadd.f32 %v1306, %v1514
        %1516 = vdwg.mxu0
        %1517 = vmatpush.msra.mxu0 %v498
        %1518 = vmatpush.msra.mxu0 %v490
        %1519 = vmatpush.msra.mxu0 %v482
        %1520 = vmatpush.msra.mxu0 %v474
        %1521 = vmatpush.msra.mxu0 %v466
        %1522 = vmatpush.msra.mxu0 %v458
        %1523 = vmatpush.msra.mxu0 %v450
        %1524 = vmatpush.msra.mxu0 %v442
        %1525 = vmatpush.msra.mxu0 %v434
        %1526 = vmatpush.msra.mxu0 %v426
        %1527 = vmatpush.msra.mxu0 %v418
        %1528 = vmatpush.msra.mxu0 %v410
        %1529 = vmatpush.msra.mxu0 %v402
        %1530 = vmatpush.msra.mxu0 %v394
        %1531 = vmatpush.msra.mxu0 %v386
        %1532 = vmatpush.msra.mxu0 %v378
        %1533 = vmatmul.f32.gmra.mxu0 %v185
        %v1534 = vpop.f32.mrf.mxu0
        %v1535 = vadd.f32 0.0, %v1534
        %1536 = vmatmul.f32.gmra.mxu0 %v188
        %v1537 = vpop.f32.mrf.mxu0
        %v1538 = vadd.f32 0.0, %v1537
        %1539 = vmatmul.f32.gmra.mxu0 %v191
        %v1540 = vpop.f32.mrf.mxu0
        %v1541 = vadd.f32 0.0, %v1540
        %1542 = vmatmul.f32.gmra.mxu0 %v194
        %v1543 = vpop.f32.mrf.mxu0
        %v1544 = vadd.f32 0.0, %v1543
        %1545 = vmatmul.f32.gmra.mxu0 %v197
        %v1546 = vpop.f32.mrf.mxu0
        %v1547 = vadd.f32 0.0, %v1546
        %1548 = vmatmul.f32.gmra.mxu0 %v200
        %v1549 = vpop.f32.mrf.mxu0
        %v1550 = vadd.f32 0.0, %v1549
        %1551 = vmatmul.f32.gmra.mxu0 %v203
        %v1552 = vpop.f32.mrf.mxu0
        %v1553 = vadd.f32 0.0, %v1552
        %1554 = vmatmul.f32.gmra.mxu0 %v206
        %v1555 = vpop.f32.mrf.mxu0
        %v1556 = vadd.f32 0.0, %v1555
        %1557 = vmatmul.f32.gmra.mxu0 %v209
        %v1558 = vpop.f32.mrf.mxu0
        %v1559 = vadd.f32 0.0, %v1558
        %1560 = vmatmul.f32.gmra.mxu0 %v212
        %v1561 = vpop.f32.mrf.mxu0
        %v1562 = vadd.f32 0.0, %v1561
        %1563 = vmatmul.f32.gmra.mxu0 %v215
        %v1564 = vpop.f32.mrf.mxu0
        %v1565 = vadd.f32 0.0, %v1564
        %1566 = vmatmul.f32.gmra.mxu0 %v218
        %v1567 = vpop.f32.mrf.mxu0
        %v1568 = vadd.f32 0.0, %v1567
        %1569 = vmatmul.f32.gmra.mxu0 %v221
        %v1570 = vpop.f32.mrf.mxu0
        %v1571 = vadd.f32 0.0, %v1570
        %1572 = vmatmul.f32.gmra.mxu0 %v224
        %v1573 = vpop.f32.mrf.mxu0
        %v1574 = vadd.f32 0.0, %v1573
        %1575 = vmatmul.f32.gmra.mxu0 %v227
        %v1576 = vpop.f32.mrf.mxu0
        %v1577 = vadd.f32 0.0, %v1576
        %1578 = vmatmul.f32.gmra.mxu0 %v230
        %v1579 = vpop.f32.mrf.mxu0
        %v1580 = vadd.f32 0.0, %v1579
        %1581 = vmatmul.f32.gmra.mxu0 %v233
        %v1582 = vpop.f32.mrf.mxu0
        %v1583 = vadd.f32 0.0, %v1582
        %1584 = vmatmul.f32.gmra.mxu0 %v236
        %v1585 = vpop.f32.mrf.mxu0
        %v1586 = vadd.f32 0.0, %v1585
        %1587 = vmatmul.f32.gmra.mxu0 %v239
        %v1588 = vpop.f32.mrf.mxu0
        %v1589 = vadd.f32 0.0, %v1588
        %1590 = vmatmul.f32.gmra.mxu0 %v242
        %v1591 = vpop.f32.mrf.mxu0
        %v1592 = vadd.f32 0.0, %v1591
        %1593 = vmatmul.f32.gmra.mxu0 %v245
        %v1594 = vpop.f32.mrf.mxu0
        %v1595 = vadd.f32 0.0, %v1594
        %1596 = vmatmul.f32.gmra.mxu0 %v248
        %v1597 = vpop.f32.mrf.mxu0
        %v1598 = vadd.f32 0.0, %v1597
        %1599 = vmatmul.f32.gmra.mxu0 %v251
        %v1600 = vpop.f32.mrf.mxu0
        %v1601 = vadd.f32 0.0, %v1600
        %1602 = vmatmul.f32.gmra.mxu0 %v254
        %v1603 = vpop.f32.mrf.mxu0
        %v1604 = vadd.f32 0.0, %v1603
        %1605 = vmatmul.f32.gmra.mxu0 %v257
        %v1606 = vpop.f32.mrf.mxu0
        %v1607 = vadd.f32 0.0, %v1606
        %1608 = vmatmul.f32.gmra.mxu0 %v260
        %v1609 = vpop.f32.mrf.mxu0
        %v1610 = vadd.f32 0.0, %v1609
        %1611 = vmatmul.f32.gmra.mxu0 %v263
        %v1612 = vpop.f32.mrf.mxu0
        %v1613 = vadd.f32 0.0, %v1612
        %1614 = vmatmul.f32.gmra.mxu0 %v266
        %v1615 = vpop.f32.mrf.mxu0
        %v1616 = vadd.f32 0.0, %v1615
        %1617 = vmatmul.f32.gmra.mxu0 %v269
        %v1618 = vpop.f32.mrf.mxu0
        %v1619 = vadd.f32 0.0, %v1618
        %1620 = vmatmul.f32.gmra.mxu0 %v272
        %v1621 = vpop.f32.mrf.mxu0
        %v1622 = vadd.f32 0.0, %v1621
        %1623 = vmatmul.f32.gmra.mxu0 %v275
        %v1624 = vpop.f32.mrf.mxu0
        %v1625 = vadd.f32 0.0, %v1624
        %1626 = vmatmul.f32.gmra.mxu0 %v278
        %v1627 = vpop.f32.mrf.mxu0
        %v1628 = vadd.f32 0.0, %v1627
        %1629 = vmatmul.f32.gmra.mxu0 %v281
        %v1630 = vpop.f32.mrf.mxu0
        %v1631 = vadd.f32 0.0, %v1630
        %1632 = vmatmul.f32.gmra.mxu0 %v284
        %v1633 = vpop.f32.mrf.mxu0
        %v1634 = vadd.f32 0.0, %v1633
        %1635 = vmatmul.f32.gmra.mxu0 %v287
        %v1636 = vpop.f32.mrf.mxu0
        %v1637 = vadd.f32 0.0, %v1636
        %1638 = vmatmul.f32.gmra.mxu0 %v290
        %v1639 = vpop.f32.mrf.mxu0
        %v1640 = vadd.f32 0.0, %v1639
        %1641 = vmatmul.f32.gmra.mxu0 %v293
        %v1642 = vpop.f32.mrf.mxu0
        %v1643 = vadd.f32 0.0, %v1642
        %1644 = vmatmul.f32.gmra.mxu0 %v296
        %v1645 = vpop.f32.mrf.mxu0
        %v1646 = vadd.f32 0.0, %v1645
        %1647 = vmatmul.f32.gmra.mxu0 %v299
        %v1648 = vpop.f32.mrf.mxu0
        %v1649 = vadd.f32 0.0, %v1648
        %1650 = vmatmul.f32.gmra.mxu0 %v302
        %v1651 = vpop.f32.mrf.mxu0
        %v1652 = vadd.f32 0.0, %v1651
        %1653 = vmatmul.f32.gmra.mxu0 %v305
        %v1654 = vpop.f32.mrf.mxu0
        %v1655 = vadd.f32 0.0, %v1654
        %1656 = vmatmul.f32.gmra.mxu0 %v308
        %v1657 = vpop.f32.mrf.mxu0
        %v1658 = vadd.f32 0.0, %v1657
        %1659 = vmatmul.f32.gmra.mxu0 %v311
        %v1660 = vpop.f32.mrf.mxu0
        %v1661 = vadd.f32 0.0, %v1660
        %1662 = vmatmul.f32.gmra.mxu0 %v314
        %v1663 = vpop.f32.mrf.mxu0
        %v1664 = vadd.f32 0.0, %v1663
        %1665 = vmatmul.f32.gmra.mxu0 %v317
        %v1666 = vpop.f32.mrf.mxu0
        %v1667 = vadd.f32 0.0, %v1666
        %1668 = vmatmul.f32.gmra.mxu0 %v320
        %v1669 = vpop.f32.mrf.mxu0
        %v1670 = vadd.f32 0.0, %v1669
        %1671 = vmatmul.f32.gmra.mxu0 %v323
        %v1672 = vpop.f32.mrf.mxu0
        %v1673 = vadd.f32 0.0, %v1672
        %1674 = vmatmul.f32.gmra.mxu0 %v326
        %v1675 = vpop.f32.mrf.mxu0
        %v1676 = vadd.f32 0.0, %v1675
        %1677 = vmatmul.f32.gmra.mxu0 %v329
        %v1678 = vpop.f32.mrf.mxu0
        %v1679 = vadd.f32 0.0, %v1678
        %1680 = vmatmul.f32.gmra.mxu0 %v332
        %v1681 = vpop.f32.mrf.mxu0
        %v1682 = vadd.f32 0.0, %v1681
        %1683 = vmatmul.f32.gmra.mxu0 %v335
        %v1684 = vpop.f32.mrf.mxu0
        %v1685 = vadd.f32 0.0, %v1684
        %1686 = vmatmul.f32.gmra.mxu0 %v338
        %v1687 = vpop.f32.mrf.mxu0
        %v1688 = vadd.f32 0.0, %v1687
        %1689 = vmatmul.f32.gmra.mxu0 %v341
        %v1690 = vpop.f32.mrf.mxu0
        %v1691 = vadd.f32 0.0, %v1690
        %1692 = vmatmul.f32.gmra.mxu0 %v344
        %v1693 = vpop.f32.mrf.mxu0
        %v1694 = vadd.f32 0.0, %v1693
        %1695 = vmatmul.f32.gmra.mxu0 %v347
        %v1696 = vpop.f32.mrf.mxu0
        %v1697 = vadd.f32 0.0, %v1696
        %1698 = vmatmul.f32.gmra.mxu0 %v350
        %v1699 = vpop.f32.mrf.mxu0
        %v1700 = vadd.f32 0.0, %v1699
        %1701 = vmatmul.f32.gmra.mxu0 %v353
        %v1702 = vpop.f32.mrf.mxu0
        %v1703 = vadd.f32 0.0, %v1702
        %1704 = vmatmul.f32.gmra.mxu0 %v356
        %v1705 = vpop.f32.mrf.mxu0
        %v1706 = vadd.f32 0.0, %v1705
        %1707 = vmatmul.f32.gmra.mxu0 %v359
        %v1708 = vpop.f32.mrf.mxu0
        %v1709 = vadd.f32 0.0, %v1708
        %1710 = vmatmul.f32.gmra.mxu0 %v362
        %v1711 = vpop.f32.mrf.mxu0
        %v1712 = vadd.f32 0.0, %v1711
        %1713 = vmatmul.f32.gmra.mxu0 %v365
        %v1714 = vpop.f32.mrf.mxu0
        %v1715 = vadd.f32 0.0, %v1714
        %1716 = vmatmul.f32.gmra.mxu0 %v368
        %v1717 = vpop.f32.mrf.mxu0
        %v1718 = vadd.f32 0.0, %v1717
        %1719 = vmatmul.f32.gmra.mxu0 %v371
        %v1720 = vpop.f32.mrf.mxu0
        %v1721 = vadd.f32 0.0, %v1720
        %1722 = vmatmul.f32.gmra.mxu0 %v374
        %v1723 = vpop.f32.mrf.mxu0
        %v1724 = vadd.f32 0.0, %v1723
        %1725 = vdwg.mxu0
        %1726 = vmatpush.msra.mxu0 %v626
        %1727 = vmatpush.msra.mxu0 %v618
        %1728 = vmatpush.msra.mxu0 %v610
        %1729 = vmatpush.msra.mxu0 %v602
        %1730 = vmatpush.msra.mxu0 %v594
        %1731 = vmatpush.msra.mxu0 %v586
        %1732 = vmatpush.msra.mxu0 %v578
        %1733 = vmatpush.msra.mxu0 %v570
        %1734 = vmatpush.msra.mxu0 %v562
        %1735 = vmatpush.msra.mxu0 %v554
        %1736 = vmatpush.msra.mxu0 %v546
        %1737 = vmatpush.msra.mxu0 %v538
        %1738 = vmatpush.msra.mxu0 %v530
        %1739 = vmatpush.msra.mxu0 %v522
        %1740 = vmatpush.msra.mxu0 %v514
        %1741 = vmatpush.msra.mxu0 %v506
        %1742 = vmatmul.f32.gmra.mxu0 %v186
        %v1743 = vpop.f32.mrf.mxu0
        %v1744 = vadd.f32 %v1535, %v1743
        %1745 = vmatmul.f32.gmra.mxu0 %v189
        %v1746 = vpop.f32.mrf.mxu0
        %v1747 = vadd.f32 %v1538, %v1746
        %1748 = vmatmul.f32.gmra.mxu0 %v192
        %v1749 = vpop.f32.mrf.mxu0
        %v1750 = vadd.f32 %v1541, %v1749
        %1751 = vmatmul.f32.gmra.mxu0 %v195
        %v1752 = vpop.f32.mrf.mxu0
        %v1753 = vadd.f32 %v1544, %v1752
        %1754 = vmatmul.f32.gmra.mxu0 %v198
        %v1755 = vpop.f32.mrf.mxu0
        %v1756 = vadd.f32 %v1547, %v1755
        %1757 = vmatmul.f32.gmra.mxu0 %v201
        %v1758 = vpop.f32.mrf.mxu0
        %v1759 = vadd.f32 %v1550, %v1758
        %1760 = vmatmul.f32.gmra.mxu0 %v204
        %v1761 = vpop.f32.mrf.mxu0
        %v1762 = vadd.f32 %v1553, %v1761
        %1763 = vmatmul.f32.gmra.mxu0 %v207
        %v1764 = vpop.f32.mrf.mxu0
        %v1765 = vadd.f32 %v1556, %v1764
        %1766 = vmatmul.f32.gmra.mxu0 %v210
        %v1767 = vpop.f32.mrf.mxu0
        %v1768 = vadd.f32 %v1559, %v1767
        %1769 = vmatmul.f32.gmra.mxu0 %v213
        %v1770 = vpop.f32.mrf.mxu0
        %v1771 = vadd.f32 %v1562, %v1770
        %1772 = vmatmul.f32.gmra.mxu0 %v216
        %v1773 = vpop.f32.mrf.mxu0
        %v1774 = vadd.f32 %v1565, %v1773
        %1775 = vmatmul.f32.gmra.mxu0 %v219
        %v1776 = vpop.f32.mrf.mxu0
        %v1777 = vadd.f32 %v1568, %v1776
        %1778 = vmatmul.f32.gmra.mxu0 %v222
        %v1779 = vpop.f32.mrf.mxu0
        %v1780 = vadd.f32 %v1571, %v1779
        %1781 = vmatmul.f32.gmra.mxu0 %v225
        %v1782 = vpop.f32.mrf.mxu0
        %v1783 = vadd.f32 %v1574, %v1782
        %1784 = vmatmul.f32.gmra.mxu0 %v228
        %v1785 = vpop.f32.mrf.mxu0
        %v1786 = vadd.f32 %v1577, %v1785
        %1787 = vmatmul.f32.gmra.mxu0 %v231
        %v1788 = vpop.f32.mrf.mxu0
        %v1789 = vadd.f32 %v1580, %v1788
        %1790 = vmatmul.f32.gmra.mxu0 %v234
        %v1791 = vpop.f32.mrf.mxu0
        %v1792 = vadd.f32 %v1583, %v1791
        %1793 = vmatmul.f32.gmra.mxu0 %v237
        %v1794 = vpop.f32.mrf.mxu0
        %v1795 = vadd.f32 %v1586, %v1794
        %1796 = vmatmul.f32.gmra.mxu0 %v240
        %v1797 = vpop.f32.mrf.mxu0
        %v1798 = vadd.f32 %v1589, %v1797
        %1799 = vmatmul.f32.gmra.mxu0 %v243
        %v1800 = vpop.f32.mrf.mxu0
        %v1801 = vadd.f32 %v1592, %v1800
        %1802 = vmatmul.f32.gmra.mxu0 %v246
        %v1803 = vpop.f32.mrf.mxu0
        %v1804 = vadd.f32 %v1595, %v1803
        %1805 = vmatmul.f32.gmra.mxu0 %v249
        %v1806 = vpop.f32.mrf.mxu0
        %v1807 = vadd.f32 %v1598, %v1806
        %1808 = vmatmul.f32.gmra.mxu0 %v252
        %v1809 = vpop.f32.mrf.mxu0
        %v1810 = vadd.f32 %v1601, %v1809
        %1811 = vmatmul.f32.gmra.mxu0 %v255
        %v1812 = vpop.f32.mrf.mxu0
        %v1813 = vadd.f32 %v1604, %v1812
        %1814 = vmatmul.f32.gmra.mxu0 %v258
        %v1815 = vpop.f32.mrf.mxu0
        %v1816 = vadd.f32 %v1607, %v1815
        %1817 = vmatmul.f32.gmra.mxu0 %v261
        %v1818 = vpop.f32.mrf.mxu0
        %v1819 = vadd.f32 %v1610, %v1818
        %1820 = vmatmul.f32.gmra.mxu0 %v264
        %v1821 = vpop.f32.mrf.mxu0
        %v1822 = vadd.f32 %v1613, %v1821
        %1823 = vmatmul.f32.gmra.mxu0 %v267
        %v1824 = vpop.f32.mrf.mxu0
        %v1825 = vadd.f32 %v1616, %v1824
        %1826 = vmatmul.f32.gmra.mxu0 %v270
        %v1827 = vpop.f32.mrf.mxu0
        %v1828 = vadd.f32 %v1619, %v1827
        %1829 = vmatmul.f32.gmra.mxu0 %v273
        %v1830 = vpop.f32.mrf.mxu0
        %v1831 = vadd.f32 %v1622, %v1830
        %1832 = vmatmul.f32.gmra.mxu0 %v276
        %v1833 = vpop.f32.mrf.mxu0
        %v1834 = vadd.f32 %v1625, %v1833
        %1835 = vmatmul.f32.gmra.mxu0 %v279
        %v1836 = vpop.f32.mrf.mxu0
        %v1837 = vadd.f32 %v1628, %v1836
        %1838 = vmatmul.f32.gmra.mxu0 %v282
        %v1839 = vpop.f32.mrf.mxu0
        %v1840 = vadd.f32 %v1631, %v1839
        %1841 = vmatmul.f32.gmra.mxu0 %v285
        %v1842 = vpop.f32.mrf.mxu0
        %v1843 = vadd.f32 %v1634, %v1842
        %1844 = vmatmul.f32.gmra.mxu0 %v288
        %v1845 = vpop.f32.mrf.mxu0
        %v1846 = vadd.f32 %v1637, %v1845
        %1847 = vmatmul.f32.gmra.mxu0 %v291
        %v1848 = vpop.f32.mrf.mxu0
        %v1849 = vadd.f32 %v1640, %v1848
        %1850 = vmatmul.f32.gmra.mxu0 %v294
        %v1851 = vpop.f32.mrf.mxu0
        %v1852 = vadd.f32 %v1643, %v1851
        %1853 = vmatmul.f32.gmra.mxu0 %v297
        %v1854 = vpop.f32.mrf.mxu0
        %v1855 = vadd.f32 %v1646, %v1854
        %1856 = vmatmul.f32.gmra.mxu0 %v300
        %v1857 = vpop.f32.mrf.mxu0
        %v1858 = vadd.f32 %v1649, %v1857
        %1859 = vmatmul.f32.gmra.mxu0 %v303
        %v1860 = vpop.f32.mrf.mxu0
        %v1861 = vadd.f32 %v1652, %v1860
        %1862 = vmatmul.f32.gmra.mxu0 %v306
        %v1863 = vpop.f32.mrf.mxu0
        %v1864 = vadd.f32 %v1655, %v1863
        %1865 = vmatmul.f32.gmra.mxu0 %v309
        %v1866 = vpop.f32.mrf.mxu0
        %v1867 = vadd.f32 %v1658, %v1866
        %1868 = vmatmul.f32.gmra.mxu0 %v312
        %v1869 = vpop.f32.mrf.mxu0
        %v1870 = vadd.f32 %v1661, %v1869
        %1871 = vmatmul.f32.gmra.mxu0 %v315
        %v1872 = vpop.f32.mrf.mxu0
        %v1873 = vadd.f32 %v1664, %v1872
        %1874 = vmatmul.f32.gmra.mxu0 %v318
        %v1875 = vpop.f32.mrf.mxu0
        %v1876 = vadd.f32 %v1667, %v1875
        %1877 = vmatmul.f32.gmra.mxu0 %v321
        %v1878 = vpop.f32.mrf.mxu0
        %v1879 = vadd.f32 %v1670, %v1878
        %1880 = vmatmul.f32.gmra.mxu0 %v324
        %v1881 = vpop.f32.mrf.mxu0
        %v1882 = vadd.f32 %v1673, %v1881
        %1883 = vmatmul.f32.gmra.mxu0 %v327
        %v1884 = vpop.f32.mrf.mxu0
        %v1885 = vadd.f32 %v1676, %v1884
        %1886 = vmatmul.f32.gmra.mxu0 %v330
        %v1887 = vpop.f32.mrf.mxu0
        %v1888 = vadd.f32 %v1679, %v1887
        %1889 = vmatmul.f32.gmra.mxu0 %v333
        %v1890 = vpop.f32.mrf.mxu0
        %v1891 = vadd.f32 %v1682, %v1890
        %1892 = vmatmul.f32.gmra.mxu0 %v336
        %v1893 = vpop.f32.mrf.mxu0
        %v1894 = vadd.f32 %v1685, %v1893
        %1895 = vmatmul.f32.gmra.mxu0 %v339
        %v1896 = vpop.f32.mrf.mxu0
        %v1897 = vadd.f32 %v1688, %v1896
        %1898 = vmatmul.f32.gmra.mxu0 %v342
        %v1899 = vpop.f32.mrf.mxu0
        %v1900 = vadd.f32 %v1691, %v1899
        %1901 = vmatmul.f32.gmra.mxu0 %v345
        %v1902 = vpop.f32.mrf.mxu0
        %v1903 = vadd.f32 %v1694, %v1902
        %1904 = vmatmul.f32.gmra.mxu0 %v348
        %v1905 = vpop.f32.mrf.mxu0
        %v1906 = vadd.f32 %v1697, %v1905
        %1907 = vmatmul.f32.gmra.mxu0 %v351
        %v1908 = vpop.f32.mrf.mxu0
        %v1909 = vadd.f32 %v1700, %v1908
        %1910 = vmatmul.f32.gmra.mxu0 %v354
        %v1911 = vpop.f32.mrf.mxu0
        %v1912 = vadd.f32 %v1703, %v1911
        %1913 = vmatmul.f32.gmra.mxu0 %v357
        %v1914 = vpop.f32.mrf.mxu0
        %v1915 = vadd.f32 %v1706, %v1914
        %1916 = vmatmul.f32.gmra.mxu0 %v360
        %v1917 = vpop.f32.mrf.mxu0
        %v1918 = vadd.f32 %v1709, %v1917
        %1919 = vmatmul.f32.gmra.mxu0 %v363
        %v1920 = vpop.f32.mrf.mxu0
        %v1921 = vadd.f32 %v1712, %v1920
        %1922 = vmatmul.f32.gmra.mxu0 %v366
        %v1923 = vpop.f32.mrf.mxu0
        %v1924 = vadd.f32 %v1715, %v1923
        %1925 = vmatmul.f32.gmra.mxu0 %v369
        %v1926 = vpop.f32.mrf.mxu0
        %v1927 = vadd.f32 %v1718, %v1926
        %1928 = vmatmul.f32.gmra.mxu0 %v372
        %v1929 = vpop.f32.mrf.mxu0
        %v1930 = vadd.f32 %v1721, %v1929
        %1931 = vmatmul.f32.gmra.mxu0 %v375
        %v1932 = vpop.f32.mrf.mxu0
        %v1933 = vadd.f32 %v1724, %v1932
        %1934 = vdwg.mxu0
        %1935 = vmatpush.msra.mxu0 0.0
        %1936 = vmatpush.msra.mxu0 0.0
        %1937 = vmatpush.msra.mxu0 0.0
        %1938 = vmatpush.msra.mxu0 0.0
        %1939 = vmatpush.msra.mxu0 0.0
        %1940 = vmatpush.msra.mxu0 0.0
        %1941 = vmatpush.msra.mxu0 0.0
        %1942 = vmatpush.msra.mxu0 0.0
        %1943 = vmatpush.msra.mxu0 %v690
        %1944 = vmatpush.msra.mxu0 %v682
        %1945 = vmatpush.msra.mxu0 %v674
        %1946 = vmatpush.msra.mxu0 %v666
        %1947 = vmatpush.msra.mxu0 %v658
        %1948 = vmatpush.msra.mxu0 %v650
        %1949 = vmatpush.msra.mxu0 %v642
        %1950 = vmatpush.msra.mxu0 %v634
        %1951 = vmatmul.f32.gmra.mxu0 %v699
        %v1952 = vpop.f32.mrf.mxu0
        %v1953 = vadd.f32 %v1744, %v1952
        %1954 = vmatmul.f32.gmra.mxu0 %v702
        %v1955 = vpop.f32.mrf.mxu0
        %v1956 = vadd.f32 %v1747, %v1955
        %1957 = vmatmul.f32.gmra.mxu0 %v705
        %v1958 = vpop.f32.mrf.mxu0
        %v1959 = vadd.f32 %v1750, %v1958
        %1960 = vmatmul.f32.gmra.mxu0 %v708
        %v1961 = vpop.f32.mrf.mxu0
        %v1962 = vadd.f32 %v1753, %v1961
        %1963 = vmatmul.f32.gmra.mxu0 %v711
        %v1964 = vpop.f32.mrf.mxu0
        %v1965 = vadd.f32 %v1756, %v1964
        %1966 = vmatmul.f32.gmra.mxu0 %v714
        %v1967 = vpop.f32.mrf.mxu0
        %v1968 = vadd.f32 %v1759, %v1967
        %1969 = vmatmul.f32.gmra.mxu0 %v717
        %v1970 = vpop.f32.mrf.mxu0
        %v1971 = vadd.f32 %v1762, %v1970
        %1972 = vmatmul.f32.gmra.mxu0 %v720
        %v1973 = vpop.f32.mrf.mxu0
        %v1974 = vadd.f32 %v1765, %v1973
        %1975 = vmatmul.f32.gmra.mxu0 %v723
        %v1976 = vpop.f32.mrf.mxu0
        %v1977 = vadd.f32 %v1768, %v1976
        %1978 = vmatmul.f32.gmra.mxu0 %v726
        %v1979 = vpop.f32.mrf.mxu0
        %v1980 = vadd.f32 %v1771, %v1979
        %1981 = vmatmul.f32.gmra.mxu0 %v729
        %v1982 = vpop.f32.mrf.mxu0
        %v1983 = vadd.f32 %v1774, %v1982
        %1984 = vmatmul.f32.gmra.mxu0 %v732
        %v1985 = vpop.f32.mrf.mxu0
        %v1986 = vadd.f32 %v1777, %v1985
        %1987 = vmatmul.f32.gmra.mxu0 %v735
        %v1988 = vpop.f32.mrf.mxu0
        %v1989 = vadd.f32 %v1780, %v1988
        %1990 = vmatmul.f32.gmra.mxu0 %v738
        %v1991 = vpop.f32.mrf.mxu0
        %v1992 = vadd.f32 %v1783, %v1991
        %1993 = vmatmul.f32.gmra.mxu0 %v741
        %v1994 = vpop.f32.mrf.mxu0
        %v1995 = vadd.f32 %v1786, %v1994
        %1996 = vmatmul.f32.gmra.mxu0 %v744
        %v1997 = vpop.f32.mrf.mxu0
        %v1998 = vadd.f32 %v1789, %v1997
        %1999 = vmatmul.f32.gmra.mxu0 %v747
        %v2000 = vpop.f32.mrf.mxu0
        %v2001 = vadd.f32 %v1792, %v2000
        %2002 = vmatmul.f32.gmra.mxu0 %v750
        %v2003 = vpop.f32.mrf.mxu0
        %v2004 = vadd.f32 %v1795, %v2003
        %2005 = vmatmul.f32.gmra.mxu0 %v753
        %v2006 = vpop.f32.mrf.mxu0
        %v2007 = vadd.f32 %v1798, %v2006
        %2008 = vmatmul.f32.gmra.mxu0 %v756
        %v2009 = vpop.f32.mrf.mxu0
        %v2010 = vadd.f32 %v1801, %v2009
        %2011 = vmatmul.f32.gmra.mxu0 %v759
        %v2012 = vpop.f32.mrf.mxu0
        %v2013 = vadd.f32 %v1804, %v2012
        %2014 = vmatmul.f32.gmra.mxu0 %v762
        %v2015 = vpop.f32.mrf.mxu0
        %v2016 = vadd.f32 %v1807, %v2015
        %2017 = vmatmul.f32.gmra.mxu0 %v765
        %v2018 = vpop.f32.mrf.mxu0
        %v2019 = vadd.f32 %v1810, %v2018
        %2020 = vmatmul.f32.gmra.mxu0 %v768
        %v2021 = vpop.f32.mrf.mxu0
        %v2022 = vadd.f32 %v1813, %v2021
        %2023 = vmatmul.f32.gmra.mxu0 %v771
        %v2024 = vpop.f32.mrf.mxu0
        %v2025 = vadd.f32 %v1816, %v2024
        %2026 = vmatmul.f32.gmra.mxu0 %v774
        %v2027 = vpop.f32.mrf.mxu0
        %v2028 = vadd.f32 %v1819, %v2027
        %2029 = vmatmul.f32.gmra.mxu0 %v777
        %v2030 = vpop.f32.mrf.mxu0
        %v2031 = vadd.f32 %v1822, %v2030
        %2032 = vmatmul.f32.gmra.mxu0 %v780
        %v2033 = vpop.f32.mrf.mxu0
        %v2034 = vadd.f32 %v1825, %v2033
        %2035 = vmatmul.f32.gmra.mxu0 %v783
        %v2036 = vpop.f32.mrf.mxu0
        %v2037 = vadd.f32 %v1828, %v2036
        %2038 = vmatmul.f32.gmra.mxu0 %v786
        %v2039 = vpop.f32.mrf.mxu0
        %v2040 = vadd.f32 %v1831, %v2039
        %2041 = vmatmul.f32.gmra.mxu0 %v789
        %v2042 = vpop.f32.mrf.mxu0
        %v2043 = vadd.f32 %v1834, %v2042
        %2044 = vmatmul.f32.gmra.mxu0 %v792
        %v2045 = vpop.f32.mrf.mxu0
        %v2046 = vadd.f32 %v1837, %v2045
        %2047 = vmatmul.f32.gmra.mxu0 %v795
        %v2048 = vpop.f32.mrf.mxu0
        %v2049 = vadd.f32 %v1840, %v2048
        %2050 = vmatmul.f32.gmra.mxu0 %v798
        %v2051 = vpop.f32.mrf.mxu0
        %v2052 = vadd.f32 %v1843, %v2051
        %2053 = vmatmul.f32.gmra.mxu0 %v801
        %v2054 = vpop.f32.mrf.mxu0
        %v2055 = vadd.f32 %v1846, %v2054
        %2056 = vmatmul.f32.gmra.mxu0 %v804
        %v2057 = vpop.f32.mrf.mxu0
        %v2058 = vadd.f32 %v1849, %v2057
        %2059 = vmatmul.f32.gmra.mxu0 %v807
        %v2060 = vpop.f32.mrf.mxu0
        %v2061 = vadd.f32 %v1852, %v2060
        %2062 = vmatmul.f32.gmra.mxu0 %v810
        %v2063 = vpop.f32.mrf.mxu0
        %v2064 = vadd.f32 %v1855, %v2063
        %2065 = vmatmul.f32.gmra.mxu0 %v813
        %v2066 = vpop.f32.mrf.mxu0
        %v2067 = vadd.f32 %v1858, %v2066
        %2068 = vmatmul.f32.gmra.mxu0 %v816
        %v2069 = vpop.f32.mrf.mxu0
        %v2070 = vadd.f32 %v1861, %v2069
        %2071 = vmatmul.f32.gmra.mxu0 %v819
        %v2072 = vpop.f32.mrf.mxu0
        %v2073 = vadd.f32 %v1864, %v2072
        %2074 = vmatmul.f32.gmra.mxu0 %v822
        %v2075 = vpop.f32.mrf.mxu0
        %v2076 = vadd.f32 %v1867, %v2075
        %2077 = vmatmul.f32.gmra.mxu0 %v825
        %v2078 = vpop.f32.mrf.mxu0
        %v2079 = vadd.f32 %v1870, %v2078
        %2080 = vmatmul.f32.gmra.mxu0 %v828
        %v2081 = vpop.f32.mrf.mxu0
        %v2082 = vadd.f32 %v1873, %v2081
        %2083 = vmatmul.f32.gmra.mxu0 %v831
        %v2084 = vpop.f32.mrf.mxu0
        %v2085 = vadd.f32 %v1876, %v2084
        %2086 = vmatmul.f32.gmra.mxu0 %v834
        %v2087 = vpop.f32.mrf.mxu0
        %v2088 = vadd.f32 %v1879, %v2087
        %2089 = vmatmul.f32.gmra.mxu0 %v837
        %v2090 = vpop.f32.mrf.mxu0
        %v2091 = vadd.f32 %v1882, %v2090
        %2092 = vmatmul.f32.gmra.mxu0 %v840
        %v2093 = vpop.f32.mrf.mxu0
        %v2094 = vadd.f32 %v1885, %v2093
        %2095 = vmatmul.f32.gmra.mxu0 %v843
        %v2096 = vpop.f32.mrf.mxu0
        %v2097 = vadd.f32 %v1888, %v2096
        %2098 = vmatmul.f32.gmra.mxu0 %v846
        %v2099 = vpop.f32.mrf.mxu0
        %v2100 = vadd.f32 %v1891, %v2099
        %2101 = vmatmul.f32.gmra.mxu0 %v849
        %v2102 = vpop.f32.mrf.mxu0
        %v2103 = vadd.f32 %v1894, %v2102
        %2104 = vmatmul.f32.gmra.mxu0 %v852
        %v2105 = vpop.f32.mrf.mxu0
        %v2106 = vadd.f32 %v1897, %v2105
        %2107 = vmatmul.f32.gmra.mxu0 %v855
        %v2108 = vpop.f32.mrf.mxu0
        %v2109 = vadd.f32 %v1900, %v2108
        %2110 = vmatmul.f32.gmra.mxu0 %v858
        %v2111 = vpop.f32.mrf.mxu0
        %v2112 = vadd.f32 %v1903, %v2111
        %2113 = vmatmul.f32.gmra.mxu0 %v861
        %v2114 = vpop.f32.mrf.mxu0
        %v2115 = vadd.f32 %v1906, %v2114
        %2116 = vmatmul.f32.gmra.mxu0 %v864
        %v2117 = vpop.f32.mrf.mxu0
        %v2118 = vadd.f32 %v1909, %v2117
        %2119 = vmatmul.f32.gmra.mxu0 %v867
        %v2120 = vpop.f32.mrf.mxu0
        %v2121 = vadd.f32 %v1912, %v2120
        %2122 = vmatmul.f32.gmra.mxu0 %v870
        %v2123 = vpop.f32.mrf.mxu0
        %v2124 = vadd.f32 %v1915, %v2123
        %2125 = vmatmul.f32.gmra.mxu0 %v873
        %v2126 = vpop.f32.mrf.mxu0
        %v2127 = vadd.f32 %v1918, %v2126
        %2128 = vmatmul.f32.gmra.mxu0 %v876
        %v2129 = vpop.f32.mrf.mxu0
        %v2130 = vadd.f32 %v1921, %v2129
        %2131 = vmatmul.f32.gmra.mxu0 %v879
        %v2132 = vpop.f32.mrf.mxu0
        %v2133 = vadd.f32 %v1924, %v2132
        %2134 = vmatmul.f32.gmra.mxu0 %v882
        %v2135 = vpop.f32.mrf.mxu0
        %v2136 = vadd.f32 %v1927, %v2135
        %2137 = vmatmul.f32.gmra.mxu0 %v885
        %v2138 = vpop.f32.mrf.mxu0
        %v2139 = vadd.f32 %v1930, %v2138
        %2140 = vmatmul.f32.gmra.mxu0 %v888
        %v2141 = vpop.f32.mrf.mxu0
        %v2142 = vadd.f32 %v1933, %v2141
        %2143 = vdwg.mxu0
        %2144 = vmatpush.msra.mxu0 %v499
        %2145 = vmatpush.msra.mxu0 %v491
        %2146 = vmatpush.msra.mxu0 %v483
        %2147 = vmatpush.msra.mxu0 %v475
        %2148 = vmatpush.msra.mxu0 %v467
        %2149 = vmatpush.msra.mxu0 %v459
        %2150 = vmatpush.msra.mxu0 %v451
        %2151 = vmatpush.msra.mxu0 %v443
        %2152 = vmatpush.msra.mxu0 %v435
        %2153 = vmatpush.msra.mxu0 %v427
        %2154 = vmatpush.msra.mxu0 %v419
        %2155 = vmatpush.msra.mxu0 %v411
        %2156 = vmatpush.msra.mxu0 %v403
        %2157 = vmatpush.msra.mxu0 %v395
        %2158 = vmatpush.msra.mxu0 %v387
        %2159 = vmatpush.msra.mxu0 %v379
        %2160 = vmatmul.f32.gmra.mxu0 %v185
        %v2161 = vpop.f32.mrf.mxu0
        %v2162 = vadd.f32 0.0, %v2161
        %2163 = vmatmul.f32.gmra.mxu0 %v188
        %v2164 = vpop.f32.mrf.mxu0
        %v2165 = vadd.f32 0.0, %v2164
        %2166 = vmatmul.f32.gmra.mxu0 %v191
        %v2167 = vpop.f32.mrf.mxu0
        %v2168 = vadd.f32 0.0, %v2167
        %2169 = vmatmul.f32.gmra.mxu0 %v194
        %v2170 = vpop.f32.mrf.mxu0
        %v2171 = vadd.f32 0.0, %v2170
        %2172 = vmatmul.f32.gmra.mxu0 %v197
        %v2173 = vpop.f32.mrf.mxu0
        %v2174 = vadd.f32 0.0, %v2173
        %2175 = vmatmul.f32.gmra.mxu0 %v200
        %v2176 = vpop.f32.mrf.mxu0
        %v2177 = vadd.f32 0.0, %v2176
        %2178 = vmatmul.f32.gmra.mxu0 %v203
        %v2179 = vpop.f32.mrf.mxu0
        %v2180 = vadd.f32 0.0, %v2179
        %2181 = vmatmul.f32.gmra.mxu0 %v206
        %v2182 = vpop.f32.mrf.mxu0
        %v2183 = vadd.f32 0.0, %v2182
        %2184 = vmatmul.f32.gmra.mxu0 %v209
        %v2185 = vpop.f32.mrf.mxu0
        %v2186 = vadd.f32 0.0, %v2185
        %2187 = vmatmul.f32.gmra.mxu0 %v212
        %v2188 = vpop.f32.mrf.mxu0
        %v2189 = vadd.f32 0.0, %v2188
        %2190 = vmatmul.f32.gmra.mxu0 %v215
        %v2191 = vpop.f32.mrf.mxu0
        %v2192 = vadd.f32 0.0, %v2191
        %2193 = vmatmul.f32.gmra.mxu0 %v218
        %v2194 = vpop.f32.mrf.mxu0
        %v2195 = vadd.f32 0.0, %v2194
        %2196 = vmatmul.f32.gmra.mxu0 %v221
        %v2197 = vpop.f32.mrf.mxu0
        %v2198 = vadd.f32 0.0, %v2197
        %2199 = vmatmul.f32.gmra.mxu0 %v224
        %v2200 = vpop.f32.mrf.mxu0
        %v2201 = vadd.f32 0.0, %v2200
        %2202 = vmatmul.f32.gmra.mxu0 %v227
        %v2203 = vpop.f32.mrf.mxu0
        %v2204 = vadd.f32 0.0, %v2203
        %2205 = vmatmul.f32.gmra.mxu0 %v230
        %v2206 = vpop.f32.mrf.mxu0
        %v2207 = vadd.f32 0.0, %v2206
        %2208 = vmatmul.f32.gmra.mxu0 %v233
        %v2209 = vpop.f32.mrf.mxu0
        %v2210 = vadd.f32 0.0, %v2209
        %2211 = vmatmul.f32.gmra.mxu0 %v236
        %v2212 = vpop.f32.mrf.mxu0
        %v2213 = vadd.f32 0.0, %v2212
        %2214 = vmatmul.f32.gmra.mxu0 %v239
        %v2215 = vpop.f32.mrf.mxu0
        %v2216 = vadd.f32 0.0, %v2215
        %2217 = vmatmul.f32.gmra.mxu0 %v242
        %v2218 = vpop.f32.mrf.mxu0
        %v2219 = vadd.f32 0.0, %v2218
        %2220 = vmatmul.f32.gmra.mxu0 %v245
        %v2221 = vpop.f32.mrf.mxu0
        %v2222 = vadd.f32 0.0, %v2221
        %2223 = vmatmul.f32.gmra.mxu0 %v248
        %v2224 = vpop.f32.mrf.mxu0
        %v2225 = vadd.f32 0.0, %v2224
        %2226 = vmatmul.f32.gmra.mxu0 %v251
        %v2227 = vpop.f32.mrf.mxu0
        %v2228 = vadd.f32 0.0, %v2227
        %2229 = vmatmul.f32.gmra.mxu0 %v254
        %v2230 = vpop.f32.mrf.mxu0
        %v2231 = vadd.f32 0.0, %v2230
        %2232 = vmatmul.f32.gmra.mxu0 %v257
        %v2233 = vpop.f32.mrf.mxu0
        %v2234 = vadd.f32 0.0, %v2233
        %2235 = vmatmul.f32.gmra.mxu0 %v260
        %v2236 = vpop.f32.mrf.mxu0
        %v2237 = vadd.f32 0.0, %v2236
        %2238 = vmatmul.f32.gmra.mxu0 %v263
        %v2239 = vpop.f32.mrf.mxu0
        %v2240 = vadd.f32 0.0, %v2239
        %2241 = vmatmul.f32.gmra.mxu0 %v266
        %v2242 = vpop.f32.mrf.mxu0
        %v2243 = vadd.f32 0.0, %v2242
        %2244 = vmatmul.f32.gmra.mxu0 %v269
        %v2245 = vpop.f32.mrf.mxu0
        %v2246 = vadd.f32 0.0, %v2245
        %2247 = vmatmul.f32.gmra.mxu0 %v272
        %v2248 = vpop.f32.mrf.mxu0
        %v2249 = vadd.f32 0.0, %v2248
        %2250 = vmatmul.f32.gmra.mxu0 %v275
        %v2251 = vpop.f32.mrf.mxu0
        %v2252 = vadd.f32 0.0, %v2251
        %2253 = vmatmul.f32.gmra.mxu0 %v278
        %v2254 = vpop.f32.mrf.mxu0
        %v2255 = vadd.f32 0.0, %v2254
        %2256 = vmatmul.f32.gmra.mxu0 %v281
        %v2257 = vpop.f32.mrf.mxu0
        %v2258 = vadd.f32 0.0, %v2257
        %2259 = vmatmul.f32.gmra.mxu0 %v284
        %v2260 = vpop.f32.mrf.mxu0
        %v2261 = vadd.f32 0.0, %v2260
        %2262 = vmatmul.f32.gmra.mxu0 %v287
        %v2263 = vpop.f32.mrf.mxu0
        %v2264 = vadd.f32 0.0, %v2263
        %2265 = vmatmul.f32.gmra.mxu0 %v290
        %v2266 = vpop.f32.mrf.mxu0
        %v2267 = vadd.f32 0.0, %v2266
        %2268 = vmatmul.f32.gmra.mxu0 %v293
        %v2269 = vpop.f32.mrf.mxu0
        %v2270 = vadd.f32 0.0, %v2269
        %2271 = vmatmul.f32.gmra.mxu0 %v296
        %v2272 = vpop.f32.mrf.mxu0
        %v2273 = vadd.f32 0.0, %v2272
        %2274 = vmatmul.f32.gmra.mxu0 %v299
        %v2275 = vpop.f32.mrf.mxu0
        %v2276 = vadd.f32 0.0, %v2275
        %2277 = vmatmul.f32.gmra.mxu0 %v302
        %v2278 = vpop.f32.mrf.mxu0
        %v2279 = vadd.f32 0.0, %v2278
        %2280 = vmatmul.f32.gmra.mxu0 %v305
        %v2281 = vpop.f32.mrf.mxu0
        %v2282 = vadd.f32 0.0, %v2281
        %2283 = vmatmul.f32.gmra.mxu0 %v308
        %v2284 = vpop.f32.mrf.mxu0
        %v2285 = vadd.f32 0.0, %v2284
        %2286 = vmatmul.f32.gmra.mxu0 %v311
        %v2287 = vpop.f32.mrf.mxu0
        %v2288 = vadd.f32 0.0, %v2287
        %2289 = vmatmul.f32.gmra.mxu0 %v314
        %v2290 = vpop.f32.mrf.mxu0
        %v2291 = vadd.f32 0.0, %v2290
        %2292 = vmatmul.f32.gmra.mxu0 %v317
        %v2293 = vpop.f32.mrf.mxu0
        %v2294 = vadd.f32 0.0, %v2293
        %2295 = vmatmul.f32.gmra.mxu0 %v320
        %v2296 = vpop.f32.mrf.mxu0
        %v2297 = vadd.f32 0.0, %v2296
        %2298 = vmatmul.f32.gmra.mxu0 %v323
        %v2299 = vpop.f32.mrf.mxu0
        %v2300 = vadd.f32 0.0, %v2299
        %2301 = vmatmul.f32.gmra.mxu0 %v326
        %v2302 = vpop.f32.mrf.mxu0
        %v2303 = vadd.f32 0.0, %v2302
        %2304 = vmatmul.f32.gmra.mxu0 %v329
        %v2305 = vpop.f32.mrf.mxu0
        %v2306 = vadd.f32 0.0, %v2305
        %2307 = vmatmul.f32.gmra.mxu0 %v332
        %v2308 = vpop.f32.mrf.mxu0
        %v2309 = vadd.f32 0.0, %v2308
        %2310 = vmatmul.f32.gmra.mxu0 %v335
        %v2311 = vpop.f32.mrf.mxu0
        %v2312 = vadd.f32 0.0, %v2311
        %2313 = vmatmul.f32.gmra.mxu0 %v338
        %v2314 = vpop.f32.mrf.mxu0
        %v2315 = vadd.f32 0.0, %v2314
        %2316 = vmatmul.f32.gmra.mxu0 %v341
        %v2317 = vpop.f32.mrf.mxu0
        %v2318 = vadd.f32 0.0, %v2317
        %2319 = vmatmul.f32.gmra.mxu0 %v344
        %v2320 = vpop.f32.mrf.mxu0
        %v2321 = vadd.f32 0.0, %v2320
        %2322 = vmatmul.f32.gmra.mxu0 %v347
        %v2323 = vpop.f32.mrf.mxu0
        %v2324 = vadd.f32 0.0, %v2323
        %2325 = vmatmul.f32.gmra.mxu0 %v350
        %v2326 = vpop.f32.mrf.mxu0
        %v2327 = vadd.f32 0.0, %v2326
        %2328 = vmatmul.f32.gmra.mxu0 %v353
        %v2329 = vpop.f32.mrf.mxu0
        %v2330 = vadd.f32 0.0, %v2329
        %2331 = vmatmul.f32.gmra.mxu0 %v356
        %v2332 = vpop.f32.mrf.mxu0
        %v2333 = vadd.f32 0.0, %v2332
        %2334 = vmatmul.f32.gmra.mxu0 %v359
        %v2335 = vpop.f32.mrf.mxu0
        %v2336 = vadd.f32 0.0, %v2335
        %2337 = vmatmul.f32.gmra.mxu0 %v362
        %v2338 = vpop.f32.mrf.mxu0
        %v2339 = vadd.f32 0.0, %v2338
        %2340 = vmatmul.f32.gmra.mxu0 %v365
        %v2341 = vpop.f32.mrf.mxu0
        %v2342 = vadd.f32 0.0, %v2341
        %2343 = vmatmul.f32.gmra.mxu0 %v368
        %v2344 = vpop.f32.mrf.mxu0
        %v2345 = vadd.f32 0.0, %v2344
        %2346 = vmatmul.f32.gmra.mxu0 %v371
        %v2347 = vpop.f32.mrf.mxu0
        %v2348 = vadd.f32 0.0, %v2347
        %2349 = vmatmul.f32.gmra.mxu0 %v374
        %v2350 = vpop.f32.mrf.mxu0
        %v2351 = vadd.f32 0.0, %v2350
        %2352 = vdwg.mxu0
        %2353 = vmatpush.msra.mxu0 %v627
        %2354 = vmatpush.msra.mxu0 %v619
        %2355 = vmatpush.msra.mxu0 %v611
        %2356 = vmatpush.msra.mxu0 %v603
        %2357 = vmatpush.msra.mxu0 %v595
        %2358 = vmatpush.msra.mxu0 %v587
        %2359 = vmatpush.msra.mxu0 %v579
        %2360 = vmatpush.msra.mxu0 %v571
        %2361 = vmatpush.msra.mxu0 %v563
        %2362 = vmatpush.msra.mxu0 %v555
        %2363 = vmatpush.msra.mxu0 %v547
        %2364 = vmatpush.msra.mxu0 %v539
        %2365 = vmatpush.msra.mxu0 %v531
        %2366 = vmatpush.msra.mxu0 %v523
        %2367 = vmatpush.msra.mxu0 %v515
        %2368 = vmatpush.msra.mxu0 %v507
        %2369 = vmatmul.f32.gmra.mxu0 %v186
        %v2370 = vpop.f32.mrf.mxu0
        %v2371 = vadd.f32 %v2162, %v2370
        %2372 = vmatmul.f32.gmra.mxu0 %v189
        %v2373 = vpop.f32.mrf.mxu0
        %v2374 = vadd.f32 %v2165, %v2373
        %2375 = vmatmul.f32.gmra.mxu0 %v192
        %v2376 = vpop.f32.mrf.mxu0
        %v2377 = vadd.f32 %v2168, %v2376
        %2378 = vmatmul.f32.gmra.mxu0 %v195
        %v2379 = vpop.f32.mrf.mxu0
        %v2380 = vadd.f32 %v2171, %v2379
        %2381 = vmatmul.f32.gmra.mxu0 %v198
        %v2382 = vpop.f32.mrf.mxu0
        %v2383 = vadd.f32 %v2174, %v2382
        %2384 = vmatmul.f32.gmra.mxu0 %v201
        %v2385 = vpop.f32.mrf.mxu0
        %v2386 = vadd.f32 %v2177, %v2385
        %2387 = vmatmul.f32.gmra.mxu0 %v204
        %v2388 = vpop.f32.mrf.mxu0
        %v2389 = vadd.f32 %v2180, %v2388
        %2390 = vmatmul.f32.gmra.mxu0 %v207
        %v2391 = vpop.f32.mrf.mxu0
        %v2392 = vadd.f32 %v2183, %v2391
        %2393 = vmatmul.f32.gmra.mxu0 %v210
        %v2394 = vpop.f32.mrf.mxu0
        %v2395 = vadd.f32 %v2186, %v2394
        %2396 = vmatmul.f32.gmra.mxu0 %v213
        %v2397 = vpop.f32.mrf.mxu0
        %v2398 = vadd.f32 %v2189, %v2397
        %2399 = vmatmul.f32.gmra.mxu0 %v216
        %v2400 = vpop.f32.mrf.mxu0
        %v2401 = vadd.f32 %v2192, %v2400
        %2402 = vmatmul.f32.gmra.mxu0 %v219
        %v2403 = vpop.f32.mrf.mxu0
        %v2404 = vadd.f32 %v2195, %v2403
        %2405 = vmatmul.f32.gmra.mxu0 %v222
        %v2406 = vpop.f32.mrf.mxu0
        %v2407 = vadd.f32 %v2198, %v2406
        %2408 = vmatmul.f32.gmra.mxu0 %v225
        %v2409 = vpop.f32.mrf.mxu0
        %v2410 = vadd.f32 %v2201, %v2409
        %2411 = vmatmul.f32.gmra.mxu0 %v228
        %v2412 = vpop.f32.mrf.mxu0
        %v2413 = vadd.f32 %v2204, %v2412
        %2414 = vmatmul.f32.gmra.mxu0 %v231
        %v2415 = vpop.f32.mrf.mxu0
        %v2416 = vadd.f32 %v2207, %v2415
        %2417 = vmatmul.f32.gmra.mxu0 %v234
        %v2418 = vpop.f32.mrf.mxu0
        %v2419 = vadd.f32 %v2210, %v2418
        %2420 = vmatmul.f32.gmra.mxu0 %v237
        %v2421 = vpop.f32.mrf.mxu0
        %v2422 = vadd.f32 %v2213, %v2421
        %2423 = vmatmul.f32.gmra.mxu0 %v240
        %v2424 = vpop.f32.mrf.mxu0
        %v2425 = vadd.f32 %v2216, %v2424
        %2426 = vmatmul.f32.gmra.mxu0 %v243
        %v2427 = vpop.f32.mrf.mxu0
        %v2428 = vadd.f32 %v2219, %v2427
        %2429 = vmatmul.f32.gmra.mxu0 %v246
        %v2430 = vpop.f32.mrf.mxu0
        %v2431 = vadd.f32 %v2222, %v2430
        %2432 = vmatmul.f32.gmra.mxu0 %v249
        %v2433 = vpop.f32.mrf.mxu0
        %v2434 = vadd.f32 %v2225, %v2433
        %2435 = vmatmul.f32.gmra.mxu0 %v252
        %v2436 = vpop.f32.mrf.mxu0
        %v2437 = vadd.f32 %v2228, %v2436
        %2438 = vmatmul.f32.gmra.mxu0 %v255
        %v2439 = vpop.f32.mrf.mxu0
        %v2440 = vadd.f32 %v2231, %v2439
        %2441 = vmatmul.f32.gmra.mxu0 %v258
        %v2442 = vpop.f32.mrf.mxu0
        %v2443 = vadd.f32 %v2234, %v2442
        %2444 = vmatmul.f32.gmra.mxu0 %v261
        %v2445 = vpop.f32.mrf.mxu0
        %v2446 = vadd.f32 %v2237, %v2445
        %2447 = vmatmul.f32.gmra.mxu0 %v264
        %v2448 = vpop.f32.mrf.mxu0
        %v2449 = vadd.f32 %v2240, %v2448
        %2450 = vmatmul.f32.gmra.mxu0 %v267
        %v2451 = vpop.f32.mrf.mxu0
        %v2452 = vadd.f32 %v2243, %v2451
        %2453 = vmatmul.f32.gmra.mxu0 %v270
        %v2454 = vpop.f32.mrf.mxu0
        %v2455 = vadd.f32 %v2246, %v2454
        %2456 = vmatmul.f32.gmra.mxu0 %v273
        %v2457 = vpop.f32.mrf.mxu0
        %v2458 = vadd.f32 %v2249, %v2457
        %2459 = vmatmul.f32.gmra.mxu0 %v276
        %v2460 = vpop.f32.mrf.mxu0
        %v2461 = vadd.f32 %v2252, %v2460
        %2462 = vmatmul.f32.gmra.mxu0 %v279
        %v2463 = vpop.f32.mrf.mxu0
        %v2464 = vadd.f32 %v2255, %v2463
        %2465 = vmatmul.f32.gmra.mxu0 %v282
        %v2466 = vpop.f32.mrf.mxu0
        %v2467 = vadd.f32 %v2258, %v2466
        %2468 = vmatmul.f32.gmra.mxu0 %v285
        %v2469 = vpop.f32.mrf.mxu0
        %v2470 = vadd.f32 %v2261, %v2469
        %2471 = vmatmul.f32.gmra.mxu0 %v288
        %v2472 = vpop.f32.mrf.mxu0
        %v2473 = vadd.f32 %v2264, %v2472
        %2474 = vmatmul.f32.gmra.mxu0 %v291
        %v2475 = vpop.f32.mrf.mxu0
        %v2476 = vadd.f32 %v2267, %v2475
        %2477 = vmatmul.f32.gmra.mxu0 %v294
        %v2478 = vpop.f32.mrf.mxu0
        %v2479 = vadd.f32 %v2270, %v2478
        %2480 = vmatmul.f32.gmra.mxu0 %v297
        %v2481 = vpop.f32.mrf.mxu0
        %v2482 = vadd.f32 %v2273, %v2481
        %2483 = vmatmul.f32.gmra.mxu0 %v300
        %v2484 = vpop.f32.mrf.mxu0
        %v2485 = vadd.f32 %v2276, %v2484
        %2486 = vmatmul.f32.gmra.mxu0 %v303
        %v2487 = vpop.f32.mrf.mxu0
        %v2488 = vadd.f32 %v2279, %v2487
        %2489 = vmatmul.f32.gmra.mxu0 %v306
        %v2490 = vpop.f32.mrf.mxu0
        %v2491 = vadd.f32 %v2282, %v2490
        %2492 = vmatmul.f32.gmra.mxu0 %v309
        %v2493 = vpop.f32.mrf.mxu0
        %v2494 = vadd.f32 %v2285, %v2493
        %2495 = vmatmul.f32.gmra.mxu0 %v312
        %v2496 = vpop.f32.mrf.mxu0
        %v2497 = vadd.f32 %v2288, %v2496
        %2498 = vmatmul.f32.gmra.mxu0 %v315
        %v2499 = vpop.f32.mrf.mxu0
        %v2500 = vadd.f32 %v2291, %v2499
        %2501 = vmatmul.f32.gmra.mxu0 %v318
        %v2502 = vpop.f32.mrf.mxu0
        %v2503 = vadd.f32 %v2294, %v2502
        %2504 = vmatmul.f32.gmra.mxu0 %v321
        %v2505 = vpop.f32.mrf.mxu0
        %v2506 = vadd.f32 %v2297, %v2505
        %2507 = vmatmul.f32.gmra.mxu0 %v324
        %v2508 = vpop.f32.mrf.mxu0
        %v2509 = vadd.f32 %v2300, %v2508
        %2510 = vmatmul.f32.gmra.mxu0 %v327
        %v2511 = vpop.f32.mrf.mxu0
        %v2512 = vadd.f32 %v2303, %v2511
        %2513 = vmatmul.f32.gmra.mxu0 %v330
        %v2514 = vpop.f32.mrf.mxu0
        %v2515 = vadd.f32 %v2306, %v2514
        %2516 = vmatmul.f32.gmra.mxu0 %v333
        %v2517 = vpop.f32.mrf.mxu0
        %v2518 = vadd.f32 %v2309, %v2517
        %2519 = vmatmul.f32.gmra.mxu0 %v336
        %v2520 = vpop.f32.mrf.mxu0
        %v2521 = vadd.f32 %v2312, %v2520
        %2522 = vmatmul.f32.gmra.mxu0 %v339
        %v2523 = vpop.f32.mrf.mxu0
        %v2524 = vadd.f32 %v2315, %v2523
        %2525 = vmatmul.f32.gmra.mxu0 %v342
        %v2526 = vpop.f32.mrf.mxu0
        %v2527 = vadd.f32 %v2318, %v2526
        %2528 = vmatmul.f32.gmra.mxu0 %v345
        %v2529 = vpop.f32.mrf.mxu0
        %v2530 = vadd.f32 %v2321, %v2529
        %2531 = vmatmul.f32.gmra.mxu0 %v348
        %v2532 = vpop.f32.mrf.mxu0
        %v2533 = vadd.f32 %v2324, %v2532
        %2534 = vmatmul.f32.gmra.mxu0 %v351
        %v2535 = vpop.f32.mrf.mxu0
        %v2536 = vadd.f32 %v2327, %v2535
        %2537 = vmatmul.f32.gmra.mxu0 %v354
        %v2538 = vpop.f32.mrf.mxu0
        %v2539 = vadd.f32 %v2330, %v2538
        %2540 = vmatmul.f32.gmra.mxu0 %v357
        %v2541 = vpop.f32.mrf.mxu0
        %v2542 = vadd.f32 %v2333, %v2541
        %2543 = vmatmul.f32.gmra.mxu0 %v360
        %v2544 = vpop.f32.mrf.mxu0
        %v2545 = vadd.f32 %v2336, %v2544
        %2546 = vmatmul.f32.gmra.mxu0 %v363
        %v2547 = vpop.f32.mrf.mxu0
        %v2548 = vadd.f32 %v2339, %v2547
        %2549 = vmatmul.f32.gmra.mxu0 %v366
        %v2550 = vpop.f32.mrf.mxu0
        %v2551 = vadd.f32 %v2342, %v2550
        %2552 = vmatmul.f32.gmra.mxu0 %v369
        %v2553 = vpop.f32.mrf.mxu0
        %v2554 = vadd.f32 %v2345, %v2553
        %2555 = vmatmul.f32.gmra.mxu0 %v372
        %v2556 = vpop.f32.mrf.mxu0
        %v2557 = vadd.f32 %v2348, %v2556
        %2558 = vmatmul.f32.gmra.mxu0 %v375
        %v2559 = vpop.f32.mrf.mxu0
        %v2560 = vadd.f32 %v2351, %v2559
        %2561 = vdwg.mxu0
        %2562 = vmatpush.msra.mxu0 0.0
        %2563 = vmatpush.msra.mxu0 0.0
        %2564 = vmatpush.msra.mxu0 0.0
        %2565 = vmatpush.msra.mxu0 0.0
        %2566 = vmatpush.msra.mxu0 0.0
        %2567 = vmatpush.msra.mxu0 0.0
        %2568 = vmatpush.msra.mxu0 0.0
        %2569 = vmatpush.msra.mxu0 0.0
        %2570 = vmatpush.msra.mxu0 %v691
        %2571 = vmatpush.msra.mxu0 %v683
        %2572 = vmatpush.msra.mxu0 %v675
        %2573 = vmatpush.msra.mxu0 %v667
        %2574 = vmatpush.msra.mxu0 %v659
        %2575 = vmatpush.msra.mxu0 %v651
        %2576 = vmatpush.msra.mxu0 %v643
        %2577 = vmatpush.msra.mxu0 %v635
        %2578 = vmatmul.f32.gmra.mxu0 %v699
        %v2579 = vpop.f32.mrf.mxu0
        %v2580 = vadd.f32 %v2371, %v2579
        %2581 = vmatmul.f32.gmra.mxu0 %v702
        %v2582 = vpop.f32.mrf.mxu0
        %v2583 = vadd.f32 %v2374, %v2582
        %2584 = vmatmul.f32.gmra.mxu0 %v705
        %v2585 = vpop.f32.mrf.mxu0
        %v2586 = vadd.f32 %v2377, %v2585
        %2587 = vmatmul.f32.gmra.mxu0 %v708
        %v2588 = vpop.f32.mrf.mxu0
        %v2589 = vadd.f32 %v2380, %v2588
        %2590 = vmatmul.f32.gmra.mxu0 %v711
        %v2591 = vpop.f32.mrf.mxu0
        %v2592 = vadd.f32 %v2383, %v2591
        %2593 = vmatmul.f32.gmra.mxu0 %v714
        %v2594 = vpop.f32.mrf.mxu0
        %v2595 = vadd.f32 %v2386, %v2594
        %2596 = vmatmul.f32.gmra.mxu0 %v717
        %v2597 = vpop.f32.mrf.mxu0
        %v2598 = vadd.f32 %v2389, %v2597
        %2599 = vmatmul.f32.gmra.mxu0 %v720
        %v2600 = vpop.f32.mrf.mxu0
        %v2601 = vadd.f32 %v2392, %v2600
        %2602 = vmatmul.f32.gmra.mxu0 %v723
        %v2603 = vpop.f32.mrf.mxu0
        %v2604 = vadd.f32 %v2395, %v2603
        %2605 = vmatmul.f32.gmra.mxu0 %v726
        %v2606 = vpop.f32.mrf.mxu0
        %v2607 = vadd.f32 %v2398, %v2606
        %2608 = vmatmul.f32.gmra.mxu0 %v729
        %v2609 = vpop.f32.mrf.mxu0
        %v2610 = vadd.f32 %v2401, %v2609
        %2611 = vmatmul.f32.gmra.mxu0 %v732
        %v2612 = vpop.f32.mrf.mxu0
        %v2613 = vadd.f32 %v2404, %v2612
        %2614 = vmatmul.f32.gmra.mxu0 %v735
        %v2615 = vpop.f32.mrf.mxu0
        %v2616 = vadd.f32 %v2407, %v2615
        %2617 = vmatmul.f32.gmra.mxu0 %v738
        %v2618 = vpop.f32.mrf.mxu0
        %v2619 = vadd.f32 %v2410, %v2618
        %2620 = vmatmul.f32.gmra.mxu0 %v741
        %v2621 = vpop.f32.mrf.mxu0
        %v2622 = vadd.f32 %v2413, %v2621
        %2623 = vmatmul.f32.gmra.mxu0 %v744
        %v2624 = vpop.f32.mrf.mxu0
        %v2625 = vadd.f32 %v2416, %v2624
        %2626 = vmatmul.f32.gmra.mxu0 %v747
        %v2627 = vpop.f32.mrf.mxu0
        %v2628 = vadd.f32 %v2419, %v2627
        %2629 = vmatmul.f32.gmra.mxu0 %v750
        %v2630 = vpop.f32.mrf.mxu0
        %v2631 = vadd.f32 %v2422, %v2630
        %2632 = vmatmul.f32.gmra.mxu0 %v753
        %v2633 = vpop.f32.mrf.mxu0
        %v2634 = vadd.f32 %v2425, %v2633
        %2635 = vmatmul.f32.gmra.mxu0 %v756
        %v2636 = vpop.f32.mrf.mxu0
        %v2637 = vadd.f32 %v2428, %v2636
        %2638 = vmatmul.f32.gmra.mxu0 %v759
        %v2639 = vpop.f32.mrf.mxu0
        %v2640 = vadd.f32 %v2431, %v2639
        %2641 = vmatmul.f32.gmra.mxu0 %v762
        %v2642 = vpop.f32.mrf.mxu0
        %v2643 = vadd.f32 %v2434, %v2642
        %2644 = vmatmul.f32.gmra.mxu0 %v765
        %v2645 = vpop.f32.mrf.mxu0
        %v2646 = vadd.f32 %v2437, %v2645
        %2647 = vmatmul.f32.gmra.mxu0 %v768
        %v2648 = vpop.f32.mrf.mxu0
        %v2649 = vadd.f32 %v2440, %v2648
        %2650 = vmatmul.f32.gmra.mxu0 %v771
        %v2651 = vpop.f32.mrf.mxu0
        %v2652 = vadd.f32 %v2443, %v2651
        %2653 = vmatmul.f32.gmra.mxu0 %v774
        %v2654 = vpop.f32.mrf.mxu0
        %v2655 = vadd.f32 %v2446, %v2654
        %2656 = vmatmul.f32.gmra.mxu0 %v777
        %v2657 = vpop.f32.mrf.mxu0
        %v2658 = vadd.f32 %v2449, %v2657
        %2659 = vmatmul.f32.gmra.mxu0 %v780
        %v2660 = vpop.f32.mrf.mxu0
        %v2661 = vadd.f32 %v2452, %v2660
        %2662 = vmatmul.f32.gmra.mxu0 %v783
        %v2663 = vpop.f32.mrf.mxu0
        %v2664 = vadd.f32 %v2455, %v2663
        %2665 = vmatmul.f32.gmra.mxu0 %v786
        %v2666 = vpop.f32.mrf.mxu0
        %v2667 = vadd.f32 %v2458, %v2666
        %2668 = vmatmul.f32.gmra.mxu0 %v789
        %v2669 = vpop.f32.mrf.mxu0
        %v2670 = vadd.f32 %v2461, %v2669
        %2671 = vmatmul.f32.gmra.mxu0 %v792
        %v2672 = vpop.f32.mrf.mxu0
        %v2673 = vadd.f32 %v2464, %v2672
        %2674 = vmatmul.f32.gmra.mxu0 %v795
        %v2675 = vpop.f32.mrf.mxu0
        %v2676 = vadd.f32 %v2467, %v2675
        %2677 = vmatmul.f32.gmra.mxu0 %v798
        %v2678 = vpop.f32.mrf.mxu0
        %v2679 = vadd.f32 %v2470, %v2678
        %2680 = vmatmul.f32.gmra.mxu0 %v801
        %v2681 = vpop.f32.mrf.mxu0
        %v2682 = vadd.f32 %v2473, %v2681
        %2683 = vmatmul.f32.gmra.mxu0 %v804
        %v2684 = vpop.f32.mrf.mxu0
        %v2685 = vadd.f32 %v2476, %v2684
        %2686 = vmatmul.f32.gmra.mxu0 %v807
        %v2687 = vpop.f32.mrf.mxu0
        %v2688 = vadd.f32 %v2479, %v2687
        %2689 = vmatmul.f32.gmra.mxu0 %v810
        %v2690 = vpop.f32.mrf.mxu0
        %v2691 = vadd.f32 %v2482, %v2690
        %2692 = vmatmul.f32.gmra.mxu0 %v813
        %v2693 = vpop.f32.mrf.mxu0
        %v2694 = vadd.f32 %v2485, %v2693
        %2695 = vmatmul.f32.gmra.mxu0 %v816
        %v2696 = vpop.f32.mrf.mxu0
        %v2697 = vadd.f32 %v2488, %v2696
        %2698 = vmatmul.f32.gmra.mxu0 %v819
        %v2699 = vpop.f32.mrf.mxu0
        %v2700 = vadd.f32 %v2491, %v2699
        %2701 = vmatmul.f32.gmra.mxu0 %v822
        %v2702 = vpop.f32.mrf.mxu0
        %v2703 = vadd.f32 %v2494, %v2702
        %2704 = vmatmul.f32.gmra.mxu0 %v825
        %v2705 = vpop.f32.mrf.mxu0
        %v2706 = vadd.f32 %v2497, %v2705
        %2707 = vmatmul.f32.gmra.mxu0 %v828
        %v2708 = vpop.f32.mrf.mxu0
        %v2709 = vadd.f32 %v2500, %v2708
        %2710 = vmatmul.f32.gmra.mxu0 %v831
        %v2711 = vpop.f32.mrf.mxu0
        %v2712 = vadd.f32 %v2503, %v2711
        %2713 = vmatmul.f32.gmra.mxu0 %v834
        %v2714 = vpop.f32.mrf.mxu0
        %v2715 = vadd.f32 %v2506, %v2714
        %2716 = vmatmul.f32.gmra.mxu0 %v837
        %v2717 = vpop.f32.mrf.mxu0
        %v2718 = vadd.f32 %v2509, %v2717
        %2719 = vmatmul.f32.gmra.mxu0 %v840
        %v2720 = vpop.f32.mrf.mxu0
        %v2721 = vadd.f32 %v2512, %v2720
        %2722 = vmatmul.f32.gmra.mxu0 %v843
        %v2723 = vpop.f32.mrf.mxu0
        %v2724 = vadd.f32 %v2515, %v2723
        %2725 = vmatmul.f32.gmra.mxu0 %v846
        %v2726 = vpop.f32.mrf.mxu0
        %v2727 = vadd.f32 %v2518, %v2726
        %2728 = vmatmul.f32.gmra.mxu0 %v849
        %v2729 = vpop.f32.mrf.mxu0
        %v2730 = vadd.f32 %v2521, %v2729
        %2731 = vmatmul.f32.gmra.mxu0 %v852
        %v2732 = vpop.f32.mrf.mxu0
        %v2733 = vadd.f32 %v2524, %v2732
        %2734 = vmatmul.f32.gmra.mxu0 %v855
        %v2735 = vpop.f32.mrf.mxu0
        %v2736 = vadd.f32 %v2527, %v2735
        %2737 = vmatmul.f32.gmra.mxu0 %v858
        %v2738 = vpop.f32.mrf.mxu0
        %v2739 = vadd.f32 %v2530, %v2738
        %2740 = vmatmul.f32.gmra.mxu0 %v861
        %v2741 = vpop.f32.mrf.mxu0
        %v2742 = vadd.f32 %v2533, %v2741
        %2743 = vmatmul.f32.gmra.mxu0 %v864
        %v2744 = vpop.f32.mrf.mxu0
        %v2745 = vadd.f32 %v2536, %v2744
        %2746 = vmatmul.f32.gmra.mxu0 %v867
        %v2747 = vpop.f32.mrf.mxu0
        %v2748 = vadd.f32 %v2539, %v2747
        %2749 = vmatmul.f32.gmra.mxu0 %v870
        %v2750 = vpop.f32.mrf.mxu0
        %v2751 = vadd.f32 %v2542, %v2750
        %2752 = vmatmul.f32.gmra.mxu0 %v873
        %v2753 = vpop.f32.mrf.mxu0
        %v2754 = vadd.f32 %v2545, %v2753
        %2755 = vmatmul.f32.gmra.mxu0 %v876
        %v2756 = vpop.f32.mrf.mxu0
        %v2757 = vadd.f32 %v2548, %v2756
        %2758 = vmatmul.f32.gmra.mxu0 %v879
        %v2759 = vpop.f32.mrf.mxu0
        %v2760 = vadd.f32 %v2551, %v2759
        %2761 = vmatmul.f32.gmra.mxu0 %v882
        %v2762 = vpop.f32.mrf.mxu0
        %v2763 = vadd.f32 %v2554, %v2762
        %2764 = vmatmul.f32.gmra.mxu0 %v885
        %v2765 = vpop.f32.mrf.mxu0
        %v2766 = vadd.f32 %v2557, %v2765
        %2767 = vmatmul.f32.gmra.mxu0 %v888
        %v2768 = vpop.f32.mrf.mxu0
        %v2769 = vadd.f32 %v2560, %v2768
        %2770 = vdwg.mxu0
        %2771 = vmatpush.msra.mxu0 %v500
        %2772 = vmatpush.msra.mxu0 %v492
        %2773 = vmatpush.msra.mxu0 %v484
        %2774 = vmatpush.msra.mxu0 %v476
        %2775 = vmatpush.msra.mxu0 %v468
        %2776 = vmatpush.msra.mxu0 %v460
        %2777 = vmatpush.msra.mxu0 %v452
        %2778 = vmatpush.msra.mxu0 %v444
        %2779 = vmatpush.msra.mxu0 %v436
        %2780 = vmatpush.msra.mxu0 %v428
        %2781 = vmatpush.msra.mxu0 %v420
        %2782 = vmatpush.msra.mxu0 %v412
        %2783 = vmatpush.msra.mxu0 %v404
        %2784 = vmatpush.msra.mxu0 %v396
        %2785 = vmatpush.msra.mxu0 %v388
        %2786 = vmatpush.msra.mxu0 %v380
        %2787 = vmatmul.f32.gmra.mxu0 %v185
        %v2788 = vpop.f32.mrf.mxu0
        %v2789 = vadd.f32 0.0, %v2788
        %2790 = vmatmul.f32.gmra.mxu0 %v188
        %v2791 = vpop.f32.mrf.mxu0
        %v2792 = vadd.f32 0.0, %v2791
        %2793 = vmatmul.f32.gmra.mxu0 %v191
        %v2794 = vpop.f32.mrf.mxu0
        %v2795 = vadd.f32 0.0, %v2794
        %2796 = vmatmul.f32.gmra.mxu0 %v194
        %v2797 = vpop.f32.mrf.mxu0
        %v2798 = vadd.f32 0.0, %v2797
        %2799 = vmatmul.f32.gmra.mxu0 %v197
        %v2800 = vpop.f32.mrf.mxu0
        %v2801 = vadd.f32 0.0, %v2800
        %2802 = vmatmul.f32.gmra.mxu0 %v200
        %v2803 = vpop.f32.mrf.mxu0
        %v2804 = vadd.f32 0.0, %v2803
        %2805 = vmatmul.f32.gmra.mxu0 %v203
        %v2806 = vpop.f32.mrf.mxu0
        %v2807 = vadd.f32 0.0, %v2806
        %2808 = vmatmul.f32.gmra.mxu0 %v206
        %v2809 = vpop.f32.mrf.mxu0
        %v2810 = vadd.f32 0.0, %v2809
        %2811 = vmatmul.f32.gmra.mxu0 %v209
        %v2812 = vpop.f32.mrf.mxu0
        %v2813 = vadd.f32 0.0, %v2812
        %2814 = vmatmul.f32.gmra.mxu0 %v212
        %v2815 = vpop.f32.mrf.mxu0
        %v2816 = vadd.f32 0.0, %v2815
        %2817 = vmatmul.f32.gmra.mxu0 %v215
        %v2818 = vpop.f32.mrf.mxu0
        %v2819 = vadd.f32 0.0, %v2818
        %2820 = vmatmul.f32.gmra.mxu0 %v218
        %v2821 = vpop.f32.mrf.mxu0
        %v2822 = vadd.f32 0.0, %v2821
        %2823 = vmatmul.f32.gmra.mxu0 %v221
        %v2824 = vpop.f32.mrf.mxu0
        %v2825 = vadd.f32 0.0, %v2824
        %2826 = vmatmul.f32.gmra.mxu0 %v224
        %v2827 = vpop.f32.mrf.mxu0
        %v2828 = vadd.f32 0.0, %v2827
        %2829 = vmatmul.f32.gmra.mxu0 %v227
        %v2830 = vpop.f32.mrf.mxu0
        %v2831 = vadd.f32 0.0, %v2830
        %2832 = vmatmul.f32.gmra.mxu0 %v230
        %v2833 = vpop.f32.mrf.mxu0
        %v2834 = vadd.f32 0.0, %v2833
        %2835 = vmatmul.f32.gmra.mxu0 %v233
        %v2836 = vpop.f32.mrf.mxu0
        %v2837 = vadd.f32 0.0, %v2836
        %2838 = vmatmul.f32.gmra.mxu0 %v236
        %v2839 = vpop.f32.mrf.mxu0
        %v2840 = vadd.f32 0.0, %v2839
        %2841 = vmatmul.f32.gmra.mxu0 %v239
        %v2842 = vpop.f32.mrf.mxu0
        %v2843 = vadd.f32 0.0, %v2842
        %2844 = vmatmul.f32.gmra.mxu0 %v242
        %v2845 = vpop.f32.mrf.mxu0
        %v2846 = vadd.f32 0.0, %v2845
        %2847 = vmatmul.f32.gmra.mxu0 %v245
        %v2848 = vpop.f32.mrf.mxu0
        %v2849 = vadd.f32 0.0, %v2848
        %2850 = vmatmul.f32.gmra.mxu0 %v248
        %v2851 = vpop.f32.mrf.mxu0
        %v2852 = vadd.f32 0.0, %v2851
        %2853 = vmatmul.f32.gmra.mxu0 %v251
        %v2854 = vpop.f32.mrf.mxu0
        %v2855 = vadd.f32 0.0, %v2854
        %2856 = vmatmul.f32.gmra.mxu0 %v254
        %v2857 = vpop.f32.mrf.mxu0
        %v2858 = vadd.f32 0.0, %v2857
        %2859 = vmatmul.f32.gmra.mxu0 %v257
        %v2860 = vpop.f32.mrf.mxu0
        %v2861 = vadd.f32 0.0, %v2860
        %2862 = vmatmul.f32.gmra.mxu0 %v260
        %v2863 = vpop.f32.mrf.mxu0
        %v2864 = vadd.f32 0.0, %v2863
        %2865 = vmatmul.f32.gmra.mxu0 %v263
        %v2866 = vpop.f32.mrf.mxu0
        %v2867 = vadd.f32 0.0, %v2866
        %2868 = vmatmul.f32.gmra.mxu0 %v266
        %v2869 = vpop.f32.mrf.mxu0
        %v2870 = vadd.f32 0.0, %v2869
        %2871 = vmatmul.f32.gmra.mxu0 %v269
        %v2872 = vpop.f32.mrf.mxu0
        %v2873 = vadd.f32 0.0, %v2872
        %2874 = vmatmul.f32.gmra.mxu0 %v272
        %v2875 = vpop.f32.mrf.mxu0
        %v2876 = vadd.f32 0.0, %v2875
        %2877 = vmatmul.f32.gmra.mxu0 %v275
        %v2878 = vpop.f32.mrf.mxu0
        %v2879 = vadd.f32 0.0, %v2878
        %2880 = vmatmul.f32.gmra.mxu0 %v278
        %v2881 = vpop.f32.mrf.mxu0
        %v2882 = vadd.f32 0.0, %v2881
        %2883 = vmatmul.f32.gmra.mxu0 %v281
        %v2884 = vpop.f32.mrf.mxu0
        %v2885 = vadd.f32 0.0, %v2884
        %2886 = vmatmul.f32.gmra.mxu0 %v284
        %v2887 = vpop.f32.mrf.mxu0
        %v2888 = vadd.f32 0.0, %v2887
        %2889 = vmatmul.f32.gmra.mxu0 %v287
        %v2890 = vpop.f32.mrf.mxu0
        %v2891 = vadd.f32 0.0, %v2890
        %2892 = vmatmul.f32.gmra.mxu0 %v290
        %v2893 = vpop.f32.mrf.mxu0
        %v2894 = vadd.f32 0.0, %v2893
        %2895 = vmatmul.f32.gmra.mxu0 %v293
        %v2896 = vpop.f32.mrf.mxu0
        %v2897 = vadd.f32 0.0, %v2896
        %2898 = vmatmul.f32.gmra.mxu0 %v296
        %v2899 = vpop.f32.mrf.mxu0
        %v2900 = vadd.f32 0.0, %v2899
        %2901 = vmatmul.f32.gmra.mxu0 %v299
        %v2902 = vpop.f32.mrf.mxu0
        %v2903 = vadd.f32 0.0, %v2902
        %2904 = vmatmul.f32.gmra.mxu0 %v302
        %v2905 = vpop.f32.mrf.mxu0
        %v2906 = vadd.f32 0.0, %v2905
        %2907 = vmatmul.f32.gmra.mxu0 %v305
        %v2908 = vpop.f32.mrf.mxu0
        %v2909 = vadd.f32 0.0, %v2908
        %2910 = vmatmul.f32.gmra.mxu0 %v308
        %v2911 = vpop.f32.mrf.mxu0
        %v2912 = vadd.f32 0.0, %v2911
        %2913 = vmatmul.f32.gmra.mxu0 %v311
        %v2914 = vpop.f32.mrf.mxu0
        %v2915 = vadd.f32 0.0, %v2914
        %2916 = vmatmul.f32.gmra.mxu0 %v314
        %v2917 = vpop.f32.mrf.mxu0
        %v2918 = vadd.f32 0.0, %v2917
        %2919 = vmatmul.f32.gmra.mxu0 %v317
        %v2920 = vpop.f32.mrf.mxu0
        %v2921 = vadd.f32 0.0, %v2920
        %2922 = vmatmul.f32.gmra.mxu0 %v320
        %v2923 = vpop.f32.mrf.mxu0
        %v2924 = vadd.f32 0.0, %v2923
        %2925 = vmatmul.f32.gmra.mxu0 %v323
        %v2926 = vpop.f32.mrf.mxu0
        %v2927 = vadd.f32 0.0, %v2926
        %2928 = vmatmul.f32.gmra.mxu0 %v326
        %v2929 = vpop.f32.mrf.mxu0
        %v2930 = vadd.f32 0.0, %v2929
        %2931 = vmatmul.f32.gmra.mxu0 %v329
        %v2932 = vpop.f32.mrf.mxu0
        %v2933 = vadd.f32 0.0, %v2932
        %2934 = vmatmul.f32.gmra.mxu0 %v332
        %v2935 = vpop.f32.mrf.mxu0
        %v2936 = vadd.f32 0.0, %v2935
        %2937 = vmatmul.f32.gmra.mxu0 %v335
        %v2938 = vpop.f32.mrf.mxu0
        %v2939 = vadd.f32 0.0, %v2938
        %2940 = vmatmul.f32.gmra.mxu0 %v338
        %v2941 = vpop.f32.mrf.mxu0
        %v2942 = vadd.f32 0.0, %v2941
        %2943 = vmatmul.f32.gmra.mxu0 %v341
        %v2944 = vpop.f32.mrf.mxu0
        %v2945 = vadd.f32 0.0, %v2944
        %2946 = vmatmul.f32.gmra.mxu0 %v344
        %v2947 = vpop.f32.mrf.mxu0
        %v2948 = vadd.f32 0.0, %v2947
        %2949 = vmatmul.f32.gmra.mxu0 %v347
        %v2950 = vpop.f32.mrf.mxu0
        %v2951 = vadd.f32 0.0, %v2950
        %2952 = vmatmul.f32.gmra.mxu0 %v350
        %v2953 = vpop.f32.mrf.mxu0
        %v2954 = vadd.f32 0.0, %v2953
        %2955 = vmatmul.f32.gmra.mxu0 %v353
        %v2956 = vpop.f32.mrf.mxu0
        %v2957 = vadd.f32 0.0, %v2956
        %2958 = vmatmul.f32.gmra.mxu0 %v356
        %v2959 = vpop.f32.mrf.mxu0
        %v2960 = vadd.f32 0.0, %v2959
        %2961 = vmatmul.f32.gmra.mxu0 %v359
        %v2962 = vpop.f32.mrf.mxu0
        %v2963 = vadd.f32 0.0, %v2962
        %2964 = vmatmul.f32.gmra.mxu0 %v362
        %v2965 = vpop.f32.mrf.mxu0
        %v2966 = vadd.f32 0.0, %v2965
        %2967 = vmatmul.f32.gmra.mxu0 %v365
        %v2968 = vpop.f32.mrf.mxu0
        %v2969 = vadd.f32 0.0, %v2968
        %2970 = vmatmul.f32.gmra.mxu0 %v368
        %v2971 = vpop.f32.mrf.mxu0
        %v2972 = vadd.f32 0.0, %v2971
        %2973 = vmatmul.f32.gmra.mxu0 %v371
        %v2974 = vpop.f32.mrf.mxu0
        %v2975 = vadd.f32 0.0, %v2974
        %2976 = vmatmul.f32.gmra.mxu0 %v374
        %v2977 = vpop.f32.mrf.mxu0
        %v2978 = vadd.f32 0.0, %v2977
        %2979 = vdwg.mxu0
        %2980 = vmatpush.msra.mxu0 %v628
        %2981 = vmatpush.msra.mxu0 %v620
        %2982 = vmatpush.msra.mxu0 %v612
        %2983 = vmatpush.msra.mxu0 %v604
        %2984 = vmatpush.msra.mxu0 %v596
        %2985 = vmatpush.msra.mxu0 %v588
        %2986 = vmatpush.msra.mxu0 %v580
        %2987 = vmatpush.msra.mxu0 %v572
        %2988 = vmatpush.msra.mxu0 %v564
        %2989 = vmatpush.msra.mxu0 %v556
        %2990 = vmatpush.msra.mxu0 %v548
        %2991 = vmatpush.msra.mxu0 %v540
        %2992 = vmatpush.msra.mxu0 %v532
        %2993 = vmatpush.msra.mxu0 %v524
        %2994 = vmatpush.msra.mxu0 %v516
        %2995 = vmatpush.msra.mxu0 %v508
        %2996 = vmatmul.f32.gmra.mxu0 %v186
        %v2997 = vpop.f32.mrf.mxu0
        %v2998 = vadd.f32 %v2789, %v2997
        %2999 = vmatmul.f32.gmra.mxu0 %v189
        %v3000 = vpop.f32.mrf.mxu0
        %v3001 = vadd.f32 %v2792, %v3000
        %3002 = vmatmul.f32.gmra.mxu0 %v192
        %v3003 = vpop.f32.mrf.mxu0
        %v3004 = vadd.f32 %v2795, %v3003
        %3005 = vmatmul.f32.gmra.mxu0 %v195
        %v3006 = vpop.f32.mrf.mxu0
        %v3007 = vadd.f32 %v2798, %v3006
        %3008 = vmatmul.f32.gmra.mxu0 %v198
        %v3009 = vpop.f32.mrf.mxu0
        %v3010 = vadd.f32 %v2801, %v3009
        %3011 = vmatmul.f32.gmra.mxu0 %v201
        %v3012 = vpop.f32.mrf.mxu0
        %v3013 = vadd.f32 %v2804, %v3012
        %3014 = vmatmul.f32.gmra.mxu0 %v204
        %v3015 = vpop.f32.mrf.mxu0
        %v3016 = vadd.f32 %v2807, %v3015
        %3017 = vmatmul.f32.gmra.mxu0 %v207
        %v3018 = vpop.f32.mrf.mxu0
        %v3019 = vadd.f32 %v2810, %v3018
        %3020 = vmatmul.f32.gmra.mxu0 %v210
        %v3021 = vpop.f32.mrf.mxu0
        %v3022 = vadd.f32 %v2813, %v3021
        %3023 = vmatmul.f32.gmra.mxu0 %v213
        %v3024 = vpop.f32.mrf.mxu0
        %v3025 = vadd.f32 %v2816, %v3024
        %3026 = vmatmul.f32.gmra.mxu0 %v216
        %v3027 = vpop.f32.mrf.mxu0
        %v3028 = vadd.f32 %v2819, %v3027
        %3029 = vmatmul.f32.gmra.mxu0 %v219
        %v3030 = vpop.f32.mrf.mxu0
        %v3031 = vadd.f32 %v2822, %v3030
        %3032 = vmatmul.f32.gmra.mxu0 %v222
        %v3033 = vpop.f32.mrf.mxu0
        %v3034 = vadd.f32 %v2825, %v3033
        %3035 = vmatmul.f32.gmra.mxu0 %v225
        %v3036 = vpop.f32.mrf.mxu0
        %v3037 = vadd.f32 %v2828, %v3036
        %3038 = vmatmul.f32.gmra.mxu0 %v228
        %v3039 = vpop.f32.mrf.mxu0
        %v3040 = vadd.f32 %v2831, %v3039
        %3041 = vmatmul.f32.gmra.mxu0 %v231
        %v3042 = vpop.f32.mrf.mxu0
        %v3043 = vadd.f32 %v2834, %v3042
        %3044 = vmatmul.f32.gmra.mxu0 %v234
        %v3045 = vpop.f32.mrf.mxu0
        %v3046 = vadd.f32 %v2837, %v3045
        %3047 = vmatmul.f32.gmra.mxu0 %v237
        %v3048 = vpop.f32.mrf.mxu0
        %v3049 = vadd.f32 %v2840, %v3048
        %3050 = vmatmul.f32.gmra.mxu0 %v240
        %v3051 = vpop.f32.mrf.mxu0
        %v3052 = vadd.f32 %v2843, %v3051
        %3053 = vmatmul.f32.gmra.mxu0 %v243
        %v3054 = vpop.f32.mrf.mxu0
        %v3055 = vadd.f32 %v2846, %v3054
        %3056 = vmatmul.f32.gmra.mxu0 %v246
        %v3057 = vpop.f32.mrf.mxu0
        %v3058 = vadd.f32 %v2849, %v3057
        %3059 = vmatmul.f32.gmra.mxu0 %v249
        %v3060 = vpop.f32.mrf.mxu0
        %v3061 = vadd.f32 %v2852, %v3060
        %3062 = vmatmul.f32.gmra.mxu0 %v252
        %v3063 = vpop.f32.mrf.mxu0
        %v3064 = vadd.f32 %v2855, %v3063
        %3065 = vmatmul.f32.gmra.mxu0 %v255
        %v3066 = vpop.f32.mrf.mxu0
        %v3067 = vadd.f32 %v2858, %v3066
        %3068 = vmatmul.f32.gmra.mxu0 %v258
        %v3069 = vpop.f32.mrf.mxu0
        %v3070 = vadd.f32 %v2861, %v3069
        %3071 = vmatmul.f32.gmra.mxu0 %v261
        %v3072 = vpop.f32.mrf.mxu0
        %v3073 = vadd.f32 %v2864, %v3072
        %3074 = vmatmul.f32.gmra.mxu0 %v264
        %v3075 = vpop.f32.mrf.mxu0
        %v3076 = vadd.f32 %v2867, %v3075
        %3077 = vmatmul.f32.gmra.mxu0 %v267
        %v3078 = vpop.f32.mrf.mxu0
        %v3079 = vadd.f32 %v2870, %v3078
        %3080 = vmatmul.f32.gmra.mxu0 %v270
        %v3081 = vpop.f32.mrf.mxu0
        %v3082 = vadd.f32 %v2873, %v3081
        %3083 = vmatmul.f32.gmra.mxu0 %v273
        %v3084 = vpop.f32.mrf.mxu0
        %v3085 = vadd.f32 %v2876, %v3084
        %3086 = vmatmul.f32.gmra.mxu0 %v276
        %v3087 = vpop.f32.mrf.mxu0
        %v3088 = vadd.f32 %v2879, %v3087
        %3089 = vmatmul.f32.gmra.mxu0 %v279
        %v3090 = vpop.f32.mrf.mxu0
        %v3091 = vadd.f32 %v2882, %v3090
        %3092 = vmatmul.f32.gmra.mxu0 %v282
        %v3093 = vpop.f32.mrf.mxu0
        %v3094 = vadd.f32 %v2885, %v3093
        %3095 = vmatmul.f32.gmra.mxu0 %v285
        %v3096 = vpop.f32.mrf.mxu0
        %v3097 = vadd.f32 %v2888, %v3096
        %3098 = vmatmul.f32.gmra.mxu0 %v288
        %v3099 = vpop.f32.mrf.mxu0
        %v3100 = vadd.f32 %v2891, %v3099
        %3101 = vmatmul.f32.gmra.mxu0 %v291
        %v3102 = vpop.f32.mrf.mxu0
        %v3103 = vadd.f32 %v2894, %v3102
        %3104 = vmatmul.f32.gmra.mxu0 %v294
        %v3105 = vpop.f32.mrf.mxu0
        %v3106 = vadd.f32 %v2897, %v3105
        %3107 = vmatmul.f32.gmra.mxu0 %v297
        %v3108 = vpop.f32.mrf.mxu0
        %v3109 = vadd.f32 %v2900, %v3108
        %3110 = vmatmul.f32.gmra.mxu0 %v300
        %v3111 = vpop.f32.mrf.mxu0
        %v3112 = vadd.f32 %v2903, %v3111
        %3113 = vmatmul.f32.gmra.mxu0 %v303
        %v3114 = vpop.f32.mrf.mxu0
        %v3115 = vadd.f32 %v2906, %v3114
        %3116 = vmatmul.f32.gmra.mxu0 %v306
        %v3117 = vpop.f32.mrf.mxu0
        %v3118 = vadd.f32 %v2909, %v3117
        %3119 = vmatmul.f32.gmra.mxu0 %v309
        %v3120 = vpop.f32.mrf.mxu0
        %v3121 = vadd.f32 %v2912, %v3120
        %3122 = vmatmul.f32.gmra.mxu0 %v312
        %v3123 = vpop.f32.mrf.mxu0
        %v3124 = vadd.f32 %v2915, %v3123
        %3125 = vmatmul.f32.gmra.mxu0 %v315
        %v3126 = vpop.f32.mrf.mxu0
        %v3127 = vadd.f32 %v2918, %v3126
        %3128 = vmatmul.f32.gmra.mxu0 %v318
        %v3129 = vpop.f32.mrf.mxu0
        %v3130 = vadd.f32 %v2921, %v3129
        %3131 = vmatmul.f32.gmra.mxu0 %v321
        %v3132 = vpop.f32.mrf.mxu0
        %v3133 = vadd.f32 %v2924, %v3132
        %3134 = vmatmul.f32.gmra.mxu0 %v324
        %v3135 = vpop.f32.mrf.mxu0
        %v3136 = vadd.f32 %v2927, %v3135
        %3137 = vmatmul.f32.gmra.mxu0 %v327
        %v3138 = vpop.f32.mrf.mxu0
        %v3139 = vadd.f32 %v2930, %v3138
        %3140 = vmatmul.f32.gmra.mxu0 %v330
        %v3141 = vpop.f32.mrf.mxu0
        %v3142 = vadd.f32 %v2933, %v3141
        %3143 = vmatmul.f32.gmra.mxu0 %v333
        %v3144 = vpop.f32.mrf.mxu0
        %v3145 = vadd.f32 %v2936, %v3144
        %3146 = vmatmul.f32.gmra.mxu0 %v336
        %v3147 = vpop.f32.mrf.mxu0
        %v3148 = vadd.f32 %v2939, %v3147
        %3149 = vmatmul.f32.gmra.mxu0 %v339
        %v3150 = vpop.f32.mrf.mxu0
        %v3151 = vadd.f32 %v2942, %v3150
        %3152 = vmatmul.f32.gmra.mxu0 %v342
        %v3153 = vpop.f32.mrf.mxu0
        %v3154 = vadd.f32 %v2945, %v3153
        %3155 = vmatmul.f32.gmra.mxu0 %v345
        %v3156 = vpop.f32.mrf.mxu0
        %v3157 = vadd.f32 %v2948, %v3156
        %3158 = vmatmul.f32.gmra.mxu0 %v348
        %v3159 = vpop.f32.mrf.mxu0
        %v3160 = vadd.f32 %v2951, %v3159
        %3161 = vmatmul.f32.gmra.mxu0 %v351
        %v3162 = vpop.f32.mrf.mxu0
        %v3163 = vadd.f32 %v2954, %v3162
        %3164 = vmatmul.f32.gmra.mxu0 %v354
        %v3165 = vpop.f32.mrf.mxu0
        %v3166 = vadd.f32 %v2957, %v3165
        %3167 = vmatmul.f32.gmra.mxu0 %v357
        %v3168 = vpop.f32.mrf.mxu0
        %v3169 = vadd.f32 %v2960, %v3168
        %3170 = vmatmul.f32.gmra.mxu0 %v360
        %v3171 = vpop.f32.mrf.mxu0
        %v3172 = vadd.f32 %v2963, %v3171
        %3173 = vmatmul.f32.gmra.mxu0 %v363
        %v3174 = vpop.f32.mrf.mxu0
        %v3175 = vadd.f32 %v2966, %v3174
        %3176 = vmatmul.f32.gmra.mxu0 %v366
        %v3177 = vpop.f32.mrf.mxu0
        %v3178 = vadd.f32 %v2969, %v3177
        %3179 = vmatmul.f32.gmra.mxu0 %v369
        %v3180 = vpop.f32.mrf.mxu0
        %v3181 = vadd.f32 %v2972, %v3180
        %3182 = vmatmul.f32.gmra.mxu0 %v372
        %v3183 = vpop.f32.mrf.mxu0
        %v3184 = vadd.f32 %v2975, %v3183
        %3185 = vmatmul.f32.gmra.mxu0 %v375
        %v3186 = vpop.f32.mrf.mxu0
        %v3187 = vadd.f32 %v2978, %v3186
        %3188 = vdwg.mxu0
        %3189 = vmatpush.msra.mxu0 0.0
        %3190 = vmatpush.msra.mxu0 0.0
        %3191 = vmatpush.msra.mxu0 0.0
        %3192 = vmatpush.msra.mxu0 0.0
        %3193 = vmatpush.msra.mxu0 0.0
        %3194 = vmatpush.msra.mxu0 0.0
        %3195 = vmatpush.msra.mxu0 0.0
        %3196 = vmatpush.msra.mxu0 0.0
        %3197 = vmatpush.msra.mxu0 %v692
        %3198 = vmatpush.msra.mxu0 %v684
        %3199 = vmatpush.msra.mxu0 %v676
        %3200 = vmatpush.msra.mxu0 %v668
        %3201 = vmatpush.msra.mxu0 %v660
        %3202 = vmatpush.msra.mxu0 %v652
        %3203 = vmatpush.msra.mxu0 %v644
        %3204 = vmatpush.msra.mxu0 %v636
        %3205 = vmatmul.f32.gmra.mxu0 %v699
        %v3206 = vpop.f32.mrf.mxu0
        %v3207 = vadd.f32 %v2998, %v3206
        %3208 = vmatmul.f32.gmra.mxu0 %v702
        %v3209 = vpop.f32.mrf.mxu0
        %v3210 = vadd.f32 %v3001, %v3209
        %3211 = vmatmul.f32.gmra.mxu0 %v705
        %v3212 = vpop.f32.mrf.mxu0
        %v3213 = vadd.f32 %v3004, %v3212
        %3214 = vmatmul.f32.gmra.mxu0 %v708
        %v3215 = vpop.f32.mrf.mxu0
        %v3216 = vadd.f32 %v3007, %v3215
        %3217 = vmatmul.f32.gmra.mxu0 %v711
        %v3218 = vpop.f32.mrf.mxu0
        %v3219 = vadd.f32 %v3010, %v3218
        %3220 = vmatmul.f32.gmra.mxu0 %v714
        %v3221 = vpop.f32.mrf.mxu0
        %v3222 = vadd.f32 %v3013, %v3221
        %3223 = vmatmul.f32.gmra.mxu0 %v717
        %v3224 = vpop.f32.mrf.mxu0
        %v3225 = vadd.f32 %v3016, %v3224
        %3226 = vmatmul.f32.gmra.mxu0 %v720
        %v3227 = vpop.f32.mrf.mxu0
        %v3228 = vadd.f32 %v3019, %v3227
        %3229 = vmatmul.f32.gmra.mxu0 %v723
        %v3230 = vpop.f32.mrf.mxu0
        %v3231 = vadd.f32 %v3022, %v3230
        %3232 = vmatmul.f32.gmra.mxu0 %v726
        %v3233 = vpop.f32.mrf.mxu0
        %v3234 = vadd.f32 %v3025, %v3233
        %3235 = vmatmul.f32.gmra.mxu0 %v729
        %v3236 = vpop.f32.mrf.mxu0
        %v3237 = vadd.f32 %v3028, %v3236
        %3238 = vmatmul.f32.gmra.mxu0 %v732
        %v3239 = vpop.f32.mrf.mxu0
        %v3240 = vadd.f32 %v3031, %v3239
        %3241 = vmatmul.f32.gmra.mxu0 %v735
        %v3242 = vpop.f32.mrf.mxu0
        %v3243 = vadd.f32 %v3034, %v3242
        %3244 = vmatmul.f32.gmra.mxu0 %v738
        %v3245 = vpop.f32.mrf.mxu0
        %v3246 = vadd.f32 %v3037, %v3245
        %3247 = vmatmul.f32.gmra.mxu0 %v741
        %v3248 = vpop.f32.mrf.mxu0
        %v3249 = vadd.f32 %v3040, %v3248
        %3250 = vmatmul.f32.gmra.mxu0 %v744
        %v3251 = vpop.f32.mrf.mxu0
        %v3252 = vadd.f32 %v3043, %v3251
        %3253 = vmatmul.f32.gmra.mxu0 %v747
        %v3254 = vpop.f32.mrf.mxu0
        %v3255 = vadd.f32 %v3046, %v3254
        %3256 = vmatmul.f32.gmra.mxu0 %v750
        %v3257 = vpop.f32.mrf.mxu0
        %v3258 = vadd.f32 %v3049, %v3257
        %3259 = vmatmul.f32.gmra.mxu0 %v753
        %v3260 = vpop.f32.mrf.mxu0
        %v3261 = vadd.f32 %v3052, %v3260
        %3262 = vmatmul.f32.gmra.mxu0 %v756
        %v3263 = vpop.f32.mrf.mxu0
        %v3264 = vadd.f32 %v3055, %v3263
        %3265 = vmatmul.f32.gmra.mxu0 %v759
        %v3266 = vpop.f32.mrf.mxu0
        %v3267 = vadd.f32 %v3058, %v3266
        %3268 = vmatmul.f32.gmra.mxu0 %v762
        %v3269 = vpop.f32.mrf.mxu0
        %v3270 = vadd.f32 %v3061, %v3269
        %3271 = vmatmul.f32.gmra.mxu0 %v765
        %v3272 = vpop.f32.mrf.mxu0
        %v3273 = vadd.f32 %v3064, %v3272
        %3274 = vmatmul.f32.gmra.mxu0 %v768
        %v3275 = vpop.f32.mrf.mxu0
        %v3276 = vadd.f32 %v3067, %v3275
        %3277 = vmatmul.f32.gmra.mxu0 %v771
        %v3278 = vpop.f32.mrf.mxu0
        %v3279 = vadd.f32 %v3070, %v3278
        %3280 = vmatmul.f32.gmra.mxu0 %v774
        %v3281 = vpop.f32.mrf.mxu0
        %v3282 = vadd.f32 %v3073, %v3281
        %3283 = vmatmul.f32.gmra.mxu0 %v777
        %v3284 = vpop.f32.mrf.mxu0
        %v3285 = vadd.f32 %v3076, %v3284
        %3286 = vmatmul.f32.gmra.mxu0 %v780
        %v3287 = vpop.f32.mrf.mxu0
        %v3288 = vadd.f32 %v3079, %v3287
        %3289 = vmatmul.f32.gmra.mxu0 %v783
        %v3290 = vpop.f32.mrf.mxu0
        %v3291 = vadd.f32 %v3082, %v3290
        %3292 = vmatmul.f32.gmra.mxu0 %v786
        %v3293 = vpop.f32.mrf.mxu0
        %v3294 = vadd.f32 %v3085, %v3293
        %3295 = vmatmul.f32.gmra.mxu0 %v789
        %v3296 = vpop.f32.mrf.mxu0
        %v3297 = vadd.f32 %v3088, %v3296
        %3298 = vmatmul.f32.gmra.mxu0 %v792
        %v3299 = vpop.f32.mrf.mxu0
        %v3300 = vadd.f32 %v3091, %v3299
        %3301 = vmatmul.f32.gmra.mxu0 %v795
        %v3302 = vpop.f32.mrf.mxu0
        %v3303 = vadd.f32 %v3094, %v3302
        %3304 = vmatmul.f32.gmra.mxu0 %v798
        %v3305 = vpop.f32.mrf.mxu0
        %v3306 = vadd.f32 %v3097, %v3305
        %3307 = vmatmul.f32.gmra.mxu0 %v801
        %v3308 = vpop.f32.mrf.mxu0
        %v3309 = vadd.f32 %v3100, %v3308
        %3310 = vmatmul.f32.gmra.mxu0 %v804
        %v3311 = vpop.f32.mrf.mxu0
        %v3312 = vadd.f32 %v3103, %v3311
        %3313 = vmatmul.f32.gmra.mxu0 %v807
        %v3314 = vpop.f32.mrf.mxu0
        %v3315 = vadd.f32 %v3106, %v3314
        %3316 = vmatmul.f32.gmra.mxu0 %v810
        %v3317 = vpop.f32.mrf.mxu0
        %v3318 = vadd.f32 %v3109, %v3317
        %3319 = vmatmul.f32.gmra.mxu0 %v813
        %v3320 = vpop.f32.mrf.mxu0
        %v3321 = vadd.f32 %v3112, %v3320
        %3322 = vmatmul.f32.gmra.mxu0 %v816
        %v3323 = vpop.f32.mrf.mxu0
        %v3324 = vadd.f32 %v3115, %v3323
        %3325 = vmatmul.f32.gmra.mxu0 %v819
        %v3326 = vpop.f32.mrf.mxu0
        %v3327 = vadd.f32 %v3118, %v3326
        %3328 = vmatmul.f32.gmra.mxu0 %v822
        %v3329 = vpop.f32.mrf.mxu0
        %v3330 = vadd.f32 %v3121, %v3329
        %3331 = vmatmul.f32.gmra.mxu0 %v825
        %v3332 = vpop.f32.mrf.mxu0
        %v3333 = vadd.f32 %v3124, %v3332
        %3334 = vmatmul.f32.gmra.mxu0 %v828
        %v3335 = vpop.f32.mrf.mxu0
        %v3336 = vadd.f32 %v3127, %v3335
        %3337 = vmatmul.f32.gmra.mxu0 %v831
        %v3338 = vpop.f32.mrf.mxu0
        %v3339 = vadd.f32 %v3130, %v3338
        %3340 = vmatmul.f32.gmra.mxu0 %v834
        %v3341 = vpop.f32.mrf.mxu0
        %v3342 = vadd.f32 %v3133, %v3341
        %3343 = vmatmul.f32.gmra.mxu0 %v837
        %v3344 = vpop.f32.mrf.mxu0
        %v3345 = vadd.f32 %v3136, %v3344
        %3346 = vmatmul.f32.gmra.mxu0 %v840
        %v3347 = vpop.f32.mrf.mxu0
        %v3348 = vadd.f32 %v3139, %v3347
        %3349 = vmatmul.f32.gmra.mxu0 %v843
        %v3350 = vpop.f32.mrf.mxu0
        %v3351 = vadd.f32 %v3142, %v3350
        %3352 = vmatmul.f32.gmra.mxu0 %v846
        %v3353 = vpop.f32.mrf.mxu0
        %v3354 = vadd.f32 %v3145, %v3353
        %3355 = vmatmul.f32.gmra.mxu0 %v849
        %v3356 = vpop.f32.mrf.mxu0
        %v3357 = vadd.f32 %v3148, %v3356
        %3358 = vmatmul.f32.gmra.mxu0 %v852
        %v3359 = vpop.f32.mrf.mxu0
        %v3360 = vadd.f32 %v3151, %v3359
        %3361 = vmatmul.f32.gmra.mxu0 %v855
        %v3362 = vpop.f32.mrf.mxu0
        %v3363 = vadd.f32 %v3154, %v3362
        %3364 = vmatmul.f32.gmra.mxu0 %v858
        %v3365 = vpop.f32.mrf.mxu0
        %v3366 = vadd.f32 %v3157, %v3365
        %3367 = vmatmul.f32.gmra.mxu0 %v861
        %v3368 = vpop.f32.mrf.mxu0
        %v3369 = vadd.f32 %v3160, %v3368
        %3370 = vmatmul.f32.gmra.mxu0 %v864
        %v3371 = vpop.f32.mrf.mxu0
        %v3372 = vadd.f32 %v3163, %v3371
        %3373 = vmatmul.f32.gmra.mxu0 %v867
        %v3374 = vpop.f32.mrf.mxu0
        %v3375 = vadd.f32 %v3166, %v3374
        %3376 = vmatmul.f32.gmra.mxu0 %v870
        %v3377 = vpop.f32.mrf.mxu0
        %v3378 = vadd.f32 %v3169, %v3377
        %3379 = vmatmul.f32.gmra.mxu0 %v873
        %v3380 = vpop.f32.mrf.mxu0
        %v3381 = vadd.f32 %v3172, %v3380
        %3382 = vmatmul.f32.gmra.mxu0 %v876
        %v3383 = vpop.f32.mrf.mxu0
        %v3384 = vadd.f32 %v3175, %v3383
        %3385 = vmatmul.f32.gmra.mxu0 %v879
        %v3386 = vpop.f32.mrf.mxu0
        %v3387 = vadd.f32 %v3178, %v3386
        %3388 = vmatmul.f32.gmra.mxu0 %v882
        %v3389 = vpop.f32.mrf.mxu0
        %v3390 = vadd.f32 %v3181, %v3389
        %3391 = vmatmul.f32.gmra.mxu0 %v885
        %v3392 = vpop.f32.mrf.mxu0
        %v3393 = vadd.f32 %v3184, %v3392
        %3394 = vmatmul.f32.gmra.mxu0 %v888
        %v3395 = vpop.f32.mrf.mxu0
        %v3396 = vadd.f32 %v3187, %v3395
        %3397 = vdwg.mxu0
        %3398 = vmatpush.msra.mxu0 %v501
        %3399 = vmatpush.msra.mxu0 %v493
        %3400 = vmatpush.msra.mxu0 %v485
        %3401 = vmatpush.msra.mxu0 %v477
        %3402 = vmatpush.msra.mxu0 %v469
        %3403 = vmatpush.msra.mxu0 %v461
        %3404 = vmatpush.msra.mxu0 %v453
        %3405 = vmatpush.msra.mxu0 %v445
        %3406 = vmatpush.msra.mxu0 %v437
        %3407 = vmatpush.msra.mxu0 %v429
        %3408 = vmatpush.msra.mxu0 %v421
        %3409 = vmatpush.msra.mxu0 %v413
        %3410 = vmatpush.msra.mxu0 %v405
        %3411 = vmatpush.msra.mxu0 %v397
        %3412 = vmatpush.msra.mxu0 %v389
        %3413 = vmatpush.msra.mxu0 %v381
        %3414 = vmatmul.f32.gmra.mxu0 %v185
        %v3415 = vpop.f32.mrf.mxu0
        %v3416 = vadd.f32 0.0, %v3415
        %3417 = vmatmul.f32.gmra.mxu0 %v188
        %v3418 = vpop.f32.mrf.mxu0
        %v3419 = vadd.f32 0.0, %v3418
        %3420 = vmatmul.f32.gmra.mxu0 %v191
        %v3421 = vpop.f32.mrf.mxu0
        %v3422 = vadd.f32 0.0, %v3421
        %3423 = vmatmul.f32.gmra.mxu0 %v194
        %v3424 = vpop.f32.mrf.mxu0
        %v3425 = vadd.f32 0.0, %v3424
        %3426 = vmatmul.f32.gmra.mxu0 %v197
        %v3427 = vpop.f32.mrf.mxu0
        %v3428 = vadd.f32 0.0, %v3427
        %3429 = vmatmul.f32.gmra.mxu0 %v200
        %v3430 = vpop.f32.mrf.mxu0
        %v3431 = vadd.f32 0.0, %v3430
        %3432 = vmatmul.f32.gmra.mxu0 %v203
        %v3433 = vpop.f32.mrf.mxu0
        %v3434 = vadd.f32 0.0, %v3433
        %3435 = vmatmul.f32.gmra.mxu0 %v206
        %v3436 = vpop.f32.mrf.mxu0
        %v3437 = vadd.f32 0.0, %v3436
        %3438 = vmatmul.f32.gmra.mxu0 %v209
        %v3439 = vpop.f32.mrf.mxu0
        %v3440 = vadd.f32 0.0, %v3439
        %3441 = vmatmul.f32.gmra.mxu0 %v212
        %v3442 = vpop.f32.mrf.mxu0
        %v3443 = vadd.f32 0.0, %v3442
        %3444 = vmatmul.f32.gmra.mxu0 %v215
        %v3445 = vpop.f32.mrf.mxu0
        %v3446 = vadd.f32 0.0, %v3445
        %3447 = vmatmul.f32.gmra.mxu0 %v218
        %v3448 = vpop.f32.mrf.mxu0
        %v3449 = vadd.f32 0.0, %v3448
        %3450 = vmatmul.f32.gmra.mxu0 %v221
        %v3451 = vpop.f32.mrf.mxu0
        %v3452 = vadd.f32 0.0, %v3451
        %3453 = vmatmul.f32.gmra.mxu0 %v224
        %v3454 = vpop.f32.mrf.mxu0
        %v3455 = vadd.f32 0.0, %v3454
        %3456 = vmatmul.f32.gmra.mxu0 %v227
        %v3457 = vpop.f32.mrf.mxu0
        %v3458 = vadd.f32 0.0, %v3457
        %3459 = vmatmul.f32.gmra.mxu0 %v230
        %v3460 = vpop.f32.mrf.mxu0
        %v3461 = vadd.f32 0.0, %v3460
        %3462 = vmatmul.f32.gmra.mxu0 %v233
        %v3463 = vpop.f32.mrf.mxu0
        %v3464 = vadd.f32 0.0, %v3463
        %3465 = vmatmul.f32.gmra.mxu0 %v236
        %v3466 = vpop.f32.mrf.mxu0
        %v3467 = vadd.f32 0.0, %v3466
        %3468 = vmatmul.f32.gmra.mxu0 %v239
        %v3469 = vpop.f32.mrf.mxu0
        %v3470 = vadd.f32 0.0, %v3469
        %3471 = vmatmul.f32.gmra.mxu0 %v242
        %v3472 = vpop.f32.mrf.mxu0
        %v3473 = vadd.f32 0.0, %v3472
        %3474 = vmatmul.f32.gmra.mxu0 %v245
        %v3475 = vpop.f32.mrf.mxu0
        %v3476 = vadd.f32 0.0, %v3475
        %3477 = vmatmul.f32.gmra.mxu0 %v248
        %v3478 = vpop.f32.mrf.mxu0
        %v3479 = vadd.f32 0.0, %v3478
        %3480 = vmatmul.f32.gmra.mxu0 %v251
        %v3481 = vpop.f32.mrf.mxu0
        %v3482 = vadd.f32 0.0, %v3481
        %3483 = vmatmul.f32.gmra.mxu0 %v254
        %v3484 = vpop.f32.mrf.mxu0
        %v3485 = vadd.f32 0.0, %v3484
        %3486 = vmatmul.f32.gmra.mxu0 %v257
        %v3487 = vpop.f32.mrf.mxu0
        %v3488 = vadd.f32 0.0, %v3487
        %3489 = vmatmul.f32.gmra.mxu0 %v260
        %v3490 = vpop.f32.mrf.mxu0
        %v3491 = vadd.f32 0.0, %v3490
        %3492 = vmatmul.f32.gmra.mxu0 %v263
        %v3493 = vpop.f32.mrf.mxu0
        %v3494 = vadd.f32 0.0, %v3493
        %3495 = vmatmul.f32.gmra.mxu0 %v266
        %v3496 = vpop.f32.mrf.mxu0
        %v3497 = vadd.f32 0.0, %v3496
        %3498 = vmatmul.f32.gmra.mxu0 %v269
        %v3499 = vpop.f32.mrf.mxu0
        %v3500 = vadd.f32 0.0, %v3499
        %3501 = vmatmul.f32.gmra.mxu0 %v272
        %v3502 = vpop.f32.mrf.mxu0
        %v3503 = vadd.f32 0.0, %v3502
        %3504 = vmatmul.f32.gmra.mxu0 %v275
        %v3505 = vpop.f32.mrf.mxu0
        %v3506 = vadd.f32 0.0, %v3505
        %3507 = vmatmul.f32.gmra.mxu0 %v278
        %v3508 = vpop.f32.mrf.mxu0
        %v3509 = vadd.f32 0.0, %v3508
        %3510 = vmatmul.f32.gmra.mxu0 %v281
        %v3511 = vpop.f32.mrf.mxu0
        %v3512 = vadd.f32 0.0, %v3511
        %3513 = vmatmul.f32.gmra.mxu0 %v284
        %v3514 = vpop.f32.mrf.mxu0
        %v3515 = vadd.f32 0.0, %v3514
        %3516 = vmatmul.f32.gmra.mxu0 %v287
        %v3517 = vpop.f32.mrf.mxu0
        %v3518 = vadd.f32 0.0, %v3517
        %3519 = vmatmul.f32.gmra.mxu0 %v290
        %v3520 = vpop.f32.mrf.mxu0
        %v3521 = vadd.f32 0.0, %v3520
        %3522 = vmatmul.f32.gmra.mxu0 %v293
        %v3523 = vpop.f32.mrf.mxu0
        %v3524 = vadd.f32 0.0, %v3523
        %3525 = vmatmul.f32.gmra.mxu0 %v296
        %v3526 = vpop.f32.mrf.mxu0
        %v3527 = vadd.f32 0.0, %v3526
        %3528 = vmatmul.f32.gmra.mxu0 %v299
        %v3529 = vpop.f32.mrf.mxu0
        %v3530 = vadd.f32 0.0, %v3529
        %3531 = vmatmul.f32.gmra.mxu0 %v302
        %v3532 = vpop.f32.mrf.mxu0
        %v3533 = vadd.f32 0.0, %v3532
        %3534 = vmatmul.f32.gmra.mxu0 %v305
        %v3535 = vpop.f32.mrf.mxu0
        %v3536 = vadd.f32 0.0, %v3535
        %3537 = vmatmul.f32.gmra.mxu0 %v308
        %v3538 = vpop.f32.mrf.mxu0
        %v3539 = vadd.f32 0.0, %v3538
        %3540 = vmatmul.f32.gmra.mxu0 %v311
        %v3541 = vpop.f32.mrf.mxu0
        %v3542 = vadd.f32 0.0, %v3541
        %3543 = vmatmul.f32.gmra.mxu0 %v314
        %v3544 = vpop.f32.mrf.mxu0
        %v3545 = vadd.f32 0.0, %v3544
        %3546 = vmatmul.f32.gmra.mxu0 %v317
        %v3547 = vpop.f32.mrf.mxu0
        %v3548 = vadd.f32 0.0, %v3547
        %3549 = vmatmul.f32.gmra.mxu0 %v320
        %v3550 = vpop.f32.mrf.mxu0
        %v3551 = vadd.f32 0.0, %v3550
        %3552 = vmatmul.f32.gmra.mxu0 %v323
        %v3553 = vpop.f32.mrf.mxu0
        %v3554 = vadd.f32 0.0, %v3553
        %3555 = vmatmul.f32.gmra.mxu0 %v326
        %v3556 = vpop.f32.mrf.mxu0
        %v3557 = vadd.f32 0.0, %v3556
        %3558 = vmatmul.f32.gmra.mxu0 %v329
        %v3559 = vpop.f32.mrf.mxu0
        %v3560 = vadd.f32 0.0, %v3559
        %3561 = vmatmul.f32.gmra.mxu0 %v332
        %v3562 = vpop.f32.mrf.mxu0
        %v3563 = vadd.f32 0.0, %v3562
        %3564 = vmatmul.f32.gmra.mxu0 %v335
        %v3565 = vpop.f32.mrf.mxu0
        %v3566 = vadd.f32 0.0, %v3565
        %3567 = vmatmul.f32.gmra.mxu0 %v338
        %v3568 = vpop.f32.mrf.mxu0
        %v3569 = vadd.f32 0.0, %v3568
        %3570 = vmatmul.f32.gmra.mxu0 %v341
        %v3571 = vpop.f32.mrf.mxu0
        %v3572 = vadd.f32 0.0, %v3571
        %3573 = vmatmul.f32.gmra.mxu0 %v344
        %v3574 = vpop.f32.mrf.mxu0
        %v3575 = vadd.f32 0.0, %v3574
        %3576 = vmatmul.f32.gmra.mxu0 %v347
        %v3577 = vpop.f32.mrf.mxu0
        %v3578 = vadd.f32 0.0, %v3577
        %3579 = vmatmul.f32.gmra.mxu0 %v350
        %v3580 = vpop.f32.mrf.mxu0
        %v3581 = vadd.f32 0.0, %v3580
        %3582 = vmatmul.f32.gmra.mxu0 %v353
        %v3583 = vpop.f32.mrf.mxu0
        %v3584 = vadd.f32 0.0, %v3583
        %3585 = vmatmul.f32.gmra.mxu0 %v356
        %v3586 = vpop.f32.mrf.mxu0
        %v3587 = vadd.f32 0.0, %v3586
        %3588 = vmatmul.f32.gmra.mxu0 %v359
        %v3589 = vpop.f32.mrf.mxu0
        %v3590 = vadd.f32 0.0, %v3589
        %3591 = vmatmul.f32.gmra.mxu0 %v362
        %v3592 = vpop.f32.mrf.mxu0
        %v3593 = vadd.f32 0.0, %v3592
        %3594 = vmatmul.f32.gmra.mxu0 %v365
        %v3595 = vpop.f32.mrf.mxu0
        %v3596 = vadd.f32 0.0, %v3595
        %3597 = vmatmul.f32.gmra.mxu0 %v368
        %v3598 = vpop.f32.mrf.mxu0
        %v3599 = vadd.f32 0.0, %v3598
        %3600 = vmatmul.f32.gmra.mxu0 %v371
        %v3601 = vpop.f32.mrf.mxu0
        %v3602 = vadd.f32 0.0, %v3601
        %3603 = vmatmul.f32.gmra.mxu0 %v374
        %v3604 = vpop.f32.mrf.mxu0
        %v3605 = vadd.f32 0.0, %v3604
        %3606 = vdwg.mxu0
        %3607 = vmatpush.msra.mxu0 %v629
        %3608 = vmatpush.msra.mxu0 %v621
        %3609 = vmatpush.msra.mxu0 %v613
        %3610 = vmatpush.msra.mxu0 %v605
        %3611 = vmatpush.msra.mxu0 %v597
        %3612 = vmatpush.msra.mxu0 %v589
        %3613 = vmatpush.msra.mxu0 %v581
        %3614 = vmatpush.msra.mxu0 %v573
        %3615 = vmatpush.msra.mxu0 %v565
        %3616 = vmatpush.msra.mxu0 %v557
        %3617 = vmatpush.msra.mxu0 %v549
        %3618 = vmatpush.msra.mxu0 %v541
        %3619 = vmatpush.msra.mxu0 %v533
        %3620 = vmatpush.msra.mxu0 %v525
        %3621 = vmatpush.msra.mxu0 %v517
        %3622 = vmatpush.msra.mxu0 %v509
        %3623 = vmatmul.f32.gmra.mxu0 %v186
        %v3624 = vpop.f32.mrf.mxu0
        %v3625 = vadd.f32 %v3416, %v3624
        %3626 = vmatmul.f32.gmra.mxu0 %v189
        %v3627 = vpop.f32.mrf.mxu0
        %v3628 = vadd.f32 %v3419, %v3627
        %3629 = vmatmul.f32.gmra.mxu0 %v192
        %v3630 = vpop.f32.mrf.mxu0
        %v3631 = vadd.f32 %v3422, %v3630
        %3632 = vmatmul.f32.gmra.mxu0 %v195
        %v3633 = vpop.f32.mrf.mxu0
        %v3634 = vadd.f32 %v3425, %v3633
        %3635 = vmatmul.f32.gmra.mxu0 %v198
        %v3636 = vpop.f32.mrf.mxu0
        %v3637 = vadd.f32 %v3428, %v3636
        %3638 = vmatmul.f32.gmra.mxu0 %v201
        %v3639 = vpop.f32.mrf.mxu0
        %v3640 = vadd.f32 %v3431, %v3639
        %3641 = vmatmul.f32.gmra.mxu0 %v204
        %v3642 = vpop.f32.mrf.mxu0
        %v3643 = vadd.f32 %v3434, %v3642
        %3644 = vmatmul.f32.gmra.mxu0 %v207
        %v3645 = vpop.f32.mrf.mxu0
        %v3646 = vadd.f32 %v3437, %v3645
        %3647 = vmatmul.f32.gmra.mxu0 %v210
        %v3648 = vpop.f32.mrf.mxu0
        %v3649 = vadd.f32 %v3440, %v3648
        %3650 = vmatmul.f32.gmra.mxu0 %v213
        %v3651 = vpop.f32.mrf.mxu0
        %v3652 = vadd.f32 %v3443, %v3651
        %3653 = vmatmul.f32.gmra.mxu0 %v216
        %v3654 = vpop.f32.mrf.mxu0
        %v3655 = vadd.f32 %v3446, %v3654
        %3656 = vmatmul.f32.gmra.mxu0 %v219
        %v3657 = vpop.f32.mrf.mxu0
        %v3658 = vadd.f32 %v3449, %v3657
        %3659 = vmatmul.f32.gmra.mxu0 %v222
        %v3660 = vpop.f32.mrf.mxu0
        %v3661 = vadd.f32 %v3452, %v3660
        %3662 = vmatmul.f32.gmra.mxu0 %v225
        %v3663 = vpop.f32.mrf.mxu0
        %v3664 = vadd.f32 %v3455, %v3663
        %3665 = vmatmul.f32.gmra.mxu0 %v228
        %v3666 = vpop.f32.mrf.mxu0
        %v3667 = vadd.f32 %v3458, %v3666
        %3668 = vmatmul.f32.gmra.mxu0 %v231
        %v3669 = vpop.f32.mrf.mxu0
        %v3670 = vadd.f32 %v3461, %v3669
        %3671 = vmatmul.f32.gmra.mxu0 %v234
        %v3672 = vpop.f32.mrf.mxu0
        %v3673 = vadd.f32 %v3464, %v3672
        %3674 = vmatmul.f32.gmra.mxu0 %v237
        %v3675 = vpop.f32.mrf.mxu0
        %v3676 = vadd.f32 %v3467, %v3675
        %3677 = vmatmul.f32.gmra.mxu0 %v240
        %v3678 = vpop.f32.mrf.mxu0
        %v3679 = vadd.f32 %v3470, %v3678
        %3680 = vmatmul.f32.gmra.mxu0 %v243
        %v3681 = vpop.f32.mrf.mxu0
        %v3682 = vadd.f32 %v3473, %v3681
        %3683 = vmatmul.f32.gmra.mxu0 %v246
        %v3684 = vpop.f32.mrf.mxu0
        %v3685 = vadd.f32 %v3476, %v3684
        %3686 = vmatmul.f32.gmra.mxu0 %v249
        %v3687 = vpop.f32.mrf.mxu0
        %v3688 = vadd.f32 %v3479, %v3687
        %3689 = vmatmul.f32.gmra.mxu0 %v252
        %v3690 = vpop.f32.mrf.mxu0
        %v3691 = vadd.f32 %v3482, %v3690
        %3692 = vmatmul.f32.gmra.mxu0 %v255
        %v3693 = vpop.f32.mrf.mxu0
        %v3694 = vadd.f32 %v3485, %v3693
        %3695 = vmatmul.f32.gmra.mxu0 %v258
        %v3696 = vpop.f32.mrf.mxu0
        %v3697 = vadd.f32 %v3488, %v3696
        %3698 = vmatmul.f32.gmra.mxu0 %v261
        %v3699 = vpop.f32.mrf.mxu0
        %v3700 = vadd.f32 %v3491, %v3699
        %3701 = vmatmul.f32.gmra.mxu0 %v264
        %v3702 = vpop.f32.mrf.mxu0
        %v3703 = vadd.f32 %v3494, %v3702
        %3704 = vmatmul.f32.gmra.mxu0 %v267
        %v3705 = vpop.f32.mrf.mxu0
        %v3706 = vadd.f32 %v3497, %v3705
        %3707 = vmatmul.f32.gmra.mxu0 %v270
        %v3708 = vpop.f32.mrf.mxu0
        %v3709 = vadd.f32 %v3500, %v3708
        %3710 = vmatmul.f32.gmra.mxu0 %v273
        %v3711 = vpop.f32.mrf.mxu0
        %v3712 = vadd.f32 %v3503, %v3711
        %3713 = vmatmul.f32.gmra.mxu0 %v276
        %v3714 = vpop.f32.mrf.mxu0
        %v3715 = vadd.f32 %v3506, %v3714
        %3716 = vmatmul.f32.gmra.mxu0 %v279
        %v3717 = vpop.f32.mrf.mxu0
        %v3718 = vadd.f32 %v3509, %v3717
        %3719 = vmatmul.f32.gmra.mxu0 %v282
        %v3720 = vpop.f32.mrf.mxu0
        %v3721 = vadd.f32 %v3512, %v3720
        %3722 = vmatmul.f32.gmra.mxu0 %v285
        %v3723 = vpop.f32.mrf.mxu0
        %v3724 = vadd.f32 %v3515, %v3723
        %3725 = vmatmul.f32.gmra.mxu0 %v288
        %v3726 = vpop.f32.mrf.mxu0
        %v3727 = vadd.f32 %v3518, %v3726
        %3728 = vmatmul.f32.gmra.mxu0 %v291
        %v3729 = vpop.f32.mrf.mxu0
        %v3730 = vadd.f32 %v3521, %v3729
        %3731 = vmatmul.f32.gmra.mxu0 %v294
        %v3732 = vpop.f32.mrf.mxu0
        %v3733 = vadd.f32 %v3524, %v3732
        %3734 = vmatmul.f32.gmra.mxu0 %v297
        %v3735 = vpop.f32.mrf.mxu0
        %v3736 = vadd.f32 %v3527, %v3735
        %3737 = vmatmul.f32.gmra.mxu0 %v300
        %v3738 = vpop.f32.mrf.mxu0
        %v3739 = vadd.f32 %v3530, %v3738
        %3740 = vmatmul.f32.gmra.mxu0 %v303
        %v3741 = vpop.f32.mrf.mxu0
        %v3742 = vadd.f32 %v3533, %v3741
        %3743 = vmatmul.f32.gmra.mxu0 %v306
        %v3744 = vpop.f32.mrf.mxu0
        %v3745 = vadd.f32 %v3536, %v3744
        %3746 = vmatmul.f32.gmra.mxu0 %v309
        %v3747 = vpop.f32.mrf.mxu0
        %v3748 = vadd.f32 %v3539, %v3747
        %3749 = vmatmul.f32.gmra.mxu0 %v312
        %v3750 = vpop.f32.mrf.mxu0
        %v3751 = vadd.f32 %v3542, %v3750
        %3752 = vmatmul.f32.gmra.mxu0 %v315
        %v3753 = vpop.f32.mrf.mxu0
        %v3754 = vadd.f32 %v3545, %v3753
        %3755 = vmatmul.f32.gmra.mxu0 %v318
        %v3756 = vpop.f32.mrf.mxu0
        %v3757 = vadd.f32 %v3548, %v3756
        %3758 = vmatmul.f32.gmra.mxu0 %v321
        %v3759 = vpop.f32.mrf.mxu0
        %v3760 = vadd.f32 %v3551, %v3759
        %3761 = vmatmul.f32.gmra.mxu0 %v324
        %v3762 = vpop.f32.mrf.mxu0
        %v3763 = vadd.f32 %v3554, %v3762
        %3764 = vmatmul.f32.gmra.mxu0 %v327
        %v3765 = vpop.f32.mrf.mxu0
        %v3766 = vadd.f32 %v3557, %v3765
        %3767 = vmatmul.f32.gmra.mxu0 %v330
        %v3768 = vpop.f32.mrf.mxu0
        %v3769 = vadd.f32 %v3560, %v3768
        %3770 = vmatmul.f32.gmra.mxu0 %v333
        %v3771 = vpop.f32.mrf.mxu0
        %v3772 = vadd.f32 %v3563, %v3771
        %3773 = vmatmul.f32.gmra.mxu0 %v336
        %v3774 = vpop.f32.mrf.mxu0
        %v3775 = vadd.f32 %v3566, %v3774
        %3776 = vmatmul.f32.gmra.mxu0 %v339
        %v3777 = vpop.f32.mrf.mxu0
        %v3778 = vadd.f32 %v3569, %v3777
        %3779 = vmatmul.f32.gmra.mxu0 %v342
        %v3780 = vpop.f32.mrf.mxu0
        %v3781 = vadd.f32 %v3572, %v3780
        %3782 = vmatmul.f32.gmra.mxu0 %v345
        %v3783 = vpop.f32.mrf.mxu0
        %v3784 = vadd.f32 %v3575, %v3783
        %3785 = vmatmul.f32.gmra.mxu0 %v348
        %v3786 = vpop.f32.mrf.mxu0
        %v3787 = vadd.f32 %v3578, %v3786
        %3788 = vmatmul.f32.gmra.mxu0 %v351
        %v3789 = vpop.f32.mrf.mxu0
        %v3790 = vadd.f32 %v3581, %v3789
        %3791 = vmatmul.f32.gmra.mxu0 %v354
        %v3792 = vpop.f32.mrf.mxu0
        %v3793 = vadd.f32 %v3584, %v3792
        %3794 = vmatmul.f32.gmra.mxu0 %v357
        %v3795 = vpop.f32.mrf.mxu0
        %v3796 = vadd.f32 %v3587, %v3795
        %3797 = vmatmul.f32.gmra.mxu0 %v360
        %v3798 = vpop.f32.mrf.mxu0
        %v3799 = vadd.f32 %v3590, %v3798
        %3800 = vmatmul.f32.gmra.mxu0 %v363
        %v3801 = vpop.f32.mrf.mxu0
        %v3802 = vadd.f32 %v3593, %v3801
        %3803 = vmatmul.f32.gmra.mxu0 %v366
        %v3804 = vpop.f32.mrf.mxu0
        %v3805 = vadd.f32 %v3596, %v3804
        %3806 = vmatmul.f32.gmra.mxu0 %v369
        %v3807 = vpop.f32.mrf.mxu0
        %v3808 = vadd.f32 %v3599, %v3807
        %3809 = vmatmul.f32.gmra.mxu0 %v372
        %v3810 = vpop.f32.mrf.mxu0
        %v3811 = vadd.f32 %v3602, %v3810
        %3812 = vmatmul.f32.gmra.mxu0 %v375
        %v3813 = vpop.f32.mrf.mxu0
        %v3814 = vadd.f32 %v3605, %v3813
        %3815 = vdwg.mxu0
        %3816 = vmatpush.msra.mxu0 0.0
        %3817 = vmatpush.msra.mxu0 0.0
        %3818 = vmatpush.msra.mxu0 0.0
        %3819 = vmatpush.msra.mxu0 0.0
        %3820 = vmatpush.msra.mxu0 0.0
        %3821 = vmatpush.msra.mxu0 0.0
        %3822 = vmatpush.msra.mxu0 0.0
        %3823 = vmatpush.msra.mxu0 0.0
        %3824 = vmatpush.msra.mxu0 %v693
        %3825 = vmatpush.msra.mxu0 %v685
        %3826 = vmatpush.msra.mxu0 %v677
        %3827 = vmatpush.msra.mxu0 %v669
        %3828 = vmatpush.msra.mxu0 %v661
        %3829 = vmatpush.msra.mxu0 %v653
        %3830 = vmatpush.msra.mxu0 %v645
        %3831 = vmatpush.msra.mxu0 %v637
        %3832 = vmatmul.f32.gmra.mxu0 %v699
        %v3833 = vpop.f32.mrf.mxu0
        %v3834 = vadd.f32 %v3625, %v3833
        %3835 = vmatmul.f32.gmra.mxu0 %v702
        %v3836 = vpop.f32.mrf.mxu0
        %v3837 = vadd.f32 %v3628, %v3836
        %3838 = vmatmul.f32.gmra.mxu0 %v705
        %v3839 = vpop.f32.mrf.mxu0
        %v3840 = vadd.f32 %v3631, %v3839
        %3841 = vmatmul.f32.gmra.mxu0 %v708
        %v3842 = vpop.f32.mrf.mxu0
        %v3843 = vadd.f32 %v3634, %v3842
        %3844 = vmatmul.f32.gmra.mxu0 %v711
        %v3845 = vpop.f32.mrf.mxu0
        %v3846 = vadd.f32 %v3637, %v3845
        %3847 = vmatmul.f32.gmra.mxu0 %v714
        %v3848 = vpop.f32.mrf.mxu0
        %v3849 = vadd.f32 %v3640, %v3848
        %3850 = vmatmul.f32.gmra.mxu0 %v717
        %v3851 = vpop.f32.mrf.mxu0
        %v3852 = vadd.f32 %v3643, %v3851
        %3853 = vmatmul.f32.gmra.mxu0 %v720
        %v3854 = vpop.f32.mrf.mxu0
        %v3855 = vadd.f32 %v3646, %v3854
        %3856 = vmatmul.f32.gmra.mxu0 %v723
        %v3857 = vpop.f32.mrf.mxu0
        %v3858 = vadd.f32 %v3649, %v3857
        %3859 = vmatmul.f32.gmra.mxu0 %v726
        %v3860 = vpop.f32.mrf.mxu0
        %v3861 = vadd.f32 %v3652, %v3860
        %3862 = vmatmul.f32.gmra.mxu0 %v729
        %v3863 = vpop.f32.mrf.mxu0
        %v3864 = vadd.f32 %v3655, %v3863
        %3865 = vmatmul.f32.gmra.mxu0 %v732
        %v3866 = vpop.f32.mrf.mxu0
        %v3867 = vadd.f32 %v3658, %v3866
        %3868 = vmatmul.f32.gmra.mxu0 %v735
        %v3869 = vpop.f32.mrf.mxu0
        %v3870 = vadd.f32 %v3661, %v3869
        %3871 = vmatmul.f32.gmra.mxu0 %v738
        %v3872 = vpop.f32.mrf.mxu0
        %v3873 = vadd.f32 %v3664, %v3872
        %3874 = vmatmul.f32.gmra.mxu0 %v741
        %v3875 = vpop.f32.mrf.mxu0
        %v3876 = vadd.f32 %v3667, %v3875
        %3877 = vmatmul.f32.gmra.mxu0 %v744
        %v3878 = vpop.f32.mrf.mxu0
        %v3879 = vadd.f32 %v3670, %v3878
        %3880 = vmatmul.f32.gmra.mxu0 %v747
        %v3881 = vpop.f32.mrf.mxu0
        %v3882 = vadd.f32 %v3673, %v3881
        %3883 = vmatmul.f32.gmra.mxu0 %v750
        %v3884 = vpop.f32.mrf.mxu0
        %v3885 = vadd.f32 %v3676, %v3884
        %3886 = vmatmul.f32.gmra.mxu0 %v753
        %v3887 = vpop.f32.mrf.mxu0
        %v3888 = vadd.f32 %v3679, %v3887
        %3889 = vmatmul.f32.gmra.mxu0 %v756
        %v3890 = vpop.f32.mrf.mxu0
        %v3891 = vadd.f32 %v3682, %v3890
        %3892 = vmatmul.f32.gmra.mxu0 %v759
        %v3893 = vpop.f32.mrf.mxu0
        %v3894 = vadd.f32 %v3685, %v3893
        %3895 = vmatmul.f32.gmra.mxu0 %v762
        %v3896 = vpop.f32.mrf.mxu0
        %v3897 = vadd.f32 %v3688, %v3896
        %3898 = vmatmul.f32.gmra.mxu0 %v765
        %v3899 = vpop.f32.mrf.mxu0
        %v3900 = vadd.f32 %v3691, %v3899
        %3901 = vmatmul.f32.gmra.mxu0 %v768
        %v3902 = vpop.f32.mrf.mxu0
        %v3903 = vadd.f32 %v3694, %v3902
        %3904 = vmatmul.f32.gmra.mxu0 %v771
        %v3905 = vpop.f32.mrf.mxu0
        %v3906 = vadd.f32 %v3697, %v3905
        %3907 = vmatmul.f32.gmra.mxu0 %v774
        %v3908 = vpop.f32.mrf.mxu0
        %v3909 = vadd.f32 %v3700, %v3908
        %3910 = vmatmul.f32.gmra.mxu0 %v777
        %v3911 = vpop.f32.mrf.mxu0
        %v3912 = vadd.f32 %v3703, %v3911
        %3913 = vmatmul.f32.gmra.mxu0 %v780
        %v3914 = vpop.f32.mrf.mxu0
        %v3915 = vadd.f32 %v3706, %v3914
        %3916 = vmatmul.f32.gmra.mxu0 %v783
        %v3917 = vpop.f32.mrf.mxu0
        %v3918 = vadd.f32 %v3709, %v3917
        %3919 = vmatmul.f32.gmra.mxu0 %v786
        %v3920 = vpop.f32.mrf.mxu0
        %v3921 = vadd.f32 %v3712, %v3920
        %3922 = vmatmul.f32.gmra.mxu0 %v789
        %v3923 = vpop.f32.mrf.mxu0
        %v3924 = vadd.f32 %v3715, %v3923
        %3925 = vmatmul.f32.gmra.mxu0 %v792
        %v3926 = vpop.f32.mrf.mxu0
        %v3927 = vadd.f32 %v3718, %v3926
        %3928 = vmatmul.f32.gmra.mxu0 %v795
        %v3929 = vpop.f32.mrf.mxu0
        %v3930 = vadd.f32 %v3721, %v3929
        %3931 = vmatmul.f32.gmra.mxu0 %v798
        %v3932 = vpop.f32.mrf.mxu0
        %v3933 = vadd.f32 %v3724, %v3932
        %3934 = vmatmul.f32.gmra.mxu0 %v801
        %v3935 = vpop.f32.mrf.mxu0
        %v3936 = vadd.f32 %v3727, %v3935
        %3937 = vmatmul.f32.gmra.mxu0 %v804
        %v3938 = vpop.f32.mrf.mxu0
        %v3939 = vadd.f32 %v3730, %v3938
        %3940 = vmatmul.f32.gmra.mxu0 %v807
        %v3941 = vpop.f32.mrf.mxu0
        %v3942 = vadd.f32 %v3733, %v3941
        %3943 = vmatmul.f32.gmra.mxu0 %v810
        %v3944 = vpop.f32.mrf.mxu0
        %v3945 = vadd.f32 %v3736, %v3944
        %3946 = vmatmul.f32.gmra.mxu0 %v813
        %v3947 = vpop.f32.mrf.mxu0
        %v3948 = vadd.f32 %v3739, %v3947
        %3949 = vmatmul.f32.gmra.mxu0 %v816
        %v3950 = vpop.f32.mrf.mxu0
        %v3951 = vadd.f32 %v3742, %v3950
        %3952 = vmatmul.f32.gmra.mxu0 %v819
        %v3953 = vpop.f32.mrf.mxu0
        %v3954 = vadd.f32 %v3745, %v3953
        %3955 = vmatmul.f32.gmra.mxu0 %v822
        %v3956 = vpop.f32.mrf.mxu0
        %v3957 = vadd.f32 %v3748, %v3956
        %3958 = vmatmul.f32.gmra.mxu0 %v825
        %v3959 = vpop.f32.mrf.mxu0
        %v3960 = vadd.f32 %v3751, %v3959
        %3961 = vmatmul.f32.gmra.mxu0 %v828
        %v3962 = vpop.f32.mrf.mxu0
        %v3963 = vadd.f32 %v3754, %v3962
        %3964 = vmatmul.f32.gmra.mxu0 %v831
        %v3965 = vpop.f32.mrf.mxu0
        %v3966 = vadd.f32 %v3757, %v3965
        %3967 = vmatmul.f32.gmra.mxu0 %v834
        %v3968 = vpop.f32.mrf.mxu0
        %v3969 = vadd.f32 %v3760, %v3968
        %3970 = vmatmul.f32.gmra.mxu0 %v837
        %v3971 = vpop.f32.mrf.mxu0
        %v3972 = vadd.f32 %v3763, %v3971
        %3973 = vmatmul.f32.gmra.mxu0 %v840
        %v3974 = vpop.f32.mrf.mxu0
        %v3975 = vadd.f32 %v3766, %v3974
        %3976 = vmatmul.f32.gmra.mxu0 %v843
        %v3977 = vpop.f32.mrf.mxu0
        %v3978 = vadd.f32 %v3769, %v3977
        %3979 = vmatmul.f32.gmra.mxu0 %v846
        %v3980 = vpop.f32.mrf.mxu0
        %v3981 = vadd.f32 %v3772, %v3980
        %3982 = vmatmul.f32.gmra.mxu0 %v849
        %v3983 = vpop.f32.mrf.mxu0
        %v3984 = vadd.f32 %v3775, %v3983
        %3985 = vmatmul.f32.gmra.mxu0 %v852
        %v3986 = vpop.f32.mrf.mxu0
        %v3987 = vadd.f32 %v3778, %v3986
        %3988 = vmatmul.f32.gmra.mxu0 %v855
        %v3989 = vpop.f32.mrf.mxu0
        %v3990 = vadd.f32 %v3781, %v3989
        %3991 = vmatmul.f32.gmra.mxu0 %v858
        %v3992 = vpop.f32.mrf.mxu0
        %v3993 = vadd.f32 %v3784, %v3992
        %3994 = vmatmul.f32.gmra.mxu0 %v861
        %v3995 = vpop.f32.mrf.mxu0
        %v3996 = vadd.f32 %v3787, %v3995
        %3997 = vmatmul.f32.gmra.mxu0 %v864
        %v3998 = vpop.f32.mrf.mxu0
        %v3999 = vadd.f32 %v3790, %v3998
        %4000 = vmatmul.f32.gmra.mxu0 %v867
        %v4001 = vpop.f32.mrf.mxu0
        %v4002 = vadd.f32 %v3793, %v4001
        %4003 = vmatmul.f32.gmra.mxu0 %v870
        %v4004 = vpop.f32.mrf.mxu0
        %v4005 = vadd.f32 %v3796, %v4004
        %4006 = vmatmul.f32.gmra.mxu0 %v873
        %v4007 = vpop.f32.mrf.mxu0
        %v4008 = vadd.f32 %v3799, %v4007
        %4009 = vmatmul.f32.gmra.mxu0 %v876
        %v4010 = vpop.f32.mrf.mxu0
        %v4011 = vadd.f32 %v3802, %v4010
        %4012 = vmatmul.f32.gmra.mxu0 %v879
        %v4013 = vpop.f32.mrf.mxu0
        %v4014 = vadd.f32 %v3805, %v4013
        %4015 = vmatmul.f32.gmra.mxu0 %v882
        %v4016 = vpop.f32.mrf.mxu0
        %v4017 = vadd.f32 %v3808, %v4016
        %4018 = vmatmul.f32.gmra.mxu0 %v885
        %v4019 = vpop.f32.mrf.mxu0
        %v4020 = vadd.f32 %v3811, %v4019
        %4021 = vmatmul.f32.gmra.mxu0 %v888
        %v4022 = vpop.f32.mrf.mxu0
        %v4023 = vadd.f32 %v3814, %v4022
        %4024 = vdwg.mxu0
        %4025 = vmatpush.msra.mxu0 %v502
        %4026 = vmatpush.msra.mxu0 %v494
        %4027 = vmatpush.msra.mxu0 %v486
        %4028 = vmatpush.msra.mxu0 %v478
        %4029 = vmatpush.msra.mxu0 %v470
        %4030 = vmatpush.msra.mxu0 %v462
        %4031 = vmatpush.msra.mxu0 %v454
        %4032 = vmatpush.msra.mxu0 %v446
        %4033 = vmatpush.msra.mxu0 %v438
        %4034 = vmatpush.msra.mxu0 %v430
        %4035 = vmatpush.msra.mxu0 %v422
        %4036 = vmatpush.msra.mxu0 %v414
        %4037 = vmatpush.msra.mxu0 %v406
        %4038 = vmatpush.msra.mxu0 %v398
        %4039 = vmatpush.msra.mxu0 %v390
        %4040 = vmatpush.msra.mxu0 %v382
        %4041 = vmatmul.f32.gmra.mxu0 %v185
        %v4042 = vpop.f32.mrf.mxu0
        %v4043 = vadd.f32 0.0, %v4042
        %4044 = vmatmul.f32.gmra.mxu0 %v188
        %v4045 = vpop.f32.mrf.mxu0
        %v4046 = vadd.f32 0.0, %v4045
        %4047 = vmatmul.f32.gmra.mxu0 %v191
        %v4048 = vpop.f32.mrf.mxu0
        %v4049 = vadd.f32 0.0, %v4048
        %4050 = vmatmul.f32.gmra.mxu0 %v194
        %v4051 = vpop.f32.mrf.mxu0
        %v4052 = vadd.f32 0.0, %v4051
        %4053 = vmatmul.f32.gmra.mxu0 %v197
        %v4054 = vpop.f32.mrf.mxu0
        %v4055 = vadd.f32 0.0, %v4054
        %4056 = vmatmul.f32.gmra.mxu0 %v200
        %v4057 = vpop.f32.mrf.mxu0
        %v4058 = vadd.f32 0.0, %v4057
        %4059 = vmatmul.f32.gmra.mxu0 %v203
        %v4060 = vpop.f32.mrf.mxu0
        %v4061 = vadd.f32 0.0, %v4060
        %4062 = vmatmul.f32.gmra.mxu0 %v206
        %v4063 = vpop.f32.mrf.mxu0
        %v4064 = vadd.f32 0.0, %v4063
        %4065 = vmatmul.f32.gmra.mxu0 %v209
        %v4066 = vpop.f32.mrf.mxu0
        %v4067 = vadd.f32 0.0, %v4066
        %4068 = vmatmul.f32.gmra.mxu0 %v212
        %v4069 = vpop.f32.mrf.mxu0
        %v4070 = vadd.f32 0.0, %v4069
        %4071 = vmatmul.f32.gmra.mxu0 %v215
        %v4072 = vpop.f32.mrf.mxu0
        %v4073 = vadd.f32 0.0, %v4072
        %4074 = vmatmul.f32.gmra.mxu0 %v218
        %v4075 = vpop.f32.mrf.mxu0
        %v4076 = vadd.f32 0.0, %v4075
        %4077 = vmatmul.f32.gmra.mxu0 %v221
        %v4078 = vpop.f32.mrf.mxu0
        %v4079 = vadd.f32 0.0, %v4078
        %4080 = vmatmul.f32.gmra.mxu0 %v224
        %v4081 = vpop.f32.mrf.mxu0
        %v4082 = vadd.f32 0.0, %v4081
        %4083 = vmatmul.f32.gmra.mxu0 %v227
        %v4084 = vpop.f32.mrf.mxu0
        %v4085 = vadd.f32 0.0, %v4084
        %4086 = vmatmul.f32.gmra.mxu0 %v230
        %v4087 = vpop.f32.mrf.mxu0
        %v4088 = vadd.f32 0.0, %v4087
        %4089 = vmatmul.f32.gmra.mxu0 %v233
        %v4090 = vpop.f32.mrf.mxu0
        %v4091 = vadd.f32 0.0, %v4090
        %4092 = vmatmul.f32.gmra.mxu0 %v236
        %v4093 = vpop.f32.mrf.mxu0
        %v4094 = vadd.f32 0.0, %v4093
        %4095 = vmatmul.f32.gmra.mxu0 %v239
        %v4096 = vpop.f32.mrf.mxu0
        %v4097 = vadd.f32 0.0, %v4096
        %4098 = vmatmul.f32.gmra.mxu0 %v242
        %v4099 = vpop.f32.mrf.mxu0
        %v4100 = vadd.f32 0.0, %v4099
        %4101 = vmatmul.f32.gmra.mxu0 %v245
        %v4102 = vpop.f32.mrf.mxu0
        %v4103 = vadd.f32 0.0, %v4102
        %4104 = vmatmul.f32.gmra.mxu0 %v248
        %v4105 = vpop.f32.mrf.mxu0
        %v4106 = vadd.f32 0.0, %v4105
        %4107 = vmatmul.f32.gmra.mxu0 %v251
        %v4108 = vpop.f32.mrf.mxu0
        %v4109 = vadd.f32 0.0, %v4108
        %4110 = vmatmul.f32.gmra.mxu0 %v254
        %v4111 = vpop.f32.mrf.mxu0
        %v4112 = vadd.f32 0.0, %v4111
        %4113 = vmatmul.f32.gmra.mxu0 %v257
        %v4114 = vpop.f32.mrf.mxu0
        %v4115 = vadd.f32 0.0, %v4114
        %4116 = vmatmul.f32.gmra.mxu0 %v260
        %v4117 = vpop.f32.mrf.mxu0
        %v4118 = vadd.f32 0.0, %v4117
        %4119 = vmatmul.f32.gmra.mxu0 %v263
        %v4120 = vpop.f32.mrf.mxu0
        %v4121 = vadd.f32 0.0, %v4120
        %4122 = vmatmul.f32.gmra.mxu0 %v266
        %v4123 = vpop.f32.mrf.mxu0
        %v4124 = vadd.f32 0.0, %v4123
        %4125 = vmatmul.f32.gmra.mxu0 %v269
        %v4126 = vpop.f32.mrf.mxu0
        %v4127 = vadd.f32 0.0, %v4126
        %4128 = vmatmul.f32.gmra.mxu0 %v272
        %v4129 = vpop.f32.mrf.mxu0
        %v4130 = vadd.f32 0.0, %v4129
        %4131 = vmatmul.f32.gmra.mxu0 %v275
        %v4132 = vpop.f32.mrf.mxu0
        %v4133 = vadd.f32 0.0, %v4132
        %4134 = vmatmul.f32.gmra.mxu0 %v278
        %v4135 = vpop.f32.mrf.mxu0
        %v4136 = vadd.f32 0.0, %v4135
        %4137 = vmatmul.f32.gmra.mxu0 %v281
        %v4138 = vpop.f32.mrf.mxu0
        %v4139 = vadd.f32 0.0, %v4138
        %4140 = vmatmul.f32.gmra.mxu0 %v284
        %v4141 = vpop.f32.mrf.mxu0
        %v4142 = vadd.f32 0.0, %v4141
        %4143 = vmatmul.f32.gmra.mxu0 %v287
        %v4144 = vpop.f32.mrf.mxu0
        %v4145 = vadd.f32 0.0, %v4144
        %4146 = vmatmul.f32.gmra.mxu0 %v290
        %v4147 = vpop.f32.mrf.mxu0
        %v4148 = vadd.f32 0.0, %v4147
        %4149 = vmatmul.f32.gmra.mxu0 %v293
        %v4150 = vpop.f32.mrf.mxu0
        %v4151 = vadd.f32 0.0, %v4150
        %4152 = vmatmul.f32.gmra.mxu0 %v296
        %v4153 = vpop.f32.mrf.mxu0
        %v4154 = vadd.f32 0.0, %v4153
        %4155 = vmatmul.f32.gmra.mxu0 %v299
        %v4156 = vpop.f32.mrf.mxu0
        %v4157 = vadd.f32 0.0, %v4156
        %4158 = vmatmul.f32.gmra.mxu0 %v302
        %v4159 = vpop.f32.mrf.mxu0
        %v4160 = vadd.f32 0.0, %v4159
        %4161 = vmatmul.f32.gmra.mxu0 %v305
        %v4162 = vpop.f32.mrf.mxu0
        %v4163 = vadd.f32 0.0, %v4162
        %4164 = vmatmul.f32.gmra.mxu0 %v308
        %v4165 = vpop.f32.mrf.mxu0
        %v4166 = vadd.f32 0.0, %v4165
        %4167 = vmatmul.f32.gmra.mxu0 %v311
        %v4168 = vpop.f32.mrf.mxu0
        %v4169 = vadd.f32 0.0, %v4168
        %4170 = vmatmul.f32.gmra.mxu0 %v314
        %v4171 = vpop.f32.mrf.mxu0
        %v4172 = vadd.f32 0.0, %v4171
        %4173 = vmatmul.f32.gmra.mxu0 %v317
        %v4174 = vpop.f32.mrf.mxu0
        %v4175 = vadd.f32 0.0, %v4174
        %4176 = vmatmul.f32.gmra.mxu0 %v320
        %v4177 = vpop.f32.mrf.mxu0
        %v4178 = vadd.f32 0.0, %v4177
        %4179 = vmatmul.f32.gmra.mxu0 %v323
        %v4180 = vpop.f32.mrf.mxu0
        %v4181 = vadd.f32 0.0, %v4180
        %4182 = vmatmul.f32.gmra.mxu0 %v326
        %v4183 = vpop.f32.mrf.mxu0
        %v4184 = vadd.f32 0.0, %v4183
        %4185 = vmatmul.f32.gmra.mxu0 %v329
        %v4186 = vpop.f32.mrf.mxu0
        %v4187 = vadd.f32 0.0, %v4186
        %4188 = vmatmul.f32.gmra.mxu0 %v332
        %v4189 = vpop.f32.mrf.mxu0
        %v4190 = vadd.f32 0.0, %v4189
        %4191 = vmatmul.f32.gmra.mxu0 %v335
        %v4192 = vpop.f32.mrf.mxu0
        %v4193 = vadd.f32 0.0, %v4192
        %4194 = vmatmul.f32.gmra.mxu0 %v338
        %v4195 = vpop.f32.mrf.mxu0
        %v4196 = vadd.f32 0.0, %v4195
        %4197 = vmatmul.f32.gmra.mxu0 %v341
        %v4198 = vpop.f32.mrf.mxu0
        %v4199 = vadd.f32 0.0, %v4198
        %4200 = vmatmul.f32.gmra.mxu0 %v344
        %v4201 = vpop.f32.mrf.mxu0
        %v4202 = vadd.f32 0.0, %v4201
        %4203 = vmatmul.f32.gmra.mxu0 %v347
        %v4204 = vpop.f32.mrf.mxu0
        %v4205 = vadd.f32 0.0, %v4204
        %4206 = vmatmul.f32.gmra.mxu0 %v350
        %v4207 = vpop.f32.mrf.mxu0
        %v4208 = vadd.f32 0.0, %v4207
        %4209 = vmatmul.f32.gmra.mxu0 %v353
        %v4210 = vpop.f32.mrf.mxu0
        %v4211 = vadd.f32 0.0, %v4210
        %4212 = vmatmul.f32.gmra.mxu0 %v356
        %v4213 = vpop.f32.mrf.mxu0
        %v4214 = vadd.f32 0.0, %v4213
        %4215 = vmatmul.f32.gmra.mxu0 %v359
        %v4216 = vpop.f32.mrf.mxu0
        %v4217 = vadd.f32 0.0, %v4216
        %4218 = vmatmul.f32.gmra.mxu0 %v362
        %v4219 = vpop.f32.mrf.mxu0
        %v4220 = vadd.f32 0.0, %v4219
        %4221 = vmatmul.f32.gmra.mxu0 %v365
        %v4222 = vpop.f32.mrf.mxu0
        %v4223 = vadd.f32 0.0, %v4222
        %4224 = vmatmul.f32.gmra.mxu0 %v368
        %v4225 = vpop.f32.mrf.mxu0
        %v4226 = vadd.f32 0.0, %v4225
        %4227 = vmatmul.f32.gmra.mxu0 %v371
        %v4228 = vpop.f32.mrf.mxu0
        %v4229 = vadd.f32 0.0, %v4228
        %4230 = vmatmul.f32.gmra.mxu0 %v374
        %v4231 = vpop.f32.mrf.mxu0
        %v4232 = vadd.f32 0.0, %v4231
        %4233 = vdwg.mxu0
        %4234 = vmatpush.msra.mxu0 %v630
        %4235 = vmatpush.msra.mxu0 %v622
        %4236 = vmatpush.msra.mxu0 %v614
        %4237 = vmatpush.msra.mxu0 %v606
        %4238 = vmatpush.msra.mxu0 %v598
        %4239 = vmatpush.msra.mxu0 %v590
        %4240 = vmatpush.msra.mxu0 %v582
        %4241 = vmatpush.msra.mxu0 %v574
        %4242 = vmatpush.msra.mxu0 %v566
        %4243 = vmatpush.msra.mxu0 %v558
        %4244 = vmatpush.msra.mxu0 %v550
        %4245 = vmatpush.msra.mxu0 %v542
        %4246 = vmatpush.msra.mxu0 %v534
        %4247 = vmatpush.msra.mxu0 %v526
        %4248 = vmatpush.msra.mxu0 %v518
        %4249 = vmatpush.msra.mxu0 %v510
        %4250 = vmatmul.f32.gmra.mxu0 %v186
        %v4251 = vpop.f32.mrf.mxu0
        %v4252 = vadd.f32 %v4043, %v4251
        %4253 = vmatmul.f32.gmra.mxu0 %v189
        %v4254 = vpop.f32.mrf.mxu0
        %v4255 = vadd.f32 %v4046, %v4254
        %4256 = vmatmul.f32.gmra.mxu0 %v192
        %v4257 = vpop.f32.mrf.mxu0
        %v4258 = vadd.f32 %v4049, %v4257
        %4259 = vmatmul.f32.gmra.mxu0 %v195
        %v4260 = vpop.f32.mrf.mxu0
        %v4261 = vadd.f32 %v4052, %v4260
        %4262 = vmatmul.f32.gmra.mxu0 %v198
        %v4263 = vpop.f32.mrf.mxu0
        %v4264 = vadd.f32 %v4055, %v4263
        %4265 = vmatmul.f32.gmra.mxu0 %v201
        %v4266 = vpop.f32.mrf.mxu0
        %v4267 = vadd.f32 %v4058, %v4266
        %4268 = vmatmul.f32.gmra.mxu0 %v204
        %v4269 = vpop.f32.mrf.mxu0
        %v4270 = vadd.f32 %v4061, %v4269
        %4271 = vmatmul.f32.gmra.mxu0 %v207
        %v4272 = vpop.f32.mrf.mxu0
        %v4273 = vadd.f32 %v4064, %v4272
        %4274 = vmatmul.f32.gmra.mxu0 %v210
        %v4275 = vpop.f32.mrf.mxu0
        %v4276 = vadd.f32 %v4067, %v4275
        %4277 = vmatmul.f32.gmra.mxu0 %v213
        %v4278 = vpop.f32.mrf.mxu0
        %v4279 = vadd.f32 %v4070, %v4278
        %4280 = vmatmul.f32.gmra.mxu0 %v216
        %v4281 = vpop.f32.mrf.mxu0
        %v4282 = vadd.f32 %v4073, %v4281
        %4283 = vmatmul.f32.gmra.mxu0 %v219
        %v4284 = vpop.f32.mrf.mxu0
        %v4285 = vadd.f32 %v4076, %v4284
        %4286 = vmatmul.f32.gmra.mxu0 %v222
        %v4287 = vpop.f32.mrf.mxu0
        %v4288 = vadd.f32 %v4079, %v4287
        %4289 = vmatmul.f32.gmra.mxu0 %v225
        %v4290 = vpop.f32.mrf.mxu0
        %v4291 = vadd.f32 %v4082, %v4290
        %4292 = vmatmul.f32.gmra.mxu0 %v228
        %v4293 = vpop.f32.mrf.mxu0
        %v4294 = vadd.f32 %v4085, %v4293
        %4295 = vmatmul.f32.gmra.mxu0 %v231
        %v4296 = vpop.f32.mrf.mxu0
        %v4297 = vadd.f32 %v4088, %v4296
        %4298 = vmatmul.f32.gmra.mxu0 %v234
        %v4299 = vpop.f32.mrf.mxu0
        %v4300 = vadd.f32 %v4091, %v4299
        %4301 = vmatmul.f32.gmra.mxu0 %v237
        %v4302 = vpop.f32.mrf.mxu0
        %v4303 = vadd.f32 %v4094, %v4302
        %4304 = vmatmul.f32.gmra.mxu0 %v240
        %v4305 = vpop.f32.mrf.mxu0
        %v4306 = vadd.f32 %v4097, %v4305
        %4307 = vmatmul.f32.gmra.mxu0 %v243
        %v4308 = vpop.f32.mrf.mxu0
        %v4309 = vadd.f32 %v4100, %v4308
        %4310 = vmatmul.f32.gmra.mxu0 %v246
        %v4311 = vpop.f32.mrf.mxu0
        %v4312 = vadd.f32 %v4103, %v4311
        %4313 = vmatmul.f32.gmra.mxu0 %v249
        %v4314 = vpop.f32.mrf.mxu0
        %v4315 = vadd.f32 %v4106, %v4314
        %4316 = vmatmul.f32.gmra.mxu0 %v252
        %v4317 = vpop.f32.mrf.mxu0
        %v4318 = vadd.f32 %v4109, %v4317
        %4319 = vmatmul.f32.gmra.mxu0 %v255
        %v4320 = vpop.f32.mrf.mxu0
        %v4321 = vadd.f32 %v4112, %v4320
        %4322 = vmatmul.f32.gmra.mxu0 %v258
        %v4323 = vpop.f32.mrf.mxu0
        %v4324 = vadd.f32 %v4115, %v4323
        %4325 = vmatmul.f32.gmra.mxu0 %v261
        %v4326 = vpop.f32.mrf.mxu0
        %v4327 = vadd.f32 %v4118, %v4326
        %4328 = vmatmul.f32.gmra.mxu0 %v264
        %v4329 = vpop.f32.mrf.mxu0
        %v4330 = vadd.f32 %v4121, %v4329
        %4331 = vmatmul.f32.gmra.mxu0 %v267
        %v4332 = vpop.f32.mrf.mxu0
        %v4333 = vadd.f32 %v4124, %v4332
        %4334 = vmatmul.f32.gmra.mxu0 %v270
        %v4335 = vpop.f32.mrf.mxu0
        %v4336 = vadd.f32 %v4127, %v4335
        %4337 = vmatmul.f32.gmra.mxu0 %v273
        %v4338 = vpop.f32.mrf.mxu0
        %v4339 = vadd.f32 %v4130, %v4338
        %4340 = vmatmul.f32.gmra.mxu0 %v276
        %v4341 = vpop.f32.mrf.mxu0
        %v4342 = vadd.f32 %v4133, %v4341
        %4343 = vmatmul.f32.gmra.mxu0 %v279
        %v4344 = vpop.f32.mrf.mxu0
        %v4345 = vadd.f32 %v4136, %v4344
        %4346 = vmatmul.f32.gmra.mxu0 %v282
        %v4347 = vpop.f32.mrf.mxu0
        %v4348 = vadd.f32 %v4139, %v4347
        %4349 = vmatmul.f32.gmra.mxu0 %v285
        %v4350 = vpop.f32.mrf.mxu0
        %v4351 = vadd.f32 %v4142, %v4350
        %4352 = vmatmul.f32.gmra.mxu0 %v288
        %v4353 = vpop.f32.mrf.mxu0
        %v4354 = vadd.f32 %v4145, %v4353
        %4355 = vmatmul.f32.gmra.mxu0 %v291
        %v4356 = vpop.f32.mrf.mxu0
        %v4357 = vadd.f32 %v4148, %v4356
        %4358 = vmatmul.f32.gmra.mxu0 %v294
        %v4359 = vpop.f32.mrf.mxu0
        %v4360 = vadd.f32 %v4151, %v4359
        %4361 = vmatmul.f32.gmra.mxu0 %v297
        %v4362 = vpop.f32.mrf.mxu0
        %v4363 = vadd.f32 %v4154, %v4362
        %4364 = vmatmul.f32.gmra.mxu0 %v300
        %v4365 = vpop.f32.mrf.mxu0
        %v4366 = vadd.f32 %v4157, %v4365
        %4367 = vmatmul.f32.gmra.mxu0 %v303
        %v4368 = vpop.f32.mrf.mxu0
        %v4369 = vadd.f32 %v4160, %v4368
        %4370 = vmatmul.f32.gmra.mxu0 %v306
        %v4371 = vpop.f32.mrf.mxu0
        %v4372 = vadd.f32 %v4163, %v4371
        %4373 = vmatmul.f32.gmra.mxu0 %v309
        %v4374 = vpop.f32.mrf.mxu0
        %v4375 = vadd.f32 %v4166, %v4374
        %4376 = vmatmul.f32.gmra.mxu0 %v312
        %v4377 = vpop.f32.mrf.mxu0
        %v4378 = vadd.f32 %v4169, %v4377
        %4379 = vmatmul.f32.gmra.mxu0 %v315
        %v4380 = vpop.f32.mrf.mxu0
        %v4381 = vadd.f32 %v4172, %v4380
        %4382 = vmatmul.f32.gmra.mxu0 %v318
        %v4383 = vpop.f32.mrf.mxu0
        %v4384 = vadd.f32 %v4175, %v4383
        %4385 = vmatmul.f32.gmra.mxu0 %v321
        %v4386 = vpop.f32.mrf.mxu0
        %v4387 = vadd.f32 %v4178, %v4386
        %4388 = vmatmul.f32.gmra.mxu0 %v324
        %v4389 = vpop.f32.mrf.mxu0
        %v4390 = vadd.f32 %v4181, %v4389
        %4391 = vmatmul.f32.gmra.mxu0 %v327
        %v4392 = vpop.f32.mrf.mxu0
        %v4393 = vadd.f32 %v4184, %v4392
        %4394 = vmatmul.f32.gmra.mxu0 %v330
        %v4395 = vpop.f32.mrf.mxu0
        %v4396 = vadd.f32 %v4187, %v4395
        %4397 = vmatmul.f32.gmra.mxu0 %v333
        %v4398 = vpop.f32.mrf.mxu0
        %v4399 = vadd.f32 %v4190, %v4398
        %4400 = vmatmul.f32.gmra.mxu0 %v336
        %v4401 = vpop.f32.mrf.mxu0
        %v4402 = vadd.f32 %v4193, %v4401
        %4403 = vmatmul.f32.gmra.mxu0 %v339
        %v4404 = vpop.f32.mrf.mxu0
        %v4405 = vadd.f32 %v4196, %v4404
        %4406 = vmatmul.f32.gmra.mxu0 %v342
        %v4407 = vpop.f32.mrf.mxu0
        %v4408 = vadd.f32 %v4199, %v4407
        %4409 = vmatmul.f32.gmra.mxu0 %v345
        %v4410 = vpop.f32.mrf.mxu0
        %v4411 = vadd.f32 %v4202, %v4410
        %4412 = vmatmul.f32.gmra.mxu0 %v348
        %v4413 = vpop.f32.mrf.mxu0
        %v4414 = vadd.f32 %v4205, %v4413
        %4415 = vmatmul.f32.gmra.mxu0 %v351
        %v4416 = vpop.f32.mrf.mxu0
        %v4417 = vadd.f32 %v4208, %v4416
        %4418 = vmatmul.f32.gmra.mxu0 %v354
        %v4419 = vpop.f32.mrf.mxu0
        %v4420 = vadd.f32 %v4211, %v4419
        %4421 = vmatmul.f32.gmra.mxu0 %v357
        %v4422 = vpop.f32.mrf.mxu0
        %v4423 = vadd.f32 %v4214, %v4422
        %4424 = vmatmul.f32.gmra.mxu0 %v360
        %v4425 = vpop.f32.mrf.mxu0
        %v4426 = vadd.f32 %v4217, %v4425
        %4427 = vmatmul.f32.gmra.mxu0 %v363
        %v4428 = vpop.f32.mrf.mxu0
        %v4429 = vadd.f32 %v4220, %v4428
        %4430 = vmatmul.f32.gmra.mxu0 %v366
        %v4431 = vpop.f32.mrf.mxu0
        %v4432 = vadd.f32 %v4223, %v4431
        %4433 = vmatmul.f32.gmra.mxu0 %v369
        %v4434 = vpop.f32.mrf.mxu0
        %v4435 = vadd.f32 %v4226, %v4434
        %4436 = vmatmul.f32.gmra.mxu0 %v372
        %v4437 = vpop.f32.mrf.mxu0
        %v4438 = vadd.f32 %v4229, %v4437
        %4439 = vmatmul.f32.gmra.mxu0 %v375
        %v4440 = vpop.f32.mrf.mxu0
        %v4441 = vadd.f32 %v4232, %v4440
        %4442 = vdwg.mxu0
        %4443 = vmatpush.msra.mxu0 0.0
        %4444 = vmatpush.msra.mxu0 0.0
        %4445 = vmatpush.msra.mxu0 0.0
        %4446 = vmatpush.msra.mxu0 0.0
        %4447 = vmatpush.msra.mxu0 0.0
        %4448 = vmatpush.msra.mxu0 0.0
        %4449 = vmatpush.msra.mxu0 0.0
        %4450 = vmatpush.msra.mxu0 0.0
        %4451 = vmatpush.msra.mxu0 %v694
        %4452 = vmatpush.msra.mxu0 %v686
        %4453 = vmatpush.msra.mxu0 %v678
        %4454 = vmatpush.msra.mxu0 %v670
        %4455 = vmatpush.msra.mxu0 %v662
        %4456 = vmatpush.msra.mxu0 %v654
        %4457 = vmatpush.msra.mxu0 %v646
        %4458 = vmatpush.msra.mxu0 %v638
        %4459 = vmatmul.f32.gmra.mxu0 %v699
        %v4460 = vpop.f32.mrf.mxu0
        %v4461 = vadd.f32 %v4252, %v4460
        %4462 = vmatmul.f32.gmra.mxu0 %v702
        %v4463 = vpop.f32.mrf.mxu0
        %v4464 = vadd.f32 %v4255, %v4463
        %4465 = vmatmul.f32.gmra.mxu0 %v705
        %v4466 = vpop.f32.mrf.mxu0
        %v4467 = vadd.f32 %v4258, %v4466
        %4468 = vmatmul.f32.gmra.mxu0 %v708
        %v4469 = vpop.f32.mrf.mxu0
        %v4470 = vadd.f32 %v4261, %v4469
        %4471 = vmatmul.f32.gmra.mxu0 %v711
        %v4472 = vpop.f32.mrf.mxu0
        %v4473 = vadd.f32 %v4264, %v4472
        %4474 = vmatmul.f32.gmra.mxu0 %v714
        %v4475 = vpop.f32.mrf.mxu0
        %v4476 = vadd.f32 %v4267, %v4475
        %4477 = vmatmul.f32.gmra.mxu0 %v717
        %v4478 = vpop.f32.mrf.mxu0
        %v4479 = vadd.f32 %v4270, %v4478
        %4480 = vmatmul.f32.gmra.mxu0 %v720
        %v4481 = vpop.f32.mrf.mxu0
        %v4482 = vadd.f32 %v4273, %v4481
        %4483 = vmatmul.f32.gmra.mxu0 %v723
        %v4484 = vpop.f32.mrf.mxu0
        %v4485 = vadd.f32 %v4276, %v4484
        %4486 = vmatmul.f32.gmra.mxu0 %v726
        %v4487 = vpop.f32.mrf.mxu0
        %v4488 = vadd.f32 %v4279, %v4487
        %4489 = vmatmul.f32.gmra.mxu0 %v729
        %v4490 = vpop.f32.mrf.mxu0
        %v4491 = vadd.f32 %v4282, %v4490
        %4492 = vmatmul.f32.gmra.mxu0 %v732
        %v4493 = vpop.f32.mrf.mxu0
        %v4494 = vadd.f32 %v4285, %v4493
        %4495 = vmatmul.f32.gmra.mxu0 %v735
        %v4496 = vpop.f32.mrf.mxu0
        %v4497 = vadd.f32 %v4288, %v4496
        %4498 = vmatmul.f32.gmra.mxu0 %v738
        %v4499 = vpop.f32.mrf.mxu0
        %v4500 = vadd.f32 %v4291, %v4499
        %4501 = vmatmul.f32.gmra.mxu0 %v741
        %v4502 = vpop.f32.mrf.mxu0
        %v4503 = vadd.f32 %v4294, %v4502
        %4504 = vmatmul.f32.gmra.mxu0 %v744
        %v4505 = vpop.f32.mrf.mxu0
        %v4506 = vadd.f32 %v4297, %v4505
        %4507 = vmatmul.f32.gmra.mxu0 %v747
        %v4508 = vpop.f32.mrf.mxu0
        %v4509 = vadd.f32 %v4300, %v4508
        %4510 = vmatmul.f32.gmra.mxu0 %v750
        %v4511 = vpop.f32.mrf.mxu0
        %v4512 = vadd.f32 %v4303, %v4511
        %4513 = vmatmul.f32.gmra.mxu0 %v753
        %v4514 = vpop.f32.mrf.mxu0
        %v4515 = vadd.f32 %v4306, %v4514
        %4516 = vmatmul.f32.gmra.mxu0 %v756
        %v4517 = vpop.f32.mrf.mxu0
        %v4518 = vadd.f32 %v4309, %v4517
        %4519 = vmatmul.f32.gmra.mxu0 %v759
        %v4520 = vpop.f32.mrf.mxu0
        %v4521 = vadd.f32 %v4312, %v4520
        %4522 = vmatmul.f32.gmra.mxu0 %v762
        %v4523 = vpop.f32.mrf.mxu0
        %v4524 = vadd.f32 %v4315, %v4523
        %4525 = vmatmul.f32.gmra.mxu0 %v765
        %v4526 = vpop.f32.mrf.mxu0
        %v4527 = vadd.f32 %v4318, %v4526
        %4528 = vmatmul.f32.gmra.mxu0 %v768
        %v4529 = vpop.f32.mrf.mxu0
        %v4530 = vadd.f32 %v4321, %v4529
        %4531 = vmatmul.f32.gmra.mxu0 %v771
        %v4532 = vpop.f32.mrf.mxu0
        %v4533 = vadd.f32 %v4324, %v4532
        %4534 = vmatmul.f32.gmra.mxu0 %v774
        %v4535 = vpop.f32.mrf.mxu0
        %v4536 = vadd.f32 %v4327, %v4535
        %4537 = vmatmul.f32.gmra.mxu0 %v777
        %v4538 = vpop.f32.mrf.mxu0
        %v4539 = vadd.f32 %v4330, %v4538
        %4540 = vmatmul.f32.gmra.mxu0 %v780
        %v4541 = vpop.f32.mrf.mxu0
        %v4542 = vadd.f32 %v4333, %v4541
        %4543 = vmatmul.f32.gmra.mxu0 %v783
        %v4544 = vpop.f32.mrf.mxu0
        %v4545 = vadd.f32 %v4336, %v4544
        %4546 = vmatmul.f32.gmra.mxu0 %v786
        %v4547 = vpop.f32.mrf.mxu0
        %v4548 = vadd.f32 %v4339, %v4547
        %4549 = vmatmul.f32.gmra.mxu0 %v789
        %v4550 = vpop.f32.mrf.mxu0
        %v4551 = vadd.f32 %v4342, %v4550
        %4552 = vmatmul.f32.gmra.mxu0 %v792
        %v4553 = vpop.f32.mrf.mxu0
        %v4554 = vadd.f32 %v4345, %v4553
        %4555 = vmatmul.f32.gmra.mxu0 %v795
        %v4556 = vpop.f32.mrf.mxu0
        %v4557 = vadd.f32 %v4348, %v4556
        %4558 = vmatmul.f32.gmra.mxu0 %v798
        %v4559 = vpop.f32.mrf.mxu0
        %v4560 = vadd.f32 %v4351, %v4559
        %4561 = vmatmul.f32.gmra.mxu0 %v801
        %v4562 = vpop.f32.mrf.mxu0
        %v4563 = vadd.f32 %v4354, %v4562
        %4564 = vmatmul.f32.gmra.mxu0 %v804
        %v4565 = vpop.f32.mrf.mxu0
        %v4566 = vadd.f32 %v4357, %v4565
        %4567 = vmatmul.f32.gmra.mxu0 %v807
        %v4568 = vpop.f32.mrf.mxu0
        %v4569 = vadd.f32 %v4360, %v4568
        %4570 = vmatmul.f32.gmra.mxu0 %v810
        %v4571 = vpop.f32.mrf.mxu0
        %v4572 = vadd.f32 %v4363, %v4571
        %4573 = vmatmul.f32.gmra.mxu0 %v813
        %v4574 = vpop.f32.mrf.mxu0
        %v4575 = vadd.f32 %v4366, %v4574
        %4576 = vmatmul.f32.gmra.mxu0 %v816
        %v4577 = vpop.f32.mrf.mxu0
        %v4578 = vadd.f32 %v4369, %v4577
        %4579 = vmatmul.f32.gmra.mxu0 %v819
        %v4580 = vpop.f32.mrf.mxu0
        %v4581 = vadd.f32 %v4372, %v4580
        %4582 = vmatmul.f32.gmra.mxu0 %v822
        %v4583 = vpop.f32.mrf.mxu0
        %v4584 = vadd.f32 %v4375, %v4583
        %4585 = vmatmul.f32.gmra.mxu0 %v825
        %v4586 = vpop.f32.mrf.mxu0
        %v4587 = vadd.f32 %v4378, %v4586
        %4588 = vmatmul.f32.gmra.mxu0 %v828
        %v4589 = vpop.f32.mrf.mxu0
        %v4590 = vadd.f32 %v4381, %v4589
        %4591 = vmatmul.f32.gmra.mxu0 %v831
        %v4592 = vpop.f32.mrf.mxu0
        %v4593 = vadd.f32 %v4384, %v4592
        %4594 = vmatmul.f32.gmra.mxu0 %v834
        %v4595 = vpop.f32.mrf.mxu0
        %v4596 = vadd.f32 %v4387, %v4595
        %4597 = vmatmul.f32.gmra.mxu0 %v837
        %v4598 = vpop.f32.mrf.mxu0
        %v4599 = vadd.f32 %v4390, %v4598
        %4600 = vmatmul.f32.gmra.mxu0 %v840
        %v4601 = vpop.f32.mrf.mxu0
        %v4602 = vadd.f32 %v4393, %v4601
        %4603 = vmatmul.f32.gmra.mxu0 %v843
        %v4604 = vpop.f32.mrf.mxu0
        %v4605 = vadd.f32 %v4396, %v4604
        %4606 = vmatmul.f32.gmra.mxu0 %v846
        %v4607 = vpop.f32.mrf.mxu0
        %v4608 = vadd.f32 %v4399, %v4607
        %4609 = vmatmul.f32.gmra.mxu0 %v849
        %v4610 = vpop.f32.mrf.mxu0
        %v4611 = vadd.f32 %v4402, %v4610
        %4612 = vmatmul.f32.gmra.mxu0 %v852
        %v4613 = vpop.f32.mrf.mxu0
        %v4614 = vadd.f32 %v4405, %v4613
        %4615 = vmatmul.f32.gmra.mxu0 %v855
        %v4616 = vpop.f32.mrf.mxu0
        %v4617 = vadd.f32 %v4408, %v4616
        %4618 = vmatmul.f32.gmra.mxu0 %v858
        %v4619 = vpop.f32.mrf.mxu0
        %v4620 = vadd.f32 %v4411, %v4619
        %4621 = vmatmul.f32.gmra.mxu0 %v861
        %v4622 = vpop.f32.mrf.mxu0
        %v4623 = vadd.f32 %v4414, %v4622
        %4624 = vmatmul.f32.gmra.mxu0 %v864
        %v4625 = vpop.f32.mrf.mxu0
        %v4626 = vadd.f32 %v4417, %v4625
        %4627 = vmatmul.f32.gmra.mxu0 %v867
        %v4628 = vpop.f32.mrf.mxu0
        %v4629 = vadd.f32 %v4420, %v4628
        %4630 = vmatmul.f32.gmra.mxu0 %v870
        %v4631 = vpop.f32.mrf.mxu0
        %v4632 = vadd.f32 %v4423, %v4631
        %4633 = vmatmul.f32.gmra.mxu0 %v873
        %v4634 = vpop.f32.mrf.mxu0
        %v4635 = vadd.f32 %v4426, %v4634
        %4636 = vmatmul.f32.gmra.mxu0 %v876
        %v4637 = vpop.f32.mrf.mxu0
        %v4638 = vadd.f32 %v4429, %v4637
        %4639 = vmatmul.f32.gmra.mxu0 %v879
        %v4640 = vpop.f32.mrf.mxu0
        %v4641 = vadd.f32 %v4432, %v4640
        %4642 = vmatmul.f32.gmra.mxu0 %v882
        %v4643 = vpop.f32.mrf.mxu0
        %v4644 = vadd.f32 %v4435, %v4643
        %4645 = vmatmul.f32.gmra.mxu0 %v885
        %v4646 = vpop.f32.mrf.mxu0
        %v4647 = vadd.f32 %v4438, %v4646
        %4648 = vmatmul.f32.gmra.mxu0 %v888
        %v4649 = vpop.f32.mrf.mxu0
        %v4650 = vadd.f32 %v4441, %v4649
        %4651 = vdwg.mxu0
        %4652 = vmatpush.msra.mxu0 %v503
        %4653 = vmatpush.msra.mxu0 %v495
        %4654 = vmatpush.msra.mxu0 %v487
        %4655 = vmatpush.msra.mxu0 %v479
        %4656 = vmatpush.msra.mxu0 %v471
        %4657 = vmatpush.msra.mxu0 %v463
        %4658 = vmatpush.msra.mxu0 %v455
        %4659 = vmatpush.msra.mxu0 %v447
        %4660 = vmatpush.msra.mxu0 %v439
        %4661 = vmatpush.msra.mxu0 %v431
        %4662 = vmatpush.msra.mxu0 %v423
        %4663 = vmatpush.msra.mxu0 %v415
        %4664 = vmatpush.msra.mxu0 %v407
        %4665 = vmatpush.msra.mxu0 %v399
        %4666 = vmatpush.msra.mxu0 %v391
        %4667 = vmatpush.msra.mxu0 %v383
        %4668 = vmatmul.f32.gmra.mxu0 %v185
        %v4669 = vpop.f32.mrf.mxu0
        %v4670 = vadd.f32 0.0, %v4669
        %4671 = vmatmul.f32.gmra.mxu0 %v188
        %v4672 = vpop.f32.mrf.mxu0
        %v4673 = vadd.f32 0.0, %v4672
        %4674 = vmatmul.f32.gmra.mxu0 %v191
        %v4675 = vpop.f32.mrf.mxu0
        %v4676 = vadd.f32 0.0, %v4675
        %4677 = vmatmul.f32.gmra.mxu0 %v194
        %v4678 = vpop.f32.mrf.mxu0
        %v4679 = vadd.f32 0.0, %v4678
        %4680 = vmatmul.f32.gmra.mxu0 %v197
        %v4681 = vpop.f32.mrf.mxu0
        %v4682 = vadd.f32 0.0, %v4681
        %4683 = vmatmul.f32.gmra.mxu0 %v200
        %v4684 = vpop.f32.mrf.mxu0
        %v4685 = vadd.f32 0.0, %v4684
        %4686 = vmatmul.f32.gmra.mxu0 %v203
        %v4687 = vpop.f32.mrf.mxu0
        %v4688 = vadd.f32 0.0, %v4687
        %4689 = vmatmul.f32.gmra.mxu0 %v206
        %v4690 = vpop.f32.mrf.mxu0
        %v4691 = vadd.f32 0.0, %v4690
        %4692 = vmatmul.f32.gmra.mxu0 %v209
        %v4693 = vpop.f32.mrf.mxu0
        %v4694 = vadd.f32 0.0, %v4693
        %4695 = vmatmul.f32.gmra.mxu0 %v212
        %v4696 = vpop.f32.mrf.mxu0
        %v4697 = vadd.f32 0.0, %v4696
        %4698 = vmatmul.f32.gmra.mxu0 %v215
        %v4699 = vpop.f32.mrf.mxu0
        %v4700 = vadd.f32 0.0, %v4699
        %4701 = vmatmul.f32.gmra.mxu0 %v218
        %v4702 = vpop.f32.mrf.mxu0
        %v4703 = vadd.f32 0.0, %v4702
        %4704 = vmatmul.f32.gmra.mxu0 %v221
        %v4705 = vpop.f32.mrf.mxu0
        %v4706 = vadd.f32 0.0, %v4705
        %4707 = vmatmul.f32.gmra.mxu0 %v224
        %v4708 = vpop.f32.mrf.mxu0
        %v4709 = vadd.f32 0.0, %v4708
        %4710 = vmatmul.f32.gmra.mxu0 %v227
        %v4711 = vpop.f32.mrf.mxu0
        %v4712 = vadd.f32 0.0, %v4711
        %4713 = vmatmul.f32.gmra.mxu0 %v230
        %v4714 = vpop.f32.mrf.mxu0
        %v4715 = vadd.f32 0.0, %v4714
        %4716 = vmatmul.f32.gmra.mxu0 %v233
        %v4717 = vpop.f32.mrf.mxu0
        %v4718 = vadd.f32 0.0, %v4717
        %4719 = vmatmul.f32.gmra.mxu0 %v236
        %v4720 = vpop.f32.mrf.mxu0
        %v4721 = vadd.f32 0.0, %v4720
        %4722 = vmatmul.f32.gmra.mxu0 %v239
        %v4723 = vpop.f32.mrf.mxu0
        %v4724 = vadd.f32 0.0, %v4723
        %4725 = vmatmul.f32.gmra.mxu0 %v242
        %v4726 = vpop.f32.mrf.mxu0
        %v4727 = vadd.f32 0.0, %v4726
        %4728 = vmatmul.f32.gmra.mxu0 %v245
        %v4729 = vpop.f32.mrf.mxu0
        %v4730 = vadd.f32 0.0, %v4729
        %4731 = vmatmul.f32.gmra.mxu0 %v248
        %v4732 = vpop.f32.mrf.mxu0
        %v4733 = vadd.f32 0.0, %v4732
        %4734 = vmatmul.f32.gmra.mxu0 %v251
        %v4735 = vpop.f32.mrf.mxu0
        %v4736 = vadd.f32 0.0, %v4735
        %4737 = vmatmul.f32.gmra.mxu0 %v254
        %v4738 = vpop.f32.mrf.mxu0
        %v4739 = vadd.f32 0.0, %v4738
        %4740 = vmatmul.f32.gmra.mxu0 %v257
        %v4741 = vpop.f32.mrf.mxu0
        %v4742 = vadd.f32 0.0, %v4741
        %4743 = vmatmul.f32.gmra.mxu0 %v260
        %v4744 = vpop.f32.mrf.mxu0
        %v4745 = vadd.f32 0.0, %v4744
        %4746 = vmatmul.f32.gmra.mxu0 %v263
        %v4747 = vpop.f32.mrf.mxu0
        %v4748 = vadd.f32 0.0, %v4747
        %4749 = vmatmul.f32.gmra.mxu0 %v266
        %v4750 = vpop.f32.mrf.mxu0
        %v4751 = vadd.f32 0.0, %v4750
        %4752 = vmatmul.f32.gmra.mxu0 %v269
        %v4753 = vpop.f32.mrf.mxu0
        %v4754 = vadd.f32 0.0, %v4753
        %4755 = vmatmul.f32.gmra.mxu0 %v272
        %v4756 = vpop.f32.mrf.mxu0
        %v4757 = vadd.f32 0.0, %v4756
        %4758 = vmatmul.f32.gmra.mxu0 %v275
        %v4759 = vpop.f32.mrf.mxu0
        %v4760 = vadd.f32 0.0, %v4759
        %4761 = vmatmul.f32.gmra.mxu0 %v278
        %v4762 = vpop.f32.mrf.mxu0
        %v4763 = vadd.f32 0.0, %v4762
        %4764 = vmatmul.f32.gmra.mxu0 %v281
        %v4765 = vpop.f32.mrf.mxu0
        %v4766 = vadd.f32 0.0, %v4765
        %4767 = vmatmul.f32.gmra.mxu0 %v284
        %v4768 = vpop.f32.mrf.mxu0
        %v4769 = vadd.f32 0.0, %v4768
        %4770 = vmatmul.f32.gmra.mxu0 %v287
        %v4771 = vpop.f32.mrf.mxu0
        %v4772 = vadd.f32 0.0, %v4771
        %4773 = vmatmul.f32.gmra.mxu0 %v290
        %v4774 = vpop.f32.mrf.mxu0
        %v4775 = vadd.f32 0.0, %v4774
        %4776 = vmatmul.f32.gmra.mxu0 %v293
        %v4777 = vpop.f32.mrf.mxu0
        %v4778 = vadd.f32 0.0, %v4777
        %4779 = vmatmul.f32.gmra.mxu0 %v296
        %v4780 = vpop.f32.mrf.mxu0
        %v4781 = vadd.f32 0.0, %v4780
        %4782 = vmatmul.f32.gmra.mxu0 %v299
        %v4783 = vpop.f32.mrf.mxu0
        %v4784 = vadd.f32 0.0, %v4783
        %4785 = vmatmul.f32.gmra.mxu0 %v302
        %v4786 = vpop.f32.mrf.mxu0
        %v4787 = vadd.f32 0.0, %v4786
        %4788 = vmatmul.f32.gmra.mxu0 %v305
        %v4789 = vpop.f32.mrf.mxu0
        %v4790 = vadd.f32 0.0, %v4789
        %4791 = vmatmul.f32.gmra.mxu0 %v308
        %v4792 = vpop.f32.mrf.mxu0
        %v4793 = vadd.f32 0.0, %v4792
        %4794 = vmatmul.f32.gmra.mxu0 %v311
        %v4795 = vpop.f32.mrf.mxu0
        %v4796 = vadd.f32 0.0, %v4795
        %4797 = vmatmul.f32.gmra.mxu0 %v314
        %v4798 = vpop.f32.mrf.mxu0
        %v4799 = vadd.f32 0.0, %v4798
        %4800 = vmatmul.f32.gmra.mxu0 %v317
        %v4801 = vpop.f32.mrf.mxu0
        %v4802 = vadd.f32 0.0, %v4801
        %4803 = vmatmul.f32.gmra.mxu0 %v320
        %v4804 = vpop.f32.mrf.mxu0
        %v4805 = vadd.f32 0.0, %v4804
        %4806 = vmatmul.f32.gmra.mxu0 %v323
        %v4807 = vpop.f32.mrf.mxu0
        %v4808 = vadd.f32 0.0, %v4807
        %4809 = vmatmul.f32.gmra.mxu0 %v326
        %v4810 = vpop.f32.mrf.mxu0
        %v4811 = vadd.f32 0.0, %v4810
        %4812 = vmatmul.f32.gmra.mxu0 %v329
        %v4813 = vpop.f32.mrf.mxu0
        %v4814 = vadd.f32 0.0, %v4813
        %4815 = vmatmul.f32.gmra.mxu0 %v332
        %v4816 = vpop.f32.mrf.mxu0
        %v4817 = vadd.f32 0.0, %v4816
        %4818 = vmatmul.f32.gmra.mxu0 %v335
        %v4819 = vpop.f32.mrf.mxu0
        %v4820 = vadd.f32 0.0, %v4819
        %4821 = vmatmul.f32.gmra.mxu0 %v338
        %v4822 = vpop.f32.mrf.mxu0
        %v4823 = vadd.f32 0.0, %v4822
        %4824 = vmatmul.f32.gmra.mxu0 %v341
        %v4825 = vpop.f32.mrf.mxu0
        %v4826 = vadd.f32 0.0, %v4825
        %4827 = vmatmul.f32.gmra.mxu0 %v344
        %v4828 = vpop.f32.mrf.mxu0
        %v4829 = vadd.f32 0.0, %v4828
        %4830 = vmatmul.f32.gmra.mxu0 %v347
        %v4831 = vpop.f32.mrf.mxu0
        %v4832 = vadd.f32 0.0, %v4831
        %4833 = vmatmul.f32.gmra.mxu0 %v350
        %v4834 = vpop.f32.mrf.mxu0
        %v4835 = vadd.f32 0.0, %v4834
        %4836 = vmatmul.f32.gmra.mxu0 %v353
        %v4837 = vpop.f32.mrf.mxu0
        %v4838 = vadd.f32 0.0, %v4837
        %4839 = vmatmul.f32.gmra.mxu0 %v356
        %v4840 = vpop.f32.mrf.mxu0
        %v4841 = vadd.f32 0.0, %v4840
        %4842 = vmatmul.f32.gmra.mxu0 %v359
        %v4843 = vpop.f32.mrf.mxu0
        %v4844 = vadd.f32 0.0, %v4843
        %4845 = vmatmul.f32.gmra.mxu0 %v362
        %v4846 = vpop.f32.mrf.mxu0
        %v4847 = vadd.f32 0.0, %v4846
        %4848 = vmatmul.f32.gmra.mxu0 %v365
        %v4849 = vpop.f32.mrf.mxu0
        %v4850 = vadd.f32 0.0, %v4849
        %4851 = vmatmul.f32.gmra.mxu0 %v368
        %v4852 = vpop.f32.mrf.mxu0
        %v4853 = vadd.f32 0.0, %v4852
        %4854 = vmatmul.f32.gmra.mxu0 %v371
        %v4855 = vpop.f32.mrf.mxu0
        %v4856 = vadd.f32 0.0, %v4855
        %4857 = vmatmul.f32.gmra.mxu0 %v374
        %v4858 = vpop.f32.mrf.mxu0
        %v4859 = vadd.f32 0.0, %v4858
        %4860 = vdwg.mxu0
        %4861 = vmatpush.msra.mxu0 %v631
        %4862 = vmatpush.msra.mxu0 %v623
        %4863 = vmatpush.msra.mxu0 %v615
        %4864 = vmatpush.msra.mxu0 %v607
        %4865 = vmatpush.msra.mxu0 %v599
        %4866 = vmatpush.msra.mxu0 %v591
        %4867 = vmatpush.msra.mxu0 %v583
        %4868 = vmatpush.msra.mxu0 %v575
        %4869 = vmatpush.msra.mxu0 %v567
        %4870 = vmatpush.msra.mxu0 %v559
        %4871 = vmatpush.msra.mxu0 %v551
        %4872 = vmatpush.msra.mxu0 %v543
        %4873 = vmatpush.msra.mxu0 %v535
        %4874 = vmatpush.msra.mxu0 %v527
        %4875 = vmatpush.msra.mxu0 %v519
        %4876 = vmatpush.msra.mxu0 %v511
        %4877 = vmatmul.f32.gmra.mxu0 %v186
        %v4878 = vpop.f32.mrf.mxu0
        %v4879 = vadd.f32 %v4670, %v4878
        %4880 = vmatmul.f32.gmra.mxu0 %v189
        %v4881 = vpop.f32.mrf.mxu0
        %v4882 = vadd.f32 %v4673, %v4881
        %4883 = vmatmul.f32.gmra.mxu0 %v192
        %v4884 = vpop.f32.mrf.mxu0
        %v4885 = vadd.f32 %v4676, %v4884
        %4886 = vmatmul.f32.gmra.mxu0 %v195
        %v4887 = vpop.f32.mrf.mxu0
        %v4888 = vadd.f32 %v4679, %v4887
        %4889 = vmatmul.f32.gmra.mxu0 %v198
        %v4890 = vpop.f32.mrf.mxu0
        %v4891 = vadd.f32 %v4682, %v4890
        %4892 = vmatmul.f32.gmra.mxu0 %v201
        %v4893 = vpop.f32.mrf.mxu0
        %v4894 = vadd.f32 %v4685, %v4893
        %4895 = vmatmul.f32.gmra.mxu0 %v204
        %v4896 = vpop.f32.mrf.mxu0
        %v4897 = vadd.f32 %v4688, %v4896
        %4898 = vmatmul.f32.gmra.mxu0 %v207
        %v4899 = vpop.f32.mrf.mxu0
        %v4900 = vadd.f32 %v4691, %v4899
        %4901 = vmatmul.f32.gmra.mxu0 %v210
        %v4902 = vpop.f32.mrf.mxu0
        %v4903 = vadd.f32 %v4694, %v4902
        %4904 = vmatmul.f32.gmra.mxu0 %v213
        %v4905 = vpop.f32.mrf.mxu0
        %v4906 = vadd.f32 %v4697, %v4905
        %4907 = vmatmul.f32.gmra.mxu0 %v216
        %v4908 = vpop.f32.mrf.mxu0
        %v4909 = vadd.f32 %v4700, %v4908
        %4910 = vmatmul.f32.gmra.mxu0 %v219
        %v4911 = vpop.f32.mrf.mxu0
        %v4912 = vadd.f32 %v4703, %v4911
        %4913 = vmatmul.f32.gmra.mxu0 %v222
        %v4914 = vpop.f32.mrf.mxu0
        %v4915 = vadd.f32 %v4706, %v4914
        %4916 = vmatmul.f32.gmra.mxu0 %v225
        %v4917 = vpop.f32.mrf.mxu0
        %v4918 = vadd.f32 %v4709, %v4917
        %4919 = vmatmul.f32.gmra.mxu0 %v228
        %v4920 = vpop.f32.mrf.mxu0
        %v4921 = vadd.f32 %v4712, %v4920
        %4922 = vmatmul.f32.gmra.mxu0 %v231
        %v4923 = vpop.f32.mrf.mxu0
        %v4924 = vadd.f32 %v4715, %v4923
        %4925 = vmatmul.f32.gmra.mxu0 %v234
        %v4926 = vpop.f32.mrf.mxu0
        %v4927 = vadd.f32 %v4718, %v4926
        %4928 = vmatmul.f32.gmra.mxu0 %v237
        %v4929 = vpop.f32.mrf.mxu0
        %v4930 = vadd.f32 %v4721, %v4929
        %4931 = vmatmul.f32.gmra.mxu0 %v240
        %v4932 = vpop.f32.mrf.mxu0
        %v4933 = vadd.f32 %v4724, %v4932
        %4934 = vmatmul.f32.gmra.mxu0 %v243
        %v4935 = vpop.f32.mrf.mxu0
        %v4936 = vadd.f32 %v4727, %v4935
        %4937 = vmatmul.f32.gmra.mxu0 %v246
        %v4938 = vpop.f32.mrf.mxu0
        %v4939 = vadd.f32 %v4730, %v4938
        %4940 = vmatmul.f32.gmra.mxu0 %v249
        %v4941 = vpop.f32.mrf.mxu0
        %v4942 = vadd.f32 %v4733, %v4941
        %4943 = vmatmul.f32.gmra.mxu0 %v252
        %v4944 = vpop.f32.mrf.mxu0
        %v4945 = vadd.f32 %v4736, %v4944
        %4946 = vmatmul.f32.gmra.mxu0 %v255
        %v4947 = vpop.f32.mrf.mxu0
        %v4948 = vadd.f32 %v4739, %v4947
        %4949 = vmatmul.f32.gmra.mxu0 %v258
        %v4950 = vpop.f32.mrf.mxu0
        %v4951 = vadd.f32 %v4742, %v4950
        %4952 = vmatmul.f32.gmra.mxu0 %v261
        %v4953 = vpop.f32.mrf.mxu0
        %v4954 = vadd.f32 %v4745, %v4953
        %4955 = vmatmul.f32.gmra.mxu0 %v264
        %v4956 = vpop.f32.mrf.mxu0
        %v4957 = vadd.f32 %v4748, %v4956
        %4958 = vmatmul.f32.gmra.mxu0 %v267
        %v4959 = vpop.f32.mrf.mxu0
        %v4960 = vadd.f32 %v4751, %v4959
        %4961 = vmatmul.f32.gmra.mxu0 %v270
        %v4962 = vpop.f32.mrf.mxu0
        %v4963 = vadd.f32 %v4754, %v4962
        %4964 = vmatmul.f32.gmra.mxu0 %v273
        %v4965 = vpop.f32.mrf.mxu0
        %v4966 = vadd.f32 %v4757, %v4965
        %4967 = vmatmul.f32.gmra.mxu0 %v276
        %v4968 = vpop.f32.mrf.mxu0
        %v4969 = vadd.f32 %v4760, %v4968
        %4970 = vmatmul.f32.gmra.mxu0 %v279
        %v4971 = vpop.f32.mrf.mxu0
        %v4972 = vadd.f32 %v4763, %v4971
        %4973 = vmatmul.f32.gmra.mxu0 %v282
        %v4974 = vpop.f32.mrf.mxu0
        %v4975 = vadd.f32 %v4766, %v4974
        %4976 = vmatmul.f32.gmra.mxu0 %v285
        %v4977 = vpop.f32.mrf.mxu0
        %v4978 = vadd.f32 %v4769, %v4977
        %4979 = vmatmul.f32.gmra.mxu0 %v288
        %v4980 = vpop.f32.mrf.mxu0
        %v4981 = vadd.f32 %v4772, %v4980
        %4982 = vmatmul.f32.gmra.mxu0 %v291
        %v4983 = vpop.f32.mrf.mxu0
        %v4984 = vadd.f32 %v4775, %v4983
        %4985 = vmatmul.f32.gmra.mxu0 %v294
        %v4986 = vpop.f32.mrf.mxu0
        %v4987 = vadd.f32 %v4778, %v4986
        %4988 = vmatmul.f32.gmra.mxu0 %v297
        %v4989 = vpop.f32.mrf.mxu0
        %v4990 = vadd.f32 %v4781, %v4989
        %4991 = vmatmul.f32.gmra.mxu0 %v300
        %v4992 = vpop.f32.mrf.mxu0
        %v4993 = vadd.f32 %v4784, %v4992
        %4994 = vmatmul.f32.gmra.mxu0 %v303
        %v4995 = vpop.f32.mrf.mxu0
        %v4996 = vadd.f32 %v4787, %v4995
        %4997 = vmatmul.f32.gmra.mxu0 %v306
        %v4998 = vpop.f32.mrf.mxu0
        %v4999 = vadd.f32 %v4790, %v4998
        %5000 = vmatmul.f32.gmra.mxu0 %v309
        %v5001 = vpop.f32.mrf.mxu0
        %v5002 = vadd.f32 %v4793, %v5001
        %5003 = vmatmul.f32.gmra.mxu0 %v312
        %v5004 = vpop.f32.mrf.mxu0
        %v5005 = vadd.f32 %v4796, %v5004
        %5006 = vmatmul.f32.gmra.mxu0 %v315
        %v5007 = vpop.f32.mrf.mxu0
        %v5008 = vadd.f32 %v4799, %v5007
        %5009 = vmatmul.f32.gmra.mxu0 %v318
        %v5010 = vpop.f32.mrf.mxu0
        %v5011 = vadd.f32 %v4802, %v5010
        %5012 = vmatmul.f32.gmra.mxu0 %v321
        %v5013 = vpop.f32.mrf.mxu0
        %v5014 = vadd.f32 %v4805, %v5013
        %5015 = vmatmul.f32.gmra.mxu0 %v324
        %v5016 = vpop.f32.mrf.mxu0
        %v5017 = vadd.f32 %v4808, %v5016
        %5018 = vmatmul.f32.gmra.mxu0 %v327
        %v5019 = vpop.f32.mrf.mxu0
        %v5020 = vadd.f32 %v4811, %v5019
        %5021 = vmatmul.f32.gmra.mxu0 %v330
        %v5022 = vpop.f32.mrf.mxu0
        %v5023 = vadd.f32 %v4814, %v5022
        %5024 = vmatmul.f32.gmra.mxu0 %v333
        %v5025 = vpop.f32.mrf.mxu0
        %v5026 = vadd.f32 %v4817, %v5025
        %5027 = vmatmul.f32.gmra.mxu0 %v336
        %v5028 = vpop.f32.mrf.mxu0
        %v5029 = vadd.f32 %v4820, %v5028
        %5030 = vmatmul.f32.gmra.mxu0 %v339
        %v5031 = vpop.f32.mrf.mxu0
        %v5032 = vadd.f32 %v4823, %v5031
        %5033 = vmatmul.f32.gmra.mxu0 %v342
        %v5034 = vpop.f32.mrf.mxu0
        %v5035 = vadd.f32 %v4826, %v5034
        %5036 = vmatmul.f32.gmra.mxu0 %v345
        %v5037 = vpop.f32.mrf.mxu0
        %v5038 = vadd.f32 %v4829, %v5037
        %5039 = vmatmul.f32.gmra.mxu0 %v348
        %v5040 = vpop.f32.mrf.mxu0
        %v5041 = vadd.f32 %v4832, %v5040
        %5042 = vmatmul.f32.gmra.mxu0 %v351
        %v5043 = vpop.f32.mrf.mxu0
        %v5044 = vadd.f32 %v4835, %v5043
        %5045 = vmatmul.f32.gmra.mxu0 %v354
        %v5046 = vpop.f32.mrf.mxu0
        %v5047 = vadd.f32 %v4838, %v5046
        %5048 = vmatmul.f32.gmra.mxu0 %v357
        %v5049 = vpop.f32.mrf.mxu0
        %v5050 = vadd.f32 %v4841, %v5049
        %5051 = vmatmul.f32.gmra.mxu0 %v360
        %v5052 = vpop.f32.mrf.mxu0
        %v5053 = vadd.f32 %v4844, %v5052
        %5054 = vmatmul.f32.gmra.mxu0 %v363
        %v5055 = vpop.f32.mrf.mxu0
        %v5056 = vadd.f32 %v4847, %v5055
        %5057 = vmatmul.f32.gmra.mxu0 %v366
        %v5058 = vpop.f32.mrf.mxu0
        %v5059 = vadd.f32 %v4850, %v5058
        %5060 = vmatmul.f32.gmra.mxu0 %v369
        %v5061 = vpop.f32.mrf.mxu0
        %v5062 = vadd.f32 %v4853, %v5061
        %5063 = vmatmul.f32.gmra.mxu0 %v372
        %v5064 = vpop.f32.mrf.mxu0
        %v5065 = vadd.f32 %v4856, %v5064
        %5066 = vmatmul.f32.gmra.mxu0 %v375
        %v5067 = vpop.f32.mrf.mxu0
        %v5068 = vadd.f32 %v4859, %v5067
        %5069 = vdwg.mxu0
        %5070 = vmatpush.msra.mxu0 0.0
        %5071 = vmatpush.msra.mxu0 0.0
        %5072 = vmatpush.msra.mxu0 0.0
        %5073 = vmatpush.msra.mxu0 0.0
        %5074 = vmatpush.msra.mxu0 0.0
        %5075 = vmatpush.msra.mxu0 0.0
        %5076 = vmatpush.msra.mxu0 0.0
        %5077 = vmatpush.msra.mxu0 0.0
        %5078 = vmatpush.msra.mxu0 %v695
        %5079 = vmatpush.msra.mxu0 %v687
        %5080 = vmatpush.msra.mxu0 %v679
        %5081 = vmatpush.msra.mxu0 %v671
        %5082 = vmatpush.msra.mxu0 %v663
        %5083 = vmatpush.msra.mxu0 %v655
        %5084 = vmatpush.msra.mxu0 %v647
        %5085 = vmatpush.msra.mxu0 %v639
        %5086 = vmatmul.f32.gmra.mxu0 %v699
        %v5087 = vpop.f32.mrf.mxu0
        %v5088 = vadd.f32 %v4879, %v5087
        %5089 = vmatmul.f32.gmra.mxu0 %v702
        %v5090 = vpop.f32.mrf.mxu0
        %v5091 = vadd.f32 %v4882, %v5090
        %5092 = vmatmul.f32.gmra.mxu0 %v705
        %v5093 = vpop.f32.mrf.mxu0
        %v5094 = vadd.f32 %v4885, %v5093
        %5095 = vmatmul.f32.gmra.mxu0 %v708
        %v5096 = vpop.f32.mrf.mxu0
        %v5097 = vadd.f32 %v4888, %v5096
        %5098 = vmatmul.f32.gmra.mxu0 %v711
        %v5099 = vpop.f32.mrf.mxu0
        %v5100 = vadd.f32 %v4891, %v5099
        %5101 = vmatmul.f32.gmra.mxu0 %v714
        %v5102 = vpop.f32.mrf.mxu0
        %v5103 = vadd.f32 %v4894, %v5102
        %5104 = vmatmul.f32.gmra.mxu0 %v717
        %v5105 = vpop.f32.mrf.mxu0
        %v5106 = vadd.f32 %v4897, %v5105
        %5107 = vmatmul.f32.gmra.mxu0 %v720
        %v5108 = vpop.f32.mrf.mxu0
        %v5109 = vadd.f32 %v4900, %v5108
        %5110 = vmatmul.f32.gmra.mxu0 %v723
        %v5111 = vpop.f32.mrf.mxu0
        %v5112 = vadd.f32 %v4903, %v5111
        %5113 = vmatmul.f32.gmra.mxu0 %v726
        %v5114 = vpop.f32.mrf.mxu0
        %v5115 = vadd.f32 %v4906, %v5114
        %5116 = vmatmul.f32.gmra.mxu0 %v729
        %v5117 = vpop.f32.mrf.mxu0
        %v5118 = vadd.f32 %v4909, %v5117
        %5119 = vmatmul.f32.gmra.mxu0 %v732
        %v5120 = vpop.f32.mrf.mxu0
        %v5121 = vadd.f32 %v4912, %v5120
        %5122 = vmatmul.f32.gmra.mxu0 %v735
        %v5123 = vpop.f32.mrf.mxu0
        %v5124 = vadd.f32 %v4915, %v5123
        %5125 = vmatmul.f32.gmra.mxu0 %v738
        %v5126 = vpop.f32.mrf.mxu0
        %v5127 = vadd.f32 %v4918, %v5126
        %5128 = vmatmul.f32.gmra.mxu0 %v741
        %v5129 = vpop.f32.mrf.mxu0
        %v5130 = vadd.f32 %v4921, %v5129
        %5131 = vmatmul.f32.gmra.mxu0 %v744
        %v5132 = vpop.f32.mrf.mxu0
        %v5133 = vadd.f32 %v4924, %v5132
        %5134 = vmatmul.f32.gmra.mxu0 %v747
        %v5135 = vpop.f32.mrf.mxu0
        %v5136 = vadd.f32 %v4927, %v5135
        %5137 = vmatmul.f32.gmra.mxu0 %v750
        %v5138 = vpop.f32.mrf.mxu0
        %v5139 = vadd.f32 %v4930, %v5138
        %5140 = vmatmul.f32.gmra.mxu0 %v753
        %v5141 = vpop.f32.mrf.mxu0
        %v5142 = vadd.f32 %v4933, %v5141
        %5143 = vmatmul.f32.gmra.mxu0 %v756
        %v5144 = vpop.f32.mrf.mxu0
        %v5145 = vadd.f32 %v4936, %v5144
        %5146 = vmatmul.f32.gmra.mxu0 %v759
        %v5147 = vpop.f32.mrf.mxu0
        %v5148 = vadd.f32 %v4939, %v5147
        %5149 = vmatmul.f32.gmra.mxu0 %v762
        %v5150 = vpop.f32.mrf.mxu0
        %v5151 = vadd.f32 %v4942, %v5150
        %5152 = vmatmul.f32.gmra.mxu0 %v765
        %v5153 = vpop.f32.mrf.mxu0
        %v5154 = vadd.f32 %v4945, %v5153
        %5155 = vmatmul.f32.gmra.mxu0 %v768
        %v5156 = vpop.f32.mrf.mxu0
        %v5157 = vadd.f32 %v4948, %v5156
        %5158 = vmatmul.f32.gmra.mxu0 %v771
        %v5159 = vpop.f32.mrf.mxu0
        %v5160 = vadd.f32 %v4951, %v5159
        %5161 = vmatmul.f32.gmra.mxu0 %v774
        %v5162 = vpop.f32.mrf.mxu0
        %v5163 = vadd.f32 %v4954, %v5162
        %5164 = vmatmul.f32.gmra.mxu0 %v777
        %v5165 = vpop.f32.mrf.mxu0
        %v5166 = vadd.f32 %v4957, %v5165
        %5167 = vmatmul.f32.gmra.mxu0 %v780
        %v5168 = vpop.f32.mrf.mxu0
        %v5169 = vadd.f32 %v4960, %v5168
        %5170 = vmatmul.f32.gmra.mxu0 %v783
        %v5171 = vpop.f32.mrf.mxu0
        %v5172 = vadd.f32 %v4963, %v5171
        %5173 = vmatmul.f32.gmra.mxu0 %v786
        %v5174 = vpop.f32.mrf.mxu0
        %v5175 = vadd.f32 %v4966, %v5174
        %5176 = vmatmul.f32.gmra.mxu0 %v789
        %v5177 = vpop.f32.mrf.mxu0
        %v5178 = vadd.f32 %v4969, %v5177
        %5179 = vmatmul.f32.gmra.mxu0 %v792
        %v5180 = vpop.f32.mrf.mxu0
        %v5181 = vadd.f32 %v4972, %v5180
        %5182 = vmatmul.f32.gmra.mxu0 %v795
        %v5183 = vpop.f32.mrf.mxu0
        %v5184 = vadd.f32 %v4975, %v5183
        %5185 = vmatmul.f32.gmra.mxu0 %v798
        %v5186 = vpop.f32.mrf.mxu0
        %v5187 = vadd.f32 %v4978, %v5186
        %5188 = vmatmul.f32.gmra.mxu0 %v801
        %v5189 = vpop.f32.mrf.mxu0
        %v5190 = vadd.f32 %v4981, %v5189
        %5191 = vmatmul.f32.gmra.mxu0 %v804
        %v5192 = vpop.f32.mrf.mxu0
        %v5193 = vadd.f32 %v4984, %v5192
        %5194 = vmatmul.f32.gmra.mxu0 %v807
        %v5195 = vpop.f32.mrf.mxu0
        %v5196 = vadd.f32 %v4987, %v5195
        %5197 = vmatmul.f32.gmra.mxu0 %v810
        %v5198 = vpop.f32.mrf.mxu0
        %v5199 = vadd.f32 %v4990, %v5198
        %5200 = vmatmul.f32.gmra.mxu0 %v813
        %v5201 = vpop.f32.mrf.mxu0
        %v5202 = vadd.f32 %v4993, %v5201
        %5203 = vmatmul.f32.gmra.mxu0 %v816
        %v5204 = vpop.f32.mrf.mxu0
        %v5205 = vadd.f32 %v4996, %v5204
        %5206 = vmatmul.f32.gmra.mxu0 %v819
        %v5207 = vpop.f32.mrf.mxu0
        %v5208 = vadd.f32 %v4999, %v5207
        %5209 = vmatmul.f32.gmra.mxu0 %v822
        %v5210 = vpop.f32.mrf.mxu0
        %v5211 = vadd.f32 %v5002, %v5210
        %5212 = vmatmul.f32.gmra.mxu0 %v825
        %v5213 = vpop.f32.mrf.mxu0
        %v5214 = vadd.f32 %v5005, %v5213
        %5215 = vmatmul.f32.gmra.mxu0 %v828
        %v5216 = vpop.f32.mrf.mxu0
        %v5217 = vadd.f32 %v5008, %v5216
        %5218 = vmatmul.f32.gmra.mxu0 %v831
        %v5219 = vpop.f32.mrf.mxu0
        %v5220 = vadd.f32 %v5011, %v5219
        %5221 = vmatmul.f32.gmra.mxu0 %v834
        %v5222 = vpop.f32.mrf.mxu0
        %v5223 = vadd.f32 %v5014, %v5222
        %5224 = vmatmul.f32.gmra.mxu0 %v837
        %v5225 = vpop.f32.mrf.mxu0
        %v5226 = vadd.f32 %v5017, %v5225
        %5227 = vmatmul.f32.gmra.mxu0 %v840
        %v5228 = vpop.f32.mrf.mxu0
        %v5229 = vadd.f32 %v5020, %v5228
        %5230 = vmatmul.f32.gmra.mxu0 %v843
        %v5231 = vpop.f32.mrf.mxu0
        %v5232 = vadd.f32 %v5023, %v5231
        %5233 = vmatmul.f32.gmra.mxu0 %v846
        %v5234 = vpop.f32.mrf.mxu0
        %v5235 = vadd.f32 %v5026, %v5234
        %5236 = vmatmul.f32.gmra.mxu0 %v849
        %v5237 = vpop.f32.mrf.mxu0
        %v5238 = vadd.f32 %v5029, %v5237
        %5239 = vmatmul.f32.gmra.mxu0 %v852
        %v5240 = vpop.f32.mrf.mxu0
        %v5241 = vadd.f32 %v5032, %v5240
        %5242 = vmatmul.f32.gmra.mxu0 %v855
        %v5243 = vpop.f32.mrf.mxu0
        %v5244 = vadd.f32 %v5035, %v5243
        %5245 = vmatmul.f32.gmra.mxu0 %v858
        %v5246 = vpop.f32.mrf.mxu0
        %v5247 = vadd.f32 %v5038, %v5246
        %5248 = vmatmul.f32.gmra.mxu0 %v861
        %v5249 = vpop.f32.mrf.mxu0
        %v5250 = vadd.f32 %v5041, %v5249
        %5251 = vmatmul.f32.gmra.mxu0 %v864
        %v5252 = vpop.f32.mrf.mxu0
        %v5253 = vadd.f32 %v5044, %v5252
        %5254 = vmatmul.f32.gmra.mxu0 %v867
        %v5255 = vpop.f32.mrf.mxu0
        %v5256 = vadd.f32 %v5047, %v5255
        %5257 = vmatmul.f32.gmra.mxu0 %v870
        %v5258 = vpop.f32.mrf.mxu0
        %v5259 = vadd.f32 %v5050, %v5258
        %5260 = vmatmul.f32.gmra.mxu0 %v873
        %v5261 = vpop.f32.mrf.mxu0
        %v5262 = vadd.f32 %v5053, %v5261
        %5263 = vmatmul.f32.gmra.mxu0 %v876
        %v5264 = vpop.f32.mrf.mxu0
        %v5265 = vadd.f32 %v5056, %v5264
        %5266 = vmatmul.f32.gmra.mxu0 %v879
        %v5267 = vpop.f32.mrf.mxu0
        %v5268 = vadd.f32 %v5059, %v5267
        %5269 = vmatmul.f32.gmra.mxu0 %v882
        %v5270 = vpop.f32.mrf.mxu0
        %v5271 = vadd.f32 %v5062, %v5270
        %5272 = vmatmul.f32.gmra.mxu0 %v885
        %v5273 = vpop.f32.mrf.mxu0
        %v5274 = vadd.f32 %v5065, %v5273
        %5275 = vmatmul.f32.gmra.mxu0 %v888
        %v5276 = vpop.f32.mrf.mxu0
        %v5277 = vadd.f32 %v5068, %v5276
        %5278 = vdwg.mxu0
        %5279 = vmatpush.msra.mxu0 %v504
        %5280 = vmatpush.msra.mxu0 %v496
        %5281 = vmatpush.msra.mxu0 %v488
        %5282 = vmatpush.msra.mxu0 %v480
        %5283 = vmatpush.msra.mxu0 %v472
        %5284 = vmatpush.msra.mxu0 %v464
        %5285 = vmatpush.msra.mxu0 %v456
        %5286 = vmatpush.msra.mxu0 %v448
        %5287 = vmatpush.msra.mxu0 %v440
        %5288 = vmatpush.msra.mxu0 %v432
        %5289 = vmatpush.msra.mxu0 %v424
        %5290 = vmatpush.msra.mxu0 %v416
        %5291 = vmatpush.msra.mxu0 %v408
        %5292 = vmatpush.msra.mxu0 %v400
        %5293 = vmatpush.msra.mxu0 %v392
        %5294 = vmatpush.msra.mxu0 %v384
        %5295 = vmatmul.f32.gmra.mxu0 %v185
        %v5296 = vpop.f32.mrf.mxu0
        %v5297 = vadd.f32 0.0, %v5296
        %5298 = vmatmul.f32.gmra.mxu0 %v188
        %v5299 = vpop.f32.mrf.mxu0
        %v5300 = vadd.f32 0.0, %v5299
        %5301 = vmatmul.f32.gmra.mxu0 %v191
        %v5302 = vpop.f32.mrf.mxu0
        %v5303 = vadd.f32 0.0, %v5302
        %5304 = vmatmul.f32.gmra.mxu0 %v194
        %v5305 = vpop.f32.mrf.mxu0
        %v5306 = vadd.f32 0.0, %v5305
        %5307 = vmatmul.f32.gmra.mxu0 %v197
        %v5308 = vpop.f32.mrf.mxu0
        %v5309 = vadd.f32 0.0, %v5308
        %5310 = vmatmul.f32.gmra.mxu0 %v200
        %v5311 = vpop.f32.mrf.mxu0
        %v5312 = vadd.f32 0.0, %v5311
        %5313 = vmatmul.f32.gmra.mxu0 %v203
        %v5314 = vpop.f32.mrf.mxu0
        %v5315 = vadd.f32 0.0, %v5314
        %5316 = vmatmul.f32.gmra.mxu0 %v206
        %v5317 = vpop.f32.mrf.mxu0
        %v5318 = vadd.f32 0.0, %v5317
        %5319 = vmatmul.f32.gmra.mxu0 %v209
        %v5320 = vpop.f32.mrf.mxu0
        %v5321 = vadd.f32 0.0, %v5320
        %5322 = vmatmul.f32.gmra.mxu0 %v212
        %v5323 = vpop.f32.mrf.mxu0
        %v5324 = vadd.f32 0.0, %v5323
        %5325 = vmatmul.f32.gmra.mxu0 %v215
        %v5326 = vpop.f32.mrf.mxu0
        %v5327 = vadd.f32 0.0, %v5326
        %5328 = vmatmul.f32.gmra.mxu0 %v218
        %v5329 = vpop.f32.mrf.mxu0
        %v5330 = vadd.f32 0.0, %v5329
        %5331 = vmatmul.f32.gmra.mxu0 %v221
        %v5332 = vpop.f32.mrf.mxu0
        %v5333 = vadd.f32 0.0, %v5332
        %5334 = vmatmul.f32.gmra.mxu0 %v224
        %v5335 = vpop.f32.mrf.mxu0
        %v5336 = vadd.f32 0.0, %v5335
        %5337 = vmatmul.f32.gmra.mxu0 %v227
        %v5338 = vpop.f32.mrf.mxu0
        %v5339 = vadd.f32 0.0, %v5338
        %5340 = vmatmul.f32.gmra.mxu0 %v230
        %v5341 = vpop.f32.mrf.mxu0
        %v5342 = vadd.f32 0.0, %v5341
        %5343 = vmatmul.f32.gmra.mxu0 %v233
        %v5344 = vpop.f32.mrf.mxu0
        %v5345 = vadd.f32 0.0, %v5344
        %5346 = vmatmul.f32.gmra.mxu0 %v236
        %v5347 = vpop.f32.mrf.mxu0
        %v5348 = vadd.f32 0.0, %v5347
        %5349 = vmatmul.f32.gmra.mxu0 %v239
        %v5350 = vpop.f32.mrf.mxu0
        %v5351 = vadd.f32 0.0, %v5350
        %5352 = vmatmul.f32.gmra.mxu0 %v242
        %v5353 = vpop.f32.mrf.mxu0
        %v5354 = vadd.f32 0.0, %v5353
        %5355 = vmatmul.f32.gmra.mxu0 %v245
        %v5356 = vpop.f32.mrf.mxu0
        %v5357 = vadd.f32 0.0, %v5356
        %5358 = vmatmul.f32.gmra.mxu0 %v248
        %v5359 = vpop.f32.mrf.mxu0
        %v5360 = vadd.f32 0.0, %v5359
        %5361 = vmatmul.f32.gmra.mxu0 %v251
        %v5362 = vpop.f32.mrf.mxu0
        %v5363 = vadd.f32 0.0, %v5362
        %5364 = vmatmul.f32.gmra.mxu0 %v254
        %v5365 = vpop.f32.mrf.mxu0
        %v5366 = vadd.f32 0.0, %v5365
        %5367 = vmatmul.f32.gmra.mxu0 %v257
        %v5368 = vpop.f32.mrf.mxu0
        %v5369 = vadd.f32 0.0, %v5368
        %5370 = vmatmul.f32.gmra.mxu0 %v260
        %v5371 = vpop.f32.mrf.mxu0
        %v5372 = vadd.f32 0.0, %v5371
        %5373 = vmatmul.f32.gmra.mxu0 %v263
        %v5374 = vpop.f32.mrf.mxu0
        %v5375 = vadd.f32 0.0, %v5374
        %5376 = vmatmul.f32.gmra.mxu0 %v266
        %v5377 = vpop.f32.mrf.mxu0
        %v5378 = vadd.f32 0.0, %v5377
        %5379 = vmatmul.f32.gmra.mxu0 %v269
        %v5380 = vpop.f32.mrf.mxu0
        %v5381 = vadd.f32 0.0, %v5380
        %5382 = vmatmul.f32.gmra.mxu0 %v272
        %v5383 = vpop.f32.mrf.mxu0
        %v5384 = vadd.f32 0.0, %v5383
        %5385 = vmatmul.f32.gmra.mxu0 %v275
        %v5386 = vpop.f32.mrf.mxu0
        %v5387 = vadd.f32 0.0, %v5386
        %5388 = vmatmul.f32.gmra.mxu0 %v278
        %v5389 = vpop.f32.mrf.mxu0
        %v5390 = vadd.f32 0.0, %v5389
        %5391 = vmatmul.f32.gmra.mxu0 %v281
        %v5392 = vpop.f32.mrf.mxu0
        %v5393 = vadd.f32 0.0, %v5392
        %5394 = vmatmul.f32.gmra.mxu0 %v284
        %v5395 = vpop.f32.mrf.mxu0
        %v5396 = vadd.f32 0.0, %v5395
        %5397 = vmatmul.f32.gmra.mxu0 %v287
        %v5398 = vpop.f32.mrf.mxu0
        %v5399 = vadd.f32 0.0, %v5398
        %5400 = vmatmul.f32.gmra.mxu0 %v290
        %v5401 = vpop.f32.mrf.mxu0
        %v5402 = vadd.f32 0.0, %v5401
        %5403 = vmatmul.f32.gmra.mxu0 %v293
        %v5404 = vpop.f32.mrf.mxu0
        %v5405 = vadd.f32 0.0, %v5404
        %5406 = vmatmul.f32.gmra.mxu0 %v296
        %v5407 = vpop.f32.mrf.mxu0
        %v5408 = vadd.f32 0.0, %v5407
        %5409 = vmatmul.f32.gmra.mxu0 %v299
        %v5410 = vpop.f32.mrf.mxu0
        %v5411 = vadd.f32 0.0, %v5410
        %5412 = vmatmul.f32.gmra.mxu0 %v302
        %v5413 = vpop.f32.mrf.mxu0
        %v5414 = vadd.f32 0.0, %v5413
        %5415 = vmatmul.f32.gmra.mxu0 %v305
        %v5416 = vpop.f32.mrf.mxu0
        %v5417 = vadd.f32 0.0, %v5416
        %5418 = vmatmul.f32.gmra.mxu0 %v308
        %v5419 = vpop.f32.mrf.mxu0
        %v5420 = vadd.f32 0.0, %v5419
        %5421 = vmatmul.f32.gmra.mxu0 %v311
        %v5422 = vpop.f32.mrf.mxu0
        %v5423 = vadd.f32 0.0, %v5422
        %5424 = vmatmul.f32.gmra.mxu0 %v314
        %v5425 = vpop.f32.mrf.mxu0
        %v5426 = vadd.f32 0.0, %v5425
        %5427 = vmatmul.f32.gmra.mxu0 %v317
        %v5428 = vpop.f32.mrf.mxu0
        %v5429 = vadd.f32 0.0, %v5428
        %5430 = vmatmul.f32.gmra.mxu0 %v320
        %v5431 = vpop.f32.mrf.mxu0
        %v5432 = vadd.f32 0.0, %v5431
        %5433 = vmatmul.f32.gmra.mxu0 %v323
        %v5434 = vpop.f32.mrf.mxu0
        %v5435 = vadd.f32 0.0, %v5434
        %5436 = vmatmul.f32.gmra.mxu0 %v326
        %v5437 = vpop.f32.mrf.mxu0
        %v5438 = vadd.f32 0.0, %v5437
        %5439 = vmatmul.f32.gmra.mxu0 %v329
        %v5440 = vpop.f32.mrf.mxu0
        %v5441 = vadd.f32 0.0, %v5440
        %5442 = vmatmul.f32.gmra.mxu0 %v332
        %v5443 = vpop.f32.mrf.mxu0
        %v5444 = vadd.f32 0.0, %v5443
        %5445 = vmatmul.f32.gmra.mxu0 %v335
        %v5446 = vpop.f32.mrf.mxu0
        %v5447 = vadd.f32 0.0, %v5446
        %5448 = vmatmul.f32.gmra.mxu0 %v338
        %v5449 = vpop.f32.mrf.mxu0
        %v5450 = vadd.f32 0.0, %v5449
        %5451 = vmatmul.f32.gmra.mxu0 %v341
        %v5452 = vpop.f32.mrf.mxu0
        %v5453 = vadd.f32 0.0, %v5452
        %5454 = vmatmul.f32.gmra.mxu0 %v344
        %v5455 = vpop.f32.mrf.mxu0
        %v5456 = vadd.f32 0.0, %v5455
        %5457 = vmatmul.f32.gmra.mxu0 %v347
        %v5458 = vpop.f32.mrf.mxu0
        %v5459 = vadd.f32 0.0, %v5458
        %5460 = vmatmul.f32.gmra.mxu0 %v350
        %v5461 = vpop.f32.mrf.mxu0
        %v5462 = vadd.f32 0.0, %v5461
        %5463 = vmatmul.f32.gmra.mxu0 %v353
        %v5464 = vpop.f32.mrf.mxu0
        %v5465 = vadd.f32 0.0, %v5464
        %5466 = vmatmul.f32.gmra.mxu0 %v356
        %v5467 = vpop.f32.mrf.mxu0
        %v5468 = vadd.f32 0.0, %v5467
        %5469 = vmatmul.f32.gmra.mxu0 %v359
        %v5470 = vpop.f32.mrf.mxu0
        %v5471 = vadd.f32 0.0, %v5470
        %5472 = vmatmul.f32.gmra.mxu0 %v362
        %v5473 = vpop.f32.mrf.mxu0
        %v5474 = vadd.f32 0.0, %v5473
        %5475 = vmatmul.f32.gmra.mxu0 %v365
        %v5476 = vpop.f32.mrf.mxu0
        %v5477 = vadd.f32 0.0, %v5476
        %5478 = vmatmul.f32.gmra.mxu0 %v368
        %v5479 = vpop.f32.mrf.mxu0
        %v5480 = vadd.f32 0.0, %v5479
        %5481 = vmatmul.f32.gmra.mxu0 %v371
        %v5482 = vpop.f32.mrf.mxu0
        %v5483 = vadd.f32 0.0, %v5482
        %5484 = vmatmul.f32.gmra.mxu0 %v374
        %v5485 = vpop.f32.mrf.mxu0
        %v5486 = vadd.f32 0.0, %v5485
        %5487 = vdwg.mxu0
        %5488 = vmatpush.msra.mxu0 %v632
        %5489 = vmatpush.msra.mxu0 %v624
        %5490 = vmatpush.msra.mxu0 %v616
        %5491 = vmatpush.msra.mxu0 %v608
        %5492 = vmatpush.msra.mxu0 %v600
        %5493 = vmatpush.msra.mxu0 %v592
        %5494 = vmatpush.msra.mxu0 %v584
        %5495 = vmatpush.msra.mxu0 %v576
        %5496 = vmatpush.msra.mxu0 %v568
        %5497 = vmatpush.msra.mxu0 %v560
        %5498 = vmatpush.msra.mxu0 %v552
        %5499 = vmatpush.msra.mxu0 %v544
        %5500 = vmatpush.msra.mxu0 %v536
        %5501 = vmatpush.msra.mxu0 %v528
        %5502 = vmatpush.msra.mxu0 %v520
        %5503 = vmatpush.msra.mxu0 %v512
        %5504 = vmatmul.f32.gmra.mxu0 %v186
        %v5505 = vpop.f32.mrf.mxu0
        %v5506 = vadd.f32 %v5297, %v5505
        %5507 = vmatmul.f32.gmra.mxu0 %v189
        %v5508 = vpop.f32.mrf.mxu0
        %v5509 = vadd.f32 %v5300, %v5508
        %5510 = vmatmul.f32.gmra.mxu0 %v192
        %v5511 = vpop.f32.mrf.mxu0
        %v5512 = vadd.f32 %v5303, %v5511
        %5513 = vmatmul.f32.gmra.mxu0 %v195
        %v5514 = vpop.f32.mrf.mxu0
        %v5515 = vadd.f32 %v5306, %v5514
        %5516 = vmatmul.f32.gmra.mxu0 %v198
        %v5517 = vpop.f32.mrf.mxu0
        %v5518 = vadd.f32 %v5309, %v5517
        %5519 = vmatmul.f32.gmra.mxu0 %v201
        %v5520 = vpop.f32.mrf.mxu0
        %v5521 = vadd.f32 %v5312, %v5520
        %5522 = vmatmul.f32.gmra.mxu0 %v204
        %v5523 = vpop.f32.mrf.mxu0
        %v5524 = vadd.f32 %v5315, %v5523
        %5525 = vmatmul.f32.gmra.mxu0 %v207
        %v5526 = vpop.f32.mrf.mxu0
        %v5527 = vadd.f32 %v5318, %v5526
        %5528 = vmatmul.f32.gmra.mxu0 %v210
        %v5529 = vpop.f32.mrf.mxu0
        %v5530 = vadd.f32 %v5321, %v5529
        %5531 = vmatmul.f32.gmra.mxu0 %v213
        %v5532 = vpop.f32.mrf.mxu0
        %v5533 = vadd.f32 %v5324, %v5532
        %5534 = vmatmul.f32.gmra.mxu0 %v216
        %v5535 = vpop.f32.mrf.mxu0
        %v5536 = vadd.f32 %v5327, %v5535
        %5537 = vmatmul.f32.gmra.mxu0 %v219
        %v5538 = vpop.f32.mrf.mxu0
        %v5539 = vadd.f32 %v5330, %v5538
        %5540 = vmatmul.f32.gmra.mxu0 %v222
        %v5541 = vpop.f32.mrf.mxu0
        %v5542 = vadd.f32 %v5333, %v5541
        %5543 = vmatmul.f32.gmra.mxu0 %v225
        %v5544 = vpop.f32.mrf.mxu0
        %v5545 = vadd.f32 %v5336, %v5544
        %5546 = vmatmul.f32.gmra.mxu0 %v228
        %v5547 = vpop.f32.mrf.mxu0
        %v5548 = vadd.f32 %v5339, %v5547
        %5549 = vmatmul.f32.gmra.mxu0 %v231
        %v5550 = vpop.f32.mrf.mxu0
        %v5551 = vadd.f32 %v5342, %v5550
        %5552 = vmatmul.f32.gmra.mxu0 %v234
        %v5553 = vpop.f32.mrf.mxu0
        %v5554 = vadd.f32 %v5345, %v5553
        %5555 = vmatmul.f32.gmra.mxu0 %v237
        %v5556 = vpop.f32.mrf.mxu0
        %v5557 = vadd.f32 %v5348, %v5556
        %5558 = vmatmul.f32.gmra.mxu0 %v240
        %v5559 = vpop.f32.mrf.mxu0
        %v5560 = vadd.f32 %v5351, %v5559
        %5561 = vmatmul.f32.gmra.mxu0 %v243
        %v5562 = vpop.f32.mrf.mxu0
        %v5563 = vadd.f32 %v5354, %v5562
        %5564 = vmatmul.f32.gmra.mxu0 %v246
        %v5565 = vpop.f32.mrf.mxu0
        %v5566 = vadd.f32 %v5357, %v5565
        %5567 = vmatmul.f32.gmra.mxu0 %v249
        %v5568 = vpop.f32.mrf.mxu0
        %v5569 = vadd.f32 %v5360, %v5568
        %5570 = vmatmul.f32.gmra.mxu0 %v252
        %v5571 = vpop.f32.mrf.mxu0
        %v5572 = vadd.f32 %v5363, %v5571
        %5573 = vmatmul.f32.gmra.mxu0 %v255
        %v5574 = vpop.f32.mrf.mxu0
        %v5575 = vadd.f32 %v5366, %v5574
        %5576 = vmatmul.f32.gmra.mxu0 %v258
        %v5577 = vpop.f32.mrf.mxu0
        %v5578 = vadd.f32 %v5369, %v5577
        %5579 = vmatmul.f32.gmra.mxu0 %v261
        %v5580 = vpop.f32.mrf.mxu0
        %v5581 = vadd.f32 %v5372, %v5580
        %5582 = vmatmul.f32.gmra.mxu0 %v264
        %v5583 = vpop.f32.mrf.mxu0
        %v5584 = vadd.f32 %v5375, %v5583
        %5585 = vmatmul.f32.gmra.mxu0 %v267
        %v5586 = vpop.f32.mrf.mxu0
        %v5587 = vadd.f32 %v5378, %v5586
        %5588 = vmatmul.f32.gmra.mxu0 %v270
        %v5589 = vpop.f32.mrf.mxu0
        %v5590 = vadd.f32 %v5381, %v5589
        %5591 = vmatmul.f32.gmra.mxu0 %v273
        %v5592 = vpop.f32.mrf.mxu0
        %v5593 = vadd.f32 %v5384, %v5592
        %5594 = vmatmul.f32.gmra.mxu0 %v276
        %v5595 = vpop.f32.mrf.mxu0
        %v5596 = vadd.f32 %v5387, %v5595
        %5597 = vmatmul.f32.gmra.mxu0 %v279
        %v5598 = vpop.f32.mrf.mxu0
        %v5599 = vadd.f32 %v5390, %v5598
        %5600 = vmatmul.f32.gmra.mxu0 %v282
        %v5601 = vpop.f32.mrf.mxu0
        %v5602 = vadd.f32 %v5393, %v5601
        %5603 = vmatmul.f32.gmra.mxu0 %v285
        %v5604 = vpop.f32.mrf.mxu0
        %v5605 = vadd.f32 %v5396, %v5604
        %5606 = vmatmul.f32.gmra.mxu0 %v288
        %v5607 = vpop.f32.mrf.mxu0
        %v5608 = vadd.f32 %v5399, %v5607
        %5609 = vmatmul.f32.gmra.mxu0 %v291
        %v5610 = vpop.f32.mrf.mxu0
        %v5611 = vadd.f32 %v5402, %v5610
        %5612 = vmatmul.f32.gmra.mxu0 %v294
        %v5613 = vpop.f32.mrf.mxu0
        %v5614 = vadd.f32 %v5405, %v5613
        %5615 = vmatmul.f32.gmra.mxu0 %v297
        %v5616 = vpop.f32.mrf.mxu0
        %v5617 = vadd.f32 %v5408, %v5616
        %5618 = vmatmul.f32.gmra.mxu0 %v300
        %v5619 = vpop.f32.mrf.mxu0
        %v5620 = vadd.f32 %v5411, %v5619
        %5621 = vmatmul.f32.gmra.mxu0 %v303
        %v5622 = vpop.f32.mrf.mxu0
        %v5623 = vadd.f32 %v5414, %v5622
        %5624 = vmatmul.f32.gmra.mxu0 %v306
        %v5625 = vpop.f32.mrf.mxu0
        %v5626 = vadd.f32 %v5417, %v5625
        %5627 = vmatmul.f32.gmra.mxu0 %v309
        %v5628 = vpop.f32.mrf.mxu0
        %v5629 = vadd.f32 %v5420, %v5628
        %5630 = vmatmul.f32.gmra.mxu0 %v312
        %v5631 = vpop.f32.mrf.mxu0
        %v5632 = vadd.f32 %v5423, %v5631
        %5633 = vmatmul.f32.gmra.mxu0 %v315
        %v5634 = vpop.f32.mrf.mxu0
        %v5635 = vadd.f32 %v5426, %v5634
        %5636 = vmatmul.f32.gmra.mxu0 %v318
        %v5637 = vpop.f32.mrf.mxu0
        %v5638 = vadd.f32 %v5429, %v5637
        %5639 = vmatmul.f32.gmra.mxu0 %v321
        %v5640 = vpop.f32.mrf.mxu0
        %v5641 = vadd.f32 %v5432, %v5640
        %5642 = vmatmul.f32.gmra.mxu0 %v324
        %v5643 = vpop.f32.mrf.mxu0
        %v5644 = vadd.f32 %v5435, %v5643
        %5645 = vmatmul.f32.gmra.mxu0 %v327
        %v5646 = vpop.f32.mrf.mxu0
        %v5647 = vadd.f32 %v5438, %v5646
        %5648 = vmatmul.f32.gmra.mxu0 %v330
        %v5649 = vpop.f32.mrf.mxu0
        %v5650 = vadd.f32 %v5441, %v5649
        %5651 = vmatmul.f32.gmra.mxu0 %v333
        %v5652 = vpop.f32.mrf.mxu0
        %v5653 = vadd.f32 %v5444, %v5652
        %5654 = vmatmul.f32.gmra.mxu0 %v336
        %v5655 = vpop.f32.mrf.mxu0
        %v5656 = vadd.f32 %v5447, %v5655
        %5657 = vmatmul.f32.gmra.mxu0 %v339
        %v5658 = vpop.f32.mrf.mxu0
        %v5659 = vadd.f32 %v5450, %v5658
        %5660 = vmatmul.f32.gmra.mxu0 %v342
        %v5661 = vpop.f32.mrf.mxu0
        %v5662 = vadd.f32 %v5453, %v5661
        %5663 = vmatmul.f32.gmra.mxu0 %v345
        %v5664 = vpop.f32.mrf.mxu0
        %v5665 = vadd.f32 %v5456, %v5664
        %5666 = vmatmul.f32.gmra.mxu0 %v348
        %v5667 = vpop.f32.mrf.mxu0
        %v5668 = vadd.f32 %v5459, %v5667
        %5669 = vmatmul.f32.gmra.mxu0 %v351
        %v5670 = vpop.f32.mrf.mxu0
        %v5671 = vadd.f32 %v5462, %v5670
        %5672 = vmatmul.f32.gmra.mxu0 %v354
        %v5673 = vpop.f32.mrf.mxu0
        %v5674 = vadd.f32 %v5465, %v5673
        %5675 = vmatmul.f32.gmra.mxu0 %v357
        %v5676 = vpop.f32.mrf.mxu0
        %v5677 = vadd.f32 %v5468, %v5676
        %5678 = vmatmul.f32.gmra.mxu0 %v360
        %v5679 = vpop.f32.mrf.mxu0
        %v5680 = vadd.f32 %v5471, %v5679
        %5681 = vmatmul.f32.gmra.mxu0 %v363
        %v5682 = vpop.f32.mrf.mxu0
        %v5683 = vadd.f32 %v5474, %v5682
        %5684 = vmatmul.f32.gmra.mxu0 %v366
        %v5685 = vpop.f32.mrf.mxu0
        %v5686 = vadd.f32 %v5477, %v5685
        %5687 = vmatmul.f32.gmra.mxu0 %v369
        %v5688 = vpop.f32.mrf.mxu0
        %v5689 = vadd.f32 %v5480, %v5688
        %5690 = vmatmul.f32.gmra.mxu0 %v372
        %v5691 = vpop.f32.mrf.mxu0
        %v5692 = vadd.f32 %v5483, %v5691
        %5693 = vmatmul.f32.gmra.mxu0 %v375
        %v5694 = vpop.f32.mrf.mxu0
        %v5695 = vadd.f32 %v5486, %v5694
        %5696 = vdwg.mxu0
        %5697 = vmatpush.msra.mxu0 0.0
        %5698 = vmatpush.msra.mxu0 0.0
        %5699 = vmatpush.msra.mxu0 0.0
        %5700 = vmatpush.msra.mxu0 0.0
        %5701 = vmatpush.msra.mxu0 0.0
        %5702 = vmatpush.msra.mxu0 0.0
        %5703 = vmatpush.msra.mxu0 0.0
        %5704 = vmatpush.msra.mxu0 0.0
        %5705 = vmatpush.msra.mxu0 %v696
        %5706 = vmatpush.msra.mxu0 %v688
        %5707 = vmatpush.msra.mxu0 %v680
        %5708 = vmatpush.msra.mxu0 %v672
        %5709 = vmatpush.msra.mxu0 %v664
        %5710 = vmatpush.msra.mxu0 %v656
        %5711 = vmatpush.msra.mxu0 %v648
        %5712 = vmatpush.msra.mxu0 %v640
        %5713 = vmatmul.f32.gmra.mxu0 %v699
        %v5714 = vpop.f32.mrf.mxu0
        %v5715 = vadd.f32 %v5506, %v5714
        %5716 = vmatmul.f32.gmra.mxu0 %v702
        %v5717 = vpop.f32.mrf.mxu0
        %v5718 = vadd.f32 %v5509, %v5717
        %5719 = vmatmul.f32.gmra.mxu0 %v705
        %v5720 = vpop.f32.mrf.mxu0
        %v5721 = vadd.f32 %v5512, %v5720
        %5722 = vmatmul.f32.gmra.mxu0 %v708
        %v5723 = vpop.f32.mrf.mxu0
        %v5724 = vadd.f32 %v5515, %v5723
        %5725 = vmatmul.f32.gmra.mxu0 %v711
        %v5726 = vpop.f32.mrf.mxu0
        %v5727 = vadd.f32 %v5518, %v5726
        %5728 = vmatmul.f32.gmra.mxu0 %v714
        %v5729 = vpop.f32.mrf.mxu0
        %v5730 = vadd.f32 %v5521, %v5729
        %5731 = vmatmul.f32.gmra.mxu0 %v717
        %v5732 = vpop.f32.mrf.mxu0
        %v5733 = vadd.f32 %v5524, %v5732
        %5734 = vmatmul.f32.gmra.mxu0 %v720
        %v5735 = vpop.f32.mrf.mxu0
        %v5736 = vadd.f32 %v5527, %v5735
        %5737 = vmatmul.f32.gmra.mxu0 %v723
        %v5738 = vpop.f32.mrf.mxu0
        %v5739 = vadd.f32 %v5530, %v5738
        %5740 = vmatmul.f32.gmra.mxu0 %v726
        %v5741 = vpop.f32.mrf.mxu0
        %v5742 = vadd.f32 %v5533, %v5741
        %5743 = vmatmul.f32.gmra.mxu0 %v729
        %v5744 = vpop.f32.mrf.mxu0
        %v5745 = vadd.f32 %v5536, %v5744
        %5746 = vmatmul.f32.gmra.mxu0 %v732
        %v5747 = vpop.f32.mrf.mxu0
        %v5748 = vadd.f32 %v5539, %v5747
        %5749 = vmatmul.f32.gmra.mxu0 %v735
        %v5750 = vpop.f32.mrf.mxu0
        %v5751 = vadd.f32 %v5542, %v5750
        %5752 = vmatmul.f32.gmra.mxu0 %v738
        %v5753 = vpop.f32.mrf.mxu0
        %v5754 = vadd.f32 %v5545, %v5753
        %5755 = vmatmul.f32.gmra.mxu0 %v741
        %v5756 = vpop.f32.mrf.mxu0
        %v5757 = vadd.f32 %v5548, %v5756
        %5758 = vmatmul.f32.gmra.mxu0 %v744
        %v5759 = vpop.f32.mrf.mxu0
        %v5760 = vadd.f32 %v5551, %v5759
        %5761 = vmatmul.f32.gmra.mxu0 %v747
        %v5762 = vpop.f32.mrf.mxu0
        %v5763 = vadd.f32 %v5554, %v5762
        %5764 = vmatmul.f32.gmra.mxu0 %v750
        %v5765 = vpop.f32.mrf.mxu0
        %v5766 = vadd.f32 %v5557, %v5765
        %5767 = vmatmul.f32.gmra.mxu0 %v753
        %v5768 = vpop.f32.mrf.mxu0
        %v5769 = vadd.f32 %v5560, %v5768
        %5770 = vmatmul.f32.gmra.mxu0 %v756
        %v5771 = vpop.f32.mrf.mxu0
        %v5772 = vadd.f32 %v5563, %v5771
        %5773 = vmatmul.f32.gmra.mxu0 %v759
        %v5774 = vpop.f32.mrf.mxu0
        %v5775 = vadd.f32 %v5566, %v5774
        %5776 = vmatmul.f32.gmra.mxu0 %v762
        %v5777 = vpop.f32.mrf.mxu0
        %v5778 = vadd.f32 %v5569, %v5777
        %5779 = vmatmul.f32.gmra.mxu0 %v765
        %v5780 = vpop.f32.mrf.mxu0
        %v5781 = vadd.f32 %v5572, %v5780
        %5782 = vmatmul.f32.gmra.mxu0 %v768
        %v5783 = vpop.f32.mrf.mxu0
        %v5784 = vadd.f32 %v5575, %v5783
        %5785 = vmatmul.f32.gmra.mxu0 %v771
        %v5786 = vpop.f32.mrf.mxu0
        %v5787 = vadd.f32 %v5578, %v5786
        %5788 = vmatmul.f32.gmra.mxu0 %v774
        %v5789 = vpop.f32.mrf.mxu0
        %v5790 = vadd.f32 %v5581, %v5789
        %5791 = vmatmul.f32.gmra.mxu0 %v777
        %v5792 = vpop.f32.mrf.mxu0
        %v5793 = vadd.f32 %v5584, %v5792
        %5794 = vmatmul.f32.gmra.mxu0 %v780
        %v5795 = vpop.f32.mrf.mxu0
        %v5796 = vadd.f32 %v5587, %v5795
        %5797 = vmatmul.f32.gmra.mxu0 %v783
        %v5798 = vpop.f32.mrf.mxu0
        %v5799 = vadd.f32 %v5590, %v5798
        %5800 = vmatmul.f32.gmra.mxu0 %v786
        %v5801 = vpop.f32.mrf.mxu0
        %v5802 = vadd.f32 %v5593, %v5801
        %5803 = vmatmul.f32.gmra.mxu0 %v789
        %v5804 = vpop.f32.mrf.mxu0
        %v5805 = vadd.f32 %v5596, %v5804
        %5806 = vmatmul.f32.gmra.mxu0 %v792
        %v5807 = vpop.f32.mrf.mxu0
        %v5808 = vadd.f32 %v5599, %v5807
        %5809 = vmatmul.f32.gmra.mxu0 %v795
        %v5810 = vpop.f32.mrf.mxu0
        %v5811 = vadd.f32 %v5602, %v5810
        %5812 = vmatmul.f32.gmra.mxu0 %v798
        %v5813 = vpop.f32.mrf.mxu0
        %v5814 = vadd.f32 %v5605, %v5813
        %5815 = vmatmul.f32.gmra.mxu0 %v801
        %v5816 = vpop.f32.mrf.mxu0
        %v5817 = vadd.f32 %v5608, %v5816
        %5818 = vmatmul.f32.gmra.mxu0 %v804
        %v5819 = vpop.f32.mrf.mxu0
        %v5820 = vadd.f32 %v5611, %v5819
        %5821 = vmatmul.f32.gmra.mxu0 %v807
        %v5822 = vpop.f32.mrf.mxu0
        %v5823 = vadd.f32 %v5614, %v5822
        %5824 = vmatmul.f32.gmra.mxu0 %v810
        %v5825 = vpop.f32.mrf.mxu0
        %v5826 = vadd.f32 %v5617, %v5825
        %5827 = vmatmul.f32.gmra.mxu0 %v813
        %v5828 = vpop.f32.mrf.mxu0
        %v5829 = vadd.f32 %v5620, %v5828
        %5830 = vmatmul.f32.gmra.mxu0 %v816
        %v5831 = vpop.f32.mrf.mxu0
        %v5832 = vadd.f32 %v5623, %v5831
        %5833 = vmatmul.f32.gmra.mxu0 %v819
        %v5834 = vpop.f32.mrf.mxu0
        %v5835 = vadd.f32 %v5626, %v5834
        %5836 = vmatmul.f32.gmra.mxu0 %v822
        %v5837 = vpop.f32.mrf.mxu0
        %v5838 = vadd.f32 %v5629, %v5837
        %5839 = vmatmul.f32.gmra.mxu0 %v825
        %v5840 = vpop.f32.mrf.mxu0
        %v5841 = vadd.f32 %v5632, %v5840
        %5842 = vmatmul.f32.gmra.mxu0 %v828
        %v5843 = vpop.f32.mrf.mxu0
        %v5844 = vadd.f32 %v5635, %v5843
        %5845 = vmatmul.f32.gmra.mxu0 %v831
        %v5846 = vpop.f32.mrf.mxu0
        %v5847 = vadd.f32 %v5638, %v5846
        %5848 = vmatmul.f32.gmra.mxu0 %v834
        %v5849 = vpop.f32.mrf.mxu0
        %v5850 = vadd.f32 %v5641, %v5849
        %5851 = vmatmul.f32.gmra.mxu0 %v837
        %v5852 = vpop.f32.mrf.mxu0
        %v5853 = vadd.f32 %v5644, %v5852
        %5854 = vmatmul.f32.gmra.mxu0 %v840
        %v5855 = vpop.f32.mrf.mxu0
        %v5856 = vadd.f32 %v5647, %v5855
        %5857 = vmatmul.f32.gmra.mxu0 %v843
        %v5858 = vpop.f32.mrf.mxu0
        %v5859 = vadd.f32 %v5650, %v5858
        %5860 = vmatmul.f32.gmra.mxu0 %v846
        %v5861 = vpop.f32.mrf.mxu0
        %v5862 = vadd.f32 %v5653, %v5861
        %5863 = vmatmul.f32.gmra.mxu0 %v849
        %v5864 = vpop.f32.mrf.mxu0
        %v5865 = vadd.f32 %v5656, %v5864
        %5866 = vmatmul.f32.gmra.mxu0 %v852
        %v5867 = vpop.f32.mrf.mxu0
        %v5868 = vadd.f32 %v5659, %v5867
        %5869 = vmatmul.f32.gmra.mxu0 %v855
        %v5870 = vpop.f32.mrf.mxu0
        %v5871 = vadd.f32 %v5662, %v5870
        %5872 = vmatmul.f32.gmra.mxu0 %v858
        %v5873 = vpop.f32.mrf.mxu0
        %v5874 = vadd.f32 %v5665, %v5873
        %5875 = vmatmul.f32.gmra.mxu0 %v861
        %v5876 = vpop.f32.mrf.mxu0
        %v5877 = vadd.f32 %v5668, %v5876
        %5878 = vmatmul.f32.gmra.mxu0 %v864
        %v5879 = vpop.f32.mrf.mxu0
        %v5880 = vadd.f32 %v5671, %v5879
        %5881 = vmatmul.f32.gmra.mxu0 %v867
        %v5882 = vpop.f32.mrf.mxu0
        %v5883 = vadd.f32 %v5674, %v5882
        %5884 = vmatmul.f32.gmra.mxu0 %v870
        %v5885 = vpop.f32.mrf.mxu0
        %v5886 = vadd.f32 %v5677, %v5885
        %5887 = vmatmul.f32.gmra.mxu0 %v873
        %v5888 = vpop.f32.mrf.mxu0
        %v5889 = vadd.f32 %v5680, %v5888
        %5890 = vmatmul.f32.gmra.mxu0 %v876
        %v5891 = vpop.f32.mrf.mxu0
        %v5892 = vadd.f32 %v5683, %v5891
        %5893 = vmatmul.f32.gmra.mxu0 %v879
        %v5894 = vpop.f32.mrf.mxu0
        %v5895 = vadd.f32 %v5686, %v5894
        %5896 = vmatmul.f32.gmra.mxu0 %v882
        %v5897 = vpop.f32.mrf.mxu0
        %v5898 = vadd.f32 %v5689, %v5897
        %5899 = vmatmul.f32.gmra.mxu0 %v885
        %v5900 = vpop.f32.mrf.mxu0
        %v5901 = vadd.f32 %v5692, %v5900
        %5902 = vmatmul.f32.gmra.mxu0 %v888
        %v5903 = vpop.f32.mrf.mxu0
        %v5904 = vadd.f32 %v5695, %v5903
        %5905 = vdwg.mxu0
        %v5906 = vadd.f32 %v1326, %v1329
        %v5907 = vadd.f32 %v5906, %v1332
        %v5908 = vadd.f32 %v5907, %v1335
        %v5909 = vadd.f32 %v5908, %v1338
        %v5910 = vadd.f32 %v5909, %v1341
        %v5911 = vadd.f32 %v5910, %v1344
        %v5912 = vadd.f32 %v5911, %v1347
        %v5913 = vadd.f32 %v5912, %v1350
        %v5914 = vadd.f32 %v5913, %v1353
        %v5915 = vadd.f32 %v5914, %v1356
        %v5916 = vadd.f32 %v5915, %v1359
        %v5917 = vadd.f32 %v5916, %v1362
        %v5918 = vadd.f32 %v5917, %v1365
        %v5919 = vadd.f32 %v5918, %v1368
        %v5920 = vadd.f32 %v5919, %v1371
        %v5921 = vadd.f32 %v5920, %v1374
        %v5922 = vadd.f32 %v5921, %v1377
        %v5923 = vadd.f32 %v5922, %v1380
        %v5924 = vadd.f32 %v5923, %v1383
        %v5925 = vadd.f32 %v5924, %v1386
        %v5926 = vadd.f32 %v5925, %v1389
        %v5927 = vadd.f32 %v5926, %v1392
        %v5928 = vadd.f32 %v5927, %v1395
        %v5929 = vadd.f32 %v5928, %v1398
        %v5930 = vadd.f32 %v5929, %v1401
        %v5931 = vadd.f32 %v5930, %v1404
        %v5932 = vadd.f32 %v5931, %v1407
        %v5933 = vadd.f32 %v5932, %v1410
        %v5934 = vadd.f32 %v5933, %v1413
        %v5935 = vadd.f32 %v5934, %v1416
        %v5936 = vadd.f32 %v5935, %v1419
        %v5937 = vadd.f32 %v5936, %v1422
        %v5938 = vadd.f32 %v5937, %v1425
        %v5939 = vadd.f32 %v5938, %v1428
        %v5940 = vadd.f32 %v5939, %v1431
        %v5941 = vadd.f32 %v5940, %v1434
        %v5942 = vadd.f32 %v5941, %v1437
        %v5943 = vadd.f32 %v5942, %v1440
        %v5944 = vadd.f32 %v5943, %v1443
        %v5945 = vadd.f32 %v5944, %v1446
        %v5946 = vadd.f32 %v5945, %v1449
        %v5947 = vadd.f32 %v5946, %v1452
        %v5948 = vadd.f32 %v5947, %v1455
        %v5949 = vadd.f32 %v5948, %v1458
        %v5950 = vadd.f32 %v5949, %v1461
        %v5951 = vadd.f32 %v5950, %v1464
        %v5952 = vadd.f32 %v5951, %v1467
        %v5953 = vadd.f32 %v5952, %v1470
        %v5954 = vadd.f32 %v5953, %v1473
        %v5955 = vadd.f32 %v5954, %v1476
        %v5956 = vadd.f32 %v5955, %v1479
        %v5957 = vadd.f32 %v5956, %v1482
        %v5958 = vadd.f32 %v5957, %v1485
        %v5959 = vadd.f32 %v5958, %v1488
        %v5960 = vadd.f32 %v5959, %v1491
        %v5961 = vadd.f32 %v5960, %v1494
        %v5962 = vadd.f32 %v5961, %v1497
        %v5963 = vadd.f32 %v5962, %v1500
        %v5964 = vadd.f32 %v5963, %v1503
        %v5965 = vadd.f32 %v5964, %v1506
        %v5966 = vadd.f32 %v5965, %v1509
        %v5967 = vadd.f32 %v5966, %v1512
        %v5968 = vadd.f32 %v5967, %v1515
        %v5969 = vrot.slane %v5968, 4
        %v5970 = vadd.f32 %v5968, %v5969
        %v5971 = vrot.slane %v5970, 2
        %v5972 = vadd.f32 %v5970, %v5971
        %v5973 = vrot.slane %v5972, 1
        %v5974 = vadd.f32 %v5972, %v5973
        %v5975 = vadd.f32 %v1953, %v1956
        %v5976 = vadd.f32 %v5975, %v1959
        %v5977 = vadd.f32 %v5976, %v1962
        %v5978 = vadd.f32 %v5977, %v1965
        %v5979 = vadd.f32 %v5978, %v1968
        %v5980 = vadd.f32 %v5979, %v1971
        %v5981 = vadd.f32 %v5980, %v1974
        %v5982 = vadd.f32 %v5981, %v1977
        %v5983 = vadd.f32 %v5982, %v1980
        %v5984 = vadd.f32 %v5983, %v1983
        %v5985 = vadd.f32 %v5984, %v1986
        %v5986 = vadd.f32 %v5985, %v1989
        %v5987 = vadd.f32 %v5986, %v1992
        %v5988 = vadd.f32 %v5987, %v1995
        %v5989 = vadd.f32 %v5988, %v1998
        %v5990 = vadd.f32 %v5989, %v2001
        %v5991 = vadd.f32 %v5990, %v2004
        %v5992 = vadd.f32 %v5991, %v2007
        %v5993 = vadd.f32 %v5992, %v2010
        %v5994 = vadd.f32 %v5993, %v2013
        %v5995 = vadd.f32 %v5994, %v2016
        %v5996 = vadd.f32 %v5995, %v2019
        %v5997 = vadd.f32 %v5996, %v2022
        %v5998 = vadd.f32 %v5997, %v2025
        %v5999 = vadd.f32 %v5998, %v2028
        %v6000 = vadd.f32 %v5999, %v2031
        %v6001 = vadd.f32 %v6000, %v2034
        %v6002 = vadd.f32 %v6001, %v2037
        %v6003 = vadd.f32 %v6002, %v2040
        %v6004 = vadd.f32 %v6003, %v2043
        %v6005 = vadd.f32 %v6004, %v2046
        %v6006 = vadd.f32 %v6005, %v2049
        %v6007 = vadd.f32 %v6006, %v2052
        %v6008 = vadd.f32 %v6007, %v2055
        %v6009 = vadd.f32 %v6008, %v2058
        %v6010 = vadd.f32 %v6009, %v2061
        %v6011 = vadd.f32 %v6010, %v2064
        %v6012 = vadd.f32 %v6011, %v2067
        %v6013 = vadd.f32 %v6012, %v2070
        %v6014 = vadd.f32 %v6013, %v2073
        %v6015 = vadd.f32 %v6014, %v2076
        %v6016 = vadd.f32 %v6015, %v2079
        %v6017 = vadd.f32 %v6016, %v2082
        %v6018 = vadd.f32 %v6017, %v2085
        %v6019 = vadd.f32 %v6018, %v2088
        %v6020 = vadd.f32 %v6019, %v2091
        %v6021 = vadd.f32 %v6020, %v2094
        %v6022 = vadd.f32 %v6021, %v2097
        %v6023 = vadd.f32 %v6022, %v2100
        %v6024 = vadd.f32 %v6023, %v2103
        %v6025 = vadd.f32 %v6024, %v2106
        %v6026 = vadd.f32 %v6025, %v2109
        %v6027 = vadd.f32 %v6026, %v2112
        %v6028 = vadd.f32 %v6027, %v2115
        %v6029 = vadd.f32 %v6028, %v2118
        %v6030 = vadd.f32 %v6029, %v2121
        %v6031 = vadd.f32 %v6030, %v2124
        %v6032 = vadd.f32 %v6031, %v2127
        %v6033 = vadd.f32 %v6032, %v2130
        %v6034 = vadd.f32 %v6033, %v2133
        %v6035 = vadd.f32 %v6034, %v2136
        %v6036 = vadd.f32 %v6035, %v2139
        %v6037 = vadd.f32 %v6036, %v2142
        %v6038 = vrot.slane %v6037, 4
        %v6039 = vadd.f32 %v6037, %v6038
        %v6040 = vrot.slane %v6039, 2
        %v6041 = vadd.f32 %v6039, %v6040
        %v6042 = vrot.slane %v6041, 1
        %v6043 = vadd.f32 %v6041, %v6042
        %v6044 = vadd.f32 %v2580, %v2583
        %v6045 = vadd.f32 %v6044, %v2586
        %v6046 = vadd.f32 %v6045, %v2589
        %v6047 = vadd.f32 %v6046, %v2592
        %v6048 = vadd.f32 %v6047, %v2595
        %v6049 = vadd.f32 %v6048, %v2598
        %v6050 = vadd.f32 %v6049, %v2601
        %v6051 = vadd.f32 %v6050, %v2604
        %v6052 = vadd.f32 %v6051, %v2607
        %v6053 = vadd.f32 %v6052, %v2610
        %v6054 = vadd.f32 %v6053, %v2613
        %v6055 = vadd.f32 %v6054, %v2616
        %v6056 = vadd.f32 %v6055, %v2619
        %v6057 = vadd.f32 %v6056, %v2622
        %v6058 = vadd.f32 %v6057, %v2625
        %v6059 = vadd.f32 %v6058, %v2628
        %v6060 = vadd.f32 %v6059, %v2631
        %v6061 = vadd.f32 %v6060, %v2634
        %v6062 = vadd.f32 %v6061, %v2637
        %v6063 = vadd.f32 %v6062, %v2640
        %v6064 = vadd.f32 %v6063, %v2643
        %v6065 = vadd.f32 %v6064, %v2646
        %v6066 = vadd.f32 %v6065, %v2649
        %v6067 = vadd.f32 %v6066, %v2652
        %v6068 = vadd.f32 %v6067, %v2655
        %v6069 = vadd.f32 %v6068, %v2658
        %v6070 = vadd.f32 %v6069, %v2661
        %v6071 = vadd.f32 %v6070, %v2664
        %v6072 = vadd.f32 %v6071, %v2667
        %v6073 = vadd.f32 %v6072, %v2670
        %v6074 = vadd.f32 %v6073, %v2673
        %v6075 = vadd.f32 %v6074, %v2676
        %v6076 = vadd.f32 %v6075, %v2679
        %v6077 = vadd.f32 %v6076, %v2682
        %v6078 = vadd.f32 %v6077, %v2685
        %v6079 = vadd.f32 %v6078, %v2688
        %v6080 = vadd.f32 %v6079, %v2691
        %v6081 = vadd.f32 %v6080, %v2694
        %v6082 = vadd.f32 %v6081, %v2697
        %v6083 = vadd.f32 %v6082, %v2700
        %v6084 = vadd.f32 %v6083, %v2703
        %v6085 = vadd.f32 %v6084, %v2706
        %v6086 = vadd.f32 %v6085, %v2709
        %v6087 = vadd.f32 %v6086, %v2712
        %v6088 = vadd.f32 %v6087, %v2715
        %v6089 = vadd.f32 %v6088, %v2718
        %v6090 = vadd.f32 %v6089, %v2721
        %v6091 = vadd.f32 %v6090, %v2724
        %v6092 = vadd.f32 %v6091, %v2727
        %v6093 = vadd.f32 %v6092, %v2730
        %v6094 = vadd.f32 %v6093, %v2733
        %v6095 = vadd.f32 %v6094, %v2736
        %v6096 = vadd.f32 %v6095, %v2739
        %v6097 = vadd.f32 %v6096, %v2742
        %v6098 = vadd.f32 %v6097, %v2745
        %v6099 = vadd.f32 %v6098, %v2748
        %v6100 = vadd.f32 %v6099, %v2751
        %v6101 = vadd.f32 %v6100, %v2754
        %v6102 = vadd.f32 %v6101, %v2757
        %v6103 = vadd.f32 %v6102, %v2760
        %v6104 = vadd.f32 %v6103, %v2763
        %v6105 = vadd.f32 %v6104, %v2766
        %v6106 = vadd.f32 %v6105, %v2769
        %v6107 = vrot.slane %v6106, 4
        %v6108 = vadd.f32 %v6106, %v6107
        %v6109 = vrot.slane %v6108, 2
        %v6110 = vadd.f32 %v6108, %v6109
        %v6111 = vrot.slane %v6110, 1
        %v6112 = vadd.f32 %v6110, %v6111
        %v6113 = vadd.f32 %v3207, %v3210
        %v6114 = vadd.f32 %v6113, %v3213
        %v6115 = vadd.f32 %v6114, %v3216
        %v6116 = vadd.f32 %v6115, %v3219
        %v6117 = vadd.f32 %v6116, %v3222
        %v6118 = vadd.f32 %v6117, %v3225
        %v6119 = vadd.f32 %v6118, %v3228
        %v6120 = vadd.f32 %v6119, %v3231
        %v6121 = vadd.f32 %v6120, %v3234
        %v6122 = vadd.f32 %v6121, %v3237
        %v6123 = vadd.f32 %v6122, %v3240
        %v6124 = vadd.f32 %v6123, %v3243
        %v6125 = vadd.f32 %v6124, %v3246
        %v6126 = vadd.f32 %v6125, %v3249
        %v6127 = vadd.f32 %v6126, %v3252
        %v6128 = vadd.f32 %v6127, %v3255
        %v6129 = vadd.f32 %v6128, %v3258
        %v6130 = vadd.f32 %v6129, %v3261
        %v6131 = vadd.f32 %v6130, %v3264
        %v6132 = vadd.f32 %v6131, %v3267
        %v6133 = vadd.f32 %v6132, %v3270
        %v6134 = vadd.f32 %v6133, %v3273
        %v6135 = vadd.f32 %v6134, %v3276
        %v6136 = vadd.f32 %v6135, %v3279
        %v6137 = vadd.f32 %v6136, %v3282
        %v6138 = vadd.f32 %v6137, %v3285
        %v6139 = vadd.f32 %v6138, %v3288
        %v6140 = vadd.f32 %v6139, %v3291
        %v6141 = vadd.f32 %v6140, %v3294
        %v6142 = vadd.f32 %v6141, %v3297
        %v6143 = vadd.f32 %v6142, %v3300
        %v6144 = vadd.f32 %v6143, %v3303
        %v6145 = vadd.f32 %v6144, %v3306
        %v6146 = vadd.f32 %v6145, %v3309
        %v6147 = vadd.f32 %v6146, %v3312
        %v6148 = vadd.f32 %v6147, %v3315
        %v6149 = vadd.f32 %v6148, %v3318
        %v6150 = vadd.f32 %v6149, %v3321
        %v6151 = vadd.f32 %v6150, %v3324
        %v6152 = vadd.f32 %v6151, %v3327
        %v6153 = vadd.f32 %v6152, %v3330
        %v6154 = vadd.f32 %v6153, %v3333
        %v6155 = vadd.f32 %v6154, %v3336
        %v6156 = vadd.f32 %v6155, %v3339
        %v6157 = vadd.f32 %v6156, %v3342
        %v6158 = vadd.f32 %v6157, %v3345
        %v6159 = vadd.f32 %v6158, %v3348
        %v6160 = vadd.f32 %v6159, %v3351
        %v6161 = vadd.f32 %v6160, %v3354
        %v6162 = vadd.f32 %v6161, %v3357
        %v6163 = vadd.f32 %v6162, %v3360
        %v6164 = vadd.f32 %v6163, %v3363
        %v6165 = vadd.f32 %v6164, %v3366
        %v6166 = vadd.f32 %v6165, %v3369
        %v6167 = vadd.f32 %v6166, %v3372
        %v6168 = vadd.f32 %v6167, %v3375
        %v6169 = vadd.f32 %v6168, %v3378
        %v6170 = vadd.f32 %v6169, %v3381
        %v6171 = vadd.f32 %v6170, %v3384
        %v6172 = vadd.f32 %v6171, %v3387
        %v6173 = vadd.f32 %v6172, %v3390
        %v6174 = vadd.f32 %v6173, %v3393
        %v6175 = vadd.f32 %v6174, %v3396
        %v6176 = vrot.slane %v6175, 4
        %v6177 = vadd.f32 %v6175, %v6176
        %v6178 = vrot.slane %v6177, 2
        %v6179 = vadd.f32 %v6177, %v6178
        %v6180 = vrot.slane %v6179, 1
        %v6181 = vadd.f32 %v6179, %v6180
        %v6182 = vadd.f32 %v3834, %v3837
        %v6183 = vadd.f32 %v6182, %v3840
        %v6184 = vadd.f32 %v6183, %v3843
        %v6185 = vadd.f32 %v6184, %v3846
        %v6186 = vadd.f32 %v6185, %v3849
        %v6187 = vadd.f32 %v6186, %v3852
        %v6188 = vadd.f32 %v6187, %v3855
        %v6189 = vadd.f32 %v6188, %v3858
        %v6190 = vadd.f32 %v6189, %v3861
        %v6191 = vadd.f32 %v6190, %v3864
        %v6192 = vadd.f32 %v6191, %v3867
        %v6193 = vadd.f32 %v6192, %v3870
        %v6194 = vadd.f32 %v6193, %v3873
        %v6195 = vadd.f32 %v6194, %v3876
        %v6196 = vadd.f32 %v6195, %v3879
        %v6197 = vadd.f32 %v6196, %v3882
        %v6198 = vadd.f32 %v6197, %v3885
        %v6199 = vadd.f32 %v6198, %v3888
        %v6200 = vadd.f32 %v6199, %v3891
        %v6201 = vadd.f32 %v6200, %v3894
        %v6202 = vadd.f32 %v6201, %v3897
        %v6203 = vadd.f32 %v6202, %v3900
        %v6204 = vadd.f32 %v6203, %v3903
        %v6205 = vadd.f32 %v6204, %v3906
        %v6206 = vadd.f32 %v6205, %v3909
        %v6207 = vadd.f32 %v6206, %v3912
        %v6208 = vadd.f32 %v6207, %v3915
        %v6209 = vadd.f32 %v6208, %v3918
        %v6210 = vadd.f32 %v6209, %v3921
        %v6211 = vadd.f32 %v6210, %v3924
        %v6212 = vadd.f32 %v6211, %v3927
        %v6213 = vadd.f32 %v6212, %v3930
        %v6214 = vadd.f32 %v6213, %v3933
        %v6215 = vadd.f32 %v6214, %v3936
        %v6216 = vadd.f32 %v6215, %v3939
        %v6217 = vadd.f32 %v6216, %v3942
        %v6218 = vadd.f32 %v6217, %v3945
        %v6219 = vadd.f32 %v6218, %v3948
        %v6220 = vadd.f32 %v6219, %v3951
        %v6221 = vadd.f32 %v6220, %v3954
        %v6222 = vadd.f32 %v6221, %v3957
        %v6223 = vadd.f32 %v6222, %v3960
        %v6224 = vadd.f32 %v6223, %v3963
        %v6225 = vadd.f32 %v6224, %v3966
        %v6226 = vadd.f32 %v6225, %v3969
        %v6227 = vadd.f32 %v6226, %v3972
        %v6228 = vadd.f32 %v6227, %v3975
        %v6229 = vadd.f32 %v6228, %v3978
        %v6230 = vadd.f32 %v6229, %v3981
        %v6231 = vadd.f32 %v6230, %v3984
        %v6232 = vadd.f32 %v6231, %v3987
        %v6233 = vadd.f32 %v6232, %v3990
        %v6234 = vadd.f32 %v6233, %v3993
        %v6235 = vadd.f32 %v6234, %v3996
        %v6236 = vadd.f32 %v6235, %v3999
        %v6237 = vadd.f32 %v6236, %v4002
        %v6238 = vadd.f32 %v6237, %v4005
        %v6239 = vadd.f32 %v6238, %v4008
        %v6240 = vadd.f32 %v6239, %v4011
        %v6241 = vadd.f32 %v6240, %v4014
        %v6242 = vadd.f32 %v6241, %v4017
        %v6243 = vadd.f32 %v6242, %v4020
        %v6244 = vadd.f32 %v6243, %v4023
        %v6245 = vrot.slane %v6244, 4
        %v6246 = vadd.f32 %v6244, %v6245
        %v6247 = vrot.slane %v6246, 2
        %v6248 = vadd.f32 %v6246, %v6247
        %v6249 = vrot.slane %v6248, 1
        %v6250 = vadd.f32 %v6248, %v6249
        %v6251 = vadd.f32 %v4461, %v4464
        %v6252 = vadd.f32 %v6251, %v4467
        %v6253 = vadd.f32 %v6252, %v4470
        %v6254 = vadd.f32 %v6253, %v4473
        %v6255 = vadd.f32 %v6254, %v4476
        %v6256 = vadd.f32 %v6255, %v4479
        %v6257 = vadd.f32 %v6256, %v4482
        %v6258 = vadd.f32 %v6257, %v4485
        %v6259 = vadd.f32 %v6258, %v4488
        %v6260 = vadd.f32 %v6259, %v4491
        %v6261 = vadd.f32 %v6260, %v4494
        %v6262 = vadd.f32 %v6261, %v4497
        %v6263 = vadd.f32 %v6262, %v4500
        %v6264 = vadd.f32 %v6263, %v4503
        %v6265 = vadd.f32 %v6264, %v4506
        %v6266 = vadd.f32 %v6265, %v4509
        %v6267 = vadd.f32 %v6266, %v4512
        %v6268 = vadd.f32 %v6267, %v4515
        %v6269 = vadd.f32 %v6268, %v4518
        %v6270 = vadd.f32 %v6269, %v4521
        %v6271 = vadd.f32 %v6270, %v4524
        %v6272 = vadd.f32 %v6271, %v4527
        %v6273 = vadd.f32 %v6272, %v4530
        %v6274 = vadd.f32 %v6273, %v4533
        %v6275 = vadd.f32 %v6274, %v4536
        %v6276 = vadd.f32 %v6275, %v4539
        %v6277 = vadd.f32 %v6276, %v4542
        %v6278 = vadd.f32 %v6277, %v4545
        %v6279 = vadd.f32 %v6278, %v4548
        %v6280 = vadd.f32 %v6279, %v4551
        %v6281 = vadd.f32 %v6280, %v4554
        %v6282 = vadd.f32 %v6281, %v4557
        %v6283 = vadd.f32 %v6282, %v4560
        %v6284 = vadd.f32 %v6283, %v4563
        %v6285 = vadd.f32 %v6284, %v4566
        %v6286 = vadd.f32 %v6285, %v4569
        %v6287 = vadd.f32 %v6286, %v4572
        %v6288 = vadd.f32 %v6287, %v4575
        %v6289 = vadd.f32 %v6288, %v4578
        %v6290 = vadd.f32 %v6289, %v4581
        %v6291 = vadd.f32 %v6290, %v4584
        %v6292 = vadd.f32 %v6291, %v4587
        %v6293 = vadd.f32 %v6292, %v4590
        %v6294 = vadd.f32 %v6293, %v4593
        %v6295 = vadd.f32 %v6294, %v4596
        %v6296 = vadd.f32 %v6295, %v4599
        %v6297 = vadd.f32 %v6296, %v4602
        %v6298 = vadd.f32 %v6297, %v4605
        %v6299 = vadd.f32 %v6298, %v4608
        %v6300 = vadd.f32 %v6299, %v4611
        %v6301 = vadd.f32 %v6300, %v4614
        %v6302 = vadd.f32 %v6301, %v4617
        %v6303 = vadd.f32 %v6302, %v4620
        %v6304 = vadd.f32 %v6303, %v4623
        %v6305 = vadd.f32 %v6304, %v4626
        %v6306 = vadd.f32 %v6305, %v4629
        %v6307 = vadd.f32 %v6306, %v4632
        %v6308 = vadd.f32 %v6307, %v4635
        %v6309 = vadd.f32 %v6308, %v4638
        %v6310 = vadd.f32 %v6309, %v4641
        %v6311 = vadd.f32 %v6310, %v4644
        %v6312 = vadd.f32 %v6311, %v4647
        %v6313 = vadd.f32 %v6312, %v4650
        %v6314 = vrot.slane %v6313, 4
        %v6315 = vadd.f32 %v6313, %v6314
        %v6316 = vrot.slane %v6315, 2
        %v6317 = vadd.f32 %v6315, %v6316
        %v6318 = vrot.slane %v6317, 1
        %v6319 = vadd.f32 %v6317, %v6318
        %v6320 = vadd.f32 %v5088, %v5091
        %v6321 = vadd.f32 %v6320, %v5094
        %v6322 = vadd.f32 %v6321, %v5097
        %v6323 = vadd.f32 %v6322, %v5100
        %v6324 = vadd.f32 %v6323, %v5103
        %v6325 = vadd.f32 %v6324, %v5106
        %v6326 = vadd.f32 %v6325, %v5109
        %v6327 = vadd.f32 %v6326, %v5112
        %v6328 = vadd.f32 %v6327, %v5115
        %v6329 = vadd.f32 %v6328, %v5118
        %v6330 = vadd.f32 %v6329, %v5121
        %v6331 = vadd.f32 %v6330, %v5124
        %v6332 = vadd.f32 %v6331, %v5127
        %v6333 = vadd.f32 %v6332, %v5130
        %v6334 = vadd.f32 %v6333, %v5133
        %v6335 = vadd.f32 %v6334, %v5136
        %v6336 = vadd.f32 %v6335, %v5139
        %v6337 = vadd.f32 %v6336, %v5142
        %v6338 = vadd.f32 %v6337, %v5145
        %v6339 = vadd.f32 %v6338, %v5148
        %v6340 = vadd.f32 %v6339, %v5151
        %v6341 = vadd.f32 %v6340, %v5154
        %v6342 = vadd.f32 %v6341, %v5157
        %v6343 = vadd.f32 %v6342, %v5160
        %v6344 = vadd.f32 %v6343, %v5163
        %v6345 = vadd.f32 %v6344, %v5166
        %v6346 = vadd.f32 %v6345, %v5169
        %v6347 = vadd.f32 %v6346, %v5172
        %v6348 = vadd.f32 %v6347, %v5175
        %v6349 = vadd.f32 %v6348, %v5178
        %v6350 = vadd.f32 %v6349, %v5181
        %v6351 = vadd.f32 %v6350, %v5184
        %v6352 = vadd.f32 %v6351, %v5187
        %v6353 = vadd.f32 %v6352, %v5190
        %v6354 = vadd.f32 %v6353, %v5193
        %v6355 = vadd.f32 %v6354, %v5196
        %v6356 = vadd.f32 %v6355, %v5199
        %v6357 = vadd.f32 %v6356, %v5202
        %v6358 = vadd.f32 %v6357, %v5205
        %v6359 = vadd.f32 %v6358, %v5208
        %v6360 = vadd.f32 %v6359, %v5211
        %v6361 = vadd.f32 %v6360, %v5214
        %v6362 = vadd.f32 %v6361, %v5217
        %v6363 = vadd.f32 %v6362, %v5220
        %v6364 = vadd.f32 %v6363, %v5223
        %v6365 = vadd.f32 %v6364, %v5226
        %v6366 = vadd.f32 %v6365, %v5229
        %v6367 = vadd.f32 %v6366, %v5232
        %v6368 = vadd.f32 %v6367, %v5235
        %v6369 = vadd.f32 %v6368, %v5238
        %v6370 = vadd.f32 %v6369, %v5241
        %v6371 = vadd.f32 %v6370, %v5244
        %v6372 = vadd.f32 %v6371, %v5247
        %v6373 = vadd.f32 %v6372, %v5250
        %v6374 = vadd.f32 %v6373, %v5253
        %v6375 = vadd.f32 %v6374, %v5256
        %v6376 = vadd.f32 %v6375, %v5259
        %v6377 = vadd.f32 %v6376, %v5262
        %v6378 = vadd.f32 %v6377, %v5265
        %v6379 = vadd.f32 %v6378, %v5268
        %v6380 = vadd.f32 %v6379, %v5271
        %v6381 = vadd.f32 %v6380, %v5274
        %v6382 = vadd.f32 %v6381, %v5277
        %v6383 = vrot.slane %v6382, 4
        %v6384 = vadd.f32 %v6382, %v6383
        %v6385 = vrot.slane %v6384, 2
        %v6386 = vadd.f32 %v6384, %v6385
        %v6387 = vrot.slane %v6386, 1
        %v6388 = vadd.f32 %v6386, %v6387
        %v6389 = vadd.f32 %v5715, %v5718
        %v6390 = vadd.f32 %v6389, %v5721
        %v6391 = vadd.f32 %v6390, %v5724
        %v6392 = vadd.f32 %v6391, %v5727
        %v6393 = vadd.f32 %v6392, %v5730
        %v6394 = vadd.f32 %v6393, %v5733
        %v6395 = vadd.f32 %v6394, %v5736
        %v6396 = vadd.f32 %v6395, %v5739
        %v6397 = vadd.f32 %v6396, %v5742
        %v6398 = vadd.f32 %v6397, %v5745
        %v6399 = vadd.f32 %v6398, %v5748
        %v6400 = vadd.f32 %v6399, %v5751
        %v6401 = vadd.f32 %v6400, %v5754
        %v6402 = vadd.f32 %v6401, %v5757
        %v6403 = vadd.f32 %v6402, %v5760
        %v6404 = vadd.f32 %v6403, %v5763
        %v6405 = vadd.f32 %v6404, %v5766
        %v6406 = vadd.f32 %v6405, %v5769
        %v6407 = vadd.f32 %v6406, %v5772
        %v6408 = vadd.f32 %v6407, %v5775
        %v6409 = vadd.f32 %v6408, %v5778
        %v6410 = vadd.f32 %v6409, %v5781
        %v6411 = vadd.f32 %v6410, %v5784
        %v6412 = vadd.f32 %v6411, %v5787
        %v6413 = vadd.f32 %v6412, %v5790
        %v6414 = vadd.f32 %v6413, %v5793
        %v6415 = vadd.f32 %v6414, %v5796
        %v6416 = vadd.f32 %v6415, %v5799
        %v6417 = vadd.f32 %v6416, %v5802
        %v6418 = vadd.f32 %v6417, %v5805
        %v6419 = vadd.f32 %v6418, %v5808
        %v6420 = vadd.f32 %v6419, %v5811
        %v6421 = vadd.f32 %v6420, %v5814
        %v6422 = vadd.f32 %v6421, %v5817
        %v6423 = vadd.f32 %v6422, %v5820
        %v6424 = vadd.f32 %v6423, %v5823
        %v6425 = vadd.f32 %v6424, %v5826
        %v6426 = vadd.f32 %v6425, %v5829
        %v6427 = vadd.f32 %v6426, %v5832
        %v6428 = vadd.f32 %v6427, %v5835
        %v6429 = vadd.f32 %v6428, %v5838
        %v6430 = vadd.f32 %v6429, %v5841
        %v6431 = vadd.f32 %v6430, %v5844
        %v6432 = vadd.f32 %v6431, %v5847
        %v6433 = vadd.f32 %v6432, %v5850
        %v6434 = vadd.f32 %v6433, %v5853
        %v6435 = vadd.f32 %v6434, %v5856
        %v6436 = vadd.f32 %v6435, %v5859
        %v6437 = vadd.f32 %v6436, %v5862
        %v6438 = vadd.f32 %v6437, %v5865
        %v6439 = vadd.f32 %v6438, %v5868
        %v6440 = vadd.f32 %v6439, %v5871
        %v6441 = vadd.f32 %v6440, %v5874
        %v6442 = vadd.f32 %v6441, %v5877
        %v6443 = vadd.f32 %v6442, %v5880
        %v6444 = vadd.f32 %v6443, %v5883
        %v6445 = vadd.f32 %v6444, %v5886
        %v6446 = vadd.f32 %v6445, %v5889
        %v6447 = vadd.f32 %v6446, %v5892
        %v6448 = vadd.f32 %v6447, %v5895
        %v6449 = vadd.f32 %v6448, %v5898
        %v6450 = vadd.f32 %v6449, %v5901
        %v6451 = vadd.f32 %v6450, %v5904
        %v6452 = vrot.slane %v6451, 4
        %v6453 = vadd.f32 %v6451, %v6452
        %v6454 = vrot.slane %v6453, 2
        %v6455 = vadd.f32 %v6453, %v6454
        %v6456 = vrot.slane %v6455, 1
        %v6457 = vadd.f32 %v6455, %v6456
        %v6466 = vrot.slane %v6043, 7
        %v6467 = vrot.slane %v6112, 6
        %v6468 = vrot.slane %v6181, 5
        %v6469 = vrot.slane %v6250, 4
        %v6470 = vrot.slane %v6319, 3
        %v6471 = vrot.slane %v6388, 2
        %v6472 = vrot.slane %v6457, 1
        %vm6473 = vcmask 1040384
        %v6474 = vsel %vm6473, %v5974, %v6466
        %vm6475 = vcmask 1042434
        %v6476 = vsel %vm6475, %v6467, %v6468
        %vm6477 = vcmask 1041408
        %v6478 = vsel %vm6477, %v6474, %v6476
        %vm6479 = vcmask 1044484
        %v6480 = vsel %vm6479, %v6469, %v6470
        %vm6481 = vcmask 1046534
        %v6482 = vsel %vm6481, %v6471, %v6472
        %vm6483 = vcmask 1045508
        %v6484 = vsel %vm6483, %v6480, %v6482
        %vm6485 = vcmask 1043456
        %v6486 = vsel %vm6485, %v6478, %v6484
        %6488 = vst [vmem:[%s170] sm:$0xff] %v6486
        %v6489 = vmul.f32 %v1326, %v1326
        %v6490 = vmul.f32 %v1953, %v1953
        %v6491 = vmul.f32 %v2580, %v2580
        %v6492 = vmul.f32 %v3207, %v3207
        %v6493 = vmul.f32 %v3834, %v3834
        %v6494 = vmul.f32 %v4461, %v4461
        %v6495 = vmul.f32 %v5088, %v5088
        %v6496 = vmul.f32 %v5715, %v5715
        %v6497 = vmul.f32 %v1329, %v1329
        %v6498 = vmul.f32 %v1956, %v1956
        %v6499 = vmul.f32 %v2583, %v2583
        %v6500 = vmul.f32 %v3210, %v3210
        %v6501 = vmul.f32 %v3837, %v3837
        %v6502 = vmul.f32 %v4464, %v4464
        %v6503 = vmul.f32 %v5091, %v5091
        %v6504 = vmul.f32 %v5718, %v5718
        %v6505 = vmul.f32 %v1332, %v1332
        %v6506 = vmul.f32 %v1959, %v1959
        %v6507 = vmul.f32 %v2586, %v2586
        %v6508 = vmul.f32 %v3213, %v3213
        %v6509 = vmul.f32 %v3840, %v3840
        %v6510 = vmul.f32 %v4467, %v4467
        %v6511 = vmul.f32 %v5094, %v5094
        %v6512 = vmul.f32 %v5721, %v5721
        %v6513 = vmul.f32 %v1335, %v1335
        %v6514 = vmul.f32 %v1962, %v1962
        %v6515 = vmul.f32 %v2589, %v2589
        %v6516 = vmul.f32 %v3216, %v3216
        %v6517 = vmul.f32 %v3843, %v3843
        %v6518 = vmul.f32 %v4470, %v4470
        %v6519 = vmul.f32 %v5097, %v5097
        %v6520 = vmul.f32 %v5724, %v5724
        %v6521 = vmul.f32 %v1338, %v1338
        %v6522 = vmul.f32 %v1965, %v1965
        %v6523 = vmul.f32 %v2592, %v2592
        %v6524 = vmul.f32 %v3219, %v3219
        %v6525 = vmul.f32 %v3846, %v3846
        %v6526 = vmul.f32 %v4473, %v4473
        %v6527 = vmul.f32 %v5100, %v5100
        %v6528 = vmul.f32 %v5727, %v5727
        %v6529 = vmul.f32 %v1341, %v1341
        %v6530 = vmul.f32 %v1968, %v1968
        %v6531 = vmul.f32 %v2595, %v2595
        %v6532 = vmul.f32 %v3222, %v3222
        %v6533 = vmul.f32 %v3849, %v3849
        %v6534 = vmul.f32 %v4476, %v4476
        %v6535 = vmul.f32 %v5103, %v5103
        %v6536 = vmul.f32 %v5730, %v5730
        %v6537 = vmul.f32 %v1344, %v1344
        %v6538 = vmul.f32 %v1971, %v1971
        %v6539 = vmul.f32 %v2598, %v2598
        %v6540 = vmul.f32 %v3225, %v3225
        %v6541 = vmul.f32 %v3852, %v3852
        %v6542 = vmul.f32 %v4479, %v4479
        %v6543 = vmul.f32 %v5106, %v5106
        %v6544 = vmul.f32 %v5733, %v5733
        %v6545 = vmul.f32 %v1347, %v1347
        %v6546 = vmul.f32 %v1974, %v1974
        %v6547 = vmul.f32 %v2601, %v2601
        %v6548 = vmul.f32 %v3228, %v3228
        %v6549 = vmul.f32 %v3855, %v3855
        %v6550 = vmul.f32 %v4482, %v4482
        %v6551 = vmul.f32 %v5109, %v5109
        %v6552 = vmul.f32 %v5736, %v5736
        %v6553 = vmul.f32 %v1350, %v1350
        %v6554 = vmul.f32 %v1977, %v1977
        %v6555 = vmul.f32 %v2604, %v2604
        %v6556 = vmul.f32 %v3231, %v3231
        %v6557 = vmul.f32 %v3858, %v3858
        %v6558 = vmul.f32 %v4485, %v4485
        %v6559 = vmul.f32 %v5112, %v5112
        %v6560 = vmul.f32 %v5739, %v5739
        %v6561 = vmul.f32 %v1353, %v1353
        %v6562 = vmul.f32 %v1980, %v1980
        %v6563 = vmul.f32 %v2607, %v2607
        %v6564 = vmul.f32 %v3234, %v3234
        %v6565 = vmul.f32 %v3861, %v3861
        %v6566 = vmul.f32 %v4488, %v4488
        %v6567 = vmul.f32 %v5115, %v5115
        %v6568 = vmul.f32 %v5742, %v5742
        %v6569 = vmul.f32 %v1356, %v1356
        %v6570 = vmul.f32 %v1983, %v1983
        %v6571 = vmul.f32 %v2610, %v2610
        %v6572 = vmul.f32 %v3237, %v3237
        %v6573 = vmul.f32 %v3864, %v3864
        %v6574 = vmul.f32 %v4491, %v4491
        %v6575 = vmul.f32 %v5118, %v5118
        %v6576 = vmul.f32 %v5745, %v5745
        %v6577 = vmul.f32 %v1359, %v1359
        %v6578 = vmul.f32 %v1986, %v1986
        %v6579 = vmul.f32 %v2613, %v2613
        %v6580 = vmul.f32 %v3240, %v3240
        %v6581 = vmul.f32 %v3867, %v3867
        %v6582 = vmul.f32 %v4494, %v4494
        %v6583 = vmul.f32 %v5121, %v5121
        %v6584 = vmul.f32 %v5748, %v5748
        %v6585 = vmul.f32 %v1362, %v1362
        %v6586 = vmul.f32 %v1989, %v1989
        %v6587 = vmul.f32 %v2616, %v2616
        %v6588 = vmul.f32 %v3243, %v3243
        %v6589 = vmul.f32 %v3870, %v3870
        %v6590 = vmul.f32 %v4497, %v4497
        %v6591 = vmul.f32 %v5124, %v5124
        %v6592 = vmul.f32 %v5751, %v5751
        %v6593 = vmul.f32 %v1365, %v1365
        %v6594 = vmul.f32 %v1992, %v1992
        %v6595 = vmul.f32 %v2619, %v2619
        %v6596 = vmul.f32 %v3246, %v3246
        %v6597 = vmul.f32 %v3873, %v3873
        %v6598 = vmul.f32 %v4500, %v4500
        %v6599 = vmul.f32 %v5127, %v5127
        %v6600 = vmul.f32 %v5754, %v5754
        %v6601 = vmul.f32 %v1368, %v1368
        %v6602 = vmul.f32 %v1995, %v1995
        %v6603 = vmul.f32 %v2622, %v2622
        %v6604 = vmul.f32 %v3249, %v3249
        %v6605 = vmul.f32 %v3876, %v3876
        %v6606 = vmul.f32 %v4503, %v4503
        %v6607 = vmul.f32 %v5130, %v5130
        %v6608 = vmul.f32 %v5757, %v5757
        %v6609 = vmul.f32 %v1371, %v1371
        %v6610 = vmul.f32 %v1998, %v1998
        %v6611 = vmul.f32 %v2625, %v2625
        %v6612 = vmul.f32 %v3252, %v3252
        %v6613 = vmul.f32 %v3879, %v3879
        %v6614 = vmul.f32 %v4506, %v4506
        %v6615 = vmul.f32 %v5133, %v5133
        %v6616 = vmul.f32 %v5760, %v5760
        %v6617 = vmul.f32 %v1374, %v1374
        %v6618 = vmul.f32 %v2001, %v2001
        %v6619 = vmul.f32 %v2628, %v2628
        %v6620 = vmul.f32 %v3255, %v3255
        %v6621 = vmul.f32 %v3882, %v3882
        %v6622 = vmul.f32 %v4509, %v4509
        %v6623 = vmul.f32 %v5136, %v5136
        %v6624 = vmul.f32 %v5763, %v5763
        %v6625 = vmul.f32 %v1377, %v1377
        %v6626 = vmul.f32 %v2004, %v2004
        %v6627 = vmul.f32 %v2631, %v2631
        %v6628 = vmul.f32 %v3258, %v3258
        %v6629 = vmul.f32 %v3885, %v3885
        %v6630 = vmul.f32 %v4512, %v4512
        %v6631 = vmul.f32 %v5139, %v5139
        %v6632 = vmul.f32 %v5766, %v5766
        %v6633 = vmul.f32 %v1380, %v1380
        %v6634 = vmul.f32 %v2007, %v2007
        %v6635 = vmul.f32 %v2634, %v2634
        %v6636 = vmul.f32 %v3261, %v3261
        %v6637 = vmul.f32 %v3888, %v3888
        %v6638 = vmul.f32 %v4515, %v4515
        %v6639 = vmul.f32 %v5142, %v5142
        %v6640 = vmul.f32 %v5769, %v5769
        %v6641 = vmul.f32 %v1383, %v1383
        %v6642 = vmul.f32 %v2010, %v2010
        %v6643 = vmul.f32 %v2637, %v2637
        %v6644 = vmul.f32 %v3264, %v3264
        %v6645 = vmul.f32 %v3891, %v3891
        %v6646 = vmul.f32 %v4518, %v4518
        %v6647 = vmul.f32 %v5145, %v5145
        %v6648 = vmul.f32 %v5772, %v5772
        %v6649 = vmul.f32 %v1386, %v1386
        %v6650 = vmul.f32 %v2013, %v2013
        %v6651 = vmul.f32 %v2640, %v2640
        %v6652 = vmul.f32 %v3267, %v3267
        %v6653 = vmul.f32 %v3894, %v3894
        %v6654 = vmul.f32 %v4521, %v4521
        %v6655 = vmul.f32 %v5148, %v5148
        %v6656 = vmul.f32 %v5775, %v5775
        %v6657 = vmul.f32 %v1389, %v1389
        %v6658 = vmul.f32 %v2016, %v2016
        %v6659 = vmul.f32 %v2643, %v2643
        %v6660 = vmul.f32 %v3270, %v3270
        %v6661 = vmul.f32 %v3897, %v3897
        %v6662 = vmul.f32 %v4524, %v4524
        %v6663 = vmul.f32 %v5151, %v5151
        %v6664 = vmul.f32 %v5778, %v5778
        %v6665 = vmul.f32 %v1392, %v1392
        %v6666 = vmul.f32 %v2019, %v2019
        %v6667 = vmul.f32 %v2646, %v2646
        %v6668 = vmul.f32 %v3273, %v3273
        %v6669 = vmul.f32 %v3900, %v3900
        %v6670 = vmul.f32 %v4527, %v4527
        %v6671 = vmul.f32 %v5154, %v5154
        %v6672 = vmul.f32 %v5781, %v5781
        %v6673 = vmul.f32 %v1395, %v1395
        %v6674 = vmul.f32 %v2022, %v2022
        %v6675 = vmul.f32 %v2649, %v2649
        %v6676 = vmul.f32 %v3276, %v3276
        %v6677 = vmul.f32 %v3903, %v3903
        %v6678 = vmul.f32 %v4530, %v4530
        %v6679 = vmul.f32 %v5157, %v5157
        %v6680 = vmul.f32 %v5784, %v5784
        %v6681 = vmul.f32 %v1398, %v1398
        %v6682 = vmul.f32 %v2025, %v2025
        %v6683 = vmul.f32 %v2652, %v2652
        %v6684 = vmul.f32 %v3279, %v3279
        %v6685 = vmul.f32 %v3906, %v3906
        %v6686 = vmul.f32 %v4533, %v4533
        %v6687 = vmul.f32 %v5160, %v5160
        %v6688 = vmul.f32 %v5787, %v5787
        %v6689 = vmul.f32 %v1401, %v1401
        %v6690 = vmul.f32 %v2028, %v2028
        %v6691 = vmul.f32 %v2655, %v2655
        %v6692 = vmul.f32 %v3282, %v3282
        %v6693 = vmul.f32 %v3909, %v3909
        %v6694 = vmul.f32 %v4536, %v4536
        %v6695 = vmul.f32 %v5163, %v5163
        %v6696 = vmul.f32 %v5790, %v5790
        %v6697 = vmul.f32 %v1404, %v1404
        %v6698 = vmul.f32 %v2031, %v2031
        %v6699 = vmul.f32 %v2658, %v2658
        %v6700 = vmul.f32 %v3285, %v3285
        %v6701 = vmul.f32 %v3912, %v3912
        %v6702 = vmul.f32 %v4539, %v4539
        %v6703 = vmul.f32 %v5166, %v5166
        %v6704 = vmul.f32 %v5793, %v5793
        %v6705 = vmul.f32 %v1407, %v1407
        %v6706 = vmul.f32 %v2034, %v2034
        %v6707 = vmul.f32 %v2661, %v2661
        %v6708 = vmul.f32 %v3288, %v3288
        %v6709 = vmul.f32 %v3915, %v3915
        %v6710 = vmul.f32 %v4542, %v4542
        %v6711 = vmul.f32 %v5169, %v5169
        %v6712 = vmul.f32 %v5796, %v5796
        %v6713 = vmul.f32 %v1410, %v1410
        %v6714 = vmul.f32 %v2037, %v2037
        %v6715 = vmul.f32 %v2664, %v2664
        %v6716 = vmul.f32 %v3291, %v3291
        %v6717 = vmul.f32 %v3918, %v3918
        %v6718 = vmul.f32 %v4545, %v4545
        %v6719 = vmul.f32 %v5172, %v5172
        %v6720 = vmul.f32 %v5799, %v5799
        %v6721 = vmul.f32 %v1413, %v1413
        %v6722 = vmul.f32 %v2040, %v2040
        %v6723 = vmul.f32 %v2667, %v2667
        %v6724 = vmul.f32 %v3294, %v3294
        %v6725 = vmul.f32 %v3921, %v3921
        %v6726 = vmul.f32 %v4548, %v4548
        %v6727 = vmul.f32 %v5175, %v5175
        %v6728 = vmul.f32 %v5802, %v5802
        %v6729 = vmul.f32 %v1416, %v1416
        %v6730 = vmul.f32 %v2043, %v2043
        %v6731 = vmul.f32 %v2670, %v2670
        %v6732 = vmul.f32 %v3297, %v3297
        %v6733 = vmul.f32 %v3924, %v3924
        %v6734 = vmul.f32 %v4551, %v4551
        %v6735 = vmul.f32 %v5178, %v5178
        %v6736 = vmul.f32 %v5805, %v5805
        %v6737 = vmul.f32 %v1419, %v1419
        %v6738 = vmul.f32 %v2046, %v2046
        %v6739 = vmul.f32 %v2673, %v2673
        %v6740 = vmul.f32 %v3300, %v3300
        %v6741 = vmul.f32 %v3927, %v3927
        %v6742 = vmul.f32 %v4554, %v4554
        %v6743 = vmul.f32 %v5181, %v5181
        %v6744 = vmul.f32 %v5808, %v5808
        %v6745 = vmul.f32 %v1422, %v1422
        %v6746 = vmul.f32 %v2049, %v2049
        %v6747 = vmul.f32 %v2676, %v2676
        %v6748 = vmul.f32 %v3303, %v3303
        %v6749 = vmul.f32 %v3930, %v3930
        %v6750 = vmul.f32 %v4557, %v4557
        %v6751 = vmul.f32 %v5184, %v5184
        %v6752 = vmul.f32 %v5811, %v5811
        %v6753 = vmul.f32 %v1425, %v1425
        %v6754 = vmul.f32 %v2052, %v2052
        %v6755 = vmul.f32 %v2679, %v2679
        %v6756 = vmul.f32 %v3306, %v3306
        %v6757 = vmul.f32 %v3933, %v3933
        %v6758 = vmul.f32 %v4560, %v4560
        %v6759 = vmul.f32 %v5187, %v5187
        %v6760 = vmul.f32 %v5814, %v5814
        %v6761 = vmul.f32 %v1428, %v1428
        %v6762 = vmul.f32 %v2055, %v2055
        %v6763 = vmul.f32 %v2682, %v2682
        %v6764 = vmul.f32 %v3309, %v3309
        %v6765 = vmul.f32 %v3936, %v3936
        %v6766 = vmul.f32 %v4563, %v4563
        %v6767 = vmul.f32 %v5190, %v5190
        %v6768 = vmul.f32 %v5817, %v5817
        %v6769 = vmul.f32 %v1431, %v1431
        %v6770 = vmul.f32 %v2058, %v2058
        %v6771 = vmul.f32 %v2685, %v2685
        %v6772 = vmul.f32 %v3312, %v3312
        %v6773 = vmul.f32 %v3939, %v3939
        %v6774 = vmul.f32 %v4566, %v4566
        %v6775 = vmul.f32 %v5193, %v5193
        %v6776 = vmul.f32 %v5820, %v5820
        %v6777 = vmul.f32 %v1434, %v1434
        %v6778 = vmul.f32 %v2061, %v2061
        %v6779 = vmul.f32 %v2688, %v2688
        %v6780 = vmul.f32 %v3315, %v3315
        %v6781 = vmul.f32 %v3942, %v3942
        %v6782 = vmul.f32 %v4569, %v4569
        %v6783 = vmul.f32 %v5196, %v5196
        %v6784 = vmul.f32 %v5823, %v5823
        %v6785 = vmul.f32 %v1437, %v1437
        %v6786 = vmul.f32 %v2064, %v2064
        %v6787 = vmul.f32 %v2691, %v2691
        %v6788 = vmul.f32 %v3318, %v3318
        %v6789 = vmul.f32 %v3945, %v3945
        %v6790 = vmul.f32 %v4572, %v4572
        %v6791 = vmul.f32 %v5199, %v5199
        %v6792 = vmul.f32 %v5826, %v5826
        %v6793 = vmul.f32 %v1440, %v1440
        %v6794 = vmul.f32 %v2067, %v2067
        %v6795 = vmul.f32 %v2694, %v2694
        %v6796 = vmul.f32 %v3321, %v3321
        %v6797 = vmul.f32 %v3948, %v3948
        %v6798 = vmul.f32 %v4575, %v4575
        %v6799 = vmul.f32 %v5202, %v5202
        %v6800 = vmul.f32 %v5829, %v5829
        %v6801 = vmul.f32 %v1443, %v1443
        %v6802 = vmul.f32 %v2070, %v2070
        %v6803 = vmul.f32 %v2697, %v2697
        %v6804 = vmul.f32 %v3324, %v3324
        %v6805 = vmul.f32 %v3951, %v3951
        %v6806 = vmul.f32 %v4578, %v4578
        %v6807 = vmul.f32 %v5205, %v5205
        %v6808 = vmul.f32 %v5832, %v5832
        %v6809 = vmul.f32 %v1446, %v1446
        %v6810 = vmul.f32 %v2073, %v2073
        %v6811 = vmul.f32 %v2700, %v2700
        %v6812 = vmul.f32 %v3327, %v3327
        %v6813 = vmul.f32 %v3954, %v3954
        %v6814 = vmul.f32 %v4581, %v4581
        %v6815 = vmul.f32 %v5208, %v5208
        %v6816 = vmul.f32 %v5835, %v5835
        %v6817 = vmul.f32 %v1449, %v1449
        %v6818 = vmul.f32 %v2076, %v2076
        %v6819 = vmul.f32 %v2703, %v2703
        %v6820 = vmul.f32 %v3330, %v3330
        %v6821 = vmul.f32 %v3957, %v3957
        %v6822 = vmul.f32 %v4584, %v4584
        %v6823 = vmul.f32 %v5211, %v5211
        %v6824 = vmul.f32 %v5838, %v5838
        %v6825 = vmul.f32 %v1452, %v1452
        %v6826 = vmul.f32 %v2079, %v2079
        %v6827 = vmul.f32 %v2706, %v2706
        %v6828 = vmul.f32 %v3333, %v3333
        %v6829 = vmul.f32 %v3960, %v3960
        %v6830 = vmul.f32 %v4587, %v4587
        %v6831 = vmul.f32 %v5214, %v5214
        %v6832 = vmul.f32 %v5841, %v5841
        %v6833 = vmul.f32 %v1455, %v1455
        %v6834 = vmul.f32 %v2082, %v2082
        %v6835 = vmul.f32 %v2709, %v2709
        %v6836 = vmul.f32 %v3336, %v3336
        %v6837 = vmul.f32 %v3963, %v3963
        %v6838 = vmul.f32 %v4590, %v4590
        %v6839 = vmul.f32 %v5217, %v5217
        %v6840 = vmul.f32 %v5844, %v5844
        %v6841 = vmul.f32 %v1458, %v1458
        %v6842 = vmul.f32 %v2085, %v2085
        %v6843 = vmul.f32 %v2712, %v2712
        %v6844 = vmul.f32 %v3339, %v3339
        %v6845 = vmul.f32 %v3966, %v3966
        %v6846 = vmul.f32 %v4593, %v4593
        %v6847 = vmul.f32 %v5220, %v5220
        %v6848 = vmul.f32 %v5847, %v5847
        %v6849 = vmul.f32 %v1461, %v1461
        %v6850 = vmul.f32 %v2088, %v2088
        %v6851 = vmul.f32 %v2715, %v2715
        %v6852 = vmul.f32 %v3342, %v3342
        %v6853 = vmul.f32 %v3969, %v3969
        %v6854 = vmul.f32 %v4596, %v4596
        %v6855 = vmul.f32 %v5223, %v5223
        %v6856 = vmul.f32 %v5850, %v5850
        %v6857 = vmul.f32 %v1464, %v1464
        %v6858 = vmul.f32 %v2091, %v2091
        %v6859 = vmul.f32 %v2718, %v2718
        %v6860 = vmul.f32 %v3345, %v3345
        %v6861 = vmul.f32 %v3972, %v3972
        %v6862 = vmul.f32 %v4599, %v4599
        %v6863 = vmul.f32 %v5226, %v5226
        %v6864 = vmul.f32 %v5853, %v5853
        %v6865 = vmul.f32 %v1467, %v1467
        %v6866 = vmul.f32 %v2094, %v2094
        %v6867 = vmul.f32 %v2721, %v2721
        %v6868 = vmul.f32 %v3348, %v3348
        %v6869 = vmul.f32 %v3975, %v3975
        %v6870 = vmul.f32 %v4602, %v4602
        %v6871 = vmul.f32 %v5229, %v5229
        %v6872 = vmul.f32 %v5856, %v5856
        %v6873 = vmul.f32 %v1470, %v1470
        %v6874 = vmul.f32 %v2097, %v2097
        %v6875 = vmul.f32 %v2724, %v2724
        %v6876 = vmul.f32 %v3351, %v3351
        %v6877 = vmul.f32 %v3978, %v3978
        %v6878 = vmul.f32 %v4605, %v4605
        %v6879 = vmul.f32 %v5232, %v5232
        %v6880 = vmul.f32 %v5859, %v5859
        %v6881 = vmul.f32 %v1473, %v1473
        %v6882 = vmul.f32 %v2100, %v2100
        %v6883 = vmul.f32 %v2727, %v2727
        %v6884 = vmul.f32 %v3354, %v3354
        %v6885 = vmul.f32 %v3981, %v3981
        %v6886 = vmul.f32 %v4608, %v4608
        %v6887 = vmul.f32 %v5235, %v5235
        %v6888 = vmul.f32 %v5862, %v5862
        %v6889 = vmul.f32 %v1476, %v1476
        %v6890 = vmul.f32 %v2103, %v2103
        %v6891 = vmul.f32 %v2730, %v2730
        %v6892 = vmul.f32 %v3357, %v3357
        %v6893 = vmul.f32 %v3984, %v3984
        %v6894 = vmul.f32 %v4611, %v4611
        %v6895 = vmul.f32 %v5238, %v5238
        %v6896 = vmul.f32 %v5865, %v5865
        %v6897 = vmul.f32 %v1479, %v1479
        %v6898 = vmul.f32 %v2106, %v2106
        %v6899 = vmul.f32 %v2733, %v2733
        %v6900 = vmul.f32 %v3360, %v3360
        %v6901 = vmul.f32 %v3987, %v3987
        %v6902 = vmul.f32 %v4614, %v4614
        %v6903 = vmul.f32 %v5241, %v5241
        %v6904 = vmul.f32 %v5868, %v5868
        %v6905 = vmul.f32 %v1482, %v1482
        %v6906 = vmul.f32 %v2109, %v2109
        %v6907 = vmul.f32 %v2736, %v2736
        %v6908 = vmul.f32 %v3363, %v3363
        %v6909 = vmul.f32 %v3990, %v3990
        %v6910 = vmul.f32 %v4617, %v4617
        %v6911 = vmul.f32 %v5244, %v5244
        %v6912 = vmul.f32 %v5871, %v5871
        %v6913 = vmul.f32 %v1485, %v1485
        %v6914 = vmul.f32 %v2112, %v2112
        %v6915 = vmul.f32 %v2739, %v2739
        %v6916 = vmul.f32 %v3366, %v3366
        %v6917 = vmul.f32 %v3993, %v3993
        %v6918 = vmul.f32 %v4620, %v4620
        %v6919 = vmul.f32 %v5247, %v5247
        %v6920 = vmul.f32 %v5874, %v5874
        %v6921 = vmul.f32 %v1488, %v1488
        %v6922 = vmul.f32 %v2115, %v2115
        %v6923 = vmul.f32 %v2742, %v2742
        %v6924 = vmul.f32 %v3369, %v3369
        %v6925 = vmul.f32 %v3996, %v3996
        %v6926 = vmul.f32 %v4623, %v4623
        %v6927 = vmul.f32 %v5250, %v5250
        %v6928 = vmul.f32 %v5877, %v5877
        %v6929 = vmul.f32 %v1491, %v1491
        %v6930 = vmul.f32 %v2118, %v2118
        %v6931 = vmul.f32 %v2745, %v2745
        %v6932 = vmul.f32 %v3372, %v3372
        %v6933 = vmul.f32 %v3999, %v3999
        %v6934 = vmul.f32 %v4626, %v4626
        %v6935 = vmul.f32 %v5253, %v5253
        %v6936 = vmul.f32 %v5880, %v5880
        %v6937 = vmul.f32 %v1494, %v1494
        %v6938 = vmul.f32 %v2121, %v2121
        %v6939 = vmul.f32 %v2748, %v2748
        %v6940 = vmul.f32 %v3375, %v3375
        %v6941 = vmul.f32 %v4002, %v4002
        %v6942 = vmul.f32 %v4629, %v4629
        %v6943 = vmul.f32 %v5256, %v5256
        %v6944 = vmul.f32 %v5883, %v5883
        %v6945 = vmul.f32 %v1497, %v1497
        %v6946 = vmul.f32 %v2124, %v2124
        %v6947 = vmul.f32 %v2751, %v2751
        %v6948 = vmul.f32 %v3378, %v3378
        %v6949 = vmul.f32 %v4005, %v4005
        %v6950 = vmul.f32 %v4632, %v4632
        %v6951 = vmul.f32 %v5259, %v5259
        %v6952 = vmul.f32 %v5886, %v5886
        %v6953 = vmul.f32 %v1500, %v1500
        %v6954 = vmul.f32 %v2127, %v2127
        %v6955 = vmul.f32 %v2754, %v2754
        %v6956 = vmul.f32 %v3381, %v3381
        %v6957 = vmul.f32 %v4008, %v4008
        %v6958 = vmul.f32 %v4635, %v4635
        %v6959 = vmul.f32 %v5262, %v5262
        %v6960 = vmul.f32 %v5889, %v5889
        %v6961 = vmul.f32 %v1503, %v1503
        %v6962 = vmul.f32 %v2130, %v2130
        %v6963 = vmul.f32 %v2757, %v2757
        %v6964 = vmul.f32 %v3384, %v3384
        %v6965 = vmul.f32 %v4011, %v4011
        %v6966 = vmul.f32 %v4638, %v4638
        %v6967 = vmul.f32 %v5265, %v5265
        %v6968 = vmul.f32 %v5892, %v5892
        %v6969 = vmul.f32 %v1506, %v1506
        %v6970 = vmul.f32 %v2133, %v2133
        %v6971 = vmul.f32 %v2760, %v2760
        %v6972 = vmul.f32 %v3387, %v3387
        %v6973 = vmul.f32 %v4014, %v4014
        %v6974 = vmul.f32 %v4641, %v4641
        %v6975 = vmul.f32 %v5268, %v5268
        %v6976 = vmul.f32 %v5895, %v5895
        %v6977 = vmul.f32 %v1509, %v1509
        %v6978 = vmul.f32 %v2136, %v2136
        %v6979 = vmul.f32 %v2763, %v2763
        %v6980 = vmul.f32 %v3390, %v3390
        %v6981 = vmul.f32 %v4017, %v4017
        %v6982 = vmul.f32 %v4644, %v4644
        %v6983 = vmul.f32 %v5271, %v5271
        %v6984 = vmul.f32 %v5898, %v5898
        %v6985 = vmul.f32 %v1512, %v1512
        %v6986 = vmul.f32 %v2139, %v2139
        %v6987 = vmul.f32 %v2766, %v2766
        %v6988 = vmul.f32 %v3393, %v3393
        %v6989 = vmul.f32 %v4020, %v4020
        %v6990 = vmul.f32 %v4647, %v4647
        %v6991 = vmul.f32 %v5274, %v5274
        %v6992 = vmul.f32 %v5901, %v5901
        %v6993 = vmul.f32 %v1515, %v1515
        %v6994 = vmul.f32 %v2142, %v2142
        %v6995 = vmul.f32 %v2769, %v2769
        %v6996 = vmul.f32 %v3396, %v3396
        %v6997 = vmul.f32 %v4023, %v4023
        %v6998 = vmul.f32 %v4650, %v4650
        %v6999 = vmul.f32 %v5277, %v5277
        %v7000 = vmul.f32 %v5904, %v5904
        %v7001 = vadd.f32 %v6489, %v6497
        %v7002 = vadd.f32 %v7001, %v6505
        %v7003 = vadd.f32 %v7002, %v6513
        %v7004 = vadd.f32 %v7003, %v6521
        %v7005 = vadd.f32 %v7004, %v6529
        %v7006 = vadd.f32 %v7005, %v6537
        %v7007 = vadd.f32 %v7006, %v6545
        %v7008 = vadd.f32 %v7007, %v6553
        %v7009 = vadd.f32 %v7008, %v6561
        %v7010 = vadd.f32 %v7009, %v6569
        %v7011 = vadd.f32 %v7010, %v6577
        %v7012 = vadd.f32 %v7011, %v6585
        %v7013 = vadd.f32 %v7012, %v6593
        %v7014 = vadd.f32 %v7013, %v6601
        %v7015 = vadd.f32 %v7014, %v6609
        %v7016 = vadd.f32 %v7015, %v6617
        %v7017 = vadd.f32 %v7016, %v6625
        %v7018 = vadd.f32 %v7017, %v6633
        %v7019 = vadd.f32 %v7018, %v6641
        %v7020 = vadd.f32 %v7019, %v6649
        %v7021 = vadd.f32 %v7020, %v6657
        %v7022 = vadd.f32 %v7021, %v6665
        %v7023 = vadd.f32 %v7022, %v6673
        %v7024 = vadd.f32 %v7023, %v6681
        %v7025 = vadd.f32 %v7024, %v6689
        %v7026 = vadd.f32 %v7025, %v6697
        %v7027 = vadd.f32 %v7026, %v6705
        %v7028 = vadd.f32 %v7027, %v6713
        %v7029 = vadd.f32 %v7028, %v6721
        %v7030 = vadd.f32 %v7029, %v6729
        %v7031 = vadd.f32 %v7030, %v6737
        %v7032 = vadd.f32 %v7031, %v6745
        %v7033 = vadd.f32 %v7032, %v6753
        %v7034 = vadd.f32 %v7033, %v6761
        %v7035 = vadd.f32 %v7034, %v6769
        %v7036 = vadd.f32 %v7035, %v6777
        %v7037 = vadd.f32 %v7036, %v6785
        %v7038 = vadd.f32 %v7037, %v6793
        %v7039 = vadd.f32 %v7038, %v6801
        %v7040 = vadd.f32 %v7039, %v6809
        %v7041 = vadd.f32 %v7040, %v6817
        %v7042 = vadd.f32 %v7041, %v6825
        %v7043 = vadd.f32 %v7042, %v6833
        %v7044 = vadd.f32 %v7043, %v6841
        %v7045 = vadd.f32 %v7044, %v6849
        %v7046 = vadd.f32 %v7045, %v6857
        %v7047 = vadd.f32 %v7046, %v6865
        %v7048 = vadd.f32 %v7047, %v6873
        %v7049 = vadd.f32 %v7048, %v6881
        %v7050 = vadd.f32 %v7049, %v6889
        %v7051 = vadd.f32 %v7050, %v6897
        %v7052 = vadd.f32 %v7051, %v6905
        %v7053 = vadd.f32 %v7052, %v6913
        %v7054 = vadd.f32 %v7053, %v6921
        %v7055 = vadd.f32 %v7054, %v6929
        %v7056 = vadd.f32 %v7055, %v6937
        %v7057 = vadd.f32 %v7056, %v6945
        %v7058 = vadd.f32 %v7057, %v6953
        %v7059 = vadd.f32 %v7058, %v6961
        %v7060 = vadd.f32 %v7059, %v6969
        %v7061 = vadd.f32 %v7060, %v6977
        %v7062 = vadd.f32 %v7061, %v6985
        %v7063 = vadd.f32 %v7062, %v6993
        %v7064 = vrot.slane %v7063, 4
        %v7065 = vadd.f32 %v7063, %v7064
        %v7066 = vrot.slane %v7065, 2
        %v7067 = vadd.f32 %v7065, %v7066
        %v7068 = vrot.slane %v7067, 1
        %v7069 = vadd.f32 %v7067, %v7068
        %v7070 = vadd.f32 %v6490, %v6498
        %v7071 = vadd.f32 %v7070, %v6506
        %v7072 = vadd.f32 %v7071, %v6514
        %v7073 = vadd.f32 %v7072, %v6522
        %v7074 = vadd.f32 %v7073, %v6530
        %v7075 = vadd.f32 %v7074, %v6538
        %v7076 = vadd.f32 %v7075, %v6546
        %v7077 = vadd.f32 %v7076, %v6554
        %v7078 = vadd.f32 %v7077, %v6562
        %v7079 = vadd.f32 %v7078, %v6570
        %v7080 = vadd.f32 %v7079, %v6578
        %v7081 = vadd.f32 %v7080, %v6586
        %v7082 = vadd.f32 %v7081, %v6594
        %v7083 = vadd.f32 %v7082, %v6602
        %v7084 = vadd.f32 %v7083, %v6610
        %v7085 = vadd.f32 %v7084, %v6618
        %v7086 = vadd.f32 %v7085, %v6626
        %v7087 = vadd.f32 %v7086, %v6634
        %v7088 = vadd.f32 %v7087, %v6642
        %v7089 = vadd.f32 %v7088, %v6650
        %v7090 = vadd.f32 %v7089, %v6658
        %v7091 = vadd.f32 %v7090, %v6666
        %v7092 = vadd.f32 %v7091, %v6674
        %v7093 = vadd.f32 %v7092, %v6682
        %v7094 = vadd.f32 %v7093, %v6690
        %v7095 = vadd.f32 %v7094, %v6698
        %v7096 = vadd.f32 %v7095, %v6706
        %v7097 = vadd.f32 %v7096, %v6714
        %v7098 = vadd.f32 %v7097, %v6722
        %v7099 = vadd.f32 %v7098, %v6730
        %v7100 = vadd.f32 %v7099, %v6738
        %v7101 = vadd.f32 %v7100, %v6746
        %v7102 = vadd.f32 %v7101, %v6754
        %v7103 = vadd.f32 %v7102, %v6762
        %v7104 = vadd.f32 %v7103, %v6770
        %v7105 = vadd.f32 %v7104, %v6778
        %v7106 = vadd.f32 %v7105, %v6786
        %v7107 = vadd.f32 %v7106, %v6794
        %v7108 = vadd.f32 %v7107, %v6802
        %v7109 = vadd.f32 %v7108, %v6810
        %v7110 = vadd.f32 %v7109, %v6818
        %v7111 = vadd.f32 %v7110, %v6826
        %v7112 = vadd.f32 %v7111, %v6834
        %v7113 = vadd.f32 %v7112, %v6842
        %v7114 = vadd.f32 %v7113, %v6850
        %v7115 = vadd.f32 %v7114, %v6858
        %v7116 = vadd.f32 %v7115, %v6866
        %v7117 = vadd.f32 %v7116, %v6874
        %v7118 = vadd.f32 %v7117, %v6882
        %v7119 = vadd.f32 %v7118, %v6890
        %v7120 = vadd.f32 %v7119, %v6898
        %v7121 = vadd.f32 %v7120, %v6906
        %v7122 = vadd.f32 %v7121, %v6914
        %v7123 = vadd.f32 %v7122, %v6922
        %v7124 = vadd.f32 %v7123, %v6930
        %v7125 = vadd.f32 %v7124, %v6938
        %v7126 = vadd.f32 %v7125, %v6946
        %v7127 = vadd.f32 %v7126, %v6954
        %v7128 = vadd.f32 %v7127, %v6962
        %v7129 = vadd.f32 %v7128, %v6970
        %v7130 = vadd.f32 %v7129, %v6978
        %v7131 = vadd.f32 %v7130, %v6986
        %v7132 = vadd.f32 %v7131, %v6994
        %v7133 = vrot.slane %v7132, 4
        %v7134 = vadd.f32 %v7132, %v7133
        %v7135 = vrot.slane %v7134, 2
        %v7136 = vadd.f32 %v7134, %v7135
        %v7137 = vrot.slane %v7136, 1
        %v7138 = vadd.f32 %v7136, %v7137
        %v7139 = vadd.f32 %v6491, %v6499
        %v7140 = vadd.f32 %v7139, %v6507
        %v7141 = vadd.f32 %v7140, %v6515
        %v7142 = vadd.f32 %v7141, %v6523
        %v7143 = vadd.f32 %v7142, %v6531
        %v7144 = vadd.f32 %v7143, %v6539
        %v7145 = vadd.f32 %v7144, %v6547
        %v7146 = vadd.f32 %v7145, %v6555
        %v7147 = vadd.f32 %v7146, %v6563
        %v7148 = vadd.f32 %v7147, %v6571
        %v7149 = vadd.f32 %v7148, %v6579
        %v7150 = vadd.f32 %v7149, %v6587
        %v7151 = vadd.f32 %v7150, %v6595
        %v7152 = vadd.f32 %v7151, %v6603
        %v7153 = vadd.f32 %v7152, %v6611
        %v7154 = vadd.f32 %v7153, %v6619
        %v7155 = vadd.f32 %v7154, %v6627
        %v7156 = vadd.f32 %v7155, %v6635
        %v7157 = vadd.f32 %v7156, %v6643
        %v7158 = vadd.f32 %v7157, %v6651
        %v7159 = vadd.f32 %v7158, %v6659
        %v7160 = vadd.f32 %v7159, %v6667
        %v7161 = vadd.f32 %v7160, %v6675
        %v7162 = vadd.f32 %v7161, %v6683
        %v7163 = vadd.f32 %v7162, %v6691
        %v7164 = vadd.f32 %v7163, %v6699
        %v7165 = vadd.f32 %v7164, %v6707
        %v7166 = vadd.f32 %v7165, %v6715
        %v7167 = vadd.f32 %v7166, %v6723
        %v7168 = vadd.f32 %v7167, %v6731
        %v7169 = vadd.f32 %v7168, %v6739
        %v7170 = vadd.f32 %v7169, %v6747
        %v7171 = vadd.f32 %v7170, %v6755
        %v7172 = vadd.f32 %v7171, %v6763
        %v7173 = vadd.f32 %v7172, %v6771
        %v7174 = vadd.f32 %v7173, %v6779
        %v7175 = vadd.f32 %v7174, %v6787
        %v7176 = vadd.f32 %v7175, %v6795
        %v7177 = vadd.f32 %v7176, %v6803
        %v7178 = vadd.f32 %v7177, %v6811
        %v7179 = vadd.f32 %v7178, %v6819
        %v7180 = vadd.f32 %v7179, %v6827
        %v7181 = vadd.f32 %v7180, %v6835
        %v7182 = vadd.f32 %v7181, %v6843
        %v7183 = vadd.f32 %v7182, %v6851
        %v7184 = vadd.f32 %v7183, %v6859
        %v7185 = vadd.f32 %v7184, %v6867
        %v7186 = vadd.f32 %v7185, %v6875
        %v7187 = vadd.f32 %v7186, %v6883
        %v7188 = vadd.f32 %v7187, %v6891
        %v7189 = vadd.f32 %v7188, %v6899
        %v7190 = vadd.f32 %v7189, %v6907
        %v7191 = vadd.f32 %v7190, %v6915
        %v7192 = vadd.f32 %v7191, %v6923
        %v7193 = vadd.f32 %v7192, %v6931
        %v7194 = vadd.f32 %v7193, %v6939
        %v7195 = vadd.f32 %v7194, %v6947
        %v7196 = vadd.f32 %v7195, %v6955
        %v7197 = vadd.f32 %v7196, %v6963
        %v7198 = vadd.f32 %v7197, %v6971
        %v7199 = vadd.f32 %v7198, %v6979
        %v7200 = vadd.f32 %v7199, %v6987
        %v7201 = vadd.f32 %v7200, %v6995
        %v7202 = vrot.slane %v7201, 4
        %v7203 = vadd.f32 %v7201, %v7202
        %v7204 = vrot.slane %v7203, 2
        %v7205 = vadd.f32 %v7203, %v7204
        %v7206 = vrot.slane %v7205, 1
        %v7207 = vadd.f32 %v7205, %v7206
        %v7208 = vadd.f32 %v6492, %v6500
        %v7209 = vadd.f32 %v7208, %v6508
        %v7210 = vadd.f32 %v7209, %v6516
        %v7211 = vadd.f32 %v7210, %v6524
        %v7212 = vadd.f32 %v7211, %v6532
        %v7213 = vadd.f32 %v7212, %v6540
        %v7214 = vadd.f32 %v7213, %v6548
        %v7215 = vadd.f32 %v7214, %v6556
        %v7216 = vadd.f32 %v7215, %v6564
        %v7217 = vadd.f32 %v7216, %v6572
        %v7218 = vadd.f32 %v7217, %v6580
        %v7219 = vadd.f32 %v7218, %v6588
        %v7220 = vadd.f32 %v7219, %v6596
        %v7221 = vadd.f32 %v7220, %v6604
        %v7222 = vadd.f32 %v7221, %v6612
        %v7223 = vadd.f32 %v7222, %v6620
        %v7224 = vadd.f32 %v7223, %v6628
        %v7225 = vadd.f32 %v7224, %v6636
        %v7226 = vadd.f32 %v7225, %v6644
        %v7227 = vadd.f32 %v7226, %v6652
        %v7228 = vadd.f32 %v7227, %v6660
        %v7229 = vadd.f32 %v7228, %v6668
        %v7230 = vadd.f32 %v7229, %v6676
        %v7231 = vadd.f32 %v7230, %v6684
        %v7232 = vadd.f32 %v7231, %v6692
        %v7233 = vadd.f32 %v7232, %v6700
        %v7234 = vadd.f32 %v7233, %v6708
        %v7235 = vadd.f32 %v7234, %v6716
        %v7236 = vadd.f32 %v7235, %v6724
        %v7237 = vadd.f32 %v7236, %v6732
        %v7238 = vadd.f32 %v7237, %v6740
        %v7239 = vadd.f32 %v7238, %v6748
        %v7240 = vadd.f32 %v7239, %v6756
        %v7241 = vadd.f32 %v7240, %v6764
        %v7242 = vadd.f32 %v7241, %v6772
        %v7243 = vadd.f32 %v7242, %v6780
        %v7244 = vadd.f32 %v7243, %v6788
        %v7245 = vadd.f32 %v7244, %v6796
        %v7246 = vadd.f32 %v7245, %v6804
        %v7247 = vadd.f32 %v7246, %v6812
        %v7248 = vadd.f32 %v7247, %v6820
        %v7249 = vadd.f32 %v7248, %v6828
        %v7250 = vadd.f32 %v7249, %v6836
        %v7251 = vadd.f32 %v7250, %v6844
        %v7252 = vadd.f32 %v7251, %v6852
        %v7253 = vadd.f32 %v7252, %v6860
        %v7254 = vadd.f32 %v7253, %v6868
        %v7255 = vadd.f32 %v7254, %v6876
        %v7256 = vadd.f32 %v7255, %v6884
        %v7257 = vadd.f32 %v7256, %v6892
        %v7258 = vadd.f32 %v7257, %v6900
        %v7259 = vadd.f32 %v7258, %v6908
        %v7260 = vadd.f32 %v7259, %v6916
        %v7261 = vadd.f32 %v7260, %v6924
        %v7262 = vadd.f32 %v7261, %v6932
        %v7263 = vadd.f32 %v7262, %v6940
        %v7264 = vadd.f32 %v7263, %v6948
        %v7265 = vadd.f32 %v7264, %v6956
        %v7266 = vadd.f32 %v7265, %v6964
        %v7267 = vadd.f32 %v7266, %v6972
        %v7268 = vadd.f32 %v7267, %v6980
        %v7269 = vadd.f32 %v7268, %v6988
        %v7270 = vadd.f32 %v7269, %v6996
        %v7271 = vrot.slane %v7270, 4
        %v7272 = vadd.f32 %v7270, %v7271
        %v7273 = vrot.slane %v7272, 2
        %v7274 = vadd.f32 %v7272, %v7273
        %v7275 = vrot.slane %v7274, 1
        %v7276 = vadd.f32 %v7274, %v7275
        %v7277 = vadd.f32 %v6493, %v6501
        %v7278 = vadd.f32 %v7277, %v6509
        %v7279 = vadd.f32 %v7278, %v6517
        %v7280 = vadd.f32 %v7279, %v6525
        %v7281 = vadd.f32 %v7280, %v6533
        %v7282 = vadd.f32 %v7281, %v6541
        %v7283 = vadd.f32 %v7282, %v6549
        %v7284 = vadd.f32 %v7283, %v6557
        %v7285 = vadd.f32 %v7284, %v6565
        %v7286 = vadd.f32 %v7285, %v6573
        %v7287 = vadd.f32 %v7286, %v6581
        %v7288 = vadd.f32 %v7287, %v6589
        %v7289 = vadd.f32 %v7288, %v6597
        %v7290 = vadd.f32 %v7289, %v6605
        %v7291 = vadd.f32 %v7290, %v6613
        %v7292 = vadd.f32 %v7291, %v6621
        %v7293 = vadd.f32 %v7292, %v6629
        %v7294 = vadd.f32 %v7293, %v6637
        %v7295 = vadd.f32 %v7294, %v6645
        %v7296 = vadd.f32 %v7295, %v6653
        %v7297 = vadd.f32 %v7296, %v6661
        %v7298 = vadd.f32 %v7297, %v6669
        %v7299 = vadd.f32 %v7298, %v6677
        %v7300 = vadd.f32 %v7299, %v6685
        %v7301 = vadd.f32 %v7300, %v6693
        %v7302 = vadd.f32 %v7301, %v6701
        %v7303 = vadd.f32 %v7302, %v6709
        %v7304 = vadd.f32 %v7303, %v6717
        %v7305 = vadd.f32 %v7304, %v6725
        %v7306 = vadd.f32 %v7305, %v6733
        %v7307 = vadd.f32 %v7306, %v6741
        %v7308 = vadd.f32 %v7307, %v6749
        %v7309 = vadd.f32 %v7308, %v6757
        %v7310 = vadd.f32 %v7309, %v6765
        %v7311 = vadd.f32 %v7310, %v6773
        %v7312 = vadd.f32 %v7311, %v6781
        %v7313 = vadd.f32 %v7312, %v6789
        %v7314 = vadd.f32 %v7313, %v6797
        %v7315 = vadd.f32 %v7314, %v6805
        %v7316 = vadd.f32 %v7315, %v6813
        %v7317 = vadd.f32 %v7316, %v6821
        %v7318 = vadd.f32 %v7317, %v6829
        %v7319 = vadd.f32 %v7318, %v6837
        %v7320 = vadd.f32 %v7319, %v6845
        %v7321 = vadd.f32 %v7320, %v6853
        %v7322 = vadd.f32 %v7321, %v6861
        %v7323 = vadd.f32 %v7322, %v6869
        %v7324 = vadd.f32 %v7323, %v6877
        %v7325 = vadd.f32 %v7324, %v6885
        %v7326 = vadd.f32 %v7325, %v6893
        %v7327 = vadd.f32 %v7326, %v6901
        %v7328 = vadd.f32 %v7327, %v6909
        %v7329 = vadd.f32 %v7328, %v6917
        %v7330 = vadd.f32 %v7329, %v6925
        %v7331 = vadd.f32 %v7330, %v6933
        %v7332 = vadd.f32 %v7331, %v6941
        %v7333 = vadd.f32 %v7332, %v6949
        %v7334 = vadd.f32 %v7333, %v6957
        %v7335 = vadd.f32 %v7334, %v6965
        %v7336 = vadd.f32 %v7335, %v6973
        %v7337 = vadd.f32 %v7336, %v6981
        %v7338 = vadd.f32 %v7337, %v6989
        %v7339 = vadd.f32 %v7338, %v6997
        %v7340 = vrot.slane %v7339, 4
        %v7341 = vadd.f32 %v7339, %v7340
        %v7342 = vrot.slane %v7341, 2
        %v7343 = vadd.f32 %v7341, %v7342
        %v7344 = vrot.slane %v7343, 1
        %v7345 = vadd.f32 %v7343, %v7344
        %v7346 = vadd.f32 %v6494, %v6502
        %v7347 = vadd.f32 %v7346, %v6510
        %v7348 = vadd.f32 %v7347, %v6518
        %v7349 = vadd.f32 %v7348, %v6526
        %v7350 = vadd.f32 %v7349, %v6534
        %v7351 = vadd.f32 %v7350, %v6542
        %v7352 = vadd.f32 %v7351, %v6550
        %v7353 = vadd.f32 %v7352, %v6558
        %v7354 = vadd.f32 %v7353, %v6566
        %v7355 = vadd.f32 %v7354, %v6574
        %v7356 = vadd.f32 %v7355, %v6582
        %v7357 = vadd.f32 %v7356, %v6590
        %v7358 = vadd.f32 %v7357, %v6598
        %v7359 = vadd.f32 %v7358, %v6606
        %v7360 = vadd.f32 %v7359, %v6614
        %v7361 = vadd.f32 %v7360, %v6622
        %v7362 = vadd.f32 %v7361, %v6630
        %v7363 = vadd.f32 %v7362, %v6638
        %v7364 = vadd.f32 %v7363, %v6646
        %v7365 = vadd.f32 %v7364, %v6654
        %v7366 = vadd.f32 %v7365, %v6662
        %v7367 = vadd.f32 %v7366, %v6670
        %v7368 = vadd.f32 %v7367, %v6678
        %v7369 = vadd.f32 %v7368, %v6686
        %v7370 = vadd.f32 %v7369, %v6694
        %v7371 = vadd.f32 %v7370, %v6702
        %v7372 = vadd.f32 %v7371, %v6710
        %v7373 = vadd.f32 %v7372, %v6718
        %v7374 = vadd.f32 %v7373, %v6726
        %v7375 = vadd.f32 %v7374, %v6734
        %v7376 = vadd.f32 %v7375, %v6742
        %v7377 = vadd.f32 %v7376, %v6750
        %v7378 = vadd.f32 %v7377, %v6758
        %v7379 = vadd.f32 %v7378, %v6766
        %v7380 = vadd.f32 %v7379, %v6774
        %v7381 = vadd.f32 %v7380, %v6782
        %v7382 = vadd.f32 %v7381, %v6790
        %v7383 = vadd.f32 %v7382, %v6798
        %v7384 = vadd.f32 %v7383, %v6806
        %v7385 = vadd.f32 %v7384, %v6814
        %v7386 = vadd.f32 %v7385, %v6822
        %v7387 = vadd.f32 %v7386, %v6830
        %v7388 = vadd.f32 %v7387, %v6838
        %v7389 = vadd.f32 %v7388, %v6846
        %v7390 = vadd.f32 %v7389, %v6854
        %v7391 = vadd.f32 %v7390, %v6862
        %v7392 = vadd.f32 %v7391, %v6870
        %v7393 = vadd.f32 %v7392, %v6878
        %v7394 = vadd.f32 %v7393, %v6886
        %v7395 = vadd.f32 %v7394, %v6894
        %v7396 = vadd.f32 %v7395, %v6902
        %v7397 = vadd.f32 %v7396, %v6910
        %v7398 = vadd.f32 %v7397, %v6918
        %v7399 = vadd.f32 %v7398, %v6926
        %v7400 = vadd.f32 %v7399, %v6934
        %v7401 = vadd.f32 %v7400, %v6942
        %v7402 = vadd.f32 %v7401, %v6950
        %v7403 = vadd.f32 %v7402, %v6958
        %v7404 = vadd.f32 %v7403, %v6966
        %v7405 = vadd.f32 %v7404, %v6974
        %v7406 = vadd.f32 %v7405, %v6982
        %v7407 = vadd.f32 %v7406, %v6990
        %v7408 = vadd.f32 %v7407, %v6998
        %v7409 = vrot.slane %v7408, 4
        %v7410 = vadd.f32 %v7408, %v7409
        %v7411 = vrot.slane %v7410, 2
        %v7412 = vadd.f32 %v7410, %v7411
        %v7413 = vrot.slane %v7412, 1
        %v7414 = vadd.f32 %v7412, %v7413
        %v7415 = vadd.f32 %v6495, %v6503
        %v7416 = vadd.f32 %v7415, %v6511
        %v7417 = vadd.f32 %v7416, %v6519
        %v7418 = vadd.f32 %v7417, %v6527
        %v7419 = vadd.f32 %v7418, %v6535
        %v7420 = vadd.f32 %v7419, %v6543
        %v7421 = vadd.f32 %v7420, %v6551
        %v7422 = vadd.f32 %v7421, %v6559
        %v7423 = vadd.f32 %v7422, %v6567
        %v7424 = vadd.f32 %v7423, %v6575
        %v7425 = vadd.f32 %v7424, %v6583
        %v7426 = vadd.f32 %v7425, %v6591
        %v7427 = vadd.f32 %v7426, %v6599
        %v7428 = vadd.f32 %v7427, %v6607
        %v7429 = vadd.f32 %v7428, %v6615
        %v7430 = vadd.f32 %v7429, %v6623
        %v7431 = vadd.f32 %v7430, %v6631
        %v7432 = vadd.f32 %v7431, %v6639
        %v7433 = vadd.f32 %v7432, %v6647
        %v7434 = vadd.f32 %v7433, %v6655
        %v7435 = vadd.f32 %v7434, %v6663
        %v7436 = vadd.f32 %v7435, %v6671
        %v7437 = vadd.f32 %v7436, %v6679
        %v7438 = vadd.f32 %v7437, %v6687
        %v7439 = vadd.f32 %v7438, %v6695
        %v7440 = vadd.f32 %v7439, %v6703
        %v7441 = vadd.f32 %v7440, %v6711
        %v7442 = vadd.f32 %v7441, %v6719
        %v7443 = vadd.f32 %v7442, %v6727
        %v7444 = vadd.f32 %v7443, %v6735
        %v7445 = vadd.f32 %v7444, %v6743
        %v7446 = vadd.f32 %v7445, %v6751
        %v7447 = vadd.f32 %v7446, %v6759
        %v7448 = vadd.f32 %v7447, %v6767
        %v7449 = vadd.f32 %v7448, %v6775
        %v7450 = vadd.f32 %v7449, %v6783
        %v7451 = vadd.f32 %v7450, %v6791
        %v7452 = vadd.f32 %v7451, %v6799
        %v7453 = vadd.f32 %v7452, %v6807
        %v7454 = vadd.f32 %v7453, %v6815
        %v7455 = vadd.f32 %v7454, %v6823
        %v7456 = vadd.f32 %v7455, %v6831
        %v7457 = vadd.f32 %v7456, %v6839
        %v7458 = vadd.f32 %v7457, %v6847
        %v7459 = vadd.f32 %v7458, %v6855
        %v7460 = vadd.f32 %v7459, %v6863
        %v7461 = vadd.f32 %v7460, %v6871
        %v7462 = vadd.f32 %v7461, %v6879
        %v7463 = vadd.f32 %v7462, %v6887
        %v7464 = vadd.f32 %v7463, %v6895
        %v7465 = vadd.f32 %v7464, %v6903
        %v7466 = vadd.f32 %v7465, %v6911
        %v7467 = vadd.f32 %v7466, %v6919
        %v7468 = vadd.f32 %v7467, %v6927
        %v7469 = vadd.f32 %v7468, %v6935
        %v7470 = vadd.f32 %v7469, %v6943
        %v7471 = vadd.f32 %v7470, %v6951
        %v7472 = vadd.f32 %v7471, %v6959
        %v7473 = vadd.f32 %v7472, %v6967
        %v7474 = vadd.f32 %v7473, %v6975
        %v7475 = vadd.f32 %v7474, %v6983
        %v7476 = vadd.f32 %v7475, %v6991
        %v7477 = vadd.f32 %v7476, %v6999
        %v7478 = vrot.slane %v7477, 4
        %v7479 = vadd.f32 %v7477, %v7478
        %v7480 = vrot.slane %v7479, 2
        %v7481 = vadd.f32 %v7479, %v7480
        %v7482 = vrot.slane %v7481, 1
        %v7483 = vadd.f32 %v7481, %v7482
        %v7484 = vadd.f32 %v6496, %v6504
        %v7485 = vadd.f32 %v7484, %v6512
        %v7486 = vadd.f32 %v7485, %v6520
        %v7487 = vadd.f32 %v7486, %v6528
        %v7488 = vadd.f32 %v7487, %v6536
        %v7489 = vadd.f32 %v7488, %v6544
        %v7490 = vadd.f32 %v7489, %v6552
        %v7491 = vadd.f32 %v7490, %v6560
        %v7492 = vadd.f32 %v7491, %v6568
        %v7493 = vadd.f32 %v7492, %v6576
        %v7494 = vadd.f32 %v7493, %v6584
        %v7495 = vadd.f32 %v7494, %v6592
        %v7496 = vadd.f32 %v7495, %v6600
        %v7497 = vadd.f32 %v7496, %v6608
        %v7498 = vadd.f32 %v7497, %v6616
        %v7499 = vadd.f32 %v7498, %v6624
        %v7500 = vadd.f32 %v7499, %v6632
        %v7501 = vadd.f32 %v7500, %v6640
        %v7502 = vadd.f32 %v7501, %v6648
        %v7503 = vadd.f32 %v7502, %v6656
        %v7504 = vadd.f32 %v7503, %v6664
        %v7505 = vadd.f32 %v7504, %v6672
        %v7506 = vadd.f32 %v7505, %v6680
        %v7507 = vadd.f32 %v7506, %v6688
        %v7508 = vadd.f32 %v7507, %v6696
        %v7509 = vadd.f32 %v7508, %v6704
        %v7510 = vadd.f32 %v7509, %v6712
        %v7511 = vadd.f32 %v7510, %v6720
        %v7512 = vadd.f32 %v7511, %v6728
        %v7513 = vadd.f32 %v7512, %v6736
        %v7514 = vadd.f32 %v7513, %v6744
        %v7515 = vadd.f32 %v7514, %v6752
        %v7516 = vadd.f32 %v7515, %v6760
        %v7517 = vadd.f32 %v7516, %v6768
        %v7518 = vadd.f32 %v7517, %v6776
        %v7519 = vadd.f32 %v7518, %v6784
        %v7520 = vadd.f32 %v7519, %v6792
        %v7521 = vadd.f32 %v7520, %v6800
        %v7522 = vadd.f32 %v7521, %v6808
        %v7523 = vadd.f32 %v7522, %v6816
        %v7524 = vadd.f32 %v7523, %v6824
        %v7525 = vadd.f32 %v7524, %v6832
        %v7526 = vadd.f32 %v7525, %v6840
        %v7527 = vadd.f32 %v7526, %v6848
        %v7528 = vadd.f32 %v7527, %v6856
        %v7529 = vadd.f32 %v7528, %v6864
        %v7530 = vadd.f32 %v7529, %v6872
        %v7531 = vadd.f32 %v7530, %v6880
        %v7532 = vadd.f32 %v7531, %v6888
        %v7533 = vadd.f32 %v7532, %v6896
        %v7534 = vadd.f32 %v7533, %v6904
        %v7535 = vadd.f32 %v7534, %v6912
        %v7536 = vadd.f32 %v7535, %v6920
        %v7537 = vadd.f32 %v7536, %v6928
        %v7538 = vadd.f32 %v7537, %v6936
        %v7539 = vadd.f32 %v7538, %v6944
        %v7540 = vadd.f32 %v7539, %v6952
        %v7541 = vadd.f32 %v7540, %v6960
        %v7542 = vadd.f32 %v7541, %v6968
        %v7543 = vadd.f32 %v7542, %v6976
        %v7544 = vadd.f32 %v7543, %v6984
        %v7545 = vadd.f32 %v7544, %v6992
        %v7546 = vadd.f32 %v7545, %v7000
        %v7547 = vrot.slane %v7546, 4
        %v7548 = vadd.f32 %v7546, %v7547
        %v7549 = vrot.slane %v7548, 2
        %v7550 = vadd.f32 %v7548, %v7549
        %v7551 = vrot.slane %v7550, 1
        %v7552 = vadd.f32 %v7550, %v7551
        %v7561 = vrot.slane %v7138, 7
        %v7562 = vrot.slane %v7207, 6
        %v7563 = vrot.slane %v7276, 5
        %v7564 = vrot.slane %v7345, 4
        %v7565 = vrot.slane %v7414, 3
        %v7566 = vrot.slane %v7483, 2
        %v7567 = vrot.slane %v7552, 1
        %v7568 = vsel %vm6473, %v7069, %v7561
        %v7569 = vsel %vm6475, %v7562, %v7563
        %v7570 = vsel %vm6477, %v7568, %v7569
        %v7571 = vsel %vm6479, %v7564, %v7565
        %v7572 = vsel %vm6481, %v7566, %v7567
        %v7573 = vsel %vm6483, %v7571, %v7572
        %v7574 = vsel %vm6485, %v7570, %v7573
        %7576 = vst [vmem:[%s177] sm:$0xff] %v7574
        %s7577 = sand.u32 %s76, 1
        %s7578 = scalar_lea.sflag [#allocation3], %s7577
        %s7579 = sand.u32 %s76, 1
        %s7580 = smul.addr %s7579, 8
        %s7581 = scalar_lea.vmem [#allocation2], %s7580
        %s7582 = sand.u32 %s102, 1
        %s7583 = scalar_lea.sflag [#allocation5], %s7582
        %s7584 = sand.u32 %s102, 1
        %s7585 = smul.addr %s7584, 8
        %s7586 = scalar_lea.vmem [#allocation4], %s7585
        // Predicated region
        $region29: #{tpu_custom_call.1} parent=27 // pred_check
          %p7587 = pneg %p86
        $region30: #{tpu_custom_call.1} parent=27 // pred_check_branch
          %7589 = sbr.rel (%p7587) target = $region32
        $region31: #{tpu_custom_call.1} parent=27 // pred_region
          %7591 = vsyncadd %s7578, 0
          %s7592 = smul.addr %s21, 8
          %s7593 = scalar_lea.hbm %s2, %s7592
          %s7595 = sshll.u32 %s7581, 4
          %s7596 = int_to_ptr.vmem [resolvable:$true] %s7595
          %s7597 = sshll.u32 %s7593, 4
          %s7598 = int_to_ptr.hbm [resolvable:$true] %s7597
          %7600 = dma.vmem_to_hbm [thread:$0]  %s7596, 128, %s7598, %s7578
        $region32: #{tpu_custom_call.1} parent=27 // pred_fallthru
          _
        // Predicated region
        $region33: #{tpu_custom_call.1} parent=27 // pred_check
          %p7601 = pneg %p112
        $region34: #{tpu_custom_call.1} parent=27 // pred_check_branch
          %7603 = sbr.rel (%p7601) target = $region36
        $region35: #{tpu_custom_call.1} parent=27 // pred_region
          %7605 = vsyncadd %s7583, 0
          %s7606 = smul.addr %s21, 8
          %s7607 = scalar_lea.hbm %s3, %s7606
          %s7609 = sshll.u32 %s7586, 4
          %s7610 = int_to_ptr.vmem [resolvable:$true] %s7609
          %s7611 = sshll.u32 %s7607, 4
          %s7612 = int_to_ptr.hbm [resolvable:$true] %s7611
          %7614 = dma.vmem_to_hbm [thread:$0]  %s7610, 128, %s7612, %s7583
        $region36: #{tpu_custom_call.1} parent=27 // pred_fallthru
          _
      $region28: #{tpu_custom_call.1} parent=5 // pred_fallthru
        _
      %p7615 = scmp.le.s32.totalorder 2, %s16
      // Predicated region
      $region37: #{tpu_custom_call.1} parent=5 // pred_check
        %p7616 = pneg %p7615
      $region38: #{tpu_custom_call.1} parent=5 // pred_check_branch
        %7618 = sbr.rel (%p7616) target = $region40
      $region39: #{tpu_custom_call.1} parent=5 // pred_region
        %s7619 = ssub.s32 %s16, 2
        // Predicated region
        $region41: #{tpu_custom_call.1} parent=39 // pred_check
          %p7620 = pneg %p92
        $region42: #{tpu_custom_call.1} parent=39 // pred_check_branch
          %7622 = sbr.rel (%p7620) target = $region44
        $region43: #{tpu_custom_call.1} parent=39 // pred_region
          %s7623 = sand.u32 %s77, 1
          %s7624 = scalar_lea.sflag [#allocation3], %s7623
          %s7625 = sand.u32 %s77, 1
          %s7626 = smul.addr %s7625, 8
          %s7627 = scalar_lea.vmem [#allocation2], %s7626
          %7629 = dma.done %s7624, 128
        $region44: #{tpu_custom_call.1} parent=39 // pred_fallthru
          _
        // Predicated region
        $region45: #{tpu_custom_call.1} parent=39 // pred_check
          %p7630 = pneg %p118
        $region46: #{tpu_custom_call.1} parent=39 // pred_check_branch
          %7632 = sbr.rel (%p7630) target = $region48
        $region47: #{tpu_custom_call.1} parent=39 // pred_region
          %s7633 = sand.u32 %s103, 1
          %s7634 = scalar_lea.sflag [#allocation5], %s7633
          %s7635 = sand.u32 %s103, 1
          %s7636 = smul.addr %s7635, 8
          %s7637 = scalar_lea.vmem [#allocation4], %s7636
          %7639 = dma.done %s7634, 128
        $region48: #{tpu_custom_call.1} parent=39 // pred_fallthru
          _
      $region40: #{tpu_custom_call.1} parent=5 // pred_fallthru
        _
    $region6: #{tpu_custom_call.1} parent=1 // loop_footer
      %s20 = sadd.s32 1, %s16
    $region7: #{tpu_custom_call.1} parent=1 // loop_footer_branch
      %15 = sbr.rel target = $region3
    $region8: #{tpu_custom_call.1} parent=1 // loop_exit
      _
    %7640 = vsyncpa [#allocation3], 1
    %s7641 = scalar_lea.sflag [#allocation3], 1
    %7642 = vsyncpa %s7641, 1
    %7643 = vsyncpa [#allocation5], 1
    %s7644 = scalar_lea.sflag [#allocation5], 1
    %7645 = vsyncpa %s7644, 1

</llo_original>
